<compile_context>
chip_gen: v7x
topology: tpu7x:2x2x1
jax: 0.10.0
libtpu: 0.0.40
codegen_flags: <defaults>
</compile_context>

<pallas_src>
import functools
import math

import jax
import jax.numpy as jnp
from jax.experimental import pallas as pl
from jax.experimental.pallas import tpu as pltpu

_VMEM_LIMIT = 32 << 20  # safe on v5e/v6e (128 MiB) and v7x (64 MiB physical)


# ----------------------------------------------------------------------------
# Pallas kernel: conv-as-GEMM, lane-dense output
#   out[Cout, M] = relu?(W[Cout, K] @ patches[K, M] + b[Cout, 1])
# ----------------------------------------------------------------------------
def _conv_gemm_kernel(w_ref, x_ref, b_ref, o_ref, *, apply_relu: bool):
    acc = jnp.dot(w_ref[...], x_ref[...], preferred_element_type=jnp.float32)
    acc = acc + b_ref[...]                     # (Cout, 1) broadcasts over lanes
    if apply_relu:
        acc = jnp.maximum(acc, 0.0)
    o_ref[...] = acc.astype(o_ref.dtype)


def conv_gemm_pallas(wm, patches, b, *, relu: bool):
    """wm: (Cout, K), patches: (K, M), b: (Cout,) -> (Cout, M). Single grid step."""
    cout, k = wm.shape
    m = patches.shape[1]
    return pl.pallas_call(
        functools.partial(_conv_gemm_kernel, apply_relu=relu),
        out_shape=jax.ShapeDtypeStruct((cout, m), jnp.float32),
        grid_spec=pltpu.PrefetchScalarGridSpec(
            num_scalar_prefetch=0,
            grid=(1,),
            in_specs=[
                pl.BlockSpec((cout, k), lambda i: (0, 0)),   # whole weight
                pl.BlockSpec((k, m), lambda i: (0, 0)),      # whole patch matrix
                pl.BlockSpec((cout, 1), lambda i: (0, 0)),   # bias column
            ],
            out_specs=pl.BlockSpec((cout, m), lambda i: (0, 0)),
        ),
        compiler_params=pltpu.CompilerParams(
            dimension_semantics=("arbitrary",),
            vmem_limit_bytes=_VMEM_LIMIT,
        ),
    )(wm, patches, b.reshape(cout, 1))


# ----------------------------------------------------------------------------
# Pallas kernel: fused FC tail  logits = relu(x @ W1 + b1) @ W2 + b2
# (hidden (M, 512) stays in registers/VMEM, never written to HBM)
# ----------------------------------------------------------------------------
def _fc_tail_kernel(x_ref, w1_ref, b1_ref, w2_ref, b2_ref, o_ref):
    h = jnp.dot(x_ref[...], w1_ref[...], preferred_element_type=jnp.float32)
    h = jnp.maximum(h + b1_ref[...], 0.0)
    out = jnp.dot(h, w2_ref[...], preferred_element_type=jnp.float32) + b2_ref[...]
    o_ref[...] = out.astype(o_ref.dtype)


def fc_tail_pallas(x, w1, b1, w2, b2):
    """x: (M, K1), w1: (K1, N1), w2: (N1, N2) -> (M, N2). One pallas_call."""
    m, k1 = x.shape
    n1 = w1.shape[1]
    n2 = w2.shape[1]
    mp = ((m + 7) // 8) * 8                    # pad batch to sublane multiple only
    xp = jnp.pad(x, ((0, mp - m), (0, 0))) if mp != m else x

    out = pl.pallas_call(
        _fc_tail_kernel,
        out_shape=jax.ShapeDtypeStruct((mp, n2), jnp.float32),
        grid_spec=pltpu.PrefetchScalarGridSpec(
            num_scalar_prefetch=0,
            grid=(1,),
            in_specs=[
                pl.BlockSpec((mp, k1), lambda i: (0, 0)),
                pl.BlockSpec((k1, n1), lambda i: (0, 0)),
                pl.BlockSpec((1, n1), lambda i: (0, 0)),
                pl.BlockSpec((n1, n2), lambda i: (0, 0)),
                pl.BlockSpec((1, n2), lambda i: (0, 0)),
            ],
            out_specs=pl.BlockSpec((mp, n2), lambda i: (0, 0)),
        ),
        compiler_params=pltpu.CompilerParams(
            dimension_semantics=("arbitrary",),
            vmem_limit_bytes=_VMEM_LIMIT,
        ),
    )(xp, w1, b1.reshape(1, n1), w2, b2.reshape(1, n2))
    return out[:m]


# ----------------------------------------------------------------------------
# im2col on channel-major activations (single stack+reshape, no transpose)
# ----------------------------------------------------------------------------
def _im2col_cnhw(x, kh, kw, s):
    """x: (C, N, H, W) -> patches (C*kh*kw, N*Ho*Wo).

    Row order is (c, i, j), matching torch's Conv2d weight.reshape(Cout, -1);
    column order is (n, ho, wo).
    """
    c, n, h, w = x.shape
    ho = (h - kh) // s + 1
    wo = (w - kw) // s + 1
    cols = []
    for i in range(kh):
        for j in range(kw):
            cols.append(x[:, :, i::s, j::s][:, :, :ho, :wo])   # (C, N, Ho, Wo)
    p = jnp.stack(cols, axis=1)                                # (C, kh*kw, N, Ho, Wo)
    return p.reshape(c * kh * kw, n * ho * wo), ho, wo
# TODO(synk): patch extraction could be pulled into the kernel (per-tap
# accumulation over strided slices) to avoid materializing patches in HBM.


def conv2d_cnhw_pallas(x_cnhw, w, b, *, stride: int, relu: bool):
    """x_cnhw: (Cin, N, H, W), w: (Cout, Cin, kh, kw), b: (Cout,) -> (Cout, N, Ho, Wo)."""
    cout, cin, kh, kw = w.shape
    _, n, _, _ = x_cnhw.shape
    patches, ho, wo = _im2col_cnhw(x_cnhw, kh, kw, stride)
    wm = w.reshape(cout, cin * kh * kw)                 # contiguous reshape (free)
    out = conv_gemm_pallas(wm, patches, b, relu=relu)   # (Cout, N*Ho*Wo)
    return out.reshape(cout, n, ho, wo)


# ----------------------------------------------------------------------------
# Parameter init (kaiming_normal_ fan_in, zero bias) — deterministic
# FC weights are stored directly in GEMM (K, N) layout.
# ----------------------------------------------------------------------------
def _kaiming(key, shape, fan_in):
    return jax.random.normal(key, shape, jnp.float32) * math.sqrt(2.0 / fan_in)


def init_actor_params(key):
    ks = jax.random.split(key, 5)
    p = {}
    p["c1_w"] = _kaiming(ks[0], (32, 4, 8, 8), 4 * 8 * 8)
    p["c1_b"] = jnp.zeros((32,), jnp.float32)
    p["c2_w"] = _kaiming(ks[1], (64, 32, 4, 4), 32 * 4 * 4)
    p["c2_b"] = jnp.zeros((64,), jnp.float32)
    p["c3_w"] = _kaiming(ks[2], (64, 64, 3, 3), 64 * 3 * 3)
    p["c3_b"] = jnp.zeros((64,), jnp.float32)
    p["fc1_w"] = _kaiming(ks[3], (3136, 512), 3136)     # (K, N); 64*7*7 = 3136
    p["fc1_b"] = jnp.zeros((512,), jnp.float32)
    p["fc2_w"] = _kaiming(ks[4], (512, 16), 512)        # (K, N)
    p["fc2_b"] = jnp.zeros((16,), jnp.float32)
    return p


# ----------------------------------------------------------------------------
# Actor.forward
# ----------------------------------------------------------------------------
def actor_forward(x, p):
    # One-time layout change to channel-major; everything downstream stays CNHW.
    xc = jnp.transpose(x, (1, 0, 2, 3))                                 # (4, N, 84, 84)
    h = conv2d_cnhw_pallas(xc, p["c1_w"], p["c1_b"], stride=4, relu=True)
    h = conv2d_cnhw_pallas(h, p["c2_w"], p["c2_b"], stride=2, relu=True)
    # forward does F.relu(conv(x)) after Flatten; relu(flatten(.)) == flatten(relu(.))
    h = conv2d_cnhw_pallas(h, p["c3_w"], p["c3_b"], stride=1, relu=True)  # (64, N, 7, 7)
    n = x.shape[0]
    # torch.nn.Flatten on NCHW: per-batch (c, h, w) order.  25 KB transpose.
    flat = jnp.transpose(h, (1, 0, 2, 3)).reshape(n, -1)                # (N, 3136)
    return fc_tail_pallas(flat, p["fc1_w"], p["fc1_b"], p["fc2_w"], p["fc2_b"])


# pure-JAX reference for a correctness check
def actor_forward_ref(x, p):
    def conv(x, w, b, s):
        y = jax.lax.conv_general_dilated(
            x, w, (s, s), "VALID", dimension_numbers=("NCHW", "OIHW", "NCHW"))
        return y + b[None, :, None, None]
    h = jax.nn.relu(conv(x, p["c1_w"], p["c1_b"], 4))
    h = jax.nn.relu(conv(h, p["c2_w"], p["c2_b"], 2))
    h = conv(h, p["c3_w"], p["c3_b"], 1)
    h = jax.nn.relu(h.reshape(h.shape[0], -1))
    h = jax.nn.relu(h @ p["fc1_w"] + p["fc1_b"])
    return h @ p["fc2_w"] + p["fc2_b"]


if __name__ == "__main__":
    key = jax.random.PRNGKey(0)
    k_params, k_x = jax.random.split(key)
    params = init_actor_params(k_params)

    # batch=2, obs_shape=(4, 84, 84) as implied by the module; values in [0, 1)
    # (as if already scaled by /255 the way get_action would feed forward()).
    x = jax.random.uniform(k_x, (2, 4, 84, 84), jnp.float32)

    fwd = jax.jit(actor_forward)
    logits = jax.block_until_ready(fwd(x, params))
    assert logits.shape == (2, 16) and logits.dtype == jnp.float32

    ref = jax.block_until_ready(actor_forward_ref(x, params))
    assert jnp.allclose(logits, ref, rtol=1e-2, atol=1e-2), (
        f"max abs err {jnp.max(jnp.abs(logits - ref))}")

    print("KERNEL_OK")
</pallas_src>

<mosaic_0001>
module attributes {stable_mosaic.version = 11 : i64} {
  func.func @_conv_gemm_kernel(%arg0: i32, %arg1: memref<32x256xf32, #tpu.memory_space<vmem>>, %arg2: memref<256x800xf32, #tpu.memory_space<vmem>>, %arg3: memref<32x1xf32, #tpu.memory_space<vmem>>, %arg4: memref<32x800xf32, #tpu.memory_space<vmem>>) attributes {dimension_semantics = [#tpu.dimension_semantics<arbitrary>], iteration_bounds = array<i64: 1>, scalar_prefetch = 0 : i64, scratch_operands = 0 : i64, tpu.core_type = #tpu.core_type<tc>, window_params = [{pipeline_mode = #tpu.pipeline_mode<synchronous>, transform_indices = @transform_0, window_bounds = array<i64: 32, 256>}, {pipeline_mode = #tpu.pipeline_mode<synchronous>, transform_indices = @transform_1, window_bounds = array<i64: 256, 800>}, {pipeline_mode = #tpu.pipeline_mode<synchronous>, transform_indices = @transform_2, window_bounds = array<i64: 32, 1>}, {pipeline_mode = #tpu.pipeline_mode<synchronous>, transform_indices = @transform_3, window_bounds = array<i64: 32, 800>}]} {
    %c0 = arith.constant 0 : index
    %c0_0 = arith.constant 0 : index
    %0 = vector.load %arg1[%c0, %c0_0] : memref<32x256xf32, #tpu.memory_space<vmem>>, vector<32x256xf32>
    %c0_1 = arith.constant 0 : index
    %c0_2 = arith.constant 0 : index
    %1 = vector.load %arg2[%c0_1, %c0_2] : memref<256x800xf32, #tpu.memory_space<vmem>>, vector<256x800xf32>
    %cst = arith.constant dense<0.000000e+00> : vector<32x800xf32>
    %2 = tpu.matmul %0, %1, %cst {dimension_numbers = #tpu.dot_dimension_numbers<[1], [0], [0], [1], [0, 0, 1, 1], [], []>} : vector<32x256xf32>, vector<256x800xf32>, vector<32x800xf32> -> vector<32x800xf32>
    %c0_3 = arith.constant 0 : index
    %c0_4 = arith.constant 0 : index
    %3 = vector.load %arg3[%c0_3, %c0_4] : memref<32x1xf32, #tpu.memory_space<vmem>>, vector<32x1xf32>
    %4 = vector.broadcast %3 : vector<32x1xf32> to vector<32x800xf32>
    %5 = arith.addf %2, %4 : vector<32x800xf32>
    %cst_5 = arith.constant 0.000000e+00 : f32
    %6 = vector.broadcast %cst_5 : f32 to vector<32x800xf32>
    %7 = arith.maximumf %5, %6 : vector<32x800xf32>
    %c0_6 = arith.constant 0 : index
    %c0_7 = arith.constant 0 : index
    %8 = vector.load %arg4[%c0_6, %c0_7] : memref<32x800xf32, #tpu.memory_space<vmem>>, vector<32x800xf32>
    tpu.vector_store %arg4[%c0_6, %c0_7], %7 {strides = array<i32>} : memref<32x800xf32, #tpu.memory_space<vmem>>, vector<32x800xf32>,
    return
  }
  func.func @transform_0(%arg0: i32) -> (i32, i32) {
    %c0_i32 = arith.constant 0 : i32
    %c0_i32_0 = arith.constant 0 : i32
    %c0_i32_1 = arith.constant 0 : i32
    return %c0_i32, %c0_i32_0 : i32, i32
  }
  func.func @transform_1(%arg0: i32) -> (i32, i32) {
    %c0_i32 = arith.constant 0 : i32
    %c0_i32_0 = arith.constant 0 : i32
    %c0_i32_1 = arith.constant 0 : i32
    return %c0_i32, %c0_i32_0 : i32, i32
  }
  func.func @transform_2(%arg0: i32) -> (i32, i32) {
    %c0_i32 = arith.constant 0 : i32
    %c0_i32_0 = arith.constant 0 : i32
    %c0_i32_1 = arith.constant 0 : i32
    return %c0_i32, %c0_i32_0 : i32, i32
  }
  func.func @transform_3(%arg0: i32) -> (i32, i32) {
    %c0_i32 = arith.constant 0 : i32
    %c0_i32_0 = arith.constant 0 : i32
    %c0_i32_1 = arith.constant 0 : i32
    return %c0_i32, %c0_i32_0 : i32, i32
  }
}

module attributes {stable_mosaic.version = 11 : i64} {
  func.func @_conv_gemm_kernel(%arg0: i32, %arg1: memref<64x512xf32, #tpu.memory_space<vmem>>, %arg2: memref<512x162xf32, #tpu.memory_space<vmem>>, %arg3: memref<64x1xf32, #tpu.memory_space<vmem>>, %arg4: memref<64x162xf32, #tpu.memory_space<vmem>>) attributes {dimension_semantics = [#tpu.dimension_semantics<arbitrary>], iteration_bounds = array<i64: 1>, scalar_prefetch = 0 : i64, scratch_operands = 0 : i64, tpu.core_type = #tpu.core_type<tc>, window_params = [{pipeline_mode = #tpu.pipeline_mode<synchronous>, transform_indices = @transform_0, window_bounds = array<i64: 64, 512>}, {pipeline_mode = #tpu.pipeline_mode<synchronous>, transform_indices = @transform_1, window_bounds = array<i64: 512, 162>}, {pipeline_mode = #tpu.pipeline_mode<synchronous>, transform_indices = @transform_2, window_bounds = array<i64: 64, 1>}, {pipeline_mode = #tpu.pipeline_mode<synchronous>, transform_indices = @transform_3, window_bounds = array<i64: 64, 162>}]} {
    %c0 = arith.constant 0 : index
    %c0_0 = arith.constant 0 : index
    %0 = vector.load %arg1[%c0, %c0_0] : memref<64x512xf32, #tpu.memory_space<vmem>>, vector<64x512xf32>
    %c0_1 = arith.constant 0 : index
    %c0_2 = arith.constant 0 : index
    %1 = vector.load %arg2[%c0_1, %c0_2] : memref<512x162xf32, #tpu.memory_space<vmem>>, vector<512x162xf32>
    %cst = arith.constant dense<0.000000e+00> : vector<64x162xf32>
    %2 = tpu.matmul %0, %1, %cst {dimension_numbers = #tpu.dot_dimension_numbers<[1], [0], [0], [1], [0, 0, 1, 1], [], []>} : vector<64x512xf32>, vector<512x162xf32>, vector<64x162xf32> -> vector<64x162xf32>
    %c0_3 = arith.constant 0 : index
    %c0_4 = arith.constant 0 : index
    %3 = vector.load %arg3[%c0_3, %c0_4] : memref<64x1xf32, #tpu.memory_space<vmem>>, vector<64x1xf32>
    %4 = vector.broadcast %3 : vector<64x1xf32> to vector<64x162xf32>
    %5 = arith.addf %2, %4 : vector<64x162xf32>
    %cst_5 = arith.constant 0.000000e+00 : f32
    %6 = vector.broadcast %cst_5 : f32 to vector<64x162xf32>
    %7 = arith.maximumf %5, %6 : vector<64x162xf32>
    %c0_6 = arith.constant 0 : index
    %c0_7 = arith.constant 0 : index
    %8 = vector.load %arg4[%c0_6, %c0_7] : memref<64x162xf32, #tpu.memory_space<vmem>>, vector<64x162xf32>
    tpu.vector_store %arg4[%c0_6, %c0_7], %7 {strides = array<i32>} : memref<64x162xf32, #tpu.memory_space<vmem>>, vector<64x162xf32>,
    return
  }
  func.func @transform_0(%arg0: i32) -> (i32, i32) {
    %c0_i32 = arith.constant 0 : i32
    %c0_i32_0 = arith.constant 0 : i32
    %c0_i32_1 = arith.constant 0 : i32
    return %c0_i32, %c0_i32_0 : i32, i32
  }
  func.func @transform_1(%arg0: i32) -> (i32, i32) {
    %c0_i32 = arith.constant 0 : i32
    %c0_i32_0 = arith.constant 0 : i32
    %c0_i32_1 = arith.constant 0 : i32
    return %c0_i32, %c0_i32_0 : i32, i32
  }
  func.func @transform_2(%arg0: i32) -> (i32, i32) {
    %c0_i32 = arith.constant 0 : i32
    %c0_i32_0 = arith.constant 0 : i32
    %c0_i32_1 = arith.constant 0 : i32
    return %c0_i32, %c0_i32_0 : i32, i32
  }
  func.func @transform_3(%arg0: i32) -> (i32, i32) {
    %c0_i32 = arith.constant 0 : i32
    %c0_i32_0 = arith.constant 0 : i32
    %c0_i32_1 = arith.constant 0 : i32
    return %c0_i32, %c0_i32_0 : i32, i32
  }
}

module attributes {stable_mosaic.version = 11 : i64} {
  func.func @_conv_gemm_kernel(%arg0: i32, %arg1: memref<64x576xf32, #tpu.memory_space<vmem>>, %arg2: memref<576x98xf32, #tpu.memory_space<vmem>>, %arg3: memref<64x1xf32, #tpu.memory_space<vmem>>, %arg4: memref<64x98xf32, #tpu.memory_space<vmem>>) attributes {dimension_semantics = [#tpu.dimension_semantics<arbitrary>], iteration_bounds = array<i64: 1>, scalar_prefetch = 0 : i64, scratch_operands = 0 : i64, tpu.core_type = #tpu.core_type<tc>, window_params = [{pipeline_mode = #tpu.pipeline_mode<synchronous>, transform_indices = @transform_0, window_bounds = array<i64: 64, 576>}, {pipeline_mode = #tpu.pipeline_mode<synchronous>, transform_indices = @transform_1, window_bounds = array<i64: 576, 98>}, {pipeline_mode = #tpu.pipeline_mode<synchronous>, transform_indices = @transform_2, window_bounds = array<i64: 64, 1>}, {pipeline_mode = #tpu.pipeline_mode<synchronous>, transform_indices = @transform_3, window_bounds = array<i64: 64, 98>}]} {
    %c0 = arith.constant 0 : index
    %c0_0 = arith.constant 0 : index
    %0 = vector.load %arg1[%c0, %c0_0] : memref<64x576xf32, #tpu.memory_space<vmem>>, vector<64x576xf32>
    %c0_1 = arith.constant 0 : index
    %c0_2 = arith.constant 0 : index
    %1 = vector.load %arg2[%c0_1, %c0_2] : memref<576x98xf32, #tpu.memory_space<vmem>>, vector<576x98xf32>
    %cst = arith.constant dense<0.000000e+00> : vector<64x98xf32>
    %2 = tpu.matmul %0, %1, %cst {dimension_numbers = #tpu.dot_dimension_numbers<[1], [0], [0], [1], [0, 0, 1, 1], [], []>} : vector<64x576xf32>, vector<576x98xf32>, vector<64x98xf32> -> vector<64x98xf32>
    %c0_3 = arith.constant 0 : index
    %c0_4 = arith.constant 0 : index
    %3 = vector.load %arg3[%c0_3, %c0_4] : memref<64x1xf32, #tpu.memory_space<vmem>>, vector<64x1xf32>
    %4 = vector.broadcast %3 : vector<64x1xf32> to vector<64x98xf32>
    %5 = arith.addf %2, %4 : vector<64x98xf32>
    %cst_5 = arith.constant 0.000000e+00 : f32
    %6 = vector.broadcast %cst_5 : f32 to vector<64x98xf32>
    %7 = arith.maximumf %5, %6 : vector<64x98xf32>
    %c0_6 = arith.constant 0 : index
    %c0_7 = arith.constant 0 : index
    %8 = vector.load %arg4[%c0_6, %c0_7] : memref<64x98xf32, #tpu.memory_space<vmem>>, vector<64x98xf32>
    tpu.vector_store %arg4[%c0_6, %c0_7], %7 {strides = array<i32>} : memref<64x98xf32, #tpu.memory_space<vmem>>, vector<64x98xf32>,
    return
  }
  func.func @transform_0(%arg0: i32) -> (i32, i32) {
    %c0_i32 = arith.constant 0 : i32
    %c0_i32_0 = arith.constant 0 : i32
    %c0_i32_1 = arith.constant 0 : i32
    return %c0_i32, %c0_i32_0 : i32, i32
  }
  func.func @transform_1(%arg0: i32) -> (i32, i32) {
    %c0_i32 = arith.constant 0 : i32
    %c0_i32_0 = arith.constant 0 : i32
    %c0_i32_1 = arith.constant 0 : i32
    return %c0_i32, %c0_i32_0 : i32, i32
  }
  func.func @transform_2(%arg0: i32) -> (i32, i32) {
    %c0_i32 = arith.constant 0 : i32
    %c0_i32_0 = arith.constant 0 : i32
    %c0_i32_1 = arith.constant 0 : i32
    return %c0_i32, %c0_i32_0 : i32, i32
  }
  func.func @transform_3(%arg0: i32) -> (i32, i32) {
    %c0_i32 = arith.constant 0 : i32
    %c0_i32_0 = arith.constant 0 : i32
    %c0_i32_1 = arith.constant 0 : i32
    return %c0_i32, %c0_i32_0 : i32, i32
  }
}

module attributes {stable_mosaic.version = 11 : i64} {
  func.func @_fc_tail_kernel(%arg0: i32, %arg1: memref<8x3136xf32, #tpu.memory_space<vmem>>, %arg2: memref<3136x512xf32, #tpu.memory_space<vmem>>, %arg3: memref<1x512xf32, #tpu.memory_space<vmem>>, %arg4: memref<512x16xf32, #tpu.memory_space<vmem>>, %arg5: memref<1x16xf32, #tpu.memory_space<vmem>>, %arg6: memref<8x16xf32, #tpu.memory_space<vmem>>) attributes {dimension_semantics = [#tpu.dimension_semantics<arbitrary>], iteration_bounds = array<i64: 1>, scalar_prefetch = 0 : i64, scratch_operands = 0 : i64, tpu.core_type = #tpu.core_type<tc>, window_params = [{pipeline_mode = #tpu.pipeline_mode<synchronous>, transform_indices = @transform_0, window_bounds = array<i64: 8, 3136>}, {pipeline_mode = #tpu.pipeline_mode<synchronous>, transform_indices = @transform_1, window_bounds = array<i64: 3136, 512>}, {pipeline_mode = #tpu.pipeline_mode<synchronous>, transform_indices = @transform_2, window_bounds = array<i64: 1, 512>}, {pipeline_mode = #tpu.pipeline_mode<synchronous>, transform_indices = @transform_3, window_bounds = array<i64: 512, 16>}, {pipeline_mode = #tpu.pipeline_mode<synchronous>, transform_indices = @transform_4, window_bounds = array<i64: 1, 16>}, {pipeline_mode = #tpu.pipeline_mode<synchronous>, transform_indices = @transform_5, window_bounds = array<i64: 8, 16>}]} {
    %c0 = arith.constant 0 : index
    %c0_0 = arith.constant 0 : index
    %0 = vector.load %arg1[%c0, %c0_0] : memref<8x3136xf32, #tpu.memory_space<vmem>>, vector<8x3136xf32>
    %c0_1 = arith.constant 0 : index
    %c0_2 = arith.constant 0 : index
    %1 = vector.load %arg2[%c0_1, %c0_2] : memref<3136x512xf32, #tpu.memory_space<vmem>>, vector<3136x512xf32>
    %cst = arith.constant dense<0.000000e+00> : vector<8x512xf32>
    %2 = tpu.matmul %0, %1, %cst {dimension_numbers = #tpu.dot_dimension_numbers<[1], [0], [0], [1], [0, 0, 1, 1], [], []>} : vector<8x3136xf32>, vector<3136x512xf32>, vector<8x512xf32> -> vector<8x512xf32>
    %c0_3 = arith.constant 0 : index
    %c0_4 = arith.constant 0 : index
    %3 = vector.load %arg3[%c0_3, %c0_4] : memref<1x512xf32, #tpu.memory_space<vmem>>, vector<1x512xf32>
    %4 = vector.broadcast %3 : vector<1x512xf32> to vector<8x512xf32>
    %5 = arith.addf %2, %4 : vector<8x512xf32>
    %cst_5 = arith.constant 0.000000e+00 : f32
    %6 = vector.broadcast %cst_5 : f32 to vector<8x512xf32>
    %7 = arith.maximumf %5, %6 : vector<8x512xf32>
    %c0_6 = arith.constant 0 : index
    %c0_7 = arith.constant 0 : index
    %8 = vector.load %arg4[%c0_6, %c0_7] : memref<512x16xf32, #tpu.memory_space<vmem>>, vector<512x16xf32>
    %cst_8 = arith.constant dense<0.000000e+00> : vector<8x16xf32>
    %9 = tpu.matmul %7, %8, %cst_8 {dimension_numbers = #tpu.dot_dimension_numbers<[1], [0], [0], [1], [0, 0, 1, 1], [], []>} : vector<8x512xf32>, vector<512x16xf32>, vector<8x16xf32> -> vector<8x16xf32>
    %c0_9 = arith.constant 0 : index
    %c0_10 = arith.constant 0 : index
    %10 = vector.load %arg5[%c0_9, %c0_10] : memref<1x16xf32, #tpu.memory_space<vmem>>, vector<1x16xf32>
    %11 = vector.broadcast %10 : vector<1x16xf32> to vector<8x16xf32>
    %12 = arith.addf %9, %11 : vector<8x16xf32>
    %c0_11 = arith.constant 0 : index
    %c0_12 = arith.constant 0 : index
    %13 = vector.load %arg6[%c0_11, %c0_12] : memref<8x16xf32, #tpu.memory_space<vmem>>, vector<8x16xf32>
    tpu.vector_store %arg6[%c0_11, %c0_12], %12 {strides = array<i32>} : memref<8x16xf32, #tpu.memory_space<vmem>>, vector<8x16xf32>,
    return
  }
  func.func @transform_0(%arg0: i32) -> (i32, i32) {
    %c0_i32 = arith.constant 0 : i32
    %c0_i32_0 = arith.constant 0 : i32
    %c0_i32_1 = arith.constant 0 : i32
    return %c0_i32, %c0_i32_0 : i32, i32
  }
  func.func @transform_1(%arg0: i32) -> (i32, i32) {
    %c0_i32 = arith.constant 0 : i32
    %c0_i32_0 = arith.constant 0 : i32
    %c0_i32_1 = arith.constant 0 : i32
    return %c0_i32, %c0_i32_0 : i32, i32
  }
  func.func @transform_2(%arg0: i32) -> (i32, i32) {
    %c0_i32 = arith.constant 0 : i32
    %c0_i32_0 = arith.constant 0 : i32
    %c0_i32_1 = arith.constant 0 : i32
    return %c0_i32, %c0_i32_0 : i32, i32
  }
  func.func @transform_3(%arg0: i32) -> (i32, i32) {
    %c0_i32 = arith.constant 0 : i32
    %c0_i32_0 = arith.constant 0 : i32
    %c0_i32_1 = arith.constant 0 : i32
    return %c0_i32, %c0_i32_0 : i32, i32
  }
  func.func @transform_4(%arg0: i32) -> (i32, i32) {
    %c0_i32 = arith.constant 0 : i32
    %c0_i32_0 = arith.constant 0 : i32
    %c0_i32_1 = arith.constant 0 : i32
    return %c0_i32, %c0_i32_0 : i32, i32
  }
  func.func @transform_5(%arg0: i32) -> (i32, i32) {
    %c0_i32 = arith.constant 0 : i32
    %c0_i32_0 = arith.constant 0 : i32
    %c0_i32_1 = arith.constant 0 : i32
    return %c0_i32, %c0_i32_0 : i32, i32
  }
}

</mosaic_0001>

<llo_original>
// kernel: actor_forward.4
$region0: #{actor_forward.4}
  #allocation0 [shape = 'u32[]', space=smem, size = 0x4, offset = 0x4, fixed_abs, tag = 'smem constant byte address 0x4 - core index']
  #allocation1 [shape = 'u32[144,128]{1,0:T(1,128)}', space=vmem, size = 0x12000, scoped, tag = 'internal scratch']
  %s0 = inlined_call_operand.vmem [shape: f32[32,256], index: 0, kind: input, shape index: {}]
  %s1 = inlined_call_operand.vmem [shape: f32[256,800], index: 1, kind: input, shape index: {}]
  %s2 = inlined_call_operand.vmem [shape: f32[32,1], index: 2, kind: input, shape index: {}]
  %s3 = inlined_call_operand.vmem [shape: f32[32,800], index: 3, kind: output, shape index: {}]
  %s4 = sld [smem:[#allocation0]]
  $region22: #{actor_forward.4} parent=0
    _
  %s6 = ssub.s32 1, %s4
  %s7 = scalar_select 0, %s6, %s4
  // Predicated region
  $region2: #{actor_forward.4} parent=0 // pred_check
    _
  $region3: #{actor_forward.4} parent=0 // pred_check_branch
    %9 = sbr.rel (0) target = $region5
  $region4: #{actor_forward.4} parent=0 // pred_region
    _
  $region5: #{actor_forward.4} parent=0 // pred_fallthru
    _
  // Predicated region
  $region6: #{actor_forward.4} parent=0 // pred_check
    _
  $region7: #{actor_forward.4} parent=0 // pred_check_branch
    %11 = sbr.rel (0) target = $region9
  $region8: #{actor_forward.4} parent=0 // pred_region
    _
  $region9: #{actor_forward.4} parent=0 // pred_fallthru
    _
  // Predicated region
  $region10: #{actor_forward.4} parent=0 // pred_check
    _
  $region11: #{actor_forward.4} parent=0 // pred_check_branch
    %13 = sbr.rel (0) target = $region13
  $region12: #{actor_forward.4} parent=0 // pred_region
    _
  $region13: #{actor_forward.4} parent=0 // pred_fallthru
    _
  %v14 = vld [vmem:[%s0] sm:$0xff]
  %v15 = vld [vmem:[%s0 + $0x8] sm:$0xff]
  %v16 = vld [vmem:[%s0 + $0x10] sm:$0xff]
  %v17 = vld [vmem:[%s0 + $0x18] sm:$0xff]
  %v18 = vld [vmem:[%s0 + $0x20] sm:$0xff]
  %v19 = vld [vmem:[%s0 + $0x28] sm:$0xff]
  %v20 = vld [vmem:[%s0 + $0x30] sm:$0xff]
  %v21 = vld [vmem:[%s0 + $0x38] sm:$0xff]
  %v22 = vld [vmem:[%s1] sm:$0xff]
  %v23 = vld [vmem:[%s1 + $0x8] sm:$0xff]
  %v24 = vld [vmem:[%s1 + $0x10] sm:$0xff]
  %v25 = vld [vmem:[%s1 + $0x18] sm:$0xff]
  %v26 = vld [vmem:[%s1 + $0x20] sm:$0xff]
  %v27 = vld [vmem:[%s1 + $0x28] sm:$0xff]
  %v28 = vld [vmem:[%s1 + $0x30] sm:$0xff]
  %v29 = vld [vmem:[%s1 + $0x38] sm:$0xff]
  %v30 = vld [vmem:[%s1 + $0x40] sm:$0xff]
  %v31 = vld [vmem:[%s1 + $0x48] sm:$0xff]
  %v32 = vld [vmem:[%s1 + $0x50] sm:$0xff]
  %v33 = vld [vmem:[%s1 + $0x58] sm:$0xff]
  %v34 = vld [vmem:[%s1 + $0x60] sm:$0xff]
  %v35 = vld [vmem:[%s1 + $0x68] sm:$0xff]
  %v36 = vld [vmem:[%s1 + $0x70] sm:$0xff]
  %v37 = vld [vmem:[%s1 + $0x78] sm:$0xff]
  %v38 = vld [vmem:[%s1 + $0x80] sm:$0xff]
  %v39 = vld [vmem:[%s1 + $0x88] sm:$0xff]
  %v40 = vld [vmem:[%s1 + $0x90] sm:$0xff]
  %v41 = vld [vmem:[%s1 + $0x98] sm:$0xff]
  %v42 = vld [vmem:[%s1 + $0xa0] sm:$0xff]
  %v43 = vld [vmem:[%s1 + $0xa8] sm:$0xff]
  %v44 = vld [vmem:[%s1 + $0xb0] sm:$0xff]
  %v45 = vld [vmem:[%s1 + $0xb8] sm:$0xff]
  %v46 = vld [vmem:[%s1 + $0xc0] sm:$0xff]
  %v47 = vld [vmem:[%s1 + $0xc8] sm:$0xff]
  %v48 = vld [vmem:[%s1 + $0xd0] sm:$0xff]
  %v49 = vld [vmem:[%s1 + $0xd8] sm:$0xff]
  %v50 = vld [vmem:[%s1 + $0xe0] sm:$0xff]
  %v51 = vld [vmem:[%s1 + $0xe8] sm:$0xff]
  %v52 = vld [vmem:[%s1 + $0xf0] sm:$0xff]
  %v53 = vld [vmem:[%s1 + $0xf8] sm:$0xff]
  %v54 = vld [vmem:[%s1 + $0x100] sm:$0xff]
  %v55 = vld [vmem:[%s1 + $0x108] sm:$0xff]
  %v56 = vld [vmem:[%s1 + $0x110] sm:$0xff]
  %v57 = vld [vmem:[%s1 + $0x118] sm:$0xff]
  %v58 = vld [vmem:[%s1 + $0x120] sm:$0xff]
  %v59 = vld [vmem:[%s1 + $0x128] sm:$0xff]
  %v60 = vld [vmem:[%s1 + $0x130] sm:$0xff]
  %v61 = vld [vmem:[%s1 + $0x138] sm:$0xff]
  %v62 = vld [vmem:[%s1 + $0x140] sm:$0xff]
  %v63 = vld [vmem:[%s1 + $0x148] sm:$0xff]
  %v64 = vld [vmem:[%s1 + $0x150] sm:$0xff]
  %v65 = vld [vmem:[%s1 + $0x158] sm:$0xff]
  %v66 = vld [vmem:[%s1 + $0x160] sm:$0xff]
  %v67 = vld [vmem:[%s1 + $0x168] sm:$0xff]
  %v68 = vld [vmem:[%s1 + $0x170] sm:$0xff]
  %v69 = vld [vmem:[%s1 + $0x178] sm:$0xff]
  %v70 = vld [vmem:[%s1 + $0x180] sm:$0xff]
  %v71 = vld [vmem:[%s1 + $0x188] sm:$0xff]
  %v72 = vld [vmem:[%s1 + $0x190] sm:$0xff]
  %v73 = vld [vmem:[%s1 + $0x198] sm:$0xff]
  %v74 = vld [vmem:[%s1 + $0x1a0] sm:$0xff]
  %v75 = vld [vmem:[%s1 + $0x1a8] sm:$0xff]
  %v76 = vld [vmem:[%s1 + $0x1b0] sm:$0xff]
  %v77 = vld [vmem:[%s1 + $0x1b8] sm:$0xff]
  %v78 = vld [vmem:[%s1 + $0x1c0] sm:$0xff]
  %v79 = vld [vmem:[%s1 + $0x1c8] sm:$0xff]
  %v80 = vld [vmem:[%s1 + $0x1d0] sm:$0xff]
  %v81 = vld [vmem:[%s1 + $0x1d8] sm:$0xff]
  %v82 = vld [vmem:[%s1 + $0x1e0] sm:$0xff]
  %v83 = vld [vmem:[%s1 + $0x1e8] sm:$0xff]
  %v84 = vld [vmem:[%s1 + $0x1f0] sm:$0xff]
  %v85 = vld [vmem:[%s1 + $0x1f8] sm:$0xff]
  %v86 = vld [vmem:[%s1 + $0x200] sm:$0xff]
  %v87 = vld [vmem:[%s1 + $0x208] sm:$0xff]
  %v88 = vld [vmem:[%s1 + $0x210] sm:$0xff]
  %v89 = vld [vmem:[%s1 + $0x218] sm:$0xff]
  %v90 = vld [vmem:[%s1 + $0x220] sm:$0xff]
  %v91 = vld [vmem:[%s1 + $0x228] sm:$0xff]
  %v92 = vld [vmem:[%s1 + $0x230] sm:$0xff]
  %v93 = vld [vmem:[%s1 + $0x238] sm:$0xff]
  %v94 = vld [vmem:[%s1 + $0x240] sm:$0xff]
  %v95 = vld [vmem:[%s1 + $0x248] sm:$0xff]
  %v96 = vld [vmem:[%s1 + $0x250] sm:$0xff]
  %v97 = vld [vmem:[%s1 + $0x258] sm:$0xff]
  %v98 = vld [vmem:[%s1 + $0x260] sm:$0xff]
  %v99 = vld [vmem:[%s1 + $0x268] sm:$0xff]
  %v100 = vld [vmem:[%s1 + $0x270] sm:$0xff]
  %v101 = vld [vmem:[%s1 + $0x278] sm:$0xff]
  %v102 = vld [vmem:[%s1 + $0x280] sm:$0xff]
  %v103 = vld [vmem:[%s1 + $0x288] sm:$0xff]
  %v104 = vld [vmem:[%s1 + $0x290] sm:$0xff]
  %v105 = vld [vmem:[%s1 + $0x298] sm:$0xff]
  %v106 = vld [vmem:[%s1 + $0x2a0] sm:$0xff]
  %v107 = vld [vmem:[%s1 + $0x2a8] sm:$0xff]
  %v108 = vld [vmem:[%s1 + $0x2b0] sm:$0xff]
  %v109 = vld [vmem:[%s1 + $0x2b8] sm:$0xff]
  %v110 = vld [vmem:[%s1 + $0x2c0] sm:$0xff]
  %v111 = vld [vmem:[%s1 + $0x2c8] sm:$0xff]
  %v112 = vld [vmem:[%s1 + $0x2d0] sm:$0xff]
  %v113 = vld [vmem:[%s1 + $0x2d8] sm:$0xff]
  %v114 = vld [vmem:[%s1 + $0x2e0] sm:$0xff]
  %v115 = vld [vmem:[%s1 + $0x2e8] sm:$0xff]
  %v116 = vld [vmem:[%s1 + $0x2f0] sm:$0xff]
  %v117 = vld [vmem:[%s1 + $0x2f8] sm:$0xff]
  %v118 = vld [vmem:[%s1 + $0x300] sm:$0xff]
  %v119 = vld [vmem:[%s1 + $0x308] sm:$0xff]
  %v120 = vld [vmem:[%s1 + $0x310] sm:$0xff]
  %v121 = vld [vmem:[%s1 + $0x318] sm:$0xff]
  %v122 = vld [vmem:[%s1 + $0x320] sm:$0xff]
  %v123 = vld [vmem:[%s1 + $0x328] sm:$0xff]
  %v124 = vld [vmem:[%s1 + $0x330] sm:$0xff]
  %v125 = vld [vmem:[%s1 + $0x338] sm:$0xff]
  %v126 = vld [vmem:[%s1 + $0x340] sm:$0xff]
  %v127 = vld [vmem:[%s1 + $0x348] sm:$0xff]
  %v128 = vld [vmem:[%s1 + $0x350] sm:$0xff]
  %v129 = vld [vmem:[%s1 + $0x358] sm:$0xff]
  %v130 = vld [vmem:[%s1 + $0x360] sm:$0xff]
  %v131 = vld [vmem:[%s1 + $0x368] sm:$0xff]
  %v132 = vld [vmem:[%s1 + $0x370] sm:$0xff]
  %v133 = vld [vmem:[%s1 + $0x378] sm:$0xff]
  %v134 = vld [vmem:[%s1 + $0x380] sm:$0xff]
  %v135 = vld [vmem:[%s1 + $0x388] sm:$0xff]
  %v136 = vld [vmem:[%s1 + $0x390] sm:$0xff]
  %v137 = vld [vmem:[%s1 + $0x398] sm:$0xff]
  %v138 = vld [vmem:[%s1 + $0x3a0] sm:$0xff]
  %v139 = vld [vmem:[%s1 + $0x3a8] sm:$0xff]
  %v140 = vld [vmem:[%s1 + $0x3b0] sm:$0xff]
  %v141 = vld [vmem:[%s1 + $0x3b8] sm:$0xff]
  %v142 = vld [vmem:[%s1 + $0x3c0] sm:$0xff]
  %v143 = vld [vmem:[%s1 + $0x3c8] sm:$0xff]
  %v144 = vld [vmem:[%s1 + $0x3d0] sm:$0xff]
  %v145 = vld [vmem:[%s1 + $0x3d8] sm:$0xff]
  %v146 = vld [vmem:[%s1 + $0x3e0] sm:$0xff]
  %v147 = vld [vmem:[%s1 + $0x3e8] sm:$0xff]
  %v148 = vld [vmem:[%s1 + $0x3f0] sm:$0xff]
  %v149 = vld [vmem:[%s1 + $0x3f8] sm:$0xff]
  %v150 = vld [vmem:[%s1 + $0x400] sm:$0xff]
  %v151 = vld [vmem:[%s1 + $0x408] sm:$0xff]
  %v152 = vld [vmem:[%s1 + $0x410] sm:$0xff]
  %v153 = vld [vmem:[%s1 + $0x418] sm:$0xff]
  %v154 = vld [vmem:[%s1 + $0x420] sm:$0xff]
  %v155 = vld [vmem:[%s1 + $0x428] sm:$0xff]
  %v156 = vld [vmem:[%s1 + $0x430] sm:$0xff]
  %v157 = vld [vmem:[%s1 + $0x438] sm:$0xff]
  %v158 = vld [vmem:[%s1 + $0x440] sm:$0xff]
  %v159 = vld [vmem:[%s1 + $0x448] sm:$0xff]
  %v160 = vld [vmem:[%s1 + $0x450] sm:$0xff]
  %v161 = vld [vmem:[%s1 + $0x458] sm:$0xff]
  %v162 = vld [vmem:[%s1 + $0x460] sm:$0xff]
  %v163 = vld [vmem:[%s1 + $0x468] sm:$0xff]
  %v164 = vld [vmem:[%s1 + $0x470] sm:$0xff]
  %v165 = vld [vmem:[%s1 + $0x478] sm:$0xff]
  %v166 = vld [vmem:[%s1 + $0x480] sm:$0xff]
  %v167 = vld [vmem:[%s1 + $0x488] sm:$0xff]
  %v168 = vld [vmem:[%s1 + $0x490] sm:$0xff]
  %v169 = vld [vmem:[%s1 + $0x498] sm:$0xff]
  %v170 = vld [vmem:[%s1 + $0x4a0] sm:$0xff]
  %v171 = vld [vmem:[%s1 + $0x4a8] sm:$0xff]
  %v172 = vld [vmem:[%s1 + $0x4b0] sm:$0xff]
  %v173 = vld [vmem:[%s1 + $0x4b8] sm:$0xff]
  %v174 = vld [vmem:[%s1 + $0x4c0] sm:$0xff]
  %v175 = vld [vmem:[%s1 + $0x4c8] sm:$0xff]
  %v176 = vld [vmem:[%s1 + $0x4d0] sm:$0xff]
  %v177 = vld [vmem:[%s1 + $0x4d8] sm:$0xff]
  %v178 = vld [vmem:[%s1 + $0x4e0] sm:$0xff]
  %v179 = vld [vmem:[%s1 + $0x4e8] sm:$0xff]
  %v180 = vld [vmem:[%s1 + $0x4f0] sm:$0xff]
  %v181 = vld [vmem:[%s1 + $0x4f8] sm:$0xff]
  %v182 = vld [vmem:[%s1 + $0x500] sm:$0xff]
  %v183 = vld [vmem:[%s1 + $0x508] sm:$0xff]
  %v184 = vld [vmem:[%s1 + $0x510] sm:$0xff]
  %v185 = vld [vmem:[%s1 + $0x518] sm:$0xff]
  %v186 = vld [vmem:[%s1 + $0x520] sm:$0xff]
  %v187 = vld [vmem:[%s1 + $0x528] sm:$0xff]
  %v188 = vld [vmem:[%s1 + $0x530] sm:$0xff]
  %v189 = vld [vmem:[%s1 + $0x538] sm:$0xff]
  %v190 = vld [vmem:[%s1 + $0x540] sm:$0xff]
  %v191 = vld [vmem:[%s1 + $0x548] sm:$0xff]
  %v192 = vld [vmem:[%s1 + $0x550] sm:$0xff]
  %v193 = vld [vmem:[%s1 + $0x558] sm:$0xff]
  %v194 = vld [vmem:[%s1 + $0x560] sm:$0xff]
  %v195 = vld [vmem:[%s1 + $0x568] sm:$0xff]
  %v196 = vld [vmem:[%s1 + $0x570] sm:$0xff]
  %v197 = vld [vmem:[%s1 + $0x578] sm:$0xff]
  %v198 = vld [vmem:[%s1 + $0x580] sm:$0xff]
  %v199 = vld [vmem:[%s1 + $0x588] sm:$0xff]
  %v200 = vld [vmem:[%s1 + $0x590] sm:$0xff]
  %v201 = vld [vmem:[%s1 + $0x598] sm:$0xff]
  %v202 = vld [vmem:[%s1 + $0x5a0] sm:$0xff]
  %v203 = vld [vmem:[%s1 + $0x5a8] sm:$0xff]
  %v204 = vld [vmem:[%s1 + $0x5b0] sm:$0xff]
  %v205 = vld [vmem:[%s1 + $0x5b8] sm:$0xff]
  %v206 = vld [vmem:[%s1 + $0x5c0] sm:$0xff]
  %v207 = vld [vmem:[%s1 + $0x5c8] sm:$0xff]
  %v208 = vld [vmem:[%s1 + $0x5d0] sm:$0xff]
  %v209 = vld [vmem:[%s1 + $0x5d8] sm:$0xff]
  %v210 = vld [vmem:[%s1 + $0x5e0] sm:$0xff]
  %v211 = vld [vmem:[%s1 + $0x5e8] sm:$0xff]
  %v212 = vld [vmem:[%s1 + $0x5f0] sm:$0xff]
  %v213 = vld [vmem:[%s1 + $0x5f8] sm:$0xff]
  %v214 = vld [vmem:[%s1 + $0x600] sm:$0xff]
  %v215 = vld [vmem:[%s1 + $0x608] sm:$0xff]
  %v216 = vld [vmem:[%s1 + $0x610] sm:$0xff]
  %v217 = vld [vmem:[%s1 + $0x618] sm:$0xff]
  %v218 = vld [vmem:[%s1 + $0x620] sm:$0xff]
  %v219 = vld [vmem:[%s1 + $0x628] sm:$0xff]
  %v220 = vld [vmem:[%s1 + $0x630] sm:$0xff]
  %v221 = vld [vmem:[%s1 + $0x638] sm:$0xff]
  %v222 = vld [vmem:[%s1 + $0x640] sm:$0xff]
  %v223 = vld [vmem:[%s1 + $0x648] sm:$0xff]
  %v224 = vld [vmem:[%s1 + $0x650] sm:$0xff]
  %v225 = vld [vmem:[%s1 + $0x658] sm:$0xff]
  %v226 = vld [vmem:[%s1 + $0x660] sm:$0xff]
  %v227 = vld [vmem:[%s1 + $0x668] sm:$0xff]
  %v228 = vld [vmem:[%s1 + $0x670] sm:$0xff]
  %v229 = vld [vmem:[%s1 + $0x678] sm:$0xff]
  %v230 = vld [vmem:[%s1 + $0x680] sm:$0xff]
  %v231 = vld [vmem:[%s1 + $0x688] sm:$0xff]
  %v232 = vld [vmem:[%s1 + $0x690] sm:$0xff]
  %v233 = vld [vmem:[%s1 + $0x698] sm:$0xff]
  %v234 = vld [vmem:[%s1 + $0x6a0] sm:$0xff]
  %v235 = vld [vmem:[%s1 + $0x6a8] sm:$0xff]
  %v236 = vld [vmem:[%s1 + $0x6b0] sm:$0xff]
  %v237 = vld [vmem:[%s1 + $0x6b8] sm:$0xff]
  %v238 = vld [vmem:[%s1 + $0x6c0] sm:$0xff]
  %v239 = vld [vmem:[%s1 + $0x6c8] sm:$0xff]
  %v240 = vld [vmem:[%s1 + $0x6d0] sm:$0xff]
  %v241 = vld [vmem:[%s1 + $0x6d8] sm:$0xff]
  %v242 = vld [vmem:[%s1 + $0x6e0] sm:$0xff]
  %v243 = vld [vmem:[%s1 + $0x6e8] sm:$0xff]
  %v244 = vld [vmem:[%s1 + $0x6f0] sm:$0xff]
  %v245 = vld [vmem:[%s1 + $0x6f8] sm:$0xff]
  %v246 = vld [vmem:[%s2] sm:$0xff]
  %v247 = vld [vmem:[%s2 + $0x8] sm:$0xff]
  %v248 = vld [vmem:[%s2 + $0x10] sm:$0xff]
  %v249 = vld [vmem:[%s2 + $0x18] sm:$0xff]
  %251 = vset.pattern.permute.xlu0 0
  %252 = vperm.xlu0 %251, %v246
  %v253 = vpop.permute.xlu0 %252
  %256 = vset.pattern.permute.xlu0 0
  %257 = vperm.xlu0 %256, %v247
  %v258 = vpop.permute.xlu0 %257
  %261 = vset.pattern.permute.xlu0 0
  %262 = vperm.xlu0 %261, %v248
  %v263 = vpop.permute.xlu0 %262
  %266 = vset.pattern.permute.xlu0 0
  %267 = vperm.xlu0 %266, %v249
  %v268 = vpop.permute.xlu0 %267
  %270 = vmatprep.subr.mxu0 %v23
  %271 = vmatpush1.msra.mxu0 %v22
  %272 = vmatprep.subr.mxu0 %v30
  %273 = vmatpush1.msra.mxu0 %v29
  %274 = vmatprep.subr.mxu0 %v37
  %275 = vmatpush1.msra.mxu0 %v36
  %276 = vmatprep.subr.mxu0 %v44
  %277 = vmatpush1.msra.mxu0 %v43
  %278 = vmatprep.subr.mxu0 %v51
  %279 = vmatpush1.msra.mxu0 %v50
  %280 = vmatprep.subr.mxu0 %v58
  %281 = vmatpush1.msra.mxu0 %v57
  %282 = vmatprep.subr.mxu0 %v65
  %283 = vmatpush1.msra.mxu0 %v64
  %284 = vmatprep.subr.mxu0 %v72
  %285 = vmatpush1.msra.mxu0 %v71
  %286 = vmatprep.subr.mxu0 %v79
  %287 = vmatpush1.msra.mxu0 %v78
  %288 = vmatprep.subr.mxu0 %v86
  %289 = vmatpush1.msra.mxu0 %v85
  %290 = vmatprep.subr.mxu0 %v93
  %291 = vmatpush1.msra.mxu0 %v92
  %292 = vmatprep.subr.mxu0 %v100
  %293 = vmatpush1.msra.mxu0 %v99
  %294 = vmatprep.subr.mxu0 %v107
  %295 = vmatpush1.msra.mxu0 %v106
  %296 = vmatprep.subr.mxu0 %v114
  %297 = vmatpush1.msra.mxu0 %v113
  %298 = vmatprep.subr.mxu0 %v121
  %299 = vmatpush1.msra.mxu0 %v120
  %300 = vmatprep.subr.mxu0 %v128
  %301 = vmatpush1.msra.mxu0 %v127
  %302 = vmatprep.subr.mxu0 %v135
  %303 = vmatpush1.msra.mxu0 %v134
  %304 = vmatprep.subr.mxu0 %v142
  %305 = vmatpush1.msra.mxu0 %v141
  %306 = vmatprep.subr.mxu0 %v149
  %307 = vmatpush1.msra.mxu0 %v148
  %308 = vmatprep.subr.mxu0 %v156
  %309 = vmatpush1.msra.mxu0 %v155
  %310 = vmatprep.subr.mxu0 %v163
  %311 = vmatpush1.msra.mxu0 %v162
  %312 = vmatprep.subr.mxu0 %v170
  %313 = vmatpush1.msra.mxu0 %v169
  %314 = vmatprep.subr.mxu0 %v177
  %315 = vmatpush1.msra.mxu0 %v176
  %316 = vmatprep.subr.mxu0 %v184
  %317 = vmatpush1.msra.mxu0 %v183
  %318 = vmatprep.subr.mxu0 %v191
  %319 = vmatpush1.msra.mxu0 %v190
  %320 = vmatprep.subr.mxu0 %v198
  %321 = vmatpush1.msra.mxu0 %v197
  %322 = vmatprep.subr.mxu0 %v205
  %323 = vmatpush1.msra.mxu0 %v204
  %324 = vmatprep.subr.mxu0 %v212
  %325 = vmatpush1.msra.mxu0 %v211
  %326 = vmatprep.subr.mxu0 %v219
  %327 = vmatpush1.msra.mxu0 %v218
  %328 = vmatprep.subr.mxu0 %v226
  %329 = vmatpush1.msra.mxu0 %v225
  %330 = vmatprep.subr.mxu0 %v233
  %331 = vmatpush1.msra.mxu0 %v232
  %332 = vmatprep.subr.mxu0 %v240
  %333 = vmatpush1.msra.mxu0 %v239
  %334 = vmatprep.mubr.f32.mxu0 %v15
  %335 = vmatmul.mubr.f32.gmra.mrb[0].mxu0 %v14
  %v336 = vpop.f32.mrb[0].mxu0
  %v337 = vadd.f32 %v253, %v336
  %v338 = vpop.f32.mrb[0].mxu0
  %v339 = vadd.f32 %v253, %v338
  %340 = vmatprep.mubr.f32.mxu0 %v17
  %341 = vmatmul.mubr.f32.gmra.mrb[0].mxu0 %v16
  %v342 = vpop.f32.mrb[0].mxu0
  %v343 = vadd.f32 %v258, %v342
  %v344 = vpop.f32.mrb[0].mxu0
  %v345 = vadd.f32 %v258, %v344
  %346 = vmatprep.mubr.f32.mxu0 %v19
  %347 = vmatmul.mubr.f32.gmra.mrb[0].mxu0 %v18
  %v348 = vpop.f32.mrb[0].mxu0
  %v349 = vadd.f32 %v263, %v348
  %v350 = vpop.f32.mrb[0].mxu0
  %v351 = vadd.f32 %v263, %v350
  %352 = vmatprep.mubr.f32.mxu0 %v21
  %353 = vmatmul.mubr.f32.gmra.mrb[0].mxu0 %v20
  %v354 = vpop.f32.mrb[0].mxu0
  %v355 = vadd.f32 %v268, %v354
  %v356 = vpop.f32.mrb[0].mxu0
  %v357 = vadd.f32 %v268, %v356
  %358 = vdwg.mxu0
  %359 = vmatprep.subr.mxu0 %v25
  %360 = vmatpush1.msra.mxu0 %v24
  %361 = vmatprep.subr.mxu0 %v32
  %362 = vmatpush1.msra.mxu0 %v31
  %363 = vmatprep.subr.mxu0 %v39
  %364 = vmatpush1.msra.mxu0 %v38
  %365 = vmatprep.subr.mxu0 %v46
  %366 = vmatpush1.msra.mxu0 %v45
  %367 = vmatprep.subr.mxu0 %v53
  %368 = vmatpush1.msra.mxu0 %v52
  %369 = vmatprep.subr.mxu0 %v60
  %370 = vmatpush1.msra.mxu0 %v59
  %371 = vmatprep.subr.mxu0 %v67
  %372 = vmatpush1.msra.mxu0 %v66
  %373 = vmatprep.subr.mxu0 %v74
  %374 = vmatpush1.msra.mxu0 %v73
  %375 = vmatprep.subr.mxu0 %v81
  %376 = vmatpush1.msra.mxu0 %v80
  %377 = vmatprep.subr.mxu0 %v88
  %378 = vmatpush1.msra.mxu0 %v87
  %379 = vmatprep.subr.mxu0 %v95
  %380 = vmatpush1.msra.mxu0 %v94
  %381 = vmatprep.subr.mxu0 %v102
  %382 = vmatpush1.msra.mxu0 %v101
  %383 = vmatprep.subr.mxu0 %v109
  %384 = vmatpush1.msra.mxu0 %v108
  %385 = vmatprep.subr.mxu0 %v116
  %386 = vmatpush1.msra.mxu0 %v115
  %387 = vmatprep.subr.mxu0 %v123
  %388 = vmatpush1.msra.mxu0 %v122
  %389 = vmatprep.subr.mxu0 %v130
  %390 = vmatpush1.msra.mxu0 %v129
  %391 = vmatprep.subr.mxu0 %v137
  %392 = vmatpush1.msra.mxu0 %v136
  %393 = vmatprep.subr.mxu0 %v144
  %394 = vmatpush1.msra.mxu0 %v143
  %395 = vmatprep.subr.mxu0 %v151
  %396 = vmatpush1.msra.mxu0 %v150
  %397 = vmatprep.subr.mxu0 %v158
  %398 = vmatpush1.msra.mxu0 %v157
  %399 = vmatprep.subr.mxu0 %v165
  %400 = vmatpush1.msra.mxu0 %v164
  %401 = vmatprep.subr.mxu0 %v172
  %402 = vmatpush1.msra.mxu0 %v171
  %403 = vmatprep.subr.mxu0 %v179
  %404 = vmatpush1.msra.mxu0 %v178
  %405 = vmatprep.subr.mxu0 %v186
  %406 = vmatpush1.msra.mxu0 %v185
  %407 = vmatprep.subr.mxu0 %v193
  %408 = vmatpush1.msra.mxu0 %v192
  %409 = vmatprep.subr.mxu0 %v200
  %410 = vmatpush1.msra.mxu0 %v199
  %411 = vmatprep.subr.mxu0 %v207
  %412 = vmatpush1.msra.mxu0 %v206
  %413 = vmatprep.subr.mxu0 %v214
  %414 = vmatpush1.msra.mxu0 %v213
  %415 = vmatprep.subr.mxu0 %v221
  %416 = vmatpush1.msra.mxu0 %v220
  %417 = vmatprep.subr.mxu0 %v228
  %418 = vmatpush1.msra.mxu0 %v227
  %419 = vmatprep.subr.mxu0 %v235
  %420 = vmatpush1.msra.mxu0 %v234
  %421 = vmatprep.subr.mxu0 %v242
  %422 = vmatpush1.msra.mxu0 %v241
  %423 = vmatprep.mubr.f32.mxu0 %v15
  %424 = vmatmul.mubr.f32.gmra.mrb[0].mxu0 %v14
  %v425 = vpop.f32.mrb[0].mxu0
  %v426 = vadd.f32 %v253, %v425
  %v427 = vpop.f32.mrb[0].mxu0
  %v428 = vadd.f32 %v253, %v427
  %429 = vmatprep.mubr.f32.mxu0 %v17
  %430 = vmatmul.mubr.f32.gmra.mrb[0].mxu0 %v16
  %v431 = vpop.f32.mrb[0].mxu0
  %v432 = vadd.f32 %v258, %v431
  %v433 = vpop.f32.mrb[0].mxu0
  %v434 = vadd.f32 %v258, %v433
  %435 = vmatprep.mubr.f32.mxu0 %v19
  %436 = vmatmul.mubr.f32.gmra.mrb[0].mxu0 %v18
  %v437 = vpop.f32.mrb[0].mxu0
  %v438 = vadd.f32 %v263, %v437
  %v439 = vpop.f32.mrb[0].mxu0
  %v440 = vadd.f32 %v263, %v439
  %441 = vmatprep.mubr.f32.mxu0 %v21
  %442 = vmatmul.mubr.f32.gmra.mrb[0].mxu0 %v20
  %v443 = vpop.f32.mrb[0].mxu0
  %v444 = vadd.f32 %v268, %v443
  %v445 = vpop.f32.mrb[0].mxu0
  %v446 = vadd.f32 %v268, %v445
  %447 = vdwg.mxu0
  %448 = vmatprep.subr.mxu0 %v27
  %449 = vmatpush1.msra.mxu0 %v26
  %450 = vmatprep.subr.mxu0 %v34
  %451 = vmatpush1.msra.mxu0 %v33
  %452 = vmatprep.subr.mxu0 %v41
  %453 = vmatpush1.msra.mxu0 %v40
  %454 = vmatprep.subr.mxu0 %v48
  %455 = vmatpush1.msra.mxu0 %v47
  %456 = vmatprep.subr.mxu0 %v55
  %457 = vmatpush1.msra.mxu0 %v54
  %458 = vmatprep.subr.mxu0 %v62
  %459 = vmatpush1.msra.mxu0 %v61
  %460 = vmatprep.subr.mxu0 %v69
  %461 = vmatpush1.msra.mxu0 %v68
  %462 = vmatprep.subr.mxu0 %v76
  %463 = vmatpush1.msra.mxu0 %v75
  %464 = vmatprep.subr.mxu0 %v83
  %465 = vmatpush1.msra.mxu0 %v82
  %466 = vmatprep.subr.mxu0 %v90
  %467 = vmatpush1.msra.mxu0 %v89
  %468 = vmatprep.subr.mxu0 %v97
  %469 = vmatpush1.msra.mxu0 %v96
  %470 = vmatprep.subr.mxu0 %v104
  %471 = vmatpush1.msra.mxu0 %v103
  %472 = vmatprep.subr.mxu0 %v111
  %473 = vmatpush1.msra.mxu0 %v110
  %474 = vmatprep.subr.mxu0 %v118
  %475 = vmatpush1.msra.mxu0 %v117
  %476 = vmatprep.subr.mxu0 %v125
  %477 = vmatpush1.msra.mxu0 %v124
  %478 = vmatprep.subr.mxu0 %v132
  %479 = vmatpush1.msra.mxu0 %v131
  %480 = vmatprep.subr.mxu0 %v139
  %481 = vmatpush1.msra.mxu0 %v138
  %482 = vmatprep.subr.mxu0 %v146
  %483 = vmatpush1.msra.mxu0 %v145
  %484 = vmatprep.subr.mxu0 %v153
  %485 = vmatpush1.msra.mxu0 %v152
  %486 = vmatprep.subr.mxu0 %v160
  %487 = vmatpush1.msra.mxu0 %v159
  %488 = vmatprep.subr.mxu0 %v167
  %489 = vmatpush1.msra.mxu0 %v166
  %490 = vmatprep.subr.mxu0 %v174
  %491 = vmatpush1.msra.mxu0 %v173
  %492 = vmatprep.subr.mxu0 %v181
  %493 = vmatpush1.msra.mxu0 %v180
  %494 = vmatprep.subr.mxu0 %v188
  %495 = vmatpush1.msra.mxu0 %v187
  %496 = vmatprep.subr.mxu0 %v195
  %497 = vmatpush1.msra.mxu0 %v194
  %498 = vmatprep.subr.mxu0 %v202
  %499 = vmatpush1.msra.mxu0 %v201
  %500 = vmatprep.subr.mxu0 %v209
  %501 = vmatpush1.msra.mxu0 %v208
  %502 = vmatprep.subr.mxu0 %v216
  %503 = vmatpush1.msra.mxu0 %v215
  %504 = vmatprep.subr.mxu0 %v223
  %505 = vmatpush1.msra.mxu0 %v222
  %506 = vmatprep.subr.mxu0 %v230
  %507 = vmatpush1.msra.mxu0 %v229
  %508 = vmatprep.subr.mxu0 %v237
  %509 = vmatpush1.msra.mxu0 %v236
  %510 = vmatprep.subr.mxu0 %v244
  %511 = vmatpush1.msra.mxu0 %v243
  %512 = vmatprep.mubr.f32.mxu0 %v15
  %513 = vmatmul.mubr.f32.gmra.mrb[0].mxu0 %v14
  %v514 = vpop.f32.mrb[0].mxu0
  %v515 = vadd.f32 %v253, %v514
  %v516 = vpop.f32.mrb[0].mxu0
  %v517 = vadd.f32 %v253, %v516
  %518 = vmatprep.mubr.f32.mxu0 %v17
  %519 = vmatmul.mubr.f32.gmra.mrb[0].mxu0 %v16
  %v520 = vpop.f32.mrb[0].mxu0
  %v521 = vadd.f32 %v258, %v520
  %v522 = vpop.f32.mrb[0].mxu0
  %v523 = vadd.f32 %v258, %v522
  %524 = vmatprep.mubr.f32.mxu0 %v19
  %525 = vmatmul.mubr.f32.gmra.mrb[0].mxu0 %v18
  %v526 = vpop.f32.mrb[0].mxu0
  %v527 = vadd.f32 %v263, %v526
  %v528 = vpop.f32.mrb[0].mxu0
  %v529 = vadd.f32 %v263, %v528
  %530 = vmatprep.mubr.f32.mxu0 %v21
  %531 = vmatmul.mubr.f32.gmra.mrb[0].mxu0 %v20
  %v532 = vpop.f32.mrb[0].mxu0
  %v533 = vadd.f32 %v268, %v532
  %v534 = vpop.f32.mrb[0].mxu0
  %v535 = vadd.f32 %v268, %v534
  %536 = vdwg.mxu0
  %537 = vmatprep.subr.mxu0 0.0
  %538 = vmatpush1.msra.mxu0 %v28
  %539 = vmatprep.subr.mxu0 0.0
  %540 = vmatpush1.msra.mxu0 %v35
  %541 = vmatprep.subr.mxu0 0.0
  %542 = vmatpush1.msra.mxu0 %v42
  %543 = vmatprep.subr.mxu0 0.0
  %544 = vmatpush1.msra.mxu0 %v49
  %545 = vmatprep.subr.mxu0 0.0
  %546 = vmatpush1.msra.mxu0 %v56
  %547 = vmatprep.subr.mxu0 0.0
  %548 = vmatpush1.msra.mxu0 %v63
  %549 = vmatprep.subr.mxu0 0.0
  %550 = vmatpush1.msra.mxu0 %v70
  %551 = vmatprep.subr.mxu0 0.0
  %552 = vmatpush1.msra.mxu0 %v77
  %553 = vmatprep.subr.mxu0 0.0
  %554 = vmatpush1.msra.mxu0 %v84
  %555 = vmatprep.subr.mxu0 0.0
  %556 = vmatpush1.msra.mxu0 %v91
  %557 = vmatprep.subr.mxu0 0.0
  %558 = vmatpush1.msra.mxu0 %v98
  %559 = vmatprep.subr.mxu0 0.0
  %560 = vmatpush1.msra.mxu0 %v105
  %561 = vmatprep.subr.mxu0 0.0
  %562 = vmatpush1.msra.mxu0 %v112
  %563 = vmatprep.subr.mxu0 0.0
  %564 = vmatpush1.msra.mxu0 %v119
  %565 = vmatprep.subr.mxu0 0.0
  %566 = vmatpush1.msra.mxu0 %v126
  %567 = vmatprep.subr.mxu0 0.0
  %568 = vmatpush1.msra.mxu0 %v133
  %569 = vmatprep.subr.mxu0 0.0
  %570 = vmatpush1.msra.mxu0 %v140
  %571 = vmatprep.subr.mxu0 0.0
  %572 = vmatpush1.msra.mxu0 %v147
  %573 = vmatprep.subr.mxu0 0.0
  %574 = vmatpush1.msra.mxu0 %v154
  %575 = vmatprep.subr.mxu0 0.0
  %576 = vmatpush1.msra.mxu0 %v161
  %577 = vmatprep.subr.mxu0 0.0
  %578 = vmatpush1.msra.mxu0 %v168
  %579 = vmatprep.subr.mxu0 0.0
  %580 = vmatpush1.msra.mxu0 %v175
  %581 = vmatprep.subr.mxu0 0.0
  %582 = vmatpush1.msra.mxu0 %v182
  %583 = vmatprep.subr.mxu0 0.0
  %584 = vmatpush1.msra.mxu0 %v189
  %585 = vmatprep.subr.mxu0 0.0
  %586 = vmatpush1.msra.mxu0 %v196
  %587 = vmatprep.subr.mxu0 0.0
  %588 = vmatpush1.msra.mxu0 %v203
  %589 = vmatprep.subr.mxu0 0.0
  %590 = vmatpush1.msra.mxu0 %v210
  %591 = vmatprep.subr.mxu0 0.0
  %592 = vmatpush1.msra.mxu0 %v217
  %593 = vmatprep.subr.mxu0 0.0
  %594 = vmatpush1.msra.mxu0 %v224
  %595 = vmatprep.subr.mxu0 0.0
  %596 = vmatpush1.msra.mxu0 %v231
  %597 = vmatprep.subr.mxu0 0.0
  %598 = vmatpush1.msra.mxu0 %v238
  %599 = vmatprep.subr.mxu0 0.0
  %600 = vmatpush1.msra.mxu0 %v245
  %601 = vmatprep.mubr.f32.mxu0 %v15
  %602 = vmatmul.mubr.f32.gmra.mrb[0].mxu0 %v14
  %v603 = vpop.f32.mrb[0].mxu0
  %v604 = vadd.f32 %v253, %v603
  %v605 = vpop.f32.mrb[0].mxu0
  %606 = vmatprep.mubr.f32.mxu0 %v17
  %607 = vmatmul.mubr.f32.gmra.mrb[0].mxu0 %v16
  %v608 = vpop.f32.mrb[0].mxu0
  %v609 = vadd.f32 %v258, %v608
  %v610 = vpop.f32.mrb[0].mxu0
  %611 = vmatprep.mubr.f32.mxu0 %v19
  %612 = vmatmul.mubr.f32.gmra.mrb[0].mxu0 %v18
  %v613 = vpop.f32.mrb[0].mxu0
  %v614 = vadd.f32 %v263, %v613
  %v615 = vpop.f32.mrb[0].mxu0
  %616 = vmatprep.mubr.f32.mxu0 %v21
  %617 = vmatmul.mubr.f32.gmra.mrb[0].mxu0 %v20
  %v618 = vpop.f32.mrb[0].mxu0
  %v619 = vadd.f32 %v268, %v618
  %v620 = vpop.f32.mrb[0].mxu0
  %621 = vdwg.mxu0
  %v622 = vmax.f32 %v337, 0.0
  %v623 = vmax.f32 %v339, 0.0
  %v624 = vmax.f32 %v426, 0.0
  %v625 = vmax.f32 %v428, 0.0
  %v626 = vmax.f32 %v515, 0.0
  %v627 = vmax.f32 %v517, 0.0
  %v628 = vmax.f32 %v604, 0.0
  %v629 = vmax.f32 %v343, 0.0
  %v630 = vmax.f32 %v345, 0.0
  %v631 = vmax.f32 %v432, 0.0
  %v632 = vmax.f32 %v434, 0.0
  %v633 = vmax.f32 %v521, 0.0
  %v634 = vmax.f32 %v523, 0.0
  %v635 = vmax.f32 %v609, 0.0
  %v636 = vmax.f32 %v349, 0.0
  %v637 = vmax.f32 %v351, 0.0
  %v638 = vmax.f32 %v438, 0.0
  %v639 = vmax.f32 %v440, 0.0
  %v640 = vmax.f32 %v527, 0.0
  %v641 = vmax.f32 %v529, 0.0
  %v642 = vmax.f32 %v614, 0.0
  %v643 = vmax.f32 %v355, 0.0
  %v644 = vmax.f32 %v357, 0.0
  %v645 = vmax.f32 %v444, 0.0
  %v646 = vmax.f32 %v446, 0.0
  %v647 = vmax.f32 %v533, 0.0
  %v648 = vmax.f32 %v535, 0.0
  %v649 = vmax.f32 %v619, 0.0
  %650 = vst [vmem:[%s3] sm:$0xff] %v622
  %651 = vst [vmem:[%s3 + $0x8] sm:$0xff] %v623
  %652 = vst [vmem:[%s3 + $0x10] sm:$0xff] %v624
  %653 = vst [vmem:[%s3 + $0x18] sm:$0xff] %v625
  %654 = vst [vmem:[%s3 + $0x20] sm:$0xff] %v626
  %655 = vst [vmem:[%s3 + $0x28] sm:$0xff] %v627
  %vm656 = vcmask 261120
  %657 = vst.msk [vmem:[%s3 + $0x30] sm:$0xff] %vm656, %v628
  %658 = vst [vmem:[%s3 + $0x38] sm:$0xff] %v629
  %659 = vst [vmem:[%s3 + $0x40] sm:$0xff] %v630
  %660 = vst [vmem:[%s3 + $0x48] sm:$0xff] %v631
  %661 = vst [vmem:[%s3 + $0x50] sm:$0xff] %v632
  %662 = vst [vmem:[%s3 + $0x58] sm:$0xff] %v633
  %663 = vst [vmem:[%s3 + $0x60] sm:$0xff] %v634
  %664 = vst.msk [vmem:[%s3 + $0x68] sm:$0xff] %vm656, %v635
  %665 = vst [vmem:[%s3 + $0x70] sm:$0xff] %v636
  %666 = vst [vmem:[%s3 + $0x78] sm:$0xff] %v637
  %667 = vst [vmem:[%s3 + $0x80] sm:$0xff] %v638
  %668 = vst [vmem:[%s3 + $0x88] sm:$0xff] %v639
  %669 = vst [vmem:[%s3 + $0x90] sm:$0xff] %v640
  %670 = vst [vmem:[%s3 + $0x98] sm:$0xff] %v641
  %671 = vst.msk [vmem:[%s3 + $0xa0] sm:$0xff] %vm656, %v642
  %672 = vst [vmem:[%s3 + $0xa8] sm:$0xff] %v643
  %673 = vst [vmem:[%s3 + $0xb0] sm:$0xff] %v644
  %674 = vst [vmem:[%s3 + $0xb8] sm:$0xff] %v645
  %675 = vst [vmem:[%s3 + $0xc0] sm:$0xff] %v646
  %676 = vst [vmem:[%s3 + $0xc8] sm:$0xff] %v647
  %677 = vst [vmem:[%s3 + $0xd0] sm:$0xff] %v648
  %678 = vst.msk [vmem:[%s3 + $0xd8] sm:$0xff] %vm656, %v649
  // Predicated region
  $region14: #{actor_forward.4} parent=0 // pred_check
    _
  $region15: #{actor_forward.4} parent=0 // pred_check_branch
    %680 = sbr.rel (0) target = $region17
  $region16: #{actor_forward.4} parent=0 // pred_region
    _
  $region17: #{actor_forward.4} parent=0 // pred_fallthru
    _
  // Predicated region
  $region18: #{actor_forward.4} parent=0 // pred_check
    _
  $region19: #{actor_forward.4} parent=0 // pred_check_branch
    %682 = sbr.rel (0) target = $region21
  $region20: #{actor_forward.4} parent=0 // pred_region
    _
  $region21: #{actor_forward.4} parent=0 // pred_fallthru
    _

// kernel: actor_forward.5
$region0: #{actor_forward.5}
  #allocation0 [shape = 'u32[]', space=smem, size = 0x4, offset = 0x4, fixed_abs, tag = 'smem constant byte address 0x4 - core index']
  #allocation1 [shape = 'u32[144,128]{1,0:T(1,128)}', space=vmem, size = 0x12000, scoped, tag = 'internal scratch']
  %s0 = inlined_call_operand.vmem [shape: f32[64,512], index: 0, kind: input, shape index: {}]
  %s1 = inlined_call_operand.vmem [shape: f32[512,162], index: 1, kind: input, shape index: {}]
  %s2 = inlined_call_operand.vmem [shape: f32[64,1], index: 2, kind: input, shape index: {}]
  %s3 = inlined_call_operand.vmem [shape: f32[64,162], index: 3, kind: output, shape index: {}]
  %s4 = sld [smem:[#allocation0]]
  $region22: #{actor_forward.5} parent=0
    _
  %s6 = ssub.s32 1, %s4
  %s7 = scalar_select 0, %s6, %s4
  // Predicated region
  $region2: #{actor_forward.5} parent=0 // pred_check
    _
  $region3: #{actor_forward.5} parent=0 // pred_check_branch
    %9 = sbr.rel (0) target = $region5
  $region4: #{actor_forward.5} parent=0 // pred_region
    _
  $region5: #{actor_forward.5} parent=0 // pred_fallthru
    _
  // Predicated region
  $region6: #{actor_forward.5} parent=0 // pred_check
    _
  $region7: #{actor_forward.5} parent=0 // pred_check_branch
    %11 = sbr.rel (0) target = $region9
  $region8: #{actor_forward.5} parent=0 // pred_region
    _
  $region9: #{actor_forward.5} parent=0 // pred_fallthru
    _
  // Predicated region
  $region10: #{actor_forward.5} parent=0 // pred_check
    _
  $region11: #{actor_forward.5} parent=0 // pred_check_branch
    %13 = sbr.rel (0) target = $region13
  $region12: #{actor_forward.5} parent=0 // pred_region
    _
  $region13: #{actor_forward.5} parent=0 // pred_fallthru
    _
  %v14 = vld [vmem:[%s0] sm:$0xff]
  %v15 = vld [vmem:[%s0 + $0x8] sm:$0xff]
  %v16 = vld [vmem:[%s0 + $0x10] sm:$0xff]
  %v17 = vld [vmem:[%s0 + $0x18] sm:$0xff]
  %v18 = vld [vmem:[%s0 + $0x20] sm:$0xff]
  %v19 = vld [vmem:[%s0 + $0x28] sm:$0xff]
  %v20 = vld [vmem:[%s0 + $0x30] sm:$0xff]
  %v21 = vld [vmem:[%s0 + $0x38] sm:$0xff]
  %v22 = vld [vmem:[%s0 + $0x40] sm:$0xff]
  %v23 = vld [vmem:[%s0 + $0x48] sm:$0xff]
  %v24 = vld [vmem:[%s0 + $0x50] sm:$0xff]
  %v25 = vld [vmem:[%s0 + $0x58] sm:$0xff]
  %v26 = vld [vmem:[%s0 + $0x60] sm:$0xff]
  %v27 = vld [vmem:[%s0 + $0x68] sm:$0xff]
  %v28 = vld [vmem:[%s0 + $0x70] sm:$0xff]
  %v29 = vld [vmem:[%s0 + $0x78] sm:$0xff]
  %v30 = vld [vmem:[%s0 + $0x80] sm:$0xff]
  %v31 = vld [vmem:[%s0 + $0x88] sm:$0xff]
  %v32 = vld [vmem:[%s0 + $0x90] sm:$0xff]
  %v33 = vld [vmem:[%s0 + $0x98] sm:$0xff]
  %v34 = vld [vmem:[%s0 + $0xa0] sm:$0xff]
  %v35 = vld [vmem:[%s0 + $0xa8] sm:$0xff]
  %v36 = vld [vmem:[%s0 + $0xb0] sm:$0xff]
  %v37 = vld [vmem:[%s0 + $0xb8] sm:$0xff]
  %v38 = vld [vmem:[%s0 + $0xc0] sm:$0xff]
  %v39 = vld [vmem:[%s0 + $0xc8] sm:$0xff]
  %v40 = vld [vmem:[%s0 + $0xd0] sm:$0xff]
  %v41 = vld [vmem:[%s0 + $0xd8] sm:$0xff]
  %v42 = vld [vmem:[%s0 + $0xe0] sm:$0xff]
  %v43 = vld [vmem:[%s0 + $0xe8] sm:$0xff]
  %v44 = vld [vmem:[%s0 + $0xf0] sm:$0xff]
  %v45 = vld [vmem:[%s0 + $0xf8] sm:$0xff]
  %v46 = vld [vmem:[%s1] sm:$0xff]
  %v47 = vld [vmem:[%s1 + $0x8] sm:$0xff]
  %v48 = vld [vmem:[%s1 + $0x10] sm:$0xff]
  %v49 = vld [vmem:[%s1 + $0x18] sm:$0xff]
  %v50 = vld [vmem:[%s1 + $0x20] sm:$0xff]
  %v51 = vld [vmem:[%s1 + $0x28] sm:$0xff]
  %v52 = vld [vmem:[%s1 + $0x30] sm:$0xff]
  %v53 = vld [vmem:[%s1 + $0x38] sm:$0xff]
  %v54 = vld [vmem:[%s1 + $0x40] sm:$0xff]
  %v55 = vld [vmem:[%s1 + $0x48] sm:$0xff]
  %v56 = vld [vmem:[%s1 + $0x50] sm:$0xff]
  %v57 = vld [vmem:[%s1 + $0x58] sm:$0xff]
  %v58 = vld [vmem:[%s1 + $0x60] sm:$0xff]
  %v59 = vld [vmem:[%s1 + $0x68] sm:$0xff]
  %v60 = vld [vmem:[%s1 + $0x70] sm:$0xff]
  %v61 = vld [vmem:[%s1 + $0x78] sm:$0xff]
  %v62 = vld [vmem:[%s1 + $0x80] sm:$0xff]
  %v63 = vld [vmem:[%s1 + $0x88] sm:$0xff]
  %v64 = vld [vmem:[%s1 + $0x90] sm:$0xff]
  %v65 = vld [vmem:[%s1 + $0x98] sm:$0xff]
  %v66 = vld [vmem:[%s1 + $0xa0] sm:$0xff]
  %v67 = vld [vmem:[%s1 + $0xa8] sm:$0xff]
  %v68 = vld [vmem:[%s1 + $0xb0] sm:$0xff]
  %v69 = vld [vmem:[%s1 + $0xb8] sm:$0xff]
  %v70 = vld [vmem:[%s1 + $0xc0] sm:$0xff]
  %v71 = vld [vmem:[%s1 + $0xc8] sm:$0xff]
  %v72 = vld [vmem:[%s1 + $0xd0] sm:$0xff]
  %v73 = vld [vmem:[%s1 + $0xd8] sm:$0xff]
  %v74 = vld [vmem:[%s1 + $0xe0] sm:$0xff]
  %v75 = vld [vmem:[%s1 + $0xe8] sm:$0xff]
  %v76 = vld [vmem:[%s1 + $0xf0] sm:$0xff]
  %v77 = vld [vmem:[%s1 + $0xf8] sm:$0xff]
  %v78 = vld [vmem:[%s1 + $0x100] sm:$0xff]
  %v79 = vld [vmem:[%s1 + $0x108] sm:$0xff]
  %v80 = vld [vmem:[%s1 + $0x110] sm:$0xff]
  %v81 = vld [vmem:[%s1 + $0x118] sm:$0xff]
  %v82 = vld [vmem:[%s1 + $0x120] sm:$0xff]
  %v83 = vld [vmem:[%s1 + $0x128] sm:$0xff]
  %v84 = vld [vmem:[%s1 + $0x130] sm:$0xff]
  %v85 = vld [vmem:[%s1 + $0x138] sm:$0xff]
  %v86 = vld [vmem:[%s1 + $0x140] sm:$0xff]
  %v87 = vld [vmem:[%s1 + $0x148] sm:$0xff]
  %v88 = vld [vmem:[%s1 + $0x150] sm:$0xff]
  %v89 = vld [vmem:[%s1 + $0x158] sm:$0xff]
  %v90 = vld [vmem:[%s1 + $0x160] sm:$0xff]
  %v91 = vld [vmem:[%s1 + $0x168] sm:$0xff]
  %v92 = vld [vmem:[%s1 + $0x170] sm:$0xff]
  %v93 = vld [vmem:[%s1 + $0x178] sm:$0xff]
  %v94 = vld [vmem:[%s1 + $0x180] sm:$0xff]
  %v95 = vld [vmem:[%s1 + $0x188] sm:$0xff]
  %v96 = vld [vmem:[%s1 + $0x190] sm:$0xff]
  %v97 = vld [vmem:[%s1 + $0x198] sm:$0xff]
  %v98 = vld [vmem:[%s1 + $0x1a0] sm:$0xff]
  %v99 = vld [vmem:[%s1 + $0x1a8] sm:$0xff]
  %v100 = vld [vmem:[%s1 + $0x1b0] sm:$0xff]
  %v101 = vld [vmem:[%s1 + $0x1b8] sm:$0xff]
  %v102 = vld [vmem:[%s1 + $0x1c0] sm:$0xff]
  %v103 = vld [vmem:[%s1 + $0x1c8] sm:$0xff]
  %v104 = vld [vmem:[%s1 + $0x1d0] sm:$0xff]
  %v105 = vld [vmem:[%s1 + $0x1d8] sm:$0xff]
  %v106 = vld [vmem:[%s1 + $0x1e0] sm:$0xff]
  %v107 = vld [vmem:[%s1 + $0x1e8] sm:$0xff]
  %v108 = vld [vmem:[%s1 + $0x1f0] sm:$0xff]
  %v109 = vld [vmem:[%s1 + $0x1f8] sm:$0xff]
  %v110 = vld [vmem:[%s1 + $0x200] sm:$0xff]
  %v111 = vld [vmem:[%s1 + $0x208] sm:$0xff]
  %v112 = vld [vmem:[%s1 + $0x210] sm:$0xff]
  %v113 = vld [vmem:[%s1 + $0x218] sm:$0xff]
  %v114 = vld [vmem:[%s1 + $0x220] sm:$0xff]
  %v115 = vld [vmem:[%s1 + $0x228] sm:$0xff]
  %v116 = vld [vmem:[%s1 + $0x230] sm:$0xff]
  %v117 = vld [vmem:[%s1 + $0x238] sm:$0xff]
  %v118 = vld [vmem:[%s1 + $0x240] sm:$0xff]
  %v119 = vld [vmem:[%s1 + $0x248] sm:$0xff]
  %v120 = vld [vmem:[%s1 + $0x250] sm:$0xff]
  %v121 = vld [vmem:[%s1 + $0x258] sm:$0xff]
  %v122 = vld [vmem:[%s1 + $0x260] sm:$0xff]
  %v123 = vld [vmem:[%s1 + $0x268] sm:$0xff]
  %v124 = vld [vmem:[%s1 + $0x270] sm:$0xff]
  %v125 = vld [vmem:[%s1 + $0x278] sm:$0xff]
  %v126 = vld [vmem:[%s1 + $0x280] sm:$0xff]
  %v127 = vld [vmem:[%s1 + $0x288] sm:$0xff]
  %v128 = vld [vmem:[%s1 + $0x290] sm:$0xff]
  %v129 = vld [vmem:[%s1 + $0x298] sm:$0xff]
  %v130 = vld [vmem:[%s1 + $0x2a0] sm:$0xff]
  %v131 = vld [vmem:[%s1 + $0x2a8] sm:$0xff]
  %v132 = vld [vmem:[%s1 + $0x2b0] sm:$0xff]
  %v133 = vld [vmem:[%s1 + $0x2b8] sm:$0xff]
  %v134 = vld [vmem:[%s1 + $0x2c0] sm:$0xff]
  %v135 = vld [vmem:[%s1 + $0x2c8] sm:$0xff]
  %v136 = vld [vmem:[%s1 + $0x2d0] sm:$0xff]
  %v137 = vld [vmem:[%s1 + $0x2d8] sm:$0xff]
  %v138 = vld [vmem:[%s1 + $0x2e0] sm:$0xff]
  %v139 = vld [vmem:[%s1 + $0x2e8] sm:$0xff]
  %v140 = vld [vmem:[%s1 + $0x2f0] sm:$0xff]
  %v141 = vld [vmem:[%s1 + $0x2f8] sm:$0xff]
  %v142 = vld [vmem:[%s1 + $0x300] sm:$0xff]
  %v143 = vld [vmem:[%s1 + $0x308] sm:$0xff]
  %v144 = vld [vmem:[%s1 + $0x310] sm:$0xff]
  %v145 = vld [vmem:[%s1 + $0x318] sm:$0xff]
  %v146 = vld [vmem:[%s1 + $0x320] sm:$0xff]
  %v147 = vld [vmem:[%s1 + $0x328] sm:$0xff]
  %v148 = vld [vmem:[%s1 + $0x330] sm:$0xff]
  %v149 = vld [vmem:[%s1 + $0x338] sm:$0xff]
  %v150 = vld [vmem:[%s1 + $0x340] sm:$0xff]
  %v151 = vld [vmem:[%s1 + $0x348] sm:$0xff]
  %v152 = vld [vmem:[%s1 + $0x350] sm:$0xff]
  %v153 = vld [vmem:[%s1 + $0x358] sm:$0xff]
  %v154 = vld [vmem:[%s1 + $0x360] sm:$0xff]
  %v155 = vld [vmem:[%s1 + $0x368] sm:$0xff]
  %v156 = vld [vmem:[%s1 + $0x370] sm:$0xff]
  %v157 = vld [vmem:[%s1 + $0x378] sm:$0xff]
  %v158 = vld [vmem:[%s1 + $0x380] sm:$0xff]
  %v159 = vld [vmem:[%s1 + $0x388] sm:$0xff]
  %v160 = vld [vmem:[%s1 + $0x390] sm:$0xff]
  %v161 = vld [vmem:[%s1 + $0x398] sm:$0xff]
  %v162 = vld [vmem:[%s1 + $0x3a0] sm:$0xff]
  %v163 = vld [vmem:[%s1 + $0x3a8] sm:$0xff]
  %v164 = vld [vmem:[%s1 + $0x3b0] sm:$0xff]
  %v165 = vld [vmem:[%s1 + $0x3b8] sm:$0xff]
  %v166 = vld [vmem:[%s1 + $0x3c0] sm:$0xff]
  %v167 = vld [vmem:[%s1 + $0x3c8] sm:$0xff]
  %v168 = vld [vmem:[%s1 + $0x3d0] sm:$0xff]
  %v169 = vld [vmem:[%s1 + $0x3d8] sm:$0xff]
  %v170 = vld [vmem:[%s1 + $0x3e0] sm:$0xff]
  %v171 = vld [vmem:[%s1 + $0x3e8] sm:$0xff]
  %v172 = vld [vmem:[%s1 + $0x3f0] sm:$0xff]
  %v173 = vld [vmem:[%s1 + $0x3f8] sm:$0xff]
  %v174 = vld [vmem:[%s2] sm:$0xff]
  %v175 = vld [vmem:[%s2 + $0x8] sm:$0xff]
  %v176 = vld [vmem:[%s2 + $0x10] sm:$0xff]
  %v177 = vld [vmem:[%s2 + $0x18] sm:$0xff]
  %v178 = vld [vmem:[%s2 + $0x20] sm:$0xff]
  %v179 = vld [vmem:[%s2 + $0x28] sm:$0xff]
  %v180 = vld [vmem:[%s2 + $0x30] sm:$0xff]
  %v181 = vld [vmem:[%s2 + $0x38] sm:$0xff]
  %183 = vset.pattern.permute.xlu0 0
  %184 = vperm.xlu0 %183, %v174
  %v185 = vpop.permute.xlu0 %184
  %188 = vset.pattern.permute.xlu0 0
  %189 = vperm.xlu0 %188, %v175
  %v190 = vpop.permute.xlu0 %189
  %193 = vset.pattern.permute.xlu0 0
  %194 = vperm.xlu0 %193, %v176
  %v195 = vpop.permute.xlu0 %194
  %198 = vset.pattern.permute.xlu0 0
  %199 = vperm.xlu0 %198, %v177
  %v200 = vpop.permute.xlu0 %199
  %203 = vset.pattern.permute.xlu0 0
  %204 = vperm.xlu0 %203, %v178
  %v205 = vpop.permute.xlu0 %204
  %208 = vset.pattern.permute.xlu0 0
  %209 = vperm.xlu0 %208, %v179
  %v210 = vpop.permute.xlu0 %209
  %213 = vset.pattern.permute.xlu0 0
  %214 = vperm.xlu0 %213, %v180
  %v215 = vpop.permute.xlu0 %214
  %218 = vset.pattern.permute.xlu0 0
  %219 = vperm.xlu0 %218, %v181
  %v220 = vpop.permute.xlu0 %219
  %222 = vmatprep.subr.mxu0 %v47
  %223 = vmatpush1.msra.mxu0 %v46
  %224 = vmatprep.subr.mxu0 %v49
  %225 = vmatpush1.msra.mxu0 %v48
  %226 = vmatprep.subr.mxu0 %v51
  %227 = vmatpush1.msra.mxu0 %v50
  %228 = vmatprep.subr.mxu0 %v53
  %229 = vmatpush1.msra.mxu0 %v52
  %230 = vmatprep.subr.mxu0 %v55
  %231 = vmatpush1.msra.mxu0 %v54
  %232 = vmatprep.subr.mxu0 %v57
  %233 = vmatpush1.msra.mxu0 %v56
  %234 = vmatprep.subr.mxu0 %v59
  %235 = vmatpush1.msra.mxu0 %v58
  %236 = vmatprep.subr.mxu0 %v61
  %237 = vmatpush1.msra.mxu0 %v60
  %238 = vmatprep.subr.mxu0 %v63
  %239 = vmatpush1.msra.mxu0 %v62
  %240 = vmatprep.subr.mxu0 %v65
  %241 = vmatpush1.msra.mxu0 %v64
  %242 = vmatprep.subr.mxu0 %v67
  %243 = vmatpush1.msra.mxu0 %v66
  %244 = vmatprep.subr.mxu0 %v69
  %245 = vmatpush1.msra.mxu0 %v68
  %246 = vmatprep.subr.mxu0 %v71
  %247 = vmatpush1.msra.mxu0 %v70
  %248 = vmatprep.subr.mxu0 %v73
  %249 = vmatpush1.msra.mxu0 %v72
  %250 = vmatprep.subr.mxu0 %v75
  %251 = vmatpush1.msra.mxu0 %v74
  %252 = vmatprep.subr.mxu0 %v77
  %253 = vmatpush1.msra.mxu0 %v76
  %254 = vmatprep.subr.mxu0 %v79
  %255 = vmatpush1.msra.mxu0 %v78
  %256 = vmatprep.subr.mxu0 %v81
  %257 = vmatpush1.msra.mxu0 %v80
  %258 = vmatprep.subr.mxu0 %v83
  %259 = vmatpush1.msra.mxu0 %v82
  %260 = vmatprep.subr.mxu0 %v85
  %261 = vmatpush1.msra.mxu0 %v84
  %262 = vmatprep.subr.mxu0 %v87
  %263 = vmatpush1.msra.mxu0 %v86
  %264 = vmatprep.subr.mxu0 %v89
  %265 = vmatpush1.msra.mxu0 %v88
  %266 = vmatprep.subr.mxu0 %v91
  %267 = vmatpush1.msra.mxu0 %v90
  %268 = vmatprep.subr.mxu0 %v93
  %269 = vmatpush1.msra.mxu0 %v92
  %270 = vmatprep.subr.mxu0 %v95
  %271 = vmatpush1.msra.mxu0 %v94
  %272 = vmatprep.subr.mxu0 %v97
  %273 = vmatpush1.msra.mxu0 %v96
  %274 = vmatprep.subr.mxu0 %v99
  %275 = vmatpush1.msra.mxu0 %v98
  %276 = vmatprep.subr.mxu0 %v101
  %277 = vmatpush1.msra.mxu0 %v100
  %278 = vmatprep.subr.mxu0 %v103
  %279 = vmatpush1.msra.mxu0 %v102
  %280 = vmatprep.subr.mxu0 %v105
  %281 = vmatpush1.msra.mxu0 %v104
  %282 = vmatprep.subr.mxu0 %v107
  %283 = vmatpush1.msra.mxu0 %v106
  %284 = vmatprep.subr.mxu0 %v109
  %285 = vmatpush1.msra.mxu0 %v108
  %286 = vmatprep.mubr.f32.mxu0 %v15
  %287 = vmatmul.mubr.f32.gmra.mrb[0].mxu0 %v14
  %v288 = vpop.f32.mrb[0].mxu0
  %v289 = vadd.f32 %v185, %v288
  %v290 = vpop.f32.mrb[0].mxu0
  %v291 = vadd.f32 %v185, %v290
  %292 = vmatprep.mubr.f32.mxu0 %v19
  %293 = vmatmul.mubr.f32.gmra.mrb[0].mxu0 %v18
  %v294 = vpop.f32.mrb[0].mxu0
  %v295 = vadd.f32 %v190, %v294
  %v296 = vpop.f32.mrb[0].mxu0
  %v297 = vadd.f32 %v190, %v296
  %298 = vmatprep.mubr.f32.mxu0 %v23
  %299 = vmatmul.mubr.f32.gmra.mrb[0].mxu0 %v22
  %v300 = vpop.f32.mrb[0].mxu0
  %v301 = vadd.f32 %v195, %v300
  %v302 = vpop.f32.mrb[0].mxu0
  %v303 = vadd.f32 %v195, %v302
  %304 = vmatprep.mubr.f32.mxu0 %v27
  %305 = vmatmul.mubr.f32.gmra.mrb[0].mxu0 %v26
  %v306 = vpop.f32.mrb[0].mxu0
  %v307 = vadd.f32 %v200, %v306
  %v308 = vpop.f32.mrb[0].mxu0
  %v309 = vadd.f32 %v200, %v308
  %310 = vmatprep.mubr.f32.mxu0 %v31
  %311 = vmatmul.mubr.f32.gmra.mrb[0].mxu0 %v30
  %v312 = vpop.f32.mrb[0].mxu0
  %v313 = vadd.f32 %v205, %v312
  %v314 = vpop.f32.mrb[0].mxu0
  %v315 = vadd.f32 %v205, %v314
  %316 = vmatprep.mubr.f32.mxu0 %v35
  %317 = vmatmul.mubr.f32.gmra.mrb[0].mxu0 %v34
  %v318 = vpop.f32.mrb[0].mxu0
  %v319 = vadd.f32 %v210, %v318
  %v320 = vpop.f32.mrb[0].mxu0
  %v321 = vadd.f32 %v210, %v320
  %322 = vmatprep.mubr.f32.mxu0 %v39
  %323 = vmatmul.mubr.f32.gmra.mrb[0].mxu0 %v38
  %v324 = vpop.f32.mrb[0].mxu0
  %v325 = vadd.f32 %v215, %v324
  %v326 = vpop.f32.mrb[0].mxu0
  %v327 = vadd.f32 %v215, %v326
  %328 = vmatprep.mubr.f32.mxu0 %v43
  %329 = vmatmul.mubr.f32.gmra.mrb[0].mxu0 %v42
  %v330 = vpop.f32.mrb[0].mxu0
  %v331 = vadd.f32 %v220, %v330
  %v332 = vpop.f32.mrb[0].mxu0
  %v333 = vadd.f32 %v220, %v332
  %334 = vdwg.mxu0
  %335 = vmatprep.subr.mxu0 %v111
  %336 = vmatpush1.msra.mxu0 %v110
  %337 = vmatprep.subr.mxu0 %v113
  %338 = vmatpush1.msra.mxu0 %v112
  %339 = vmatprep.subr.mxu0 %v115
  %340 = vmatpush1.msra.mxu0 %v114
  %341 = vmatprep.subr.mxu0 %v117
  %342 = vmatpush1.msra.mxu0 %v116
  %343 = vmatprep.subr.mxu0 %v119
  %344 = vmatpush1.msra.mxu0 %v118
  %345 = vmatprep.subr.mxu0 %v121
  %346 = vmatpush1.msra.mxu0 %v120
  %347 = vmatprep.subr.mxu0 %v123
  %348 = vmatpush1.msra.mxu0 %v122
  %349 = vmatprep.subr.mxu0 %v125
  %350 = vmatpush1.msra.mxu0 %v124
  %351 = vmatprep.subr.mxu0 %v127
  %352 = vmatpush1.msra.mxu0 %v126
  %353 = vmatprep.subr.mxu0 %v129
  %354 = vmatpush1.msra.mxu0 %v128
  %355 = vmatprep.subr.mxu0 %v131
  %356 = vmatpush1.msra.mxu0 %v130
  %357 = vmatprep.subr.mxu0 %v133
  %358 = vmatpush1.msra.mxu0 %v132
  %359 = vmatprep.subr.mxu0 %v135
  %360 = vmatpush1.msra.mxu0 %v134
  %361 = vmatprep.subr.mxu0 %v137
  %362 = vmatpush1.msra.mxu0 %v136
  %363 = vmatprep.subr.mxu0 %v139
  %364 = vmatpush1.msra.mxu0 %v138
  %365 = vmatprep.subr.mxu0 %v141
  %366 = vmatpush1.msra.mxu0 %v140
  %367 = vmatprep.subr.mxu0 %v143
  %368 = vmatpush1.msra.mxu0 %v142
  %369 = vmatprep.subr.mxu0 %v145
  %370 = vmatpush1.msra.mxu0 %v144
  %371 = vmatprep.subr.mxu0 %v147
  %372 = vmatpush1.msra.mxu0 %v146
  %373 = vmatprep.subr.mxu0 %v149
  %374 = vmatpush1.msra.mxu0 %v148
  %375 = vmatprep.subr.mxu0 %v151
  %376 = vmatpush1.msra.mxu0 %v150
  %377 = vmatprep.subr.mxu0 %v153
  %378 = vmatpush1.msra.mxu0 %v152
  %379 = vmatprep.subr.mxu0 %v155
  %380 = vmatpush1.msra.mxu0 %v154
  %381 = vmatprep.subr.mxu0 %v157
  %382 = vmatpush1.msra.mxu0 %v156
  %383 = vmatprep.subr.mxu0 %v159
  %384 = vmatpush1.msra.mxu0 %v158
  %385 = vmatprep.subr.mxu0 %v161
  %386 = vmatpush1.msra.mxu0 %v160
  %387 = vmatprep.subr.mxu0 %v163
  %388 = vmatpush1.msra.mxu0 %v162
  %389 = vmatprep.subr.mxu0 %v165
  %390 = vmatpush1.msra.mxu0 %v164
  %391 = vmatprep.subr.mxu0 %v167
  %392 = vmatpush1.msra.mxu0 %v166
  %393 = vmatprep.subr.mxu0 %v169
  %394 = vmatpush1.msra.mxu0 %v168
  %395 = vmatprep.subr.mxu0 %v171
  %396 = vmatpush1.msra.mxu0 %v170
  %397 = vmatprep.subr.mxu0 %v173
  %398 = vmatpush1.msra.mxu0 %v172
  %399 = vmatprep.mubr.f32.mxu0 %v17
  %400 = vmatmul.mubr.f32.gmra.mrb[0].mxu0 %v16
  %v401 = vpop.f32.mrb[0].mxu0
  %v402 = vadd.f32 %v289, %v401
  %v403 = vpop.f32.mrb[0].mxu0
  %v404 = vadd.f32 %v291, %v403
  %405 = vmatprep.mubr.f32.mxu0 %v21
  %406 = vmatmul.mubr.f32.gmra.mrb[0].mxu0 %v20
  %v407 = vpop.f32.mrb[0].mxu0
  %v408 = vadd.f32 %v295, %v407
  %v409 = vpop.f32.mrb[0].mxu0
  %v410 = vadd.f32 %v297, %v409
  %411 = vmatprep.mubr.f32.mxu0 %v25
  %412 = vmatmul.mubr.f32.gmra.mrb[0].mxu0 %v24
  %v413 = vpop.f32.mrb[0].mxu0
  %v414 = vadd.f32 %v301, %v413
  %v415 = vpop.f32.mrb[0].mxu0
  %v416 = vadd.f32 %v303, %v415
  %417 = vmatprep.mubr.f32.mxu0 %v29
  %418 = vmatmul.mubr.f32.gmra.mrb[0].mxu0 %v28
  %v419 = vpop.f32.mrb[0].mxu0
  %v420 = vadd.f32 %v307, %v419
  %v421 = vpop.f32.mrb[0].mxu0
  %v422 = vadd.f32 %v309, %v421
  %423 = vmatprep.mubr.f32.mxu0 %v33
  %424 = vmatmul.mubr.f32.gmra.mrb[0].mxu0 %v32
  %v425 = vpop.f32.mrb[0].mxu0
  %v426 = vadd.f32 %v313, %v425
  %v427 = vpop.f32.mrb[0].mxu0
  %v428 = vadd.f32 %v315, %v427
  %429 = vmatprep.mubr.f32.mxu0 %v37
  %430 = vmatmul.mubr.f32.gmra.mrb[0].mxu0 %v36
  %v431 = vpop.f32.mrb[0].mxu0
  %v432 = vadd.f32 %v319, %v431
  %v433 = vpop.f32.mrb[0].mxu0
  %v434 = vadd.f32 %v321, %v433
  %435 = vmatprep.mubr.f32.mxu0 %v41
  %436 = vmatmul.mubr.f32.gmra.mrb[0].mxu0 %v40
  %v437 = vpop.f32.mrb[0].mxu0
  %v438 = vadd.f32 %v325, %v437
  %v439 = vpop.f32.mrb[0].mxu0
  %v440 = vadd.f32 %v327, %v439
  %441 = vmatprep.mubr.f32.mxu0 %v45
  %442 = vmatmul.mubr.f32.gmra.mrb[0].mxu0 %v44
  %v443 = vpop.f32.mrb[0].mxu0
  %v444 = vadd.f32 %v331, %v443
  %v445 = vpop.f32.mrb[0].mxu0
  %v446 = vadd.f32 %v333, %v445
  %447 = vdwg.mxu0
  %v448 = vmax.f32 %v402, 0.0
  %v449 = vmax.f32 %v404, 0.0
  %v450 = vmax.f32 %v408, 0.0
  %v451 = vmax.f32 %v410, 0.0
  %v452 = vmax.f32 %v414, 0.0
  %v453 = vmax.f32 %v416, 0.0
  %v454 = vmax.f32 %v420, 0.0
  %v455 = vmax.f32 %v422, 0.0
  %v456 = vmax.f32 %v426, 0.0
  %v457 = vmax.f32 %v428, 0.0
  %v458 = vmax.f32 %v432, 0.0
  %v459 = vmax.f32 %v434, 0.0
  %v460 = vmax.f32 %v438, 0.0
  %v461 = vmax.f32 %v440, 0.0
  %v462 = vmax.f32 %v444, 0.0
  %v463 = vmax.f32 %v446, 0.0
  %464 = vst [vmem:[%s3] sm:$0xff] %v448
  %vm465 = vcmask 277504
  %466 = vst.msk [vmem:[%s3 + $0x8] sm:$0xff] %vm465, %v449
  %467 = vst [vmem:[%s3 + $0x10] sm:$0xff] %v450
  %468 = vst.msk [vmem:[%s3 + $0x18] sm:$0xff] %vm465, %v451
  %469 = vst [vmem:[%s3 + $0x20] sm:$0xff] %v452
  %470 = vst.msk [vmem:[%s3 + $0x28] sm:$0xff] %vm465, %v453
  %471 = vst [vmem:[%s3 + $0x30] sm:$0xff] %v454
  %472 = vst.msk [vmem:[%s3 + $0x38] sm:$0xff] %vm465, %v455
  %473 = vst [vmem:[%s3 + $0x40] sm:$0xff] %v456
  %474 = vst.msk [vmem:[%s3 + $0x48] sm:$0xff] %vm465, %v457
  %475 = vst [vmem:[%s3 + $0x50] sm:$0xff] %v458
  %476 = vst.msk [vmem:[%s3 + $0x58] sm:$0xff] %vm465, %v459
  %477 = vst [vmem:[%s3 + $0x60] sm:$0xff] %v460
  %478 = vst.msk [vmem:[%s3 + $0x68] sm:$0xff] %vm465, %v461
  %479 = vst [vmem:[%s3 + $0x70] sm:$0xff] %v462
  %480 = vst.msk [vmem:[%s3 + $0x78] sm:$0xff] %vm465, %v463
  // Predicated region
  $region14: #{actor_forward.5} parent=0 // pred_check
    _
  $region15: #{actor_forward.5} parent=0 // pred_check_branch
    %482 = sbr.rel (0) target = $region17
  $region16: #{actor_forward.5} parent=0 // pred_region
    _
  $region17: #{actor_forward.5} parent=0 // pred_fallthru
    _
  // Predicated region
  $region18: #{actor_forward.5} parent=0 // pred_check
    _
  $region19: #{actor_forward.5} parent=0 // pred_check_branch
    %484 = sbr.rel (0) target = $region21
  $region20: #{actor_forward.5} parent=0 // pred_region
    _
  $region21: #{actor_forward.5} parent=0 // pred_fallthru
    _

// kernel: actor_forward.6
$region0: #{actor_forward.6}
  #allocation0 [shape = 'u32[]', space=smem, size = 0x4, offset = 0x4, fixed_abs, tag = 'smem constant byte address 0x4 - core index']
  #allocation1 [shape = 'u32[144,128]{1,0:T(1,128)}', space=vmem, size = 0x12000, scoped, tag = 'internal scratch']
  %s0 = inlined_call_operand.vmem [shape: f32[64,576], index: 0, kind: input, shape index: {}]
  %s1 = inlined_call_operand.vmem [shape: f32[576,98], index: 1, kind: input, shape index: {}]
  %s2 = inlined_call_operand.vmem [shape: f32[64,1], index: 2, kind: input, shape index: {}]
  %s3 = inlined_call_operand.vmem [shape: f32[64,98], index: 3, kind: output, shape index: {}]
  %s4 = sld [smem:[#allocation0]]
  $region22: #{actor_forward.6} parent=0
    _
  %s6 = ssub.s32 1, %s4
  %s7 = scalar_select 0, %s6, %s4
  // Predicated region
  $region2: #{actor_forward.6} parent=0 // pred_check
    _
  $region3: #{actor_forward.6} parent=0 // pred_check_branch
    %9 = sbr.rel (0) target = $region5
  $region4: #{actor_forward.6} parent=0 // pred_region
    _
  $region5: #{actor_forward.6} parent=0 // pred_fallthru
    _
  // Predicated region
  $region6: #{actor_forward.6} parent=0 // pred_check
    _
  $region7: #{actor_forward.6} parent=0 // pred_check_branch
    %11 = sbr.rel (0) target = $region9
  $region8: #{actor_forward.6} parent=0 // pred_region
    _
  $region9: #{actor_forward.6} parent=0 // pred_fallthru
    _
  // Predicated region
  $region10: #{actor_forward.6} parent=0 // pred_check
    _
  $region11: #{actor_forward.6} parent=0 // pred_check_branch
    %13 = sbr.rel (0) target = $region13
  $region12: #{actor_forward.6} parent=0 // pred_region
    _
  $region13: #{actor_forward.6} parent=0 // pred_fallthru
    _
  %v14 = vld [vmem:[%s0] sm:$0xff]
  %v15 = vld [vmem:[%s0 + $0x8] sm:$0xff]
  %v16 = vld [vmem:[%s0 + $0x10] sm:$0xff]
  %v17 = vld [vmem:[%s0 + $0x18] sm:$0xff]
  %v18 = vld [vmem:[%s0 + $0x20] sm:$0xff]
  %v19 = vld [vmem:[%s0 + $0x28] sm:$0xff]
  %v20 = vld [vmem:[%s0 + $0x30] sm:$0xff]
  %v21 = vld [vmem:[%s0 + $0x38] sm:$0xff]
  %v22 = vld [vmem:[%s0 + $0x40] sm:$0xff]
  %v23 = vld [vmem:[%s0 + $0x48] sm:$0xff]
  %v24 = vld [vmem:[%s0 + $0x50] sm:$0xff]
  %v25 = vld [vmem:[%s0 + $0x58] sm:$0xff]
  %v26 = vld [vmem:[%s0 + $0x60] sm:$0xff]
  %v27 = vld [vmem:[%s0 + $0x68] sm:$0xff]
  %v28 = vld [vmem:[%s0 + $0x70] sm:$0xff]
  %v29 = vld [vmem:[%s0 + $0x78] sm:$0xff]
  %v30 = vld [vmem:[%s0 + $0x80] sm:$0xff]
  %v31 = vld [vmem:[%s0 + $0x88] sm:$0xff]
  %v32 = vld [vmem:[%s0 + $0x90] sm:$0xff]
  %v33 = vld [vmem:[%s0 + $0x98] sm:$0xff]
  %v34 = vld [vmem:[%s0 + $0xa0] sm:$0xff]
  %v35 = vld [vmem:[%s0 + $0xa8] sm:$0xff]
  %v36 = vld [vmem:[%s0 + $0xb0] sm:$0xff]
  %v37 = vld [vmem:[%s0 + $0xb8] sm:$0xff]
  %v38 = vld [vmem:[%s0 + $0xc0] sm:$0xff]
  %v39 = vld [vmem:[%s0 + $0xc8] sm:$0xff]
  %v40 = vld [vmem:[%s0 + $0xd0] sm:$0xff]
  %v41 = vld [vmem:[%s0 + $0xd8] sm:$0xff]
  %v42 = vld [vmem:[%s0 + $0xe0] sm:$0xff]
  %v43 = vld [vmem:[%s0 + $0xe8] sm:$0xff]
  %v44 = vld [vmem:[%s0 + $0xf0] sm:$0xff]
  %v45 = vld [vmem:[%s0 + $0xf8] sm:$0xff]
  %v46 = vld [vmem:[%s0 + $0x100] sm:$0xff]
  %v47 = vld [vmem:[%s0 + $0x108] sm:$0xff]
  %v48 = vld [vmem:[%s0 + $0x110] sm:$0xff]
  %v49 = vld [vmem:[%s0 + $0x118] sm:$0xff]
  %v50 = vld [vmem:[%s0 + $0x120] sm:$0xff]
  %v51 = vld [vmem:[%s0 + $0x128] sm:$0xff]
  %v52 = vld [vmem:[%s0 + $0x130] sm:$0xff]
  %v53 = vld [vmem:[%s0 + $0x138] sm:$0xff]
  %v54 = vld [vmem:[%s1] sm:$0xff]
  %v55 = vld [vmem:[%s1 + $0x8] sm:$0xff]
  %v56 = vld [vmem:[%s1 + $0x10] sm:$0xff]
  %v57 = vld [vmem:[%s1 + $0x18] sm:$0xff]
  %v58 = vld [vmem:[%s1 + $0x20] sm:$0xff]
  %v59 = vld [vmem:[%s1 + $0x28] sm:$0xff]
  %v60 = vld [vmem:[%s1 + $0x30] sm:$0xff]
  %v61 = vld [vmem:[%s1 + $0x38] sm:$0xff]
  %v62 = vld [vmem:[%s1 + $0x40] sm:$0xff]
  %v63 = vld [vmem:[%s1 + $0x48] sm:$0xff]
  %v64 = vld [vmem:[%s1 + $0x50] sm:$0xff]
  %v65 = vld [vmem:[%s1 + $0x58] sm:$0xff]
  %v66 = vld [vmem:[%s1 + $0x60] sm:$0xff]
  %v67 = vld [vmem:[%s1 + $0x68] sm:$0xff]
  %v68 = vld [vmem:[%s1 + $0x70] sm:$0xff]
  %v69 = vld [vmem:[%s1 + $0x78] sm:$0xff]
  %v70 = vld [vmem:[%s1 + $0x80] sm:$0xff]
  %v71 = vld [vmem:[%s1 + $0x88] sm:$0xff]
  %v72 = vld [vmem:[%s1 + $0x90] sm:$0xff]
  %v73 = vld [vmem:[%s1 + $0x98] sm:$0xff]
  %v74 = vld [vmem:[%s1 + $0xa0] sm:$0xff]
  %v75 = vld [vmem:[%s1 + $0xa8] sm:$0xff]
  %v76 = vld [vmem:[%s1 + $0xb0] sm:$0xff]
  %v77 = vld [vmem:[%s1 + $0xb8] sm:$0xff]
  %v78 = vld [vmem:[%s1 + $0xc0] sm:$0xff]
  %v79 = vld [vmem:[%s1 + $0xc8] sm:$0xff]
  %v80 = vld [vmem:[%s1 + $0xd0] sm:$0xff]
  %v81 = vld [vmem:[%s1 + $0xd8] sm:$0xff]
  %v82 = vld [vmem:[%s1 + $0xe0] sm:$0xff]
  %v83 = vld [vmem:[%s1 + $0xe8] sm:$0xff]
  %v84 = vld [vmem:[%s1 + $0xf0] sm:$0xff]
  %v85 = vld [vmem:[%s1 + $0xf8] sm:$0xff]
  %v86 = vld [vmem:[%s1 + $0x100] sm:$0xff]
  %v87 = vld [vmem:[%s1 + $0x108] sm:$0xff]
  %v88 = vld [vmem:[%s1 + $0x110] sm:$0xff]
  %v89 = vld [vmem:[%s1 + $0x118] sm:$0xff]
  %v90 = vld [vmem:[%s1 + $0x120] sm:$0xff]
  %v91 = vld [vmem:[%s1 + $0x128] sm:$0xff]
  %v92 = vld [vmem:[%s1 + $0x130] sm:$0xff]
  %v93 = vld [vmem:[%s1 + $0x138] sm:$0xff]
  %v94 = vld [vmem:[%s1 + $0x140] sm:$0xff]
  %v95 = vld [vmem:[%s1 + $0x148] sm:$0xff]
  %v96 = vld [vmem:[%s1 + $0x150] sm:$0xff]
  %v97 = vld [vmem:[%s1 + $0x158] sm:$0xff]
  %v98 = vld [vmem:[%s1 + $0x160] sm:$0xff]
  %v99 = vld [vmem:[%s1 + $0x168] sm:$0xff]
  %v100 = vld [vmem:[%s1 + $0x170] sm:$0xff]
  %v101 = vld [vmem:[%s1 + $0x178] sm:$0xff]
  %v102 = vld [vmem:[%s1 + $0x180] sm:$0xff]
  %v103 = vld [vmem:[%s1 + $0x188] sm:$0xff]
  %v104 = vld [vmem:[%s1 + $0x190] sm:$0xff]
  %v105 = vld [vmem:[%s1 + $0x198] sm:$0xff]
  %v106 = vld [vmem:[%s1 + $0x1a0] sm:$0xff]
  %v107 = vld [vmem:[%s1 + $0x1a8] sm:$0xff]
  %v108 = vld [vmem:[%s1 + $0x1b0] sm:$0xff]
  %v109 = vld [vmem:[%s1 + $0x1b8] sm:$0xff]
  %v110 = vld [vmem:[%s1 + $0x1c0] sm:$0xff]
  %v111 = vld [vmem:[%s1 + $0x1c8] sm:$0xff]
  %v112 = vld [vmem:[%s1 + $0x1d0] sm:$0xff]
  %v113 = vld [vmem:[%s1 + $0x1d8] sm:$0xff]
  %v114 = vld [vmem:[%s1 + $0x1e0] sm:$0xff]
  %v115 = vld [vmem:[%s1 + $0x1e8] sm:$0xff]
  %v116 = vld [vmem:[%s1 + $0x1f0] sm:$0xff]
  %v117 = vld [vmem:[%s1 + $0x1f8] sm:$0xff]
  %v118 = vld [vmem:[%s1 + $0x200] sm:$0xff]
  %v119 = vld [vmem:[%s1 + $0x208] sm:$0xff]
  %v120 = vld [vmem:[%s1 + $0x210] sm:$0xff]
  %v121 = vld [vmem:[%s1 + $0x218] sm:$0xff]
  %v122 = vld [vmem:[%s1 + $0x220] sm:$0xff]
  %v123 = vld [vmem:[%s1 + $0x228] sm:$0xff]
  %v124 = vld [vmem:[%s1 + $0x230] sm:$0xff]
  %v125 = vld [vmem:[%s1 + $0x238] sm:$0xff]
  %v126 = vld [vmem:[%s2] sm:$0xff]
  %v127 = vld [vmem:[%s2 + $0x8] sm:$0xff]
  %v128 = vld [vmem:[%s2 + $0x10] sm:$0xff]
  %v129 = vld [vmem:[%s2 + $0x18] sm:$0xff]
  %v130 = vld [vmem:[%s2 + $0x20] sm:$0xff]
  %v131 = vld [vmem:[%s2 + $0x28] sm:$0xff]
  %v132 = vld [vmem:[%s2 + $0x30] sm:$0xff]
  %v133 = vld [vmem:[%s2 + $0x38] sm:$0xff]
  %135 = vset.pattern.permute.xlu0 0
  %136 = vperm.xlu0 %135, %v126
  %v137 = vpop.permute.xlu0 %136
  %140 = vset.pattern.permute.xlu0 0
  %141 = vperm.xlu0 %140, %v127
  %v142 = vpop.permute.xlu0 %141
  %145 = vset.pattern.permute.xlu0 0
  %146 = vperm.xlu0 %145, %v128
  %v147 = vpop.permute.xlu0 %146
  %150 = vset.pattern.permute.xlu0 0
  %151 = vperm.xlu0 %150, %v129
  %v152 = vpop.permute.xlu0 %151
  %155 = vset.pattern.permute.xlu0 0
  %156 = vperm.xlu0 %155, %v130
  %v157 = vpop.permute.xlu0 %156
  %160 = vset.pattern.permute.xlu0 0
  %161 = vperm.xlu0 %160, %v131
  %v162 = vpop.permute.xlu0 %161
  %165 = vset.pattern.permute.xlu0 0
  %166 = vperm.xlu0 %165, %v132
  %v167 = vpop.permute.xlu0 %166
  %170 = vset.pattern.permute.xlu0 0
  %171 = vperm.xlu0 %170, %v133
  %v172 = vpop.permute.xlu0 %171
  %vm174 = vcmask 523264
  %v176 = vsel %vm174, %v18, 0
  %v179 = vsel %vm174, %v23, 0
  %v182 = vsel %vm174, %v28, 0
  %v185 = vsel %vm174, %v33, 0
  %v188 = vsel %vm174, %v38, 0
  %v191 = vsel %vm174, %v43, 0
  %v194 = vsel %vm174, %v48, 0
  %v197 = vsel %vm174, %v53, 0
  %199 = vmatprep.subr.mxu0 0.0
  %200 = vmatpush1.msra.mxu0 %v54
  %201 = vmatprep.subr.mxu0 0.0
  %202 = vmatpush1.msra.mxu0 %v55
  %203 = vmatprep.subr.mxu0 0.0
  %204 = vmatpush1.msra.mxu0 %v56
  %205 = vmatprep.subr.mxu0 0.0
  %206 = vmatpush1.msra.mxu0 %v57
  %207 = vmatprep.subr.mxu0 0.0
  %208 = vmatpush1.msra.mxu0 %v58
  %209 = vmatprep.subr.mxu0 0.0
  %210 = vmatpush1.msra.mxu0 %v59
  %211 = vmatprep.subr.mxu0 0.0
  %212 = vmatpush1.msra.mxu0 %v60
  %213 = vmatprep.subr.mxu0 0.0
  %214 = vmatpush1.msra.mxu0 %v61
  %215 = vmatprep.subr.mxu0 0.0
  %216 = vmatpush1.msra.mxu0 %v62
  %217 = vmatprep.subr.mxu0 0.0
  %218 = vmatpush1.msra.mxu0 %v63
  %219 = vmatprep.subr.mxu0 0.0
  %220 = vmatpush1.msra.mxu0 %v64
  %221 = vmatprep.subr.mxu0 0.0
  %222 = vmatpush1.msra.mxu0 %v65
  %223 = vmatprep.subr.mxu0 0.0
  %224 = vmatpush1.msra.mxu0 %v66
  %225 = vmatprep.subr.mxu0 0.0
  %226 = vmatpush1.msra.mxu0 %v67
  %227 = vmatprep.subr.mxu0 0.0
  %228 = vmatpush1.msra.mxu0 %v68
  %229 = vmatprep.subr.mxu0 0.0
  %230 = vmatpush1.msra.mxu0 %v69
  %231 = vmatprep.subr.mxu0 0.0
  %232 = vmatpush1.msra.mxu0 %v70
  %233 = vmatprep.subr.mxu0 0.0
  %234 = vmatpush1.msra.mxu0 %v71
  %235 = vmatprep.subr.mxu0 0.0
  %236 = vmatpush1.msra.mxu0 %v72
  %237 = vmatprep.subr.mxu0 0.0
  %238 = vmatpush1.msra.mxu0 %v73
  %239 = vmatprep.subr.mxu0 0.0
  %240 = vmatpush1.msra.mxu0 %v74
  %241 = vmatprep.subr.mxu0 0.0
  %242 = vmatpush1.msra.mxu0 %v75
  %243 = vmatprep.subr.mxu0 0.0
  %244 = vmatpush1.msra.mxu0 %v76
  %245 = vmatprep.subr.mxu0 0.0
  %246 = vmatpush1.msra.mxu0 %v77
  %247 = vmatprep.subr.mxu0 0.0
  %248 = vmatpush1.msra.mxu0 %v78
  %249 = vmatprep.subr.mxu0 0.0
  %250 = vmatpush1.msra.mxu0 %v79
  %251 = vmatprep.subr.mxu0 0.0
  %252 = vmatpush1.msra.mxu0 %v80
  %253 = vmatprep.subr.mxu0 0.0
  %254 = vmatpush1.msra.mxu0 %v81
  %255 = vmatprep.subr.mxu0 0.0
  %256 = vmatpush1.msra.mxu0 %v82
  %257 = vmatprep.subr.mxu0 0.0
  %258 = vmatpush1.msra.mxu0 %v83
  %259 = vmatprep.subr.mxu0 0.0
  %260 = vmatpush1.msra.mxu0 %v84
  %261 = vmatprep.subr.mxu0 0.0
  %262 = vmatpush1.msra.mxu0 %v85
  %263 = vmatprep.mubr.f32.mxu0 %v15
  %264 = vmatmul.mubr.f32.gmra.mrb[0].mxu0 %v14
  %v265 = vpop.f32.mrb[0].mxu0
  %v266 = vadd.f32 %v137, %v265
  %v267 = vpop.f32.mrb[0].mxu0
  %268 = vmatprep.mubr.f32.mxu0 %v20
  %269 = vmatmul.mubr.f32.gmra.mrb[0].mxu0 %v19
  %v270 = vpop.f32.mrb[0].mxu0
  %v271 = vadd.f32 %v142, %v270
  %v272 = vpop.f32.mrb[0].mxu0
  %273 = vmatprep.mubr.f32.mxu0 %v25
  %274 = vmatmul.mubr.f32.gmra.mrb[0].mxu0 %v24
  %v275 = vpop.f32.mrb[0].mxu0
  %v276 = vadd.f32 %v147, %v275
  %v277 = vpop.f32.mrb[0].mxu0
  %278 = vmatprep.mubr.f32.mxu0 %v30
  %279 = vmatmul.mubr.f32.gmra.mrb[0].mxu0 %v29
  %v280 = vpop.f32.mrb[0].mxu0
  %v281 = vadd.f32 %v152, %v280
  %v282 = vpop.f32.mrb[0].mxu0
  %283 = vmatprep.mubr.f32.mxu0 %v35
  %284 = vmatmul.mubr.f32.gmra.mrb[0].mxu0 %v34
  %v285 = vpop.f32.mrb[0].mxu0
  %v286 = vadd.f32 %v157, %v285
  %v287 = vpop.f32.mrb[0].mxu0
  %288 = vmatprep.mubr.f32.mxu0 %v40
  %289 = vmatmul.mubr.f32.gmra.mrb[0].mxu0 %v39
  %v290 = vpop.f32.mrb[0].mxu0
  %v291 = vadd.f32 %v162, %v290
  %v292 = vpop.f32.mrb[0].mxu0
  %293 = vmatprep.mubr.f32.mxu0 %v45
  %294 = vmatmul.mubr.f32.gmra.mrb[0].mxu0 %v44
  %v295 = vpop.f32.mrb[0].mxu0
  %v296 = vadd.f32 %v167, %v295
  %v297 = vpop.f32.mrb[0].mxu0
  %298 = vmatprep.mubr.f32.mxu0 %v50
  %299 = vmatmul.mubr.f32.gmra.mrb[0].mxu0 %v49
  %v300 = vpop.f32.mrb[0].mxu0
  %v301 = vadd.f32 %v172, %v300
  %v302 = vpop.f32.mrb[0].mxu0
  %303 = vdwg.mxu0
  %304 = vmatprep.subr.mxu0 0.0
  %305 = vmatpush1.msra.mxu0 %v86
  %306 = vmatprep.subr.mxu0 0.0
  %307 = vmatpush1.msra.mxu0 %v87
  %308 = vmatprep.subr.mxu0 0.0
  %309 = vmatpush1.msra.mxu0 %v88
  %310 = vmatprep.subr.mxu0 0.0
  %311 = vmatpush1.msra.mxu0 %v89
  %312 = vmatprep.subr.mxu0 0.0
  %313 = vmatpush1.msra.mxu0 %v90
  %314 = vmatprep.subr.mxu0 0.0
  %315 = vmatpush1.msra.mxu0 %v91
  %316 = vmatprep.subr.mxu0 0.0
  %317 = vmatpush1.msra.mxu0 %v92
  %318 = vmatprep.subr.mxu0 0.0
  %319 = vmatpush1.msra.mxu0 %v93
  %320 = vmatprep.subr.mxu0 0.0
  %321 = vmatpush1.msra.mxu0 %v94
  %322 = vmatprep.subr.mxu0 0.0
  %323 = vmatpush1.msra.mxu0 %v95
  %324 = vmatprep.subr.mxu0 0.0
  %325 = vmatpush1.msra.mxu0 %v96
  %326 = vmatprep.subr.mxu0 0.0
  %327 = vmatpush1.msra.mxu0 %v97
  %328 = vmatprep.subr.mxu0 0.0
  %329 = vmatpush1.msra.mxu0 %v98
  %330 = vmatprep.subr.mxu0 0.0
  %331 = vmatpush1.msra.mxu0 %v99
  %332 = vmatprep.subr.mxu0 0.0
  %333 = vmatpush1.msra.mxu0 %v100
  %334 = vmatprep.subr.mxu0 0.0
  %335 = vmatpush1.msra.mxu0 %v101
  %336 = vmatprep.subr.mxu0 0.0
  %337 = vmatpush1.msra.mxu0 %v102
  %338 = vmatprep.subr.mxu0 0.0
  %339 = vmatpush1.msra.mxu0 %v103
  %340 = vmatprep.subr.mxu0 0.0
  %341 = vmatpush1.msra.mxu0 %v104
  %342 = vmatprep.subr.mxu0 0.0
  %343 = vmatpush1.msra.mxu0 %v105
  %344 = vmatprep.subr.mxu0 0.0
  %345 = vmatpush1.msra.mxu0 %v106
  %346 = vmatprep.subr.mxu0 0.0
  %347 = vmatpush1.msra.mxu0 %v107
  %348 = vmatprep.subr.mxu0 0.0
  %349 = vmatpush1.msra.mxu0 %v108
  %350 = vmatprep.subr.mxu0 0.0
  %351 = vmatpush1.msra.mxu0 %v109
  %352 = vmatprep.subr.mxu0 0.0
  %353 = vmatpush1.msra.mxu0 %v110
  %354 = vmatprep.subr.mxu0 0.0
  %355 = vmatpush1.msra.mxu0 %v111
  %356 = vmatprep.subr.mxu0 0.0
  %357 = vmatpush1.msra.mxu0 %v112
  %358 = vmatprep.subr.mxu0 0.0
  %359 = vmatpush1.msra.mxu0 %v113
  %360 = vmatprep.subr.mxu0 0.0
  %361 = vmatpush1.msra.mxu0 %v114
  %362 = vmatprep.subr.mxu0 0.0
  %363 = vmatpush1.msra.mxu0 %v115
  %364 = vmatprep.subr.mxu0 0.0
  %365 = vmatpush1.msra.mxu0 %v116
  %366 = vmatprep.subr.mxu0 0.0
  %367 = vmatpush1.msra.mxu0 %v117
  %368 = vmatprep.mubr.f32.mxu0 %v17
  %369 = vmatmul.mubr.f32.gmra.mrb[0].mxu0 %v16
  %v370 = vpop.f32.mrb[0].mxu0
  %v371 = vadd.f32 %v266, %v370
  %v372 = vpop.f32.mrb[0].mxu0
  %373 = vmatprep.mubr.f32.mxu0 %v22
  %374 = vmatmul.mubr.f32.gmra.mrb[0].mxu0 %v21
  %v375 = vpop.f32.mrb[0].mxu0
  %v376 = vadd.f32 %v271, %v375
  %v377 = vpop.f32.mrb[0].mxu0
  %378 = vmatprep.mubr.f32.mxu0 %v27
  %379 = vmatmul.mubr.f32.gmra.mrb[0].mxu0 %v26
  %v380 = vpop.f32.mrb[0].mxu0
  %v381 = vadd.f32 %v276, %v380
  %v382 = vpop.f32.mrb[0].mxu0
  %383 = vmatprep.mubr.f32.mxu0 %v32
  %384 = vmatmul.mubr.f32.gmra.mrb[0].mxu0 %v31
  %v385 = vpop.f32.mrb[0].mxu0
  %v386 = vadd.f32 %v281, %v385
  %v387 = vpop.f32.mrb[0].mxu0
  %388 = vmatprep.mubr.f32.mxu0 %v37
  %389 = vmatmul.mubr.f32.gmra.mrb[0].mxu0 %v36
  %v390 = vpop.f32.mrb[0].mxu0
  %v391 = vadd.f32 %v286, %v390
  %v392 = vpop.f32.mrb[0].mxu0
  %393 = vmatprep.mubr.f32.mxu0 %v42
  %394 = vmatmul.mubr.f32.gmra.mrb[0].mxu0 %v41
  %v395 = vpop.f32.mrb[0].mxu0
  %v396 = vadd.f32 %v291, %v395
  %v397 = vpop.f32.mrb[0].mxu0
  %398 = vmatprep.mubr.f32.mxu0 %v47
  %399 = vmatmul.mubr.f32.gmra.mrb[0].mxu0 %v46
  %v400 = vpop.f32.mrb[0].mxu0
  %v401 = vadd.f32 %v296, %v400
  %v402 = vpop.f32.mrb[0].mxu0
  %403 = vmatprep.mubr.f32.mxu0 %v52
  %404 = vmatmul.mubr.f32.gmra.mrb[0].mxu0 %v51
  %v405 = vpop.f32.mrb[0].mxu0
  %v406 = vadd.f32 %v301, %v405
  %v407 = vpop.f32.mrb[0].mxu0
  %408 = vdwg.mxu0
  %409 = vmatprep.subr.mxu0 0.0
  %410 = vmatpush1.msra.mxu0 %v118
  %411 = vmatprep.subr.mxu0 0.0
  %412 = vmatpush1.msra.mxu0 %v119
  %413 = vmatprep.subr.mxu0 0.0
  %414 = vmatpush1.msra.mxu0 %v120
  %415 = vmatprep.subr.mxu0 0.0
  %416 = vmatpush1.msra.mxu0 %v121
  %417 = vmatprep.subr.mxu0 0.0
  %418 = vmatpush1.msra.mxu0 %v122
  %419 = vmatprep.subr.mxu0 0.0
  %420 = vmatpush1.msra.mxu0 %v123
  %421 = vmatprep.subr.mxu0 0.0
  %422 = vmatpush1.msra.mxu0 %v124
  %423 = vmatprep.subr.mxu0 0.0
  %424 = vmatpush1.msra.mxu0 %v125
  %425 = vmatprep.subr.mxu0 0.0
  %426 = vmatpush1.msra.mxu0 0.0
  %427 = vmatprep.subr.mxu0 0.0
  %428 = vmatpush1.msra.mxu0 0.0
  %429 = vmatprep.subr.mxu0 0.0
  %430 = vmatpush1.msra.mxu0 0.0
  %431 = vmatprep.subr.mxu0 0.0
  %432 = vmatpush1.msra.mxu0 0.0
  %433 = vmatprep.subr.mxu0 0.0
  %434 = vmatpush1.msra.mxu0 0.0
  %435 = vmatprep.subr.mxu0 0.0
  %436 = vmatpush1.msra.mxu0 0.0
  %437 = vmatprep.subr.mxu0 0.0
  %438 = vmatpush1.msra.mxu0 0.0
  %439 = vmatprep.subr.mxu0 0.0
  %440 = vmatpush1.msra.mxu0 0.0
  %441 = vmatprep.subr.mxu0 0.0
  %442 = vmatpush1.msra.mxu0 0.0
  %443 = vmatprep.subr.mxu0 0.0
  %444 = vmatpush1.msra.mxu0 0.0
  %445 = vmatprep.subr.mxu0 0.0
  %446 = vmatpush1.msra.mxu0 0.0
  %447 = vmatprep.subr.mxu0 0.0
  %448 = vmatpush1.msra.mxu0 0.0
  %449 = vmatprep.subr.mxu0 0.0
  %450 = vmatpush1.msra.mxu0 0.0
  %451 = vmatprep.subr.mxu0 0.0
  %452 = vmatpush1.msra.mxu0 0.0
  %453 = vmatprep.subr.mxu0 0.0
  %454 = vmatpush1.msra.mxu0 0.0
  %455 = vmatprep.subr.mxu0 0.0
  %456 = vmatpush1.msra.mxu0 0.0
  %457 = vmatprep.subr.mxu0 0.0
  %458 = vmatpush1.msra.mxu0 0.0
  %459 = vmatprep.subr.mxu0 0.0
  %460 = vmatpush1.msra.mxu0 0.0
  %461 = vmatprep.subr.mxu0 0.0
  %462 = vmatpush1.msra.mxu0 0.0
  %463 = vmatprep.subr.mxu0 0.0
  %464 = vmatpush1.msra.mxu0 0.0
  %465 = vmatprep.subr.mxu0 0.0
  %466 = vmatpush1.msra.mxu0 0.0
  %467 = vmatprep.subr.mxu0 0.0
  %468 = vmatpush1.msra.mxu0 0.0
  %469 = vmatprep.subr.mxu0 0.0
  %470 = vmatpush1.msra.mxu0 0.0
  %471 = vmatprep.subr.mxu0 0.0
  %472 = vmatpush1.msra.mxu0 0.0
  %473 = vmatprep.mubr.f32.mxu0 0.0
  %474 = vmatmul.mubr.f32.gmra.mrb[0].mxu0 %v176
  %v475 = vpop.f32.mrb[0].mxu0
  %v476 = vadd.f32 %v371, %v475
  %v477 = vpop.f32.mrb[0].mxu0
  %478 = vmatprep.mubr.f32.mxu0 0.0
  %479 = vmatmul.mubr.f32.gmra.mrb[0].mxu0 %v179
  %v480 = vpop.f32.mrb[0].mxu0
  %v481 = vadd.f32 %v376, %v480
  %v482 = vpop.f32.mrb[0].mxu0
  %483 = vmatprep.mubr.f32.mxu0 0.0
  %484 = vmatmul.mubr.f32.gmra.mrb[0].mxu0 %v182
  %v485 = vpop.f32.mrb[0].mxu0
  %v486 = vadd.f32 %v381, %v485
  %v487 = vpop.f32.mrb[0].mxu0
  %488 = vmatprep.mubr.f32.mxu0 0.0
  %489 = vmatmul.mubr.f32.gmra.mrb[0].mxu0 %v185
  %v490 = vpop.f32.mrb[0].mxu0
  %v491 = vadd.f32 %v386, %v490
  %v492 = vpop.f32.mrb[0].mxu0
  %493 = vmatprep.mubr.f32.mxu0 0.0
  %494 = vmatmul.mubr.f32.gmra.mrb[0].mxu0 %v188
  %v495 = vpop.f32.mrb[0].mxu0
  %v496 = vadd.f32 %v391, %v495
  %v497 = vpop.f32.mrb[0].mxu0
  %498 = vmatprep.mubr.f32.mxu0 0.0
  %499 = vmatmul.mubr.f32.gmra.mrb[0].mxu0 %v191
  %v500 = vpop.f32.mrb[0].mxu0
  %v501 = vadd.f32 %v396, %v500
  %v502 = vpop.f32.mrb[0].mxu0
  %503 = vmatprep.mubr.f32.mxu0 0.0
  %504 = vmatmul.mubr.f32.gmra.mrb[0].mxu0 %v194
  %v505 = vpop.f32.mrb[0].mxu0
  %v506 = vadd.f32 %v401, %v505
  %v507 = vpop.f32.mrb[0].mxu0
  %508 = vmatprep.mubr.f32.mxu0 0.0
  %509 = vmatmul.mubr.f32.gmra.mrb[0].mxu0 %v197
  %v510 = vpop.f32.mrb[0].mxu0
  %v511 = vadd.f32 %v406, %v510
  %v512 = vpop.f32.mrb[0].mxu0
  %513 = vdwg.mxu0
  %v514 = vmax.f32 %v476, 0.0
  %v515 = vmax.f32 %v481, 0.0
  %v516 = vmax.f32 %v486, 0.0
  %v517 = vmax.f32 %v491, 0.0
  %v518 = vmax.f32 %v496, 0.0
  %v519 = vmax.f32 %v501, 0.0
  %v520 = vmax.f32 %v506, 0.0
  %v521 = vmax.f32 %v511, 0.0
  %vm522 = vcmask 801792
  %523 = vst.msk [vmem:[%s3] sm:$0xff] %vm522, %v514
  %524 = vst.msk [vmem:[%s3 + $0x8] sm:$0xff] %vm522, %v515
  %525 = vst.msk [vmem:[%s3 + $0x10] sm:$0xff] %vm522, %v516
  %526 = vst.msk [vmem:[%s3 + $0x18] sm:$0xff] %vm522, %v517
  %527 = vst.msk [vmem:[%s3 + $0x20] sm:$0xff] %vm522, %v518
  %528 = vst.msk [vmem:[%s3 + $0x28] sm:$0xff] %vm522, %v519
  %529 = vst.msk [vmem:[%s3 + $0x30] sm:$0xff] %vm522, %v520
  %530 = vst.msk [vmem:[%s3 + $0x38] sm:$0xff] %vm522, %v521
  // Predicated region
  $region14: #{actor_forward.6} parent=0 // pred_check
    _
  $region15: #{actor_forward.6} parent=0 // pred_check_branch
    %532 = sbr.rel (0) target = $region17
  $region16: #{actor_forward.6} parent=0 // pred_region
    _
  $region17: #{actor_forward.6} parent=0 // pred_fallthru
    _
  // Predicated region
  $region18: #{actor_forward.6} parent=0 // pred_check
    _
  $region19: #{actor_forward.6} parent=0 // pred_check_branch
    %534 = sbr.rel (0) target = $region21
  $region20: #{actor_forward.6} parent=0 // pred_region
    _
  $region21: #{actor_forward.6} parent=0 // pred_fallthru
    _

// kernel: actor_forward.7
$region0: #{actor_forward.7}
  #allocation0 [shape = 'u32[]', space=smem, size = 0x4, offset = 0x4, fixed_abs, tag = 'smem constant byte address 0x4 - core index']
  #allocation1 [shape = 'u32[144,128]{1,0:T(1,128)}', space=vmem, size = 0x12000, scoped, tag = 'internal scratch']
  %s0 = inlined_call_operand.vmem [shape: f32[8,3136], index: 0, kind: input, shape index: {}]
  %s1 = inlined_call_operand.vmem [shape: f32[3136,512], index: 1, kind: input, shape index: {}]
  %s2 = inlined_call_operand.vmem [shape: f32[1,512], index: 2, kind: input, shape index: {}]
  %s3 = inlined_call_operand.vmem [shape: f32[512,16], index: 3, kind: input, shape index: {}]
  %s4 = inlined_call_operand.vmem [shape: f32[1,16], index: 4, kind: input, shape index: {}]
  %s5 = inlined_call_operand.vmem [shape: f32[8,16], index: 5, kind: output, shape index: {}]
  %s6 = sld [smem:[#allocation0]]
  $region30: #{actor_forward.7} parent=0
    _
  %s8 = ssub.s32 1, %s6
  %s9 = scalar_select 0, %s8, %s6
  // Predicated region
  $region2: #{actor_forward.7} parent=0 // pred_check
    _
  $region3: #{actor_forward.7} parent=0 // pred_check_branch
    %11 = sbr.rel (0) target = $region5
  $region4: #{actor_forward.7} parent=0 // pred_region
    _
  $region5: #{actor_forward.7} parent=0 // pred_fallthru
    _
  // Predicated region
  $region6: #{actor_forward.7} parent=0 // pred_check
    _
  $region7: #{actor_forward.7} parent=0 // pred_check_branch
    %13 = sbr.rel (0) target = $region9
  $region8: #{actor_forward.7} parent=0 // pred_region
    _
  $region9: #{actor_forward.7} parent=0 // pred_fallthru
    _
  // Predicated region
  $region10: #{actor_forward.7} parent=0 // pred_check
    _
  $region11: #{actor_forward.7} parent=0 // pred_check_branch
    %15 = sbr.rel (0) target = $region13
  $region12: #{actor_forward.7} parent=0 // pred_region
    _
  $region13: #{actor_forward.7} parent=0 // pred_fallthru
    _
  // Predicated region
  $region14: #{actor_forward.7} parent=0 // pred_check
    _
  $region15: #{actor_forward.7} parent=0 // pred_check_branch
    %17 = sbr.rel (0) target = $region17
  $region16: #{actor_forward.7} parent=0 // pred_region
    _
  $region17: #{actor_forward.7} parent=0 // pred_fallthru
    _
  // Predicated region
  $region18: #{actor_forward.7} parent=0 // pred_check
    _
  $region19: #{actor_forward.7} parent=0 // pred_check_branch
    %19 = sbr.rel (0) target = $region21
  $region20: #{actor_forward.7} parent=0 // pred_region
    _
  $region21: #{actor_forward.7} parent=0 // pred_fallthru
    _
  %v20 = vld [vmem:[%s0] sm:$0xff]
  %v21 = vld [vmem:[%s0 + $0x8] sm:$0xff]
  %v22 = vld [vmem:[%s0 + $0x10] sm:$0xff]
  %v23 = vld [vmem:[%s0 + $0x18] sm:$0xff]
  %v24 = vld [vmem:[%s0 + $0x20] sm:$0xff]
  %v25 = vld [vmem:[%s0 + $0x28] sm:$0xff]
  %v26 = vld [vmem:[%s0 + $0x30] sm:$0xff]
  %v27 = vld [vmem:[%s0 + $0x38] sm:$0xff]
  %v28 = vld [vmem:[%s0 + $0x40] sm:$0xff]
  %v29 = vld [vmem:[%s0 + $0x48] sm:$0xff]
  %v30 = vld [vmem:[%s0 + $0x50] sm:$0xff]
  %v31 = vld [vmem:[%s0 + $0x58] sm:$0xff]
  %v32 = vld [vmem:[%s0 + $0x60] sm:$0xff]
  %v33 = vld [vmem:[%s0 + $0x68] sm:$0xff]
  %v34 = vld [vmem:[%s0 + $0x70] sm:$0xff]
  %v35 = vld [vmem:[%s0 + $0x78] sm:$0xff]
  %v36 = vld [vmem:[%s0 + $0x80] sm:$0xff]
  %v37 = vld [vmem:[%s0 + $0x88] sm:$0xff]
  %v38 = vld [vmem:[%s0 + $0x90] sm:$0xff]
  %v39 = vld [vmem:[%s0 + $0x98] sm:$0xff]
  %v40 = vld [vmem:[%s0 + $0xa0] sm:$0xff]
  %v41 = vld [vmem:[%s0 + $0xa8] sm:$0xff]
  %v42 = vld [vmem:[%s0 + $0xb0] sm:$0xff]
  %v43 = vld [vmem:[%s0 + $0xb8] sm:$0xff]
  %v44 = vld [vmem:[%s0 + $0xc0] sm:$0xff]
  %v45 = vld [vmem:[%s1] sm:$0xff]
  %v46 = vld [vmem:[%s1 + $0x8] sm:$0xff]
  %v47 = vld [vmem:[%s1 + $0x10] sm:$0xff]
  %v48 = vld [vmem:[%s1 + $0x18] sm:$0xff]
  %v49 = vld [vmem:[%s1 + $0x20] sm:$0xff]
  %v50 = vld [vmem:[%s1 + $0x28] sm:$0xff]
  %v51 = vld [vmem:[%s1 + $0x30] sm:$0xff]
  %v52 = vld [vmem:[%s1 + $0x38] sm:$0xff]
  %v53 = vld [vmem:[%s1 + $0x40] sm:$0xff]
  %v54 = vld [vmem:[%s1 + $0x48] sm:$0xff]
  %v55 = vld [vmem:[%s1 + $0x50] sm:$0xff]
  %v56 = vld [vmem:[%s1 + $0x58] sm:$0xff]
  %v57 = vld [vmem:[%s1 + $0x60] sm:$0xff]
  %v58 = vld [vmem:[%s1 + $0x68] sm:$0xff]
  %v59 = vld [vmem:[%s1 + $0x70] sm:$0xff]
  %v60 = vld [vmem:[%s1 + $0x78] sm:$0xff]
  %v61 = vld [vmem:[%s1 + $0x80] sm:$0xff]
  %v62 = vld [vmem:[%s1 + $0x88] sm:$0xff]
  %v63 = vld [vmem:[%s1 + $0x90] sm:$0xff]
  %v64 = vld [vmem:[%s1 + $0x98] sm:$0xff]
  %v65 = vld [vmem:[%s1 + $0xa0] sm:$0xff]
  %v66 = vld [vmem:[%s1 + $0xa8] sm:$0xff]
  %v67 = vld [vmem:[%s1 + $0xb0] sm:$0xff]
  %v68 = vld [vmem:[%s1 + $0xb8] sm:$0xff]
  %v69 = vld [vmem:[%s1 + $0xc0] sm:$0xff]
  %v70 = vld [vmem:[%s1 + $0xc8] sm:$0xff]
  %v71 = vld [vmem:[%s1 + $0xd0] sm:$0xff]
  %v72 = vld [vmem:[%s1 + $0xd8] sm:$0xff]
  %v73 = vld [vmem:[%s1 + $0xe0] sm:$0xff]
  %v74 = vld [vmem:[%s1 + $0xe8] sm:$0xff]
  %v75 = vld [vmem:[%s1 + $0xf0] sm:$0xff]
  %v76 = vld [vmem:[%s1 + $0xf8] sm:$0xff]
  %v77 = vld [vmem:[%s1 + $0x100] sm:$0xff]
  %v78 = vld [vmem:[%s1 + $0x108] sm:$0xff]
  %v79 = vld [vmem:[%s1 + $0x110] sm:$0xff]
  %v80 = vld [vmem:[%s1 + $0x118] sm:$0xff]
  %v81 = vld [vmem:[%s1 + $0x120] sm:$0xff]
  %v82 = vld [vmem:[%s1 + $0x128] sm:$0xff]
  %v83 = vld [vmem:[%s1 + $0x130] sm:$0xff]
  %v84 = vld [vmem:[%s1 + $0x138] sm:$0xff]
  %v85 = vld [vmem:[%s1 + $0x140] sm:$0xff]
  %v86 = vld [vmem:[%s1 + $0x148] sm:$0xff]
  %v87 = vld [vmem:[%s1 + $0x150] sm:$0xff]
  %v88 = vld [vmem:[%s1 + $0x158] sm:$0xff]
  %v89 = vld [vmem:[%s1 + $0x160] sm:$0xff]
  %v90 = vld [vmem:[%s1 + $0x168] sm:$0xff]
  %v91 = vld [vmem:[%s1 + $0x170] sm:$0xff]
  %v92 = vld [vmem:[%s1 + $0x178] sm:$0xff]
  %v93 = vld [vmem:[%s1 + $0x180] sm:$0xff]
  %v94 = vld [vmem:[%s1 + $0x188] sm:$0xff]
  %v95 = vld [vmem:[%s1 + $0x190] sm:$0xff]
  %v96 = vld [vmem:[%s1 + $0x198] sm:$0xff]
  %v97 = vld [vmem:[%s1 + $0x1a0] sm:$0xff]
  %v98 = vld [vmem:[%s1 + $0x1a8] sm:$0xff]
  %v99 = vld [vmem:[%s1 + $0x1b0] sm:$0xff]
  %v100 = vld [vmem:[%s1 + $0x1b8] sm:$0xff]
  %v101 = vld [vmem:[%s1 + $0x1c0] sm:$0xff]
  %v102 = vld [vmem:[%s1 + $0x1c8] sm:$0xff]
  %v103 = vld [vmem:[%s1 + $0x1d0] sm:$0xff]
  %v104 = vld [vmem:[%s1 + $0x1d8] sm:$0xff]
  %v105 = vld [vmem:[%s1 + $0x1e0] sm:$0xff]
  %v106 = vld [vmem:[%s1 + $0x1e8] sm:$0xff]
  %v107 = vld [vmem:[%s1 + $0x1f0] sm:$0xff]
  %v108 = vld [vmem:[%s1 + $0x1f8] sm:$0xff]
  %v109 = vld [vmem:[%s1 + $0x200] sm:$0xff]
  %v110 = vld [vmem:[%s1 + $0x208] sm:$0xff]
  %v111 = vld [vmem:[%s1 + $0x210] sm:$0xff]
  %v112 = vld [vmem:[%s1 + $0x218] sm:$0xff]
  %v113 = vld [vmem:[%s1 + $0x220] sm:$0xff]
  %v114 = vld [vmem:[%s1 + $0x228] sm:$0xff]
  %v115 = vld [vmem:[%s1 + $0x230] sm:$0xff]
  %v116 = vld [vmem:[%s1 + $0x238] sm:$0xff]
  %v117 = vld [vmem:[%s1 + $0x240] sm:$0xff]
  %v118 = vld [vmem:[%s1 + $0x248] sm:$0xff]
  %v119 = vld [vmem:[%s1 + $0x250] sm:$0xff]
  %v120 = vld [vmem:[%s1 + $0x258] sm:$0xff]
  %v121 = vld [vmem:[%s1 + $0x260] sm:$0xff]
  %v122 = vld [vmem:[%s1 + $0x268] sm:$0xff]
  %v123 = vld [vmem:[%s1 + $0x270] sm:$0xff]
  %v124 = vld [vmem:[%s1 + $0x278] sm:$0xff]
  %v125 = vld [vmem:[%s1 + $0x280] sm:$0xff]
  %v126 = vld [vmem:[%s1 + $0x288] sm:$0xff]
  %v127 = vld [vmem:[%s1 + $0x290] sm:$0xff]
  %v128 = vld [vmem:[%s1 + $0x298] sm:$0xff]
  %v129 = vld [vmem:[%s1 + $0x2a0] sm:$0xff]
  %v130 = vld [vmem:[%s1 + $0x2a8] sm:$0xff]
  %v131 = vld [vmem:[%s1 + $0x2b0] sm:$0xff]
  %v132 = vld [vmem:[%s1 + $0x2b8] sm:$0xff]
  %v133 = vld [vmem:[%s1 + $0x2c0] sm:$0xff]
  %v134 = vld [vmem:[%s1 + $0x2c8] sm:$0xff]
  %v135 = vld [vmem:[%s1 + $0x2d0] sm:$0xff]
  %v136 = vld [vmem:[%s1 + $0x2d8] sm:$0xff]
  %v137 = vld [vmem:[%s1 + $0x2e0] sm:$0xff]
  %v138 = vld [vmem:[%s1 + $0x2e8] sm:$0xff]
  %v139 = vld [vmem:[%s1 + $0x2f0] sm:$0xff]
  %v140 = vld [vmem:[%s1 + $0x2f8] sm:$0xff]
  %v141 = vld [vmem:[%s1 + $0x300] sm:$0xff]
  %v142 = vld [vmem:[%s1 + $0x308] sm:$0xff]
  %v143 = vld [vmem:[%s1 + $0x310] sm:$0xff]
  %v144 = vld [vmem:[%s1 + $0x318] sm:$0xff]
  %v145 = vld [vmem:[%s1 + $0x320] sm:$0xff]
  %v146 = vld [vmem:[%s1 + $0x328] sm:$0xff]
  %v147 = vld [vmem:[%s1 + $0x330] sm:$0xff]
  %v148 = vld [vmem:[%s1 + $0x338] sm:$0xff]
  %v149 = vld [vmem:[%s1 + $0x340] sm:$0xff]
  %v150 = vld [vmem:[%s1 + $0x348] sm:$0xff]
  %v151 = vld [vmem:[%s1 + $0x350] sm:$0xff]
  %v152 = vld [vmem:[%s1 + $0x358] sm:$0xff]
  %v153 = vld [vmem:[%s1 + $0x360] sm:$0xff]
  %v154 = vld [vmem:[%s1 + $0x368] sm:$0xff]
  %v155 = vld [vmem:[%s1 + $0x370] sm:$0xff]
  %v156 = vld [vmem:[%s1 + $0x378] sm:$0xff]
  %v157 = vld [vmem:[%s1 + $0x380] sm:$0xff]
  %v158 = vld [vmem:[%s1 + $0x388] sm:$0xff]
  %v159 = vld [vmem:[%s1 + $0x390] sm:$0xff]
  %v160 = vld [vmem:[%s1 + $0x398] sm:$0xff]
  %v161 = vld [vmem:[%s1 + $0x3a0] sm:$0xff]
  %v162 = vld [vmem:[%s1 + $0x3a8] sm:$0xff]
  %v163 = vld [vmem:[%s1 + $0x3b0] sm:$0xff]
  %v164 = vld [vmem:[%s1 + $0x3b8] sm:$0xff]
  %v165 = vld [vmem:[%s1 + $0x3c0] sm:$0xff]
  %v166 = vld [vmem:[%s1 + $0x3c8] sm:$0xff]
  %v167 = vld [vmem:[%s1 + $0x3d0] sm:$0xff]
  %v168 = vld [vmem:[%s1 + $0x3d8] sm:$0xff]
  %v169 = vld [vmem:[%s1 + $0x3e0] sm:$0xff]
  %v170 = vld [vmem:[%s1 + $0x3e8] sm:$0xff]
  %v171 = vld [vmem:[%s1 + $0x3f0] sm:$0xff]
  %v172 = vld [vmem:[%s1 + $0x3f8] sm:$0xff]
  %v173 = vld [vmem:[%s1 + $0x400] sm:$0xff]
  %v174 = vld [vmem:[%s1 + $0x408] sm:$0xff]
  %v175 = vld [vmem:[%s1 + $0x410] sm:$0xff]
  %v176 = vld [vmem:[%s1 + $0x418] sm:$0xff]
  %v177 = vld [vmem:[%s1 + $0x420] sm:$0xff]
  %v178 = vld [vmem:[%s1 + $0x428] sm:$0xff]
  %v179 = vld [vmem:[%s1 + $0x430] sm:$0xff]
  %v180 = vld [vmem:[%s1 + $0x438] sm:$0xff]
  %v181 = vld [vmem:[%s1 + $0x440] sm:$0xff]
  %v182 = vld [vmem:[%s1 + $0x448] sm:$0xff]
  %v183 = vld [vmem:[%s1 + $0x450] sm:$0xff]
  %v184 = vld [vmem:[%s1 + $0x458] sm:$0xff]
  %v185 = vld [vmem:[%s1 + $0x460] sm:$0xff]
  %v186 = vld [vmem:[%s1 + $0x468] sm:$0xff]
  %v187 = vld [vmem:[%s1 + $0x470] sm:$0xff]
  %v188 = vld [vmem:[%s1 + $0x478] sm:$0xff]
  %v189 = vld [vmem:[%s1 + $0x480] sm:$0xff]
  %v190 = vld [vmem:[%s1 + $0x488] sm:$0xff]
  %v191 = vld [vmem:[%s1 + $0x490] sm:$0xff]
  %v192 = vld [vmem:[%s1 + $0x498] sm:$0xff]
  %v193 = vld [vmem:[%s1 + $0x4a0] sm:$0xff]
  %v194 = vld [vmem:[%s1 + $0x4a8] sm:$0xff]
  %v195 = vld [vmem:[%s1 + $0x4b0] sm:$0xff]
  %v196 = vld [vmem:[%s1 + $0x4b8] sm:$0xff]
  %v197 = vld [vmem:[%s1 + $0x4c0] sm:$0xff]
  %v198 = vld [vmem:[%s1 + $0x4c8] sm:$0xff]
  %v199 = vld [vmem:[%s1 + $0x4d0] sm:$0xff]
  %v200 = vld [vmem:[%s1 + $0x4d8] sm:$0xff]
  %v201 = vld [vmem:[%s1 + $0x4e0] sm:$0xff]
  %v202 = vld [vmem:[%s1 + $0x4e8] sm:$0xff]
  %v203 = vld [vmem:[%s1 + $0x4f0] sm:$0xff]
  %v204 = vld [vmem:[%s1 + $0x4f8] sm:$0xff]
  %v205 = vld [vmem:[%s1 + $0x500] sm:$0xff]
  %v206 = vld [vmem:[%s1 + $0x508] sm:$0xff]
  %v207 = vld [vmem:[%s1 + $0x510] sm:$0xff]
  %v208 = vld [vmem:[%s1 + $0x518] sm:$0xff]
  %v209 = vld [vmem:[%s1 + $0x520] sm:$0xff]
  %v210 = vld [vmem:[%s1 + $0x528] sm:$0xff]
  %v211 = vld [vmem:[%s1 + $0x530] sm:$0xff]
  %v212 = vld [vmem:[%s1 + $0x538] sm:$0xff]
  %v213 = vld [vmem:[%s1 + $0x540] sm:$0xff]
  %v214 = vld [vmem:[%s1 + $0x548] sm:$0xff]
  %v215 = vld [vmem:[%s1 + $0x550] sm:$0xff]
  %v216 = vld [vmem:[%s1 + $0x558] sm:$0xff]
  %v217 = vld [vmem:[%s1 + $0x560] sm:$0xff]
  %v218 = vld [vmem:[%s1 + $0x568] sm:$0xff]
  %v219 = vld [vmem:[%s1 + $0x570] sm:$0xff]
  %v220 = vld [vmem:[%s1 + $0x578] sm:$0xff]
  %v221 = vld [vmem:[%s1 + $0x580] sm:$0xff]
  %v222 = vld [vmem:[%s1 + $0x588] sm:$0xff]
  %v223 = vld [vmem:[%s1 + $0x590] sm:$0xff]
  %v224 = vld [vmem:[%s1 + $0x598] sm:$0xff]
  %v225 = vld [vmem:[%s1 + $0x5a0] sm:$0xff]
  %v226 = vld [vmem:[%s1 + $0x5a8] sm:$0xff]
  %v227 = vld [vmem:[%s1 + $0x5b0] sm:$0xff]
  %v228 = vld [vmem:[%s1 + $0x5b8] sm:$0xff]
  %v229 = vld [vmem:[%s1 + $0x5c0] sm:$0xff]
  %v230 = vld [vmem:[%s1 + $0x5c8] sm:$0xff]
  %v231 = vld [vmem:[%s1 + $0x5d0] sm:$0xff]
  %v232 = vld [vmem:[%s1 + $0x5d8] sm:$0xff]
  %v233 = vld [vmem:[%s1 + $0x5e0] sm:$0xff]
  %v234 = vld [vmem:[%s1 + $0x5e8] sm:$0xff]
  %v235 = vld [vmem:[%s1 + $0x5f0] sm:$0xff]
  %v236 = vld [vmem:[%s1 + $0x5f8] sm:$0xff]
  %v237 = vld [vmem:[%s1 + $0x600] sm:$0xff]
  %v238 = vld [vmem:[%s1 + $0x608] sm:$0xff]
  %v239 = vld [vmem:[%s1 + $0x610] sm:$0xff]
  %v240 = vld [vmem:[%s1 + $0x618] sm:$0xff]
  %v241 = vld [vmem:[%s1 + $0x620] sm:$0xff]
  %v242 = vld [vmem:[%s1 + $0x628] sm:$0xff]
  %v243 = vld [vmem:[%s1 + $0x630] sm:$0xff]
  %v244 = vld [vmem:[%s1 + $0x638] sm:$0xff]
  %v245 = vld [vmem:[%s1 + $0x640] sm:$0xff]
  %v246 = vld [vmem:[%s1 + $0x648] sm:$0xff]
  %v247 = vld [vmem:[%s1 + $0x650] sm:$0xff]
  %v248 = vld [vmem:[%s1 + $0x658] sm:$0xff]
  %v249 = vld [vmem:[%s1 + $0x660] sm:$0xff]
  %v250 = vld [vmem:[%s1 + $0x668] sm:$0xff]
  %v251 = vld [vmem:[%s1 + $0x670] sm:$0xff]
  %v252 = vld [vmem:[%s1 + $0x678] sm:$0xff]
  %v253 = vld [vmem:[%s1 + $0x680] sm:$0xff]
  %v254 = vld [vmem:[%s1 + $0x688] sm:$0xff]
  %v255 = vld [vmem:[%s1 + $0x690] sm:$0xff]
  %v256 = vld [vmem:[%s1 + $0x698] sm:$0xff]
  %v257 = vld [vmem:[%s1 + $0x6a0] sm:$0xff]
  %v258 = vld [vmem:[%s1 + $0x6a8] sm:$0xff]
  %v259 = vld [vmem:[%s1 + $0x6b0] sm:$0xff]
  %v260 = vld [vmem:[%s1 + $0x6b8] sm:$0xff]
  %v261 = vld [vmem:[%s1 + $0x6c0] sm:$0xff]
  %v262 = vld [vmem:[%s1 + $0x6c8] sm:$0xff]
  %v263 = vld [vmem:[%s1 + $0x6d0] sm:$0xff]
  %v264 = vld [vmem:[%s1 + $0x6d8] sm:$0xff]
  %v265 = vld [vmem:[%s1 + $0x6e0] sm:$0xff]
  %v266 = vld [vmem:[%s1 + $0x6e8] sm:$0xff]
  %v267 = vld [vmem:[%s1 + $0x6f0] sm:$0xff]
  %v268 = vld [vmem:[%s1 + $0x6f8] sm:$0xff]
  %v269 = vld [vmem:[%s1 + $0x700] sm:$0xff]
  %v270 = vld [vmem:[%s1 + $0x708] sm:$0xff]
  %v271 = vld [vmem:[%s1 + $0x710] sm:$0xff]
  %v272 = vld [vmem:[%s1 + $0x718] sm:$0xff]
  %v273 = vld [vmem:[%s1 + $0x720] sm:$0xff]
  %v274 = vld [vmem:[%s1 + $0x728] sm:$0xff]
  %v275 = vld [vmem:[%s1 + $0x730] sm:$0xff]
  %v276 = vld [vmem:[%s1 + $0x738] sm:$0xff]
  %v277 = vld [vmem:[%s1 + $0x740] sm:$0xff]
  %v278 = vld [vmem:[%s1 + $0x748] sm:$0xff]
  %v279 = vld [vmem:[%s1 + $0x750] sm:$0xff]
  %v280 = vld [vmem:[%s1 + $0x758] sm:$0xff]
  %v281 = vld [vmem:[%s1 + $0x760] sm:$0xff]
  %v282 = vld [vmem:[%s1 + $0x768] sm:$0xff]
  %v283 = vld [vmem:[%s1 + $0x770] sm:$0xff]
  %v284 = vld [vmem:[%s1 + $0x778] sm:$0xff]
  %v285 = vld [vmem:[%s1 + $0x780] sm:$0xff]
  %v286 = vld [vmem:[%s1 + $0x788] sm:$0xff]
  %v287 = vld [vmem:[%s1 + $0x790] sm:$0xff]
  %v288 = vld [vmem:[%s1 + $0x798] sm:$0xff]
  %v289 = vld [vmem:[%s1 + $0x7a0] sm:$0xff]
  %v290 = vld [vmem:[%s1 + $0x7a8] sm:$0xff]
  %v291 = vld [vmem:[%s1 + $0x7b0] sm:$0xff]
  %v292 = vld [vmem:[%s1 + $0x7b8] sm:$0xff]
  %v293 = vld [vmem:[%s1 + $0x7c0] sm:$0xff]
  %v294 = vld [vmem:[%s1 + $0x7c8] sm:$0xff]
  %v295 = vld [vmem:[%s1 + $0x7d0] sm:$0xff]
  %v296 = vld [vmem:[%s1 + $0x7d8] sm:$0xff]
  %v297 = vld [vmem:[%s1 + $0x7e0] sm:$0xff]
  %v298 = vld [vmem:[%s1 + $0x7e8] sm:$0xff]
  %v299 = vld [vmem:[%s1 + $0x7f0] sm:$0xff]
  %v300 = vld [vmem:[%s1 + $0x7f8] sm:$0xff]
  %v301 = vld [vmem:[%s1 + $0x800] sm:$0xff]
  %v302 = vld [vmem:[%s1 + $0x808] sm:$0xff]
  %v303 = vld [vmem:[%s1 + $0x810] sm:$0xff]
  %v304 = vld [vmem:[%s1 + $0x818] sm:$0xff]
  %v305 = vld [vmem:[%s1 + $0x820] sm:$0xff]
  %v306 = vld [vmem:[%s1 + $0x828] sm:$0xff]
  %v307 = vld [vmem:[%s1 + $0x830] sm:$0xff]
  %v308 = vld [vmem:[%s1 + $0x838] sm:$0xff]
  %v309 = vld [vmem:[%s1 + $0x840] sm:$0xff]
  %v310 = vld [vmem:[%s1 + $0x848] sm:$0xff]
  %v311 = vld [vmem:[%s1 + $0x850] sm:$0xff]
  %v312 = vld [vmem:[%s1 + $0x858] sm:$0xff]
  %v313 = vld [vmem:[%s1 + $0x860] sm:$0xff]
  %v314 = vld [vmem:[%s1 + $0x868] sm:$0xff]
  %v315 = vld [vmem:[%s1 + $0x870] sm:$0xff]
  %v316 = vld [vmem:[%s1 + $0x878] sm:$0xff]
  %v317 = vld [vmem:[%s1 + $0x880] sm:$0xff]
  %v318 = vld [vmem:[%s1 + $0x888] sm:$0xff]
  %v319 = vld [vmem:[%s1 + $0x890] sm:$0xff]
  %v320 = vld [vmem:[%s1 + $0x898] sm:$0xff]
  %v321 = vld [vmem:[%s1 + $0x8a0] sm:$0xff]
  %v322 = vld [vmem:[%s1 + $0x8a8] sm:$0xff]
  %v323 = vld [vmem:[%s1 + $0x8b0] sm:$0xff]
  %v324 = vld [vmem:[%s1 + $0x8b8] sm:$0xff]
  %v325 = vld [vmem:[%s1 + $0x8c0] sm:$0xff]
  %v326 = vld [vmem:[%s1 + $0x8c8] sm:$0xff]
  %v327 = vld [vmem:[%s1 + $0x8d0] sm:$0xff]
  %v328 = vld [vmem:[%s1 + $0x8d8] sm:$0xff]
  %v329 = vld [vmem:[%s1 + $0x8e0] sm:$0xff]
  %v330 = vld [vmem:[%s1 + $0x8e8] sm:$0xff]
  %v331 = vld [vmem:[%s1 + $0x8f0] sm:$0xff]
  %v332 = vld [vmem:[%s1 + $0x8f8] sm:$0xff]
  %v333 = vld [vmem:[%s1 + $0x900] sm:$0xff]
  %v334 = vld [vmem:[%s1 + $0x908] sm:$0xff]
  %v335 = vld [vmem:[%s1 + $0x910] sm:$0xff]
  %v336 = vld [vmem:[%s1 + $0x918] sm:$0xff]
  %v337 = vld [vmem:[%s1 + $0x920] sm:$0xff]
  %v338 = vld [vmem:[%s1 + $0x928] sm:$0xff]
  %v339 = vld [vmem:[%s1 + $0x930] sm:$0xff]
  %v340 = vld [vmem:[%s1 + $0x938] sm:$0xff]
  %v341 = vld [vmem:[%s1 + $0x940] sm:$0xff]
  %v342 = vld [vmem:[%s1 + $0x948] sm:$0xff]
  %v343 = vld [vmem:[%s1 + $0x950] sm:$0xff]
  %v344 = vld [vmem:[%s1 + $0x958] sm:$0xff]
  %v345 = vld [vmem:[%s1 + $0x960] sm:$0xff]
  %v346 = vld [vmem:[%s1 + $0x968] sm:$0xff]
  %v347 = vld [vmem:[%s1 + $0x970] sm:$0xff]
  %v348 = vld [vmem:[%s1 + $0x978] sm:$0xff]
  %v349 = vld [vmem:[%s1 + $0x980] sm:$0xff]
  %v350 = vld [vmem:[%s1 + $0x988] sm:$0xff]
  %v351 = vld [vmem:[%s1 + $0x990] sm:$0xff]
  %v352 = vld [vmem:[%s1 + $0x998] sm:$0xff]
  %v353 = vld [vmem:[%s1 + $0x9a0] sm:$0xff]
  %v354 = vld [vmem:[%s1 + $0x9a8] sm:$0xff]
  %v355 = vld [vmem:[%s1 + $0x9b0] sm:$0xff]
  %v356 = vld [vmem:[%s1 + $0x9b8] sm:$0xff]
  %v357 = vld [vmem:[%s1 + $0x9c0] sm:$0xff]
  %v358 = vld [vmem:[%s1 + $0x9c8] sm:$0xff]
  %v359 = vld [vmem:[%s1 + $0x9d0] sm:$0xff]
  %v360 = vld [vmem:[%s1 + $0x9d8] sm:$0xff]
  %v361 = vld [vmem:[%s1 + $0x9e0] sm:$0xff]
  %v362 = vld [vmem:[%s1 + $0x9e8] sm:$0xff]
  %v363 = vld [vmem:[%s1 + $0x9f0] sm:$0xff]
  %v364 = vld [vmem:[%s1 + $0x9f8] sm:$0xff]
  %v365 = vld [vmem:[%s1 + $0xa00] sm:$0xff]
  %v366 = vld [vmem:[%s1 + $0xa08] sm:$0xff]
  %v367 = vld [vmem:[%s1 + $0xa10] sm:$0xff]
  %v368 = vld [vmem:[%s1 + $0xa18] sm:$0xff]
  %v369 = vld [vmem:[%s1 + $0xa20] sm:$0xff]
  %v370 = vld [vmem:[%s1 + $0xa28] sm:$0xff]
  %v371 = vld [vmem:[%s1 + $0xa30] sm:$0xff]
  %v372 = vld [vmem:[%s1 + $0xa38] sm:$0xff]
  %v373 = vld [vmem:[%s1 + $0xa40] sm:$0xff]
  %v374 = vld [vmem:[%s1 + $0xa48] sm:$0xff]
  %v375 = vld [vmem:[%s1 + $0xa50] sm:$0xff]
  %v376 = vld [vmem:[%s1 + $0xa58] sm:$0xff]
  %v377 = vld [vmem:[%s1 + $0xa60] sm:$0xff]
  %v378 = vld [vmem:[%s1 + $0xa68] sm:$0xff]
  %v379 = vld [vmem:[%s1 + $0xa70] sm:$0xff]
  %v380 = vld [vmem:[%s1 + $0xa78] sm:$0xff]
  %v381 = vld [vmem:[%s1 + $0xa80] sm:$0xff]
  %v382 = vld [vmem:[%s1 + $0xa88] sm:$0xff]
  %v383 = vld [vmem:[%s1 + $0xa90] sm:$0xff]
  %v384 = vld [vmem:[%s1 + $0xa98] sm:$0xff]
  %v385 = vld [vmem:[%s1 + $0xaa0] sm:$0xff]
  %v386 = vld [vmem:[%s1 + $0xaa8] sm:$0xff]
  %v387 = vld [vmem:[%s1 + $0xab0] sm:$0xff]
  %v388 = vld [vmem:[%s1 + $0xab8] sm:$0xff]
  %v389 = vld [vmem:[%s1 + $0xac0] sm:$0xff]
  %v390 = vld [vmem:[%s1 + $0xac8] sm:$0xff]
  %v391 = vld [vmem:[%s1 + $0xad0] sm:$0xff]
  %v392 = vld [vmem:[%s1 + $0xad8] sm:$0xff]
  %v393 = vld [vmem:[%s1 + $0xae0] sm:$0xff]
  %v394 = vld [vmem:[%s1 + $0xae8] sm:$0xff]
  %v395 = vld [vmem:[%s1 + $0xaf0] sm:$0xff]
  %v396 = vld [vmem:[%s1 + $0xaf8] sm:$0xff]
  %v397 = vld [vmem:[%s1 + $0xb00] sm:$0xff]
  %v398 = vld [vmem:[%s1 + $0xb08] sm:$0xff]
  %v399 = vld [vmem:[%s1 + $0xb10] sm:$0xff]
  %v400 = vld [vmem:[%s1 + $0xb18] sm:$0xff]
  %v401 = vld [vmem:[%s1 + $0xb20] sm:$0xff]
  %v402 = vld [vmem:[%s1 + $0xb28] sm:$0xff]
  %v403 = vld [vmem:[%s1 + $0xb30] sm:$0xff]
  %v404 = vld [vmem:[%s1 + $0xb38] sm:$0xff]
  %v405 = vld [vmem:[%s1 + $0xb40] sm:$0xff]
  %v406 = vld [vmem:[%s1 + $0xb48] sm:$0xff]
  %v407 = vld [vmem:[%s1 + $0xb50] sm:$0xff]
  %v408 = vld [vmem:[%s1 + $0xb58] sm:$0xff]
  %v409 = vld [vmem:[%s1 + $0xb60] sm:$0xff]
  %v410 = vld [vmem:[%s1 + $0xb68] sm:$0xff]
  %v411 = vld [vmem:[%s1 + $0xb70] sm:$0xff]
  %v412 = vld [vmem:[%s1 + $0xb78] sm:$0xff]
  %v413 = vld [vmem:[%s1 + $0xb80] sm:$0xff]
  %v414 = vld [vmem:[%s1 + $0xb88] sm:$0xff]
  %v415 = vld [vmem:[%s1 + $0xb90] sm:$0xff]
  %v416 = vld [vmem:[%s1 + $0xb98] sm:$0xff]
  %v417 = vld [vmem:[%s1 + $0xba0] sm:$0xff]
  %v418 = vld [vmem:[%s1 + $0xba8] sm:$0xff]
  %v419 = vld [vmem:[%s1 + $0xbb0] sm:$0xff]
  %v420 = vld [vmem:[%s1 + $0xbb8] sm:$0xff]
  %v421 = vld [vmem:[%s1 + $0xbc0] sm:$0xff]
  %v422 = vld [vmem:[%s1 + $0xbc8] sm:$0xff]
  %v423 = vld [vmem:[%s1 + $0xbd0] sm:$0xff]
  %v424 = vld [vmem:[%s1 + $0xbd8] sm:$0xff]
  %v425 = vld [vmem:[%s1 + $0xbe0] sm:$0xff]
  %v426 = vld [vmem:[%s1 + $0xbe8] sm:$0xff]
  %v427 = vld [vmem:[%s1 + $0xbf0] sm:$0xff]
  %v428 = vld [vmem:[%s1 + $0xbf8] sm:$0xff]
  %v429 = vld [vmem:[%s1 + $0xc00] sm:$0xff]
  %v430 = vld [vmem:[%s1 + $0xc08] sm:$0xff]
  %v431 = vld [vmem:[%s1 + $0xc10] sm:$0xff]
  %v432 = vld [vmem:[%s1 + $0xc18] sm:$0xff]
  %v433 = vld [vmem:[%s1 + $0xc20] sm:$0xff]
  %v434 = vld [vmem:[%s1 + $0xc28] sm:$0xff]
  %v435 = vld [vmem:[%s1 + $0xc30] sm:$0xff]
  %v436 = vld [vmem:[%s1 + $0xc38] sm:$0xff]
  %v437 = vld [vmem:[%s1 + $0xc40] sm:$0xff]
  %v438 = vld [vmem:[%s1 + $0xc48] sm:$0xff]
  %v439 = vld [vmem:[%s1 + $0xc50] sm:$0xff]
  %v440 = vld [vmem:[%s1 + $0xc58] sm:$0xff]
  %v441 = vld [vmem:[%s1 + $0xc60] sm:$0xff]
  %v442 = vld [vmem:[%s1 + $0xc68] sm:$0xff]
  %v443 = vld [vmem:[%s1 + $0xc70] sm:$0xff]
  %v444 = vld [vmem:[%s1 + $0xc78] sm:$0xff]
  %v445 = vld [vmem:[%s1 + $0xc80] sm:$0xff]
  %v446 = vld [vmem:[%s1 + $0xc88] sm:$0xff]
  %v447 = vld [vmem:[%s1 + $0xc90] sm:$0xff]
  %v448 = vld [vmem:[%s1 + $0xc98] sm:$0xff]
  %v449 = vld [vmem:[%s1 + $0xca0] sm:$0xff]
  %v450 = vld [vmem:[%s1 + $0xca8] sm:$0xff]
  %v451 = vld [vmem:[%s1 + $0xcb0] sm:$0xff]
  %v452 = vld [vmem:[%s1 + $0xcb8] sm:$0xff]
  %v453 = vld [vmem:[%s1 + $0xcc0] sm:$0xff]
  %v454 = vld [vmem:[%s1 + $0xcc8] sm:$0xff]
  %v455 = vld [vmem:[%s1 + $0xcd0] sm:$0xff]
  %v456 = vld [vmem:[%s1 + $0xcd8] sm:$0xff]
  %v457 = vld [vmem:[%s1 + $0xce0] sm:$0xff]
  %v458 = vld [vmem:[%s1 + $0xce8] sm:$0xff]
  %v459 = vld [vmem:[%s1 + $0xcf0] sm:$0xff]
  %v460 = vld [vmem:[%s1 + $0xcf8] sm:$0xff]
  %v461 = vld [vmem:[%s1 + $0xd00] sm:$0xff]
  %v462 = vld [vmem:[%s1 + $0xd08] sm:$0xff]
  %v463 = vld [vmem:[%s1 + $0xd10] sm:$0xff]
  %v464 = vld [vmem:[%s1 + $0xd18] sm:$0xff]
  %v465 = vld [vmem:[%s1 + $0xd20] sm:$0xff]
  %v466 = vld [vmem:[%s1 + $0xd28] sm:$0xff]
  %v467 = vld [vmem:[%s1 + $0xd30] sm:$0xff]
  %v468 = vld [vmem:[%s1 + $0xd38] sm:$0xff]
  %v469 = vld [vmem:[%s1 + $0xd40] sm:$0xff]
  %v470 = vld [vmem:[%s1 + $0xd48] sm:$0xff]
  %v471 = vld [vmem:[%s1 + $0xd50] sm:$0xff]
  %v472 = vld [vmem:[%s1 + $0xd58] sm:$0xff]
  %v473 = vld [vmem:[%s1 + $0xd60] sm:$0xff]
  %v474 = vld [vmem:[%s1 + $0xd68] sm:$0xff]
  %v475 = vld [vmem:[%s1 + $0xd70] sm:$0xff]
  %v476 = vld [vmem:[%s1 + $0xd78] sm:$0xff]
  %v477 = vld [vmem:[%s1 + $0xd80] sm:$0xff]
  %v478 = vld [vmem:[%s1 + $0xd88] sm:$0xff]
  %v479 = vld [vmem:[%s1 + $0xd90] sm:$0xff]
  %v480 = vld [vmem:[%s1 + $0xd98] sm:$0xff]
  %v481 = vld [vmem:[%s1 + $0xda0] sm:$0xff]
  %v482 = vld [vmem:[%s1 + $0xda8] sm:$0xff]
  %v483 = vld [vmem:[%s1 + $0xdb0] sm:$0xff]
  %v484 = vld [vmem:[%s1 + $0xdb8] sm:$0xff]
  %v485 = vld [vmem:[%s1 + $0xdc0] sm:$0xff]
  %v486 = vld [vmem:[%s1 + $0xdc8] sm:$0xff]
  %v487 = vld [vmem:[%s1 + $0xdd0] sm:$0xff]
  %v488 = vld [vmem:[%s1 + $0xdd8] sm:$0xff]
  %v489 = vld [vmem:[%s1 + $0xde0] sm:$0xff]
  %v490 = vld [vmem:[%s1 + $0xde8] sm:$0xff]
  %v491 = vld [vmem:[%s1 + $0xdf0] sm:$0xff]
  %v492 = vld [vmem:[%s1 + $0xdf8] sm:$0xff]
  %v493 = vld [vmem:[%s1 + $0xe00] sm:$0xff]
  %v494 = vld [vmem:[%s1 + $0xe08] sm:$0xff]
  %v495 = vld [vmem:[%s1 + $0xe10] sm:$0xff]
  %v496 = vld [vmem:[%s1 + $0xe18] sm:$0xff]
  %v497 = vld [vmem:[%s1 + $0xe20] sm:$0xff]
  %v498 = vld [vmem:[%s1 + $0xe28] sm:$0xff]
  %v499 = vld [vmem:[%s1 + $0xe30] sm:$0xff]
  %v500 = vld [vmem:[%s1 + $0xe38] sm:$0xff]
  %v501 = vld [vmem:[%s1 + $0xe40] sm:$0xff]
  %v502 = vld [vmem:[%s1 + $0xe48] sm:$0xff]
  %v503 = vld [vmem:[%s1 + $0xe50] sm:$0xff]
  %v504 = vld [vmem:[%s1 + $0xe58] sm:$0xff]
  %v505 = vld [vmem:[%s1 + $0xe60] sm:$0xff]
  %v506 = vld [vmem:[%s1 + $0xe68] sm:$0xff]
  %v507 = vld [vmem:[%s1 + $0xe70] sm:$0xff]
  %v508 = vld [vmem:[%s1 + $0xe78] sm:$0xff]
  %v509 = vld [vmem:[%s1 + $0xe80] sm:$0xff]
  %v510 = vld [vmem:[%s1 + $0xe88] sm:$0xff]
  %v511 = vld [vmem:[%s1 + $0xe90] sm:$0xff]
  %v512 = vld [vmem:[%s1 + $0xe98] sm:$0xff]
  %v513 = vld [vmem:[%s1 + $0xea0] sm:$0xff]
  %v514 = vld [vmem:[%s1 + $0xea8] sm:$0xff]
  %v515 = vld [vmem:[%s1 + $0xeb0] sm:$0xff]
  %v516 = vld [vmem:[%s1 + $0xeb8] sm:$0xff]
  %v517 = vld [vmem:[%s1 + $0xec0] sm:$0xff]
  %v518 = vld [vmem:[%s1 + $0xec8] sm:$0xff]
  %v519 = vld [vmem:[%s1 + $0xed0] sm:$0xff]
  %v520 = vld [vmem:[%s1 + $0xed8] sm:$0xff]
  %v521 = vld [vmem:[%s1 + $0xee0] sm:$0xff]
  %v522 = vld [vmem:[%s1 + $0xee8] sm:$0xff]
  %v523 = vld [vmem:[%s1 + $0xef0] sm:$0xff]
  %v524 = vld [vmem:[%s1 + $0xef8] sm:$0xff]
  %v525 = vld [vmem:[%s1 + $0xf00] sm:$0xff]
  %v526 = vld [vmem:[%s1 + $0xf08] sm:$0xff]
  %v527 = vld [vmem:[%s1 + $0xf10] sm:$0xff]
  %v528 = vld [vmem:[%s1 + $0xf18] sm:$0xff]
  %v529 = vld [vmem:[%s1 + $0xf20] sm:$0xff]
  %v530 = vld [vmem:[%s1 + $0xf28] sm:$0xff]
  %v531 = vld [vmem:[%s1 + $0xf30] sm:$0xff]
  %v532 = vld [vmem:[%s1 + $0xf38] sm:$0xff]
  %v533 = vld [vmem:[%s1 + $0xf40] sm:$0xff]
  %v534 = vld [vmem:[%s1 + $0xf48] sm:$0xff]
  %v535 = vld [vmem:[%s1 + $0xf50] sm:$0xff]
  %v536 = vld [vmem:[%s1 + $0xf58] sm:$0xff]
  %v537 = vld [vmem:[%s1 + $0xf60] sm:$0xff]
  %v538 = vld [vmem:[%s1 + $0xf68] sm:$0xff]
  %v539 = vld [vmem:[%s1 + $0xf70] sm:$0xff]
  %v540 = vld [vmem:[%s1 + $0xf78] sm:$0xff]
  %v541 = vld [vmem:[%s1 + $0xf80] sm:$0xff]
  %v542 = vld [vmem:[%s1 + $0xf88] sm:$0xff]
  %v543 = vld [vmem:[%s1 + $0xf90] sm:$0xff]
  %v544 = vld [vmem:[%s1 + $0xf98] sm:$0xff]
  %v545 = vld [vmem:[%s1 + $0xfa0] sm:$0xff]
  %v546 = vld [vmem:[%s1 + $0xfa8] sm:$0xff]
  %v547 = vld [vmem:[%s1 + $0xfb0] sm:$0xff]
  %v548 = vld [vmem:[%s1 + $0xfb8] sm:$0xff]
  %v549 = vld [vmem:[%s1 + $0xfc0] sm:$0xff]
  %v550 = vld [vmem:[%s1 + $0xfc8] sm:$0xff]
  %v551 = vld [vmem:[%s1 + $0xfd0] sm:$0xff]
  %v552 = vld [vmem:[%s1 + $0xfd8] sm:$0xff]
  %v553 = vld [vmem:[%s1 + $0xfe0] sm:$0xff]
  %v554 = vld [vmem:[%s1 + $0xfe8] sm:$0xff]
  %v555 = vld [vmem:[%s1 + $0xff0] sm:$0xff]
  %v556 = vld [vmem:[%s1 + $0xff8] sm:$0xff]
  %v557 = vld [vmem:[%s1 + $0x1000] sm:$0xff]
  %v558 = vld [vmem:[%s1 + $0x1008] sm:$0xff]
  %v559 = vld [vmem:[%s1 + $0x1010] sm:$0xff]
  %v560 = vld [vmem:[%s1 + $0x1018] sm:$0xff]
  %v561 = vld [vmem:[%s1 + $0x1020] sm:$0xff]
  %v562 = vld [vmem:[%s1 + $0x1028] sm:$0xff]
  %v563 = vld [vmem:[%s1 + $0x1030] sm:$0xff]
  %v564 = vld [vmem:[%s1 + $0x1038] sm:$0xff]
  %v565 = vld [vmem:[%s1 + $0x1040] sm:$0xff]
  %v566 = vld [vmem:[%s1 + $0x1048] sm:$0xff]
  %v567 = vld [vmem:[%s1 + $0x1050] sm:$0xff]
  %v568 = vld [vmem:[%s1 + $0x1058] sm:$0xff]
  %v569 = vld [vmem:[%s1 + $0x1060] sm:$0xff]
  %v570 = vld [vmem:[%s1 + $0x1068] sm:$0xff]
  %v571 = vld [vmem:[%s1 + $0x1070] sm:$0xff]
  %v572 = vld [vmem:[%s1 + $0x1078] sm:$0xff]
  %v573 = vld [vmem:[%s1 + $0x1080] sm:$0xff]
  %v574 = vld [vmem:[%s1 + $0x1088] sm:$0xff]
  %v575 = vld [vmem:[%s1 + $0x1090] sm:$0xff]
  %v576 = vld [vmem:[%s1 + $0x1098] sm:$0xff]
  %v577 = vld [vmem:[%s1 + $0x10a0] sm:$0xff]
  %v578 = vld [vmem:[%s1 + $0x10a8] sm:$0xff]
  %v579 = vld [vmem:[%s1 + $0x10b0] sm:$0xff]
  %v580 = vld [vmem:[%s1 + $0x10b8] sm:$0xff]
  %v581 = vld [vmem:[%s1 + $0x10c0] sm:$0xff]
  %v582 = vld [vmem:[%s1 + $0x10c8] sm:$0xff]
  %v583 = vld [vmem:[%s1 + $0x10d0] sm:$0xff]
  %v584 = vld [vmem:[%s1 + $0x10d8] sm:$0xff]
  %v585 = vld [vmem:[%s1 + $0x10e0] sm:$0xff]
  %v586 = vld [vmem:[%s1 + $0x10e8] sm:$0xff]
  %v587 = vld [vmem:[%s1 + $0x10f0] sm:$0xff]
  %v588 = vld [vmem:[%s1 + $0x10f8] sm:$0xff]
  %v589 = vld [vmem:[%s1 + $0x1100] sm:$0xff]
  %v590 = vld [vmem:[%s1 + $0x1108] sm:$0xff]
  %v591 = vld [vmem:[%s1 + $0x1110] sm:$0xff]
  %v592 = vld [vmem:[%s1 + $0x1118] sm:$0xff]
  %v593 = vld [vmem:[%s1 + $0x1120] sm:$0xff]
  %v594 = vld [vmem:[%s1 + $0x1128] sm:$0xff]
  %v595 = vld [vmem:[%s1 + $0x1130] sm:$0xff]
  %v596 = vld [vmem:[%s1 + $0x1138] sm:$0xff]
  %v597 = vld [vmem:[%s1 + $0x1140] sm:$0xff]
  %v598 = vld [vmem:[%s1 + $0x1148] sm:$0xff]
  %v599 = vld [vmem:[%s1 + $0x1150] sm:$0xff]
  %v600 = vld [vmem:[%s1 + $0x1158] sm:$0xff]
  %v601 = vld [vmem:[%s1 + $0x1160] sm:$0xff]
  %v602 = vld [vmem:[%s1 + $0x1168] sm:$0xff]
  %v603 = vld [vmem:[%s1 + $0x1170] sm:$0xff]
  %v604 = vld [vmem:[%s1 + $0x1178] sm:$0xff]
  %v605 = vld [vmem:[%s1 + $0x1180] sm:$0xff]
  %v606 = vld [vmem:[%s1 + $0x1188] sm:$0xff]
  %v607 = vld [vmem:[%s1 + $0x1190] sm:$0xff]
  %v608 = vld [vmem:[%s1 + $0x1198] sm:$0xff]
  %v609 = vld [vmem:[%s1 + $0x11a0] sm:$0xff]
  %v610 = vld [vmem:[%s1 + $0x11a8] sm:$0xff]
  %v611 = vld [vmem:[%s1 + $0x11b0] sm:$0xff]
  %v612 = vld [vmem:[%s1 + $0x11b8] sm:$0xff]
  %v613 = vld [vmem:[%s1 + $0x11c0] sm:$0xff]
  %v614 = vld [vmem:[%s1 + $0x11c8] sm:$0xff]
  %v615 = vld [vmem:[%s1 + $0x11d0] sm:$0xff]
  %v616 = vld [vmem:[%s1 + $0x11d8] sm:$0xff]
  %v617 = vld [vmem:[%s1 + $0x11e0] sm:$0xff]
  %v618 = vld [vmem:[%s1 + $0x11e8] sm:$0xff]
  %v619 = vld [vmem:[%s1 + $0x11f0] sm:$0xff]
  %v620 = vld [vmem:[%s1 + $0x11f8] sm:$0xff]
  %v621 = vld [vmem:[%s1 + $0x1200] sm:$0xff]
  %v622 = vld [vmem:[%s1 + $0x1208] sm:$0xff]
  %v623 = vld [vmem:[%s1 + $0x1210] sm:$0xff]
  %v624 = vld [vmem:[%s1 + $0x1218] sm:$0xff]
  %v625 = vld [vmem:[%s1 + $0x1220] sm:$0xff]
  %v626 = vld [vmem:[%s1 + $0x1228] sm:$0xff]
  %v627 = vld [vmem:[%s1 + $0x1230] sm:$0xff]
  %v628 = vld [vmem:[%s1 + $0x1238] sm:$0xff]
  %v629 = vld [vmem:[%s1 + $0x1240] sm:$0xff]
  %v630 = vld [vmem:[%s1 + $0x1248] sm:$0xff]
  %v631 = vld [vmem:[%s1 + $0x1250] sm:$0xff]
  %v632 = vld [vmem:[%s1 + $0x1258] sm:$0xff]
  %v633 = vld [vmem:[%s1 + $0x1260] sm:$0xff]
  %v634 = vld [vmem:[%s1 + $0x1268] sm:$0xff]
  %v635 = vld [vmem:[%s1 + $0x1270] sm:$0xff]
  %v636 = vld [vmem:[%s1 + $0x1278] sm:$0xff]
  %v637 = vld [vmem:[%s1 + $0x1280] sm:$0xff]
  %v638 = vld [vmem:[%s1 + $0x1288] sm:$0xff]
  %v639 = vld [vmem:[%s1 + $0x1290] sm:$0xff]
  %v640 = vld [vmem:[%s1 + $0x1298] sm:$0xff]
  %v641 = vld [vmem:[%s1 + $0x12a0] sm:$0xff]
  %v642 = vld [vmem:[%s1 + $0x12a8] sm:$0xff]
  %v643 = vld [vmem:[%s1 + $0x12b0] sm:$0xff]
  %v644 = vld [vmem:[%s1 + $0x12b8] sm:$0xff]
  %v645 = vld [vmem:[%s1 + $0x12c0] sm:$0xff]
  %v646 = vld [vmem:[%s1 + $0x12c8] sm:$0xff]
  %v647 = vld [vmem:[%s1 + $0x12d0] sm:$0xff]
  %v648 = vld [vmem:[%s1 + $0x12d8] sm:$0xff]
  %v649 = vld [vmem:[%s1 + $0x12e0] sm:$0xff]
  %v650 = vld [vmem:[%s1 + $0x12e8] sm:$0xff]
  %v651 = vld [vmem:[%s1 + $0x12f0] sm:$0xff]
  %v652 = vld [vmem:[%s1 + $0x12f8] sm:$0xff]
  %v653 = vld [vmem:[%s1 + $0x1300] sm:$0xff]
  %v654 = vld [vmem:[%s1 + $0x1308] sm:$0xff]
  %v655 = vld [vmem:[%s1 + $0x1310] sm:$0xff]
  %v656 = vld [vmem:[%s1 + $0x1318] sm:$0xff]
  %v657 = vld [vmem:[%s1 + $0x1320] sm:$0xff]
  %v658 = vld [vmem:[%s1 + $0x1328] sm:$0xff]
  %v659 = vld [vmem:[%s1 + $0x1330] sm:$0xff]
  %v660 = vld [vmem:[%s1 + $0x1338] sm:$0xff]
  %v661 = vld [vmem:[%s1 + $0x1340] sm:$0xff]
  %v662 = vld [vmem:[%s1 + $0x1348] sm:$0xff]
  %v663 = vld [vmem:[%s1 + $0x1350] sm:$0xff]
  %v664 = vld [vmem:[%s1 + $0x1358] sm:$0xff]
  %v665 = vld [vmem:[%s1 + $0x1360] sm:$0xff]
  %v666 = vld [vmem:[%s1 + $0x1368] sm:$0xff]
  %v667 = vld [vmem:[%s1 + $0x1370] sm:$0xff]
  %v668 = vld [vmem:[%s1 + $0x1378] sm:$0xff]
  %v669 = vld [vmem:[%s1 + $0x1380] sm:$0xff]
  %v670 = vld [vmem:[%s1 + $0x1388] sm:$0xff]
  %v671 = vld [vmem:[%s1 + $0x1390] sm:$0xff]
  %v672 = vld [vmem:[%s1 + $0x1398] sm:$0xff]
  %v673 = vld [vmem:[%s1 + $0x13a0] sm:$0xff]
  %v674 = vld [vmem:[%s1 + $0x13a8] sm:$0xff]
  %v675 = vld [vmem:[%s1 + $0x13b0] sm:$0xff]
  %v676 = vld [vmem:[%s1 + $0x13b8] sm:$0xff]
  %v677 = vld [vmem:[%s1 + $0x13c0] sm:$0xff]
  %v678 = vld [vmem:[%s1 + $0x13c8] sm:$0xff]
  %v679 = vld [vmem:[%s1 + $0x13d0] sm:$0xff]
  %v680 = vld [vmem:[%s1 + $0x13d8] sm:$0xff]
  %v681 = vld [vmem:[%s1 + $0x13e0] sm:$0xff]
  %v682 = vld [vmem:[%s1 + $0x13e8] sm:$0xff]
  %v683 = vld [vmem:[%s1 + $0x13f0] sm:$0xff]
  %v684 = vld [vmem:[%s1 + $0x13f8] sm:$0xff]
  %v685 = vld [vmem:[%s1 + $0x1400] sm:$0xff]
  %v686 = vld [vmem:[%s1 + $0x1408] sm:$0xff]
  %v687 = vld [vmem:[%s1 + $0x1410] sm:$0xff]
  %v688 = vld [vmem:[%s1 + $0x1418] sm:$0xff]
  %v689 = vld [vmem:[%s1 + $0x1420] sm:$0xff]
  %v690 = vld [vmem:[%s1 + $0x1428] sm:$0xff]
  %v691 = vld [vmem:[%s1 + $0x1430] sm:$0xff]
  %v692 = vld [vmem:[%s1 + $0x1438] sm:$0xff]
  %v693 = vld [vmem:[%s1 + $0x1440] sm:$0xff]
  %v694 = vld [vmem:[%s1 + $0x1448] sm:$0xff]
  %v695 = vld [vmem:[%s1 + $0x1450] sm:$0xff]
  %v696 = vld [vmem:[%s1 + $0x1458] sm:$0xff]
  %v697 = vld [vmem:[%s1 + $0x1460] sm:$0xff]
  %v698 = vld [vmem:[%s1 + $0x1468] sm:$0xff]
  %v699 = vld [vmem:[%s1 + $0x1470] sm:$0xff]
  %v700 = vld [vmem:[%s1 + $0x1478] sm:$0xff]
  %v701 = vld [vmem:[%s1 + $0x1480] sm:$0xff]
  %v702 = vld [vmem:[%s1 + $0x1488] sm:$0xff]
  %v703 = vld [vmem:[%s1 + $0x1490] sm:$0xff]
  %v704 = vld [vmem:[%s1 + $0x1498] sm:$0xff]
  %v705 = vld [vmem:[%s1 + $0x14a0] sm:$0xff]
  %v706 = vld [vmem:[%s1 + $0x14a8] sm:$0xff]
  %v707 = vld [vmem:[%s1 + $0x14b0] sm:$0xff]
  %v708 = vld [vmem:[%s1 + $0x14b8] sm:$0xff]
  %v709 = vld [vmem:[%s1 + $0x14c0] sm:$0xff]
  %v710 = vld [vmem:[%s1 + $0x14c8] sm:$0xff]
  %v711 = vld [vmem:[%s1 + $0x14d0] sm:$0xff]
  %v712 = vld [vmem:[%s1 + $0x14d8] sm:$0xff]
  %v713 = vld [vmem:[%s1 + $0x14e0] sm:$0xff]
  %v714 = vld [vmem:[%s1 + $0x14e8] sm:$0xff]
  %v715 = vld [vmem:[%s1 + $0x14f0] sm:$0xff]
  %v716 = vld [vmem:[%s1 + $0x14f8] sm:$0xff]
  %v717 = vld [vmem:[%s1 + $0x1500] sm:$0xff]
  %v718 = vld [vmem:[%s1 + $0x1508] sm:$0xff]
  %v719 = vld [vmem:[%s1 + $0x1510] sm:$0xff]
  %v720 = vld [vmem:[%s1 + $0x1518] sm:$0xff]
  %v721 = vld [vmem:[%s1 + $0x1520] sm:$0xff]
  %v722 = vld [vmem:[%s1 + $0x1528] sm:$0xff]
  %v723 = vld [vmem:[%s1 + $0x1530] sm:$0xff]
  %v724 = vld [vmem:[%s1 + $0x1538] sm:$0xff]
  %v725 = vld [vmem:[%s1 + $0x1540] sm:$0xff]
  %v726 = vld [vmem:[%s1 + $0x1548] sm:$0xff]
  %v727 = vld [vmem:[%s1 + $0x1550] sm:$0xff]
  %v728 = vld [vmem:[%s1 + $0x1558] sm:$0xff]
  %v729 = vld [vmem:[%s1 + $0x1560] sm:$0xff]
  %v730 = vld [vmem:[%s1 + $0x1568] sm:$0xff]
  %v731 = vld [vmem:[%s1 + $0x1570] sm:$0xff]
  %v732 = vld [vmem:[%s1 + $0x1578] sm:$0xff]
  %v733 = vld [vmem:[%s1 + $0x1580] sm:$0xff]
  %v734 = vld [vmem:[%s1 + $0x1588] sm:$0xff]
  %v735 = vld [vmem:[%s1 + $0x1590] sm:$0xff]
  %v736 = vld [vmem:[%s1 + $0x1598] sm:$0xff]
  %v737 = vld [vmem:[%s1 + $0x15a0] sm:$0xff]
  %v738 = vld [vmem:[%s1 + $0x15a8] sm:$0xff]
  %v739 = vld [vmem:[%s1 + $0x15b0] sm:$0xff]
  %v740 = vld [vmem:[%s1 + $0x15b8] sm:$0xff]
  %v741 = vld [vmem:[%s1 + $0x15c0] sm:$0xff]
  %v742 = vld [vmem:[%s1 + $0x15c8] sm:$0xff]
  %v743 = vld [vmem:[%s1 + $0x15d0] sm:$0xff]
  %v744 = vld [vmem:[%s1 + $0x15d8] sm:$0xff]
  %v745 = vld [vmem:[%s1 + $0x15e0] sm:$0xff]
  %v746 = vld [vmem:[%s1 + $0x15e8] sm:$0xff]
  %v747 = vld [vmem:[%s1 + $0x15f0] sm:$0xff]
  %v748 = vld [vmem:[%s1 + $0x15f8] sm:$0xff]
  %v749 = vld [vmem:[%s1 + $0x1600] sm:$0xff]
  %v750 = vld [vmem:[%s1 + $0x1608] sm:$0xff]
  %v751 = vld [vmem:[%s1 + $0x1610] sm:$0xff]
  %v752 = vld [vmem:[%s1 + $0x1618] sm:$0xff]
  %v753 = vld [vmem:[%s1 + $0x1620] sm:$0xff]
  %v754 = vld [vmem:[%s1 + $0x1628] sm:$0xff]
  %v755 = vld [vmem:[%s1 + $0x1630] sm:$0xff]
  %v756 = vld [vmem:[%s1 + $0x1638] sm:$0xff]
  %v757 = vld [vmem:[%s1 + $0x1640] sm:$0xff]
  %v758 = vld [vmem:[%s1 + $0x1648] sm:$0xff]
  %v759 = vld [vmem:[%s1 + $0x1650] sm:$0xff]
  %v760 = vld [vmem:[%s1 + $0x1658] sm:$0xff]
  %v761 = vld [vmem:[%s1 + $0x1660] sm:$0xff]
  %v762 = vld [vmem:[%s1 + $0x1668] sm:$0xff]
  %v763 = vld [vmem:[%s1 + $0x1670] sm:$0xff]
  %v764 = vld [vmem:[%s1 + $0x1678] sm:$0xff]
  %v765 = vld [vmem:[%s1 + $0x1680] sm:$0xff]
  %v766 = vld [vmem:[%s1 + $0x1688] sm:$0xff]
  %v767 = vld [vmem:[%s1 + $0x1690] sm:$0xff]
  %v768 = vld [vmem:[%s1 + $0x1698] sm:$0xff]
  %v769 = vld [vmem:[%s1 + $0x16a0] sm:$0xff]
  %v770 = vld [vmem:[%s1 + $0x16a8] sm:$0xff]
  %v771 = vld [vmem:[%s1 + $0x16b0] sm:$0xff]
  %v772 = vld [vmem:[%s1 + $0x16b8] sm:$0xff]
  %v773 = vld [vmem:[%s1 + $0x16c0] sm:$0xff]
  %v774 = vld [vmem:[%s1 + $0x16c8] sm:$0xff]
  %v775 = vld [vmem:[%s1 + $0x16d0] sm:$0xff]
  %v776 = vld [vmem:[%s1 + $0x16d8] sm:$0xff]
  %v777 = vld [vmem:[%s1 + $0x16e0] sm:$0xff]
  %v778 = vld [vmem:[%s1 + $0x16e8] sm:$0xff]
  %v779 = vld [vmem:[%s1 + $0x16f0] sm:$0xff]
  %v780 = vld [vmem:[%s1 + $0x16f8] sm:$0xff]
  %v781 = vld [vmem:[%s1 + $0x1700] sm:$0xff]
  %v782 = vld [vmem:[%s1 + $0x1708] sm:$0xff]
  %v783 = vld [vmem:[%s1 + $0x1710] sm:$0xff]
  %v784 = vld [vmem:[%s1 + $0x1718] sm:$0xff]
  %v785 = vld [vmem:[%s1 + $0x1720] sm:$0xff]
  %v786 = vld [vmem:[%s1 + $0x1728] sm:$0xff]
  %v787 = vld [vmem:[%s1 + $0x1730] sm:$0xff]
  %v788 = vld [vmem:[%s1 + $0x1738] sm:$0xff]
  %v789 = vld [vmem:[%s1 + $0x1740] sm:$0xff]
  %v790 = vld [vmem:[%s1 + $0x1748] sm:$0xff]
  %v791 = vld [vmem:[%s1 + $0x1750] sm:$0xff]
  %v792 = vld [vmem:[%s1 + $0x1758] sm:$0xff]
  %v793 = vld [vmem:[%s1 + $0x1760] sm:$0xff]
  %v794 = vld [vmem:[%s1 + $0x1768] sm:$0xff]
  %v795 = vld [vmem:[%s1 + $0x1770] sm:$0xff]
  %v796 = vld [vmem:[%s1 + $0x1778] sm:$0xff]
  %v797 = vld [vmem:[%s1 + $0x1780] sm:$0xff]
  %v798 = vld [vmem:[%s1 + $0x1788] sm:$0xff]
  %v799 = vld [vmem:[%s1 + $0x1790] sm:$0xff]
  %v800 = vld [vmem:[%s1 + $0x1798] sm:$0xff]
  %v801 = vld [vmem:[%s1 + $0x17a0] sm:$0xff]
  %v802 = vld [vmem:[%s1 + $0x17a8] sm:$0xff]
  %v803 = vld [vmem:[%s1 + $0x17b0] sm:$0xff]
  %v804 = vld [vmem:[%s1 + $0x17b8] sm:$0xff]
  %v805 = vld [vmem:[%s1 + $0x17c0] sm:$0xff]
  %v806 = vld [vmem:[%s1 + $0x17c8] sm:$0xff]
  %v807 = vld [vmem:[%s1 + $0x17d0] sm:$0xff]
  %v808 = vld [vmem:[%s1 + $0x17d8] sm:$0xff]
  %v809 = vld [vmem:[%s1 + $0x17e0] sm:$0xff]
  %v810 = vld [vmem:[%s1 + $0x17e8] sm:$0xff]
  %v811 = vld [vmem:[%s1 + $0x17f0] sm:$0xff]
  %v812 = vld [vmem:[%s1 + $0x17f8] sm:$0xff]
  %v813 = vld [vmem:[%s1 + $0x1800] sm:$0xff]
  %v814 = vld [vmem:[%s1 + $0x1808] sm:$0xff]
  %v815 = vld [vmem:[%s1 + $0x1810] sm:$0xff]
  %v816 = vld [vmem:[%s1 + $0x1818] sm:$0xff]
  %v817 = vld [vmem:[%s1 + $0x1820] sm:$0xff]
  %v818 = vld [vmem:[%s1 + $0x1828] sm:$0xff]
  %v819 = vld [vmem:[%s1 + $0x1830] sm:$0xff]
  %v820 = vld [vmem:[%s1 + $0x1838] sm:$0xff]
  %v821 = vld [vmem:[%s1 + $0x1840] sm:$0xff]
  %v822 = vld [vmem:[%s1 + $0x1848] sm:$0xff]
  %v823 = vld [vmem:[%s1 + $0x1850] sm:$0xff]
  %v824 = vld [vmem:[%s1 + $0x1858] sm:$0xff]
  %v825 = vld [vmem:[%s1 + $0x1860] sm:$0xff]
  %v826 = vld [vmem:[%s1 + $0x1868] sm:$0xff]
  %v827 = vld [vmem:[%s1 + $0x1870] sm:$0xff]
  %v828 = vld [vmem:[%s1 + $0x1878] sm:$0xff]
  %v829 = vld [vmem:[%s1 + $0x1880] sm:$0xff]
  %v830 = vld [vmem:[%s1 + $0x1888] sm:$0xff]
  %v831 = vld [vmem:[%s1 + $0x1890] sm:$0xff]
  %v832 = vld [vmem:[%s1 + $0x1898] sm:$0xff]
  %v833 = vld [vmem:[%s1 + $0x18a0] sm:$0xff]
  %v834 = vld [vmem:[%s1 + $0x18a8] sm:$0xff]
  %v835 = vld [vmem:[%s1 + $0x18b0] sm:$0xff]
  %v836 = vld [vmem:[%s1 + $0x18b8] sm:$0xff]
  %v837 = vld [vmem:[%s1 + $0x18c0] sm:$0xff]
  %v838 = vld [vmem:[%s1 + $0x18c8] sm:$0xff]
  %v839 = vld [vmem:[%s1 + $0x18d0] sm:$0xff]
  %v840 = vld [vmem:[%s1 + $0x18d8] sm:$0xff]
  %v841 = vld [vmem:[%s1 + $0x18e0] sm:$0xff]
  %v842 = vld [vmem:[%s1 + $0x18e8] sm:$0xff]
  %v843 = vld [vmem:[%s1 + $0x18f0] sm:$0xff]
  %v844 = vld [vmem:[%s1 + $0x18f8] sm:$0xff]
  %v845 = vld [vmem:[%s1 + $0x1900] sm:$0xff]
  %v846 = vld [vmem:[%s1 + $0x1908] sm:$0xff]
  %v847 = vld [vmem:[%s1 + $0x1910] sm:$0xff]
  %v848 = vld [vmem:[%s1 + $0x1918] sm:$0xff]
  %v849 = vld [vmem:[%s1 + $0x1920] sm:$0xff]
  %v850 = vld [vmem:[%s1 + $0x1928] sm:$0xff]
  %v851 = vld [vmem:[%s1 + $0x1930] sm:$0xff]
  %v852 = vld [vmem:[%s1 + $0x1938] sm:$0xff]
  %v853 = vld [vmem:[%s1 + $0x1940] sm:$0xff]
  %v854 = vld [vmem:[%s1 + $0x1948] sm:$0xff]
  %v855 = vld [vmem:[%s1 + $0x1950] sm:$0xff]
  %v856 = vld [vmem:[%s1 + $0x1958] sm:$0xff]
  %v857 = vld [vmem:[%s1 + $0x1960] sm:$0xff]
  %v858 = vld [vmem:[%s1 + $0x1968] sm:$0xff]
  %v859 = vld [vmem:[%s1 + $0x1970] sm:$0xff]
  %v860 = vld [vmem:[%s1 + $0x1978] sm:$0xff]
  %v861 = vld [vmem:[%s1 + $0x1980] sm:$0xff]
  %v862 = vld [vmem:[%s1 + $0x1988] sm:$0xff]
  %v863 = vld [vmem:[%s1 + $0x1990] sm:$0xff]
  %v864 = vld [vmem:[%s1 + $0x1998] sm:$0xff]
  %v865 = vld [vmem:[%s1 + $0x19a0] sm:$0xff]
  %v866 = vld [vmem:[%s1 + $0x19a8] sm:$0xff]
  %v867 = vld [vmem:[%s1 + $0x19b0] sm:$0xff]
  %v868 = vld [vmem:[%s1 + $0x19b8] sm:$0xff]
  %v869 = vld [vmem:[%s1 + $0x19c0] sm:$0xff]
  %v870 = vld [vmem:[%s1 + $0x19c8] sm:$0xff]
  %v871 = vld [vmem:[%s1 + $0x19d0] sm:$0xff]
  %v872 = vld [vmem:[%s1 + $0x19d8] sm:$0xff]
  %v873 = vld [vmem:[%s1 + $0x19e0] sm:$0xff]
  %v874 = vld [vmem:[%s1 + $0x19e8] sm:$0xff]
  %v875 = vld [vmem:[%s1 + $0x19f0] sm:$0xff]
  %v876 = vld [vmem:[%s1 + $0x19f8] sm:$0xff]
  %v877 = vld [vmem:[%s1 + $0x1a00] sm:$0xff]
  %v878 = vld [vmem:[%s1 + $0x1a08] sm:$0xff]
  %v879 = vld [vmem:[%s1 + $0x1a10] sm:$0xff]
  %v880 = vld [vmem:[%s1 + $0x1a18] sm:$0xff]
  %v881 = vld [vmem:[%s1 + $0x1a20] sm:$0xff]
  %v882 = vld [vmem:[%s1 + $0x1a28] sm:$0xff]
  %v883 = vld [vmem:[%s1 + $0x1a30] sm:$0xff]
  %v884 = vld [vmem:[%s1 + $0x1a38] sm:$0xff]
  %v885 = vld [vmem:[%s1 + $0x1a40] sm:$0xff]
  %v886 = vld [vmem:[%s1 + $0x1a48] sm:$0xff]
  %v887 = vld [vmem:[%s1 + $0x1a50] sm:$0xff]
  %v888 = vld [vmem:[%s1 + $0x1a58] sm:$0xff]
  %v889 = vld [vmem:[%s1 + $0x1a60] sm:$0xff]
  %v890 = vld [vmem:[%s1 + $0x1a68] sm:$0xff]
  %v891 = vld [vmem:[%s1 + $0x1a70] sm:$0xff]
  %v892 = vld [vmem:[%s1 + $0x1a78] sm:$0xff]
  %v893 = vld [vmem:[%s1 + $0x1a80] sm:$0xff]
  %v894 = vld [vmem:[%s1 + $0x1a88] sm:$0xff]
  %v895 = vld [vmem:[%s1 + $0x1a90] sm:$0xff]
  %v896 = vld [vmem:[%s1 + $0x1a98] sm:$0xff]
  %v897 = vld [vmem:[%s1 + $0x1aa0] sm:$0xff]
  %v898 = vld [vmem:[%s1 + $0x1aa8] sm:$0xff]
  %v899 = vld [vmem:[%s1 + $0x1ab0] sm:$0xff]
  %v900 = vld [vmem:[%s1 + $0x1ab8] sm:$0xff]
  %v901 = vld [vmem:[%s1 + $0x1ac0] sm:$0xff]
  %v902 = vld [vmem:[%s1 + $0x1ac8] sm:$0xff]
  %v903 = vld [vmem:[%s1 + $0x1ad0] sm:$0xff]
  %v904 = vld [vmem:[%s1 + $0x1ad8] sm:$0xff]
  %v905 = vld [vmem:[%s1 + $0x1ae0] sm:$0xff]
  %v906 = vld [vmem:[%s1 + $0x1ae8] sm:$0xff]
  %v907 = vld [vmem:[%s1 + $0x1af0] sm:$0xff]
  %v908 = vld [vmem:[%s1 + $0x1af8] sm:$0xff]
  %v909 = vld [vmem:[%s1 + $0x1b00] sm:$0xff]
  %v910 = vld [vmem:[%s1 + $0x1b08] sm:$0xff]
  %v911 = vld [vmem:[%s1 + $0x1b10] sm:$0xff]
  %v912 = vld [vmem:[%s1 + $0x1b18] sm:$0xff]
  %v913 = vld [vmem:[%s1 + $0x1b20] sm:$0xff]
  %v914 = vld [vmem:[%s1 + $0x1b28] sm:$0xff]
  %v915 = vld [vmem:[%s1 + $0x1b30] sm:$0xff]
  %v916 = vld [vmem:[%s1 + $0x1b38] sm:$0xff]
  %v917 = vld [vmem:[%s1 + $0x1b40] sm:$0xff]
  %v918 = vld [vmem:[%s1 + $0x1b48] sm:$0xff]
  %v919 = vld [vmem:[%s1 + $0x1b50] sm:$0xff]
  %v920 = vld [vmem:[%s1 + $0x1b58] sm:$0xff]
  %v921 = vld [vmem:[%s1 + $0x1b60] sm:$0xff]
  %v922 = vld [vmem:[%s1 + $0x1b68] sm:$0xff]
  %v923 = vld [vmem:[%s1 + $0x1b70] sm:$0xff]
  %v924 = vld [vmem:[%s1 + $0x1b78] sm:$0xff]
  %v925 = vld [vmem:[%s1 + $0x1b80] sm:$0xff]
  %v926 = vld [vmem:[%s1 + $0x1b88] sm:$0xff]
  %v927 = vld [vmem:[%s1 + $0x1b90] sm:$0xff]
  %v928 = vld [vmem:[%s1 + $0x1b98] sm:$0xff]
  %v929 = vld [vmem:[%s1 + $0x1ba0] sm:$0xff]
  %v930 = vld [vmem:[%s1 + $0x1ba8] sm:$0xff]
  %v931 = vld [vmem:[%s1 + $0x1bb0] sm:$0xff]
  %v932 = vld [vmem:[%s1 + $0x1bb8] sm:$0xff]
  %v933 = vld [vmem:[%s1 + $0x1bc0] sm:$0xff]
  %v934 = vld [vmem:[%s1 + $0x1bc8] sm:$0xff]
  %v935 = vld [vmem:[%s1 + $0x1bd0] sm:$0xff]
  %v936 = vld [vmem:[%s1 + $0x1bd8] sm:$0xff]
  %v937 = vld [vmem:[%s1 + $0x1be0] sm:$0xff]
  %v938 = vld [vmem:[%s1 + $0x1be8] sm:$0xff]
  %v939 = vld [vmem:[%s1 + $0x1bf0] sm:$0xff]
  %v940 = vld [vmem:[%s1 + $0x1bf8] sm:$0xff]
  %v941 = vld [vmem:[%s1 + $0x1c00] sm:$0xff]
  %v942 = vld [vmem:[%s1 + $0x1c08] sm:$0xff]
  %v943 = vld [vmem:[%s1 + $0x1c10] sm:$0xff]
  %v944 = vld [vmem:[%s1 + $0x1c18] sm:$0xff]
  %v945 = vld [vmem:[%s1 + $0x1c20] sm:$0xff]
  %v946 = vld [vmem:[%s1 + $0x1c28] sm:$0xff]
  %v947 = vld [vmem:[%s1 + $0x1c30] sm:$0xff]
  %v948 = vld [vmem:[%s1 + $0x1c38] sm:$0xff]
  %v949 = vld [vmem:[%s1 + $0x1c40] sm:$0xff]
  %v950 = vld [vmem:[%s1 + $0x1c48] sm:$0xff]
  %v951 = vld [vmem:[%s1 + $0x1c50] sm:$0xff]
  %v952 = vld [vmem:[%s1 + $0x1c58] sm:$0xff]
  %v953 = vld [vmem:[%s1 + $0x1c60] sm:$0xff]
  %v954 = vld [vmem:[%s1 + $0x1c68] sm:$0xff]
  %v955 = vld [vmem:[%s1 + $0x1c70] sm:$0xff]
  %v956 = vld [vmem:[%s1 + $0x1c78] sm:$0xff]
  %v957 = vld [vmem:[%s1 + $0x1c80] sm:$0xff]
  %v958 = vld [vmem:[%s1 + $0x1c88] sm:$0xff]
  %v959 = vld [vmem:[%s1 + $0x1c90] sm:$0xff]
  %v960 = vld [vmem:[%s1 + $0x1c98] sm:$0xff]
  %v961 = vld [vmem:[%s1 + $0x1ca0] sm:$0xff]
  %v962 = vld [vmem:[%s1 + $0x1ca8] sm:$0xff]
  %v963 = vld [vmem:[%s1 + $0x1cb0] sm:$0xff]
  %v964 = vld [vmem:[%s1 + $0x1cb8] sm:$0xff]
  %v965 = vld [vmem:[%s1 + $0x1cc0] sm:$0xff]
  %v966 = vld [vmem:[%s1 + $0x1cc8] sm:$0xff]
  %v967 = vld [vmem:[%s1 + $0x1cd0] sm:$0xff]
  %v968 = vld [vmem:[%s1 + $0x1cd8] sm:$0xff]
  %v969 = vld [vmem:[%s1 + $0x1ce0] sm:$0xff]
  %v970 = vld [vmem:[%s1 + $0x1ce8] sm:$0xff]
  %v971 = vld [vmem:[%s1 + $0x1cf0] sm:$0xff]
  %v972 = vld [vmem:[%s1 + $0x1cf8] sm:$0xff]
  %v973 = vld [vmem:[%s1 + $0x1d00] sm:$0xff]
  %v974 = vld [vmem:[%s1 + $0x1d08] sm:$0xff]
  %v975 = vld [vmem:[%s1 + $0x1d10] sm:$0xff]
  %v976 = vld [vmem:[%s1 + $0x1d18] sm:$0xff]
  %v977 = vld [vmem:[%s1 + $0x1d20] sm:$0xff]
  %v978 = vld [vmem:[%s1 + $0x1d28] sm:$0xff]
  %v979 = vld [vmem:[%s1 + $0x1d30] sm:$0xff]
  %v980 = vld [vmem:[%s1 + $0x1d38] sm:$0xff]
  %v981 = vld [vmem:[%s1 + $0x1d40] sm:$0xff]
  %v982 = vld [vmem:[%s1 + $0x1d48] sm:$0xff]
  %v983 = vld [vmem:[%s1 + $0x1d50] sm:$0xff]
  %v984 = vld [vmem:[%s1 + $0x1d58] sm:$0xff]
  %v985 = vld [vmem:[%s1 + $0x1d60] sm:$0xff]
  %v986 = vld [vmem:[%s1 + $0x1d68] sm:$0xff]
  %v987 = vld [vmem:[%s1 + $0x1d70] sm:$0xff]
  %v988 = vld [vmem:[%s1 + $0x1d78] sm:$0xff]
  %v989 = vld [vmem:[%s1 + $0x1d80] sm:$0xff]
  %v990 = vld [vmem:[%s1 + $0x1d88] sm:$0xff]
  %v991 = vld [vmem:[%s1 + $0x1d90] sm:$0xff]
  %v992 = vld [vmem:[%s1 + $0x1d98] sm:$0xff]
  %v993 = vld [vmem:[%s1 + $0x1da0] sm:$0xff]
  %v994 = vld [vmem:[%s1 + $0x1da8] sm:$0xff]
  %v995 = vld [vmem:[%s1 + $0x1db0] sm:$0xff]
  %v996 = vld [vmem:[%s1 + $0x1db8] sm:$0xff]
  %v997 = vld [vmem:[%s1 + $0x1dc0] sm:$0xff]
  %v998 = vld [vmem:[%s1 + $0x1dc8] sm:$0xff]
  %v999 = vld [vmem:[%s1 + $0x1dd0] sm:$0xff]
  %v1000 = vld [vmem:[%s1 + $0x1dd8] sm:$0xff]
  %v1001 = vld [vmem:[%s1 + $0x1de0] sm:$0xff]
  %v1002 = vld [vmem:[%s1 + $0x1de8] sm:$0xff]
  %v1003 = vld [vmem:[%s1 + $0x1df0] sm:$0xff]
  %v1004 = vld [vmem:[%s1 + $0x1df8] sm:$0xff]
  %v1005 = vld [vmem:[%s1 + $0x1e00] sm:$0xff]
  %v1006 = vld [vmem:[%s1 + $0x1e08] sm:$0xff]
  %v1007 = vld [vmem:[%s1 + $0x1e10] sm:$0xff]
  %v1008 = vld [vmem:[%s1 + $0x1e18] sm:$0xff]
  %v1009 = vld [vmem:[%s1 + $0x1e20] sm:$0xff]
  %v1010 = vld [vmem:[%s1 + $0x1e28] sm:$0xff]
  %v1011 = vld [vmem:[%s1 + $0x1e30] sm:$0xff]
  %v1012 = vld [vmem:[%s1 + $0x1e38] sm:$0xff]
  %v1013 = vld [vmem:[%s1 + $0x1e40] sm:$0xff]
  %v1014 = vld [vmem:[%s1 + $0x1e48] sm:$0xff]
  %v1015 = vld [vmem:[%s1 + $0x1e50] sm:$0xff]
  %v1016 = vld [vmem:[%s1 + $0x1e58] sm:$0xff]
  %v1017 = vld [vmem:[%s1 + $0x1e60] sm:$0xff]
  %v1018 = vld [vmem:[%s1 + $0x1e68] sm:$0xff]
  %v1019 = vld [vmem:[%s1 + $0x1e70] sm:$0xff]
  %v1020 = vld [vmem:[%s1 + $0x1e78] sm:$0xff]
  %v1021 = vld [vmem:[%s1 + $0x1e80] sm:$0xff]
  %v1022 = vld [vmem:[%s1 + $0x1e88] sm:$0xff]
  %v1023 = vld [vmem:[%s1 + $0x1e90] sm:$0xff]
  %v1024 = vld [vmem:[%s1 + $0x1e98] sm:$0xff]
  %v1025 = vld [vmem:[%s1 + $0x1ea0] sm:$0xff]
  %v1026 = vld [vmem:[%s1 + $0x1ea8] sm:$0xff]
  %v1027 = vld [vmem:[%s1 + $0x1eb0] sm:$0xff]
  %v1028 = vld [vmem:[%s1 + $0x1eb8] sm:$0xff]
  %v1029 = vld [vmem:[%s1 + $0x1ec0] sm:$0xff]
  %v1030 = vld [vmem:[%s1 + $0x1ec8] sm:$0xff]
  %v1031 = vld [vmem:[%s1 + $0x1ed0] sm:$0xff]
  %v1032 = vld [vmem:[%s1 + $0x1ed8] sm:$0xff]
  %v1033 = vld [vmem:[%s1 + $0x1ee0] sm:$0xff]
  %v1034 = vld [vmem:[%s1 + $0x1ee8] sm:$0xff]
  %v1035 = vld [vmem:[%s1 + $0x1ef0] sm:$0xff]
  %v1036 = vld [vmem:[%s1 + $0x1ef8] sm:$0xff]
  %v1037 = vld [vmem:[%s1 + $0x1f00] sm:$0xff]
  %v1038 = vld [vmem:[%s1 + $0x1f08] sm:$0xff]
  %v1039 = vld [vmem:[%s1 + $0x1f10] sm:$0xff]
  %v1040 = vld [vmem:[%s1 + $0x1f18] sm:$0xff]
  %v1041 = vld [vmem:[%s1 + $0x1f20] sm:$0xff]
  %v1042 = vld [vmem:[%s1 + $0x1f28] sm:$0xff]
  %v1043 = vld [vmem:[%s1 + $0x1f30] sm:$0xff]
  %v1044 = vld [vmem:[%s1 + $0x1f38] sm:$0xff]
  %v1045 = vld [vmem:[%s1 + $0x1f40] sm:$0xff]
  %v1046 = vld [vmem:[%s1 + $0x1f48] sm:$0xff]
  %v1047 = vld [vmem:[%s1 + $0x1f50] sm:$0xff]
  %v1048 = vld [vmem:[%s1 + $0x1f58] sm:$0xff]
  %v1049 = vld [vmem:[%s1 + $0x1f60] sm:$0xff]
  %v1050 = vld [vmem:[%s1 + $0x1f68] sm:$0xff]
  %v1051 = vld [vmem:[%s1 + $0x1f70] sm:$0xff]
  %v1052 = vld [vmem:[%s1 + $0x1f78] sm:$0xff]
  %v1053 = vld [vmem:[%s1 + $0x1f80] sm:$0xff]
  %v1054 = vld [vmem:[%s1 + $0x1f88] sm:$0xff]
  %v1055 = vld [vmem:[%s1 + $0x1f90] sm:$0xff]
  %v1056 = vld [vmem:[%s1 + $0x1f98] sm:$0xff]
  %v1057 = vld [vmem:[%s1 + $0x1fa0] sm:$0xff]
  %v1058 = vld [vmem:[%s1 + $0x1fa8] sm:$0xff]
  %v1059 = vld [vmem:[%s1 + $0x1fb0] sm:$0xff]
  %v1060 = vld [vmem:[%s1 + $0x1fb8] sm:$0xff]
  %v1061 = vld [vmem:[%s1 + $0x1fc0] sm:$0xff]
  %v1062 = vld [vmem:[%s1 + $0x1fc8] sm:$0xff]
  %v1063 = vld [vmem:[%s1 + $0x1fd0] sm:$0xff]
  %v1064 = vld [vmem:[%s1 + $0x1fd8] sm:$0xff]
  %v1065 = vld [vmem:[%s1 + $0x1fe0] sm:$0xff]
  %v1066 = vld [vmem:[%s1 + $0x1fe8] sm:$0xff]
  %v1067 = vld [vmem:[%s1 + $0x1ff0] sm:$0xff]
  %v1068 = vld [vmem:[%s1 + $0x1ff8] sm:$0xff]
  %v1069 = vld [vmem:[%s1 + $0x2000] sm:$0xff]
  %v1070 = vld [vmem:[%s1 + $0x2008] sm:$0xff]
  %v1071 = vld [vmem:[%s1 + $0x2010] sm:$0xff]
  %v1072 = vld [vmem:[%s1 + $0x2018] sm:$0xff]
  %v1073 = vld [vmem:[%s1 + $0x2020] sm:$0xff]
  %v1074 = vld [vmem:[%s1 + $0x2028] sm:$0xff]
  %v1075 = vld [vmem:[%s1 + $0x2030] sm:$0xff]
  %v1076 = vld [vmem:[%s1 + $0x2038] sm:$0xff]
  %v1077 = vld [vmem:[%s1 + $0x2040] sm:$0xff]
  %v1078 = vld [vmem:[%s1 + $0x2048] sm:$0xff]
  %v1079 = vld [vmem:[%s1 + $0x2050] sm:$0xff]
  %v1080 = vld [vmem:[%s1 + $0x2058] sm:$0xff]
  %v1081 = vld [vmem:[%s1 + $0x2060] sm:$0xff]
  %v1082 = vld [vmem:[%s1 + $0x2068] sm:$0xff]
  %v1083 = vld [vmem:[%s1 + $0x2070] sm:$0xff]
  %v1084 = vld [vmem:[%s1 + $0x2078] sm:$0xff]
  %v1085 = vld [vmem:[%s1 + $0x2080] sm:$0xff]
  %v1086 = vld [vmem:[%s1 + $0x2088] sm:$0xff]
  %v1087 = vld [vmem:[%s1 + $0x2090] sm:$0xff]
  %v1088 = vld [vmem:[%s1 + $0x2098] sm:$0xff]
  %v1089 = vld [vmem:[%s1 + $0x20a0] sm:$0xff]
  %v1090 = vld [vmem:[%s1 + $0x20a8] sm:$0xff]
  %v1091 = vld [vmem:[%s1 + $0x20b0] sm:$0xff]
  %v1092 = vld [vmem:[%s1 + $0x20b8] sm:$0xff]
  %v1093 = vld [vmem:[%s1 + $0x20c0] sm:$0xff]
  %v1094 = vld [vmem:[%s1 + $0x20c8] sm:$0xff]
  %v1095 = vld [vmem:[%s1 + $0x20d0] sm:$0xff]
  %v1096 = vld [vmem:[%s1 + $0x20d8] sm:$0xff]
  %v1097 = vld [vmem:[%s1 + $0x20e0] sm:$0xff]
  %v1098 = vld [vmem:[%s1 + $0x20e8] sm:$0xff]
  %v1099 = vld [vmem:[%s1 + $0x20f0] sm:$0xff]
  %v1100 = vld [vmem:[%s1 + $0x20f8] sm:$0xff]
  %v1101 = vld [vmem:[%s1 + $0x2100] sm:$0xff]
  %v1102 = vld [vmem:[%s1 + $0x2108] sm:$0xff]
  %v1103 = vld [vmem:[%s1 + $0x2110] sm:$0xff]
  %v1104 = vld [vmem:[%s1 + $0x2118] sm:$0xff]
  %v1105 = vld [vmem:[%s1 + $0x2120] sm:$0xff]
  %v1106 = vld [vmem:[%s1 + $0x2128] sm:$0xff]
  %v1107 = vld [vmem:[%s1 + $0x2130] sm:$0xff]
  %v1108 = vld [vmem:[%s1 + $0x2138] sm:$0xff]
  %v1109 = vld [vmem:[%s1 + $0x2140] sm:$0xff]
  %v1110 = vld [vmem:[%s1 + $0x2148] sm:$0xff]
  %v1111 = vld [vmem:[%s1 + $0x2150] sm:$0xff]
  %v1112 = vld [vmem:[%s1 + $0x2158] sm:$0xff]
  %v1113 = vld [vmem:[%s1 + $0x2160] sm:$0xff]
  %v1114 = vld [vmem:[%s1 + $0x2168] sm:$0xff]
  %v1115 = vld [vmem:[%s1 + $0x2170] sm:$0xff]
  %v1116 = vld [vmem:[%s1 + $0x2178] sm:$0xff]
  %v1117 = vld [vmem:[%s1 + $0x2180] sm:$0xff]
  %v1118 = vld [vmem:[%s1 + $0x2188] sm:$0xff]
  %v1119 = vld [vmem:[%s1 + $0x2190] sm:$0xff]
  %v1120 = vld [vmem:[%s1 + $0x2198] sm:$0xff]
  %v1121 = vld [vmem:[%s1 + $0x21a0] sm:$0xff]
  %v1122 = vld [vmem:[%s1 + $0x21a8] sm:$0xff]
  %v1123 = vld [vmem:[%s1 + $0x21b0] sm:$0xff]
  %v1124 = vld [vmem:[%s1 + $0x21b8] sm:$0xff]
  %v1125 = vld [vmem:[%s1 + $0x21c0] sm:$0xff]
  %v1126 = vld [vmem:[%s1 + $0x21c8] sm:$0xff]
  %v1127 = vld [vmem:[%s1 + $0x21d0] sm:$0xff]
  %v1128 = vld [vmem:[%s1 + $0x21d8] sm:$0xff]
  %v1129 = vld [vmem:[%s1 + $0x21e0] sm:$0xff]
  %v1130 = vld [vmem:[%s1 + $0x21e8] sm:$0xff]
  %v1131 = vld [vmem:[%s1 + $0x21f0] sm:$0xff]
  %v1132 = vld [vmem:[%s1 + $0x21f8] sm:$0xff]
  %v1133 = vld [vmem:[%s1 + $0x2200] sm:$0xff]
  %v1134 = vld [vmem:[%s1 + $0x2208] sm:$0xff]
  %v1135 = vld [vmem:[%s1 + $0x2210] sm:$0xff]
  %v1136 = vld [vmem:[%s1 + $0x2218] sm:$0xff]
  %v1137 = vld [vmem:[%s1 + $0x2220] sm:$0xff]
  %v1138 = vld [vmem:[%s1 + $0x2228] sm:$0xff]
  %v1139 = vld [vmem:[%s1 + $0x2230] sm:$0xff]
  %v1140 = vld [vmem:[%s1 + $0x2238] sm:$0xff]
  %v1141 = vld [vmem:[%s1 + $0x2240] sm:$0xff]
  %v1142 = vld [vmem:[%s1 + $0x2248] sm:$0xff]
  %v1143 = vld [vmem:[%s1 + $0x2250] sm:$0xff]
  %v1144 = vld [vmem:[%s1 + $0x2258] sm:$0xff]
  %v1145 = vld [vmem:[%s1 + $0x2260] sm:$0xff]
  %v1146 = vld [vmem:[%s1 + $0x2268] sm:$0xff]
  %v1147 = vld [vmem:[%s1 + $0x2270] sm:$0xff]
  %v1148 = vld [vmem:[%s1 + $0x2278] sm:$0xff]
  %v1149 = vld [vmem:[%s1 + $0x2280] sm:$0xff]
  %v1150 = vld [vmem:[%s1 + $0x2288] sm:$0xff]
  %v1151 = vld [vmem:[%s1 + $0x2290] sm:$0xff]
  %v1152 = vld [vmem:[%s1 + $0x2298] sm:$0xff]
  %v1153 = vld [vmem:[%s1 + $0x22a0] sm:$0xff]
  %v1154 = vld [vmem:[%s1 + $0x22a8] sm:$0xff]
  %v1155 = vld [vmem:[%s1 + $0x22b0] sm:$0xff]
  %v1156 = vld [vmem:[%s1 + $0x22b8] sm:$0xff]
  %v1157 = vld [vmem:[%s1 + $0x22c0] sm:$0xff]
  %v1158 = vld [vmem:[%s1 + $0x22c8] sm:$0xff]
  %v1159 = vld [vmem:[%s1 + $0x22d0] sm:$0xff]
  %v1160 = vld [vmem:[%s1 + $0x22d8] sm:$0xff]
  %v1161 = vld [vmem:[%s1 + $0x22e0] sm:$0xff]
  %v1162 = vld [vmem:[%s1 + $0x22e8] sm:$0xff]
  %v1163 = vld [vmem:[%s1 + $0x22f0] sm:$0xff]
  %v1164 = vld [vmem:[%s1 + $0x22f8] sm:$0xff]
  %v1165 = vld [vmem:[%s1 + $0x2300] sm:$0xff]
  %v1166 = vld [vmem:[%s1 + $0x2308] sm:$0xff]
  %v1167 = vld [vmem:[%s1 + $0x2310] sm:$0xff]
  %v1168 = vld [vmem:[%s1 + $0x2318] sm:$0xff]
  %v1169 = vld [vmem:[%s1 + $0x2320] sm:$0xff]
  %v1170 = vld [vmem:[%s1 + $0x2328] sm:$0xff]
  %v1171 = vld [vmem:[%s1 + $0x2330] sm:$0xff]
  %v1172 = vld [vmem:[%s1 + $0x2338] sm:$0xff]
  %v1173 = vld [vmem:[%s1 + $0x2340] sm:$0xff]
  %v1174 = vld [vmem:[%s1 + $0x2348] sm:$0xff]
  %v1175 = vld [vmem:[%s1 + $0x2350] sm:$0xff]
  %v1176 = vld [vmem:[%s1 + $0x2358] sm:$0xff]
  %v1177 = vld [vmem:[%s1 + $0x2360] sm:$0xff]
  %v1178 = vld [vmem:[%s1 + $0x2368] sm:$0xff]
  %v1179 = vld [vmem:[%s1 + $0x2370] sm:$0xff]
  %v1180 = vld [vmem:[%s1 + $0x2378] sm:$0xff]
  %v1181 = vld [vmem:[%s1 + $0x2380] sm:$0xff]
  %v1182 = vld [vmem:[%s1 + $0x2388] sm:$0xff]
  %v1183 = vld [vmem:[%s1 + $0x2390] sm:$0xff]
  %v1184 = vld [vmem:[%s1 + $0x2398] sm:$0xff]
  %v1185 = vld [vmem:[%s1 + $0x23a0] sm:$0xff]
  %v1186 = vld [vmem:[%s1 + $0x23a8] sm:$0xff]
  %v1187 = vld [vmem:[%s1 + $0x23b0] sm:$0xff]
  %v1188 = vld [vmem:[%s1 + $0x23b8] sm:$0xff]
  %v1189 = vld [vmem:[%s1 + $0x23c0] sm:$0xff]
  %v1190 = vld [vmem:[%s1 + $0x23c8] sm:$0xff]
  %v1191 = vld [vmem:[%s1 + $0x23d0] sm:$0xff]
  %v1192 = vld [vmem:[%s1 + $0x23d8] sm:$0xff]
  %v1193 = vld [vmem:[%s1 + $0x23e0] sm:$0xff]
  %v1194 = vld [vmem:[%s1 + $0x23e8] sm:$0xff]
  %v1195 = vld [vmem:[%s1 + $0x23f0] sm:$0xff]
  %v1196 = vld [vmem:[%s1 + $0x23f8] sm:$0xff]
  %v1197 = vld [vmem:[%s1 + $0x2400] sm:$0xff]
  %v1198 = vld [vmem:[%s1 + $0x2408] sm:$0xff]
  %v1199 = vld [vmem:[%s1 + $0x2410] sm:$0xff]
  %v1200 = vld [vmem:[%s1 + $0x2418] sm:$0xff]
  %v1201 = vld [vmem:[%s1 + $0x2420] sm:$0xff]
  %v1202 = vld [vmem:[%s1 + $0x2428] sm:$0xff]
  %v1203 = vld [vmem:[%s1 + $0x2430] sm:$0xff]
  %v1204 = vld [vmem:[%s1 + $0x2438] sm:$0xff]
  %v1205 = vld [vmem:[%s1 + $0x2440] sm:$0xff]
  %v1206 = vld [vmem:[%s1 + $0x2448] sm:$0xff]
  %v1207 = vld [vmem:[%s1 + $0x2450] sm:$0xff]
  %v1208 = vld [vmem:[%s1 + $0x2458] sm:$0xff]
  %v1209 = vld [vmem:[%s1 + $0x2460] sm:$0xff]
  %v1210 = vld [vmem:[%s1 + $0x2468] sm:$0xff]
  %v1211 = vld [vmem:[%s1 + $0x2470] sm:$0xff]
  %v1212 = vld [vmem:[%s1 + $0x2478] sm:$0xff]
  %v1213 = vld [vmem:[%s1 + $0x2480] sm:$0xff]
  %v1214 = vld [vmem:[%s1 + $0x2488] sm:$0xff]
  %v1215 = vld [vmem:[%s1 + $0x2490] sm:$0xff]
  %v1216 = vld [vmem:[%s1 + $0x2498] sm:$0xff]
  %v1217 = vld [vmem:[%s1 + $0x24a0] sm:$0xff]
  %v1218 = vld [vmem:[%s1 + $0x24a8] sm:$0xff]
  %v1219 = vld [vmem:[%s1 + $0x24b0] sm:$0xff]
  %v1220 = vld [vmem:[%s1 + $0x24b8] sm:$0xff]
  %v1221 = vld [vmem:[%s1 + $0x24c0] sm:$0xff]
  %v1222 = vld [vmem:[%s1 + $0x24c8] sm:$0xff]
  %v1223 = vld [vmem:[%s1 + $0x24d0] sm:$0xff]
  %v1224 = vld [vmem:[%s1 + $0x24d8] sm:$0xff]
  %v1225 = vld [vmem:[%s1 + $0x24e0] sm:$0xff]
  %v1226 = vld [vmem:[%s1 + $0x24e8] sm:$0xff]
  %v1227 = vld [vmem:[%s1 + $0x24f0] sm:$0xff]
  %v1228 = vld [vmem:[%s1 + $0x24f8] sm:$0xff]
  %v1229 = vld [vmem:[%s1 + $0x2500] sm:$0xff]
  %v1230 = vld [vmem:[%s1 + $0x2508] sm:$0xff]
  %v1231 = vld [vmem:[%s1 + $0x2510] sm:$0xff]
  %v1232 = vld [vmem:[%s1 + $0x2518] sm:$0xff]
  %v1233 = vld [vmem:[%s1 + $0x2520] sm:$0xff]
  %v1234 = vld [vmem:[%s1 + $0x2528] sm:$0xff]
  %v1235 = vld [vmem:[%s1 + $0x2530] sm:$0xff]
  %v1236 = vld [vmem:[%s1 + $0x2538] sm:$0xff]
  %v1237 = vld [vmem:[%s1 + $0x2540] sm:$0xff]
  %v1238 = vld [vmem:[%s1 + $0x2548] sm:$0xff]
  %v1239 = vld [vmem:[%s1 + $0x2550] sm:$0xff]
  %v1240 = vld [vmem:[%s1 + $0x2558] sm:$0xff]
  %v1241 = vld [vmem:[%s1 + $0x2560] sm:$0xff]
  %v1242 = vld [vmem:[%s1 + $0x2568] sm:$0xff]
  %v1243 = vld [vmem:[%s1 + $0x2570] sm:$0xff]
  %v1244 = vld [vmem:[%s1 + $0x2578] sm:$0xff]
  %v1245 = vld [vmem:[%s1 + $0x2580] sm:$0xff]
  %v1246 = vld [vmem:[%s1 + $0x2588] sm:$0xff]
  %v1247 = vld [vmem:[%s1 + $0x2590] sm:$0xff]
  %v1248 = vld [vmem:[%s1 + $0x2598] sm:$0xff]
  %v1249 = vld [vmem:[%s1 + $0x25a0] sm:$0xff]
  %v1250 = vld [vmem:[%s1 + $0x25a8] sm:$0xff]
  %v1251 = vld [vmem:[%s1 + $0x25b0] sm:$0xff]
  %v1252 = vld [vmem:[%s1 + $0x25b8] sm:$0xff]
  %v1253 = vld [vmem:[%s1 + $0x25c0] sm:$0xff]
  %v1254 = vld [vmem:[%s1 + $0x25c8] sm:$0xff]
  %v1255 = vld [vmem:[%s1 + $0x25d0] sm:$0xff]
  %v1256 = vld [vmem:[%s1 + $0x25d8] sm:$0xff]
  %v1257 = vld [vmem:[%s1 + $0x25e0] sm:$0xff]
  %v1258 = vld [vmem:[%s1 + $0x25e8] sm:$0xff]
  %v1259 = vld [vmem:[%s1 + $0x25f0] sm:$0xff]
  %v1260 = vld [vmem:[%s1 + $0x25f8] sm:$0xff]
  %v1261 = vld [vmem:[%s1 + $0x2600] sm:$0xff]
  %v1262 = vld [vmem:[%s1 + $0x2608] sm:$0xff]
  %v1263 = vld [vmem:[%s1 + $0x2610] sm:$0xff]
  %v1264 = vld [vmem:[%s1 + $0x2618] sm:$0xff]
  %v1265 = vld [vmem:[%s1 + $0x2620] sm:$0xff]
  %v1266 = vld [vmem:[%s1 + $0x2628] sm:$0xff]
  %v1267 = vld [vmem:[%s1 + $0x2630] sm:$0xff]
  %v1268 = vld [vmem:[%s1 + $0x2638] sm:$0xff]
  %v1269 = vld [vmem:[%s1 + $0x2640] sm:$0xff]
  %v1270 = vld [vmem:[%s1 + $0x2648] sm:$0xff]
  %v1271 = vld [vmem:[%s1 + $0x2650] sm:$0xff]
  %v1272 = vld [vmem:[%s1 + $0x2658] sm:$0xff]
  %v1273 = vld [vmem:[%s1 + $0x2660] sm:$0xff]
  %v1274 = vld [vmem:[%s1 + $0x2668] sm:$0xff]
  %v1275 = vld [vmem:[%s1 + $0x2670] sm:$0xff]
  %v1276 = vld [vmem:[%s1 + $0x2678] sm:$0xff]
  %v1277 = vld [vmem:[%s1 + $0x2680] sm:$0xff]
  %v1278 = vld [vmem:[%s1 + $0x2688] sm:$0xff]
  %v1279 = vld [vmem:[%s1 + $0x2690] sm:$0xff]
  %v1280 = vld [vmem:[%s1 + $0x2698] sm:$0xff]
  %v1281 = vld [vmem:[%s1 + $0x26a0] sm:$0xff]
  %v1282 = vld [vmem:[%s1 + $0x26a8] sm:$0xff]
  %v1283 = vld [vmem:[%s1 + $0x26b0] sm:$0xff]
  %v1284 = vld [vmem:[%s1 + $0x26b8] sm:$0xff]
  %v1285 = vld [vmem:[%s1 + $0x26c0] sm:$0xff]
  %v1286 = vld [vmem:[%s1 + $0x26c8] sm:$0xff]
  %v1287 = vld [vmem:[%s1 + $0x26d0] sm:$0xff]
  %v1288 = vld [vmem:[%s1 + $0x26d8] sm:$0xff]
  %v1289 = vld [vmem:[%s1 + $0x26e0] sm:$0xff]
  %v1290 = vld [vmem:[%s1 + $0x26e8] sm:$0xff]
  %v1291 = vld [vmem:[%s1 + $0x26f0] sm:$0xff]
  %v1292 = vld [vmem:[%s1 + $0x26f8] sm:$0xff]
  %v1293 = vld [vmem:[%s1 + $0x2700] sm:$0xff]
  %v1294 = vld [vmem:[%s1 + $0x2708] sm:$0xff]
  %v1295 = vld [vmem:[%s1 + $0x2710] sm:$0xff]
  %v1296 = vld [vmem:[%s1 + $0x2718] sm:$0xff]
  %v1297 = vld [vmem:[%s1 + $0x2720] sm:$0xff]
  %v1298 = vld [vmem:[%s1 + $0x2728] sm:$0xff]
  %v1299 = vld [vmem:[%s1 + $0x2730] sm:$0xff]
  %v1300 = vld [vmem:[%s1 + $0x2738] sm:$0xff]
  %v1301 = vld [vmem:[%s1 + $0x2740] sm:$0xff]
  %v1302 = vld [vmem:[%s1 + $0x2748] sm:$0xff]
  %v1303 = vld [vmem:[%s1 + $0x2750] sm:$0xff]
  %v1304 = vld [vmem:[%s1 + $0x2758] sm:$0xff]
  %v1305 = vld [vmem:[%s1 + $0x2760] sm:$0xff]
  %v1306 = vld [vmem:[%s1 + $0x2768] sm:$0xff]
  %v1307 = vld [vmem:[%s1 + $0x2770] sm:$0xff]
  %v1308 = vld [vmem:[%s1 + $0x2778] sm:$0xff]
  %v1309 = vld [vmem:[%s1 + $0x2780] sm:$0xff]
  %v1310 = vld [vmem:[%s1 + $0x2788] sm:$0xff]
  %v1311 = vld [vmem:[%s1 + $0x2790] sm:$0xff]
  %v1312 = vld [vmem:[%s1 + $0x2798] sm:$0xff]
  %v1313 = vld [vmem:[%s1 + $0x27a0] sm:$0xff]
  %v1314 = vld [vmem:[%s1 + $0x27a8] sm:$0xff]
  %v1315 = vld [vmem:[%s1 + $0x27b0] sm:$0xff]
  %v1316 = vld [vmem:[%s1 + $0x27b8] sm:$0xff]
  %v1317 = vld [vmem:[%s1 + $0x27c0] sm:$0xff]
  %v1318 = vld [vmem:[%s1 + $0x27c8] sm:$0xff]
  %v1319 = vld [vmem:[%s1 + $0x27d0] sm:$0xff]
  %v1320 = vld [vmem:[%s1 + $0x27d8] sm:$0xff]
  %v1321 = vld [vmem:[%s1 + $0x27e0] sm:$0xff]
  %v1322 = vld [vmem:[%s1 + $0x27e8] sm:$0xff]
  %v1323 = vld [vmem:[%s1 + $0x27f0] sm:$0xff]
  %v1324 = vld [vmem:[%s1 + $0x27f8] sm:$0xff]
  %v1325 = vld [vmem:[%s1 + $0x2800] sm:$0xff]
  %v1326 = vld [vmem:[%s1 + $0x2808] sm:$0xff]
  %v1327 = vld [vmem:[%s1 + $0x2810] sm:$0xff]
  %v1328 = vld [vmem:[%s1 + $0x2818] sm:$0xff]
  %v1329 = vld [vmem:[%s1 + $0x2820] sm:$0xff]
  %v1330 = vld [vmem:[%s1 + $0x2828] sm:$0xff]
  %v1331 = vld [vmem:[%s1 + $0x2830] sm:$0xff]
  %v1332 = vld [vmem:[%s1 + $0x2838] sm:$0xff]
  %v1333 = vld [vmem:[%s1 + $0x2840] sm:$0xff]
  %v1334 = vld [vmem:[%s1 + $0x2848] sm:$0xff]
  %v1335 = vld [vmem:[%s1 + $0x2850] sm:$0xff]
  %v1336 = vld [vmem:[%s1 + $0x2858] sm:$0xff]
  %v1337 = vld [vmem:[%s1 + $0x2860] sm:$0xff]
  %v1338 = vld [vmem:[%s1 + $0x2868] sm:$0xff]
  %v1339 = vld [vmem:[%s1 + $0x2870] sm:$0xff]
  %v1340 = vld [vmem:[%s1 + $0x2878] sm:$0xff]
  %v1341 = vld [vmem:[%s1 + $0x2880] sm:$0xff]
  %v1342 = vld [vmem:[%s1 + $0x2888] sm:$0xff]
  %v1343 = vld [vmem:[%s1 + $0x2890] sm:$0xff]
  %v1344 = vld [vmem:[%s1 + $0x2898] sm:$0xff]
  %v1345 = vld [vmem:[%s1 + $0x28a0] sm:$0xff]
  %v1346 = vld [vmem:[%s1 + $0x28a8] sm:$0xff]
  %v1347 = vld [vmem:[%s1 + $0x28b0] sm:$0xff]
  %v1348 = vld [vmem:[%s1 + $0x28b8] sm:$0xff]
  %v1349 = vld [vmem:[%s1 + $0x28c0] sm:$0xff]
  %v1350 = vld [vmem:[%s1 + $0x28c8] sm:$0xff]
  %v1351 = vld [vmem:[%s1 + $0x28d0] sm:$0xff]
  %v1352 = vld [vmem:[%s1 + $0x28d8] sm:$0xff]
  %v1353 = vld [vmem:[%s1 + $0x28e0] sm:$0xff]
  %v1354 = vld [vmem:[%s1 + $0x28e8] sm:$0xff]
  %v1355 = vld [vmem:[%s1 + $0x28f0] sm:$0xff]
  %v1356 = vld [vmem:[%s1 + $0x28f8] sm:$0xff]
  %v1357 = vld [vmem:[%s1 + $0x2900] sm:$0xff]
  %v1358 = vld [vmem:[%s1 + $0x2908] sm:$0xff]
  %v1359 = vld [vmem:[%s1 + $0x2910] sm:$0xff]
  %v1360 = vld [vmem:[%s1 + $0x2918] sm:$0xff]
  %v1361 = vld [vmem:[%s1 + $0x2920] sm:$0xff]
  %v1362 = vld [vmem:[%s1 + $0x2928] sm:$0xff]
  %v1363 = vld [vmem:[%s1 + $0x2930] sm:$0xff]
  %v1364 = vld [vmem:[%s1 + $0x2938] sm:$0xff]
  %v1365 = vld [vmem:[%s1 + $0x2940] sm:$0xff]
  %v1366 = vld [vmem:[%s1 + $0x2948] sm:$0xff]
  %v1367 = vld [vmem:[%s1 + $0x2950] sm:$0xff]
  %v1368 = vld [vmem:[%s1 + $0x2958] sm:$0xff]
  %v1369 = vld [vmem:[%s1 + $0x2960] sm:$0xff]
  %v1370 = vld [vmem:[%s1 + $0x2968] sm:$0xff]
  %v1371 = vld [vmem:[%s1 + $0x2970] sm:$0xff]
  %v1372 = vld [vmem:[%s1 + $0x2978] sm:$0xff]
  %v1373 = vld [vmem:[%s1 + $0x2980] sm:$0xff]
  %v1374 = vld [vmem:[%s1 + $0x2988] sm:$0xff]
  %v1375 = vld [vmem:[%s1 + $0x2990] sm:$0xff]
  %v1376 = vld [vmem:[%s1 + $0x2998] sm:$0xff]
  %v1377 = vld [vmem:[%s1 + $0x29a0] sm:$0xff]
  %v1378 = vld [vmem:[%s1 + $0x29a8] sm:$0xff]
  %v1379 = vld [vmem:[%s1 + $0x29b0] sm:$0xff]
  %v1380 = vld [vmem:[%s1 + $0x29b8] sm:$0xff]
  %v1381 = vld [vmem:[%s1 + $0x29c0] sm:$0xff]
  %v1382 = vld [vmem:[%s1 + $0x29c8] sm:$0xff]
  %v1383 = vld [vmem:[%s1 + $0x29d0] sm:$0xff]
  %v1384 = vld [vmem:[%s1 + $0x29d8] sm:$0xff]
  %v1385 = vld [vmem:[%s1 + $0x29e0] sm:$0xff]
  %v1386 = vld [vmem:[%s1 + $0x29e8] sm:$0xff]
  %v1387 = vld [vmem:[%s1 + $0x29f0] sm:$0xff]
  %v1388 = vld [vmem:[%s1 + $0x29f8] sm:$0xff]
  %v1389 = vld [vmem:[%s1 + $0x2a00] sm:$0xff]
  %v1390 = vld [vmem:[%s1 + $0x2a08] sm:$0xff]
  %v1391 = vld [vmem:[%s1 + $0x2a10] sm:$0xff]
  %v1392 = vld [vmem:[%s1 + $0x2a18] sm:$0xff]
  %v1393 = vld [vmem:[%s1 + $0x2a20] sm:$0xff]
  %v1394 = vld [vmem:[%s1 + $0x2a28] sm:$0xff]
  %v1395 = vld [vmem:[%s1 + $0x2a30] sm:$0xff]
  %v1396 = vld [vmem:[%s1 + $0x2a38] sm:$0xff]
  %v1397 = vld [vmem:[%s1 + $0x2a40] sm:$0xff]
  %v1398 = vld [vmem:[%s1 + $0x2a48] sm:$0xff]
  %v1399 = vld [vmem:[%s1 + $0x2a50] sm:$0xff]
  %v1400 = vld [vmem:[%s1 + $0x2a58] sm:$0xff]
  %v1401 = vld [vmem:[%s1 + $0x2a60] sm:$0xff]
  %v1402 = vld [vmem:[%s1 + $0x2a68] sm:$0xff]
  %v1403 = vld [vmem:[%s1 + $0x2a70] sm:$0xff]
  %v1404 = vld [vmem:[%s1 + $0x2a78] sm:$0xff]
  %v1405 = vld [vmem:[%s1 + $0x2a80] sm:$0xff]
  %v1406 = vld [vmem:[%s1 + $0x2a88] sm:$0xff]
  %v1407 = vld [vmem:[%s1 + $0x2a90] sm:$0xff]
  %v1408 = vld [vmem:[%s1 + $0x2a98] sm:$0xff]
  %v1409 = vld [vmem:[%s1 + $0x2aa0] sm:$0xff]
  %v1410 = vld [vmem:[%s1 + $0x2aa8] sm:$0xff]
  %v1411 = vld [vmem:[%s1 + $0x2ab0] sm:$0xff]
  %v1412 = vld [vmem:[%s1 + $0x2ab8] sm:$0xff]
  %v1413 = vld [vmem:[%s1 + $0x2ac0] sm:$0xff]
  %v1414 = vld [vmem:[%s1 + $0x2ac8] sm:$0xff]
  %v1415 = vld [vmem:[%s1 + $0x2ad0] sm:$0xff]
  %v1416 = vld [vmem:[%s1 + $0x2ad8] sm:$0xff]
  %v1417 = vld [vmem:[%s1 + $0x2ae0] sm:$0xff]
  %v1418 = vld [vmem:[%s1 + $0x2ae8] sm:$0xff]
  %v1419 = vld [vmem:[%s1 + $0x2af0] sm:$0xff]
  %v1420 = vld [vmem:[%s1 + $0x2af8] sm:$0xff]
  %v1421 = vld [vmem:[%s1 + $0x2b00] sm:$0xff]
  %v1422 = vld [vmem:[%s1 + $0x2b08] sm:$0xff]
  %v1423 = vld [vmem:[%s1 + $0x2b10] sm:$0xff]
  %v1424 = vld [vmem:[%s1 + $0x2b18] sm:$0xff]
  %v1425 = vld [vmem:[%s1 + $0x2b20] sm:$0xff]
  %v1426 = vld [vmem:[%s1 + $0x2b28] sm:$0xff]
  %v1427 = vld [vmem:[%s1 + $0x2b30] sm:$0xff]
  %v1428 = vld [vmem:[%s1 + $0x2b38] sm:$0xff]
  %v1429 = vld [vmem:[%s1 + $0x2b40] sm:$0xff]
  %v1430 = vld [vmem:[%s1 + $0x2b48] sm:$0xff]
  %v1431 = vld [vmem:[%s1 + $0x2b50] sm:$0xff]
  %v1432 = vld [vmem:[%s1 + $0x2b58] sm:$0xff]
  %v1433 = vld [vmem:[%s1 + $0x2b60] sm:$0xff]
  %v1434 = vld [vmem:[%s1 + $0x2b68] sm:$0xff]
  %v1435 = vld [vmem:[%s1 + $0x2b70] sm:$0xff]
  %v1436 = vld [vmem:[%s1 + $0x2b78] sm:$0xff]
  %v1437 = vld [vmem:[%s1 + $0x2b80] sm:$0xff]
  %v1438 = vld [vmem:[%s1 + $0x2b88] sm:$0xff]
  %v1439 = vld [vmem:[%s1 + $0x2b90] sm:$0xff]
  %v1440 = vld [vmem:[%s1 + $0x2b98] sm:$0xff]
  %v1441 = vld [vmem:[%s1 + $0x2ba0] sm:$0xff]
  %v1442 = vld [vmem:[%s1 + $0x2ba8] sm:$0xff]
  %v1443 = vld [vmem:[%s1 + $0x2bb0] sm:$0xff]
  %v1444 = vld [vmem:[%s1 + $0x2bb8] sm:$0xff]
  %v1445 = vld [vmem:[%s1 + $0x2bc0] sm:$0xff]
  %v1446 = vld [vmem:[%s1 + $0x2bc8] sm:$0xff]
  %v1447 = vld [vmem:[%s1 + $0x2bd0] sm:$0xff]
  %v1448 = vld [vmem:[%s1 + $0x2bd8] sm:$0xff]
  %v1449 = vld [vmem:[%s1 + $0x2be0] sm:$0xff]
  %v1450 = vld [vmem:[%s1 + $0x2be8] sm:$0xff]
  %v1451 = vld [vmem:[%s1 + $0x2bf0] sm:$0xff]
  %v1452 = vld [vmem:[%s1 + $0x2bf8] sm:$0xff]
  %v1453 = vld [vmem:[%s1 + $0x2c00] sm:$0xff]
  %v1454 = vld [vmem:[%s1 + $0x2c08] sm:$0xff]
  %v1455 = vld [vmem:[%s1 + $0x2c10] sm:$0xff]
  %v1456 = vld [vmem:[%s1 + $0x2c18] sm:$0xff]
  %v1457 = vld [vmem:[%s1 + $0x2c20] sm:$0xff]
  %v1458 = vld [vmem:[%s1 + $0x2c28] sm:$0xff]
  %v1459 = vld [vmem:[%s1 + $0x2c30] sm:$0xff]
  %v1460 = vld [vmem:[%s1 + $0x2c38] sm:$0xff]
  %v1461 = vld [vmem:[%s1 + $0x2c40] sm:$0xff]
  %v1462 = vld [vmem:[%s1 + $0x2c48] sm:$0xff]
  %v1463 = vld [vmem:[%s1 + $0x2c50] sm:$0xff]
  %v1464 = vld [vmem:[%s1 + $0x2c58] sm:$0xff]
  %v1465 = vld [vmem:[%s1 + $0x2c60] sm:$0xff]
  %v1466 = vld [vmem:[%s1 + $0x2c68] sm:$0xff]
  %v1467 = vld [vmem:[%s1 + $0x2c70] sm:$0xff]
  %v1468 = vld [vmem:[%s1 + $0x2c78] sm:$0xff]
  %v1469 = vld [vmem:[%s1 + $0x2c80] sm:$0xff]
  %v1470 = vld [vmem:[%s1 + $0x2c88] sm:$0xff]
  %v1471 = vld [vmem:[%s1 + $0x2c90] sm:$0xff]
  %v1472 = vld [vmem:[%s1 + $0x2c98] sm:$0xff]
  %v1473 = vld [vmem:[%s1 + $0x2ca0] sm:$0xff]
  %v1474 = vld [vmem:[%s1 + $0x2ca8] sm:$0xff]
  %v1475 = vld [vmem:[%s1 + $0x2cb0] sm:$0xff]
  %v1476 = vld [vmem:[%s1 + $0x2cb8] sm:$0xff]
  %v1477 = vld [vmem:[%s1 + $0x2cc0] sm:$0xff]
  %v1478 = vld [vmem:[%s1 + $0x2cc8] sm:$0xff]
  %v1479 = vld [vmem:[%s1 + $0x2cd0] sm:$0xff]
  %v1480 = vld [vmem:[%s1 + $0x2cd8] sm:$0xff]
  %v1481 = vld [vmem:[%s1 + $0x2ce0] sm:$0xff]
  %v1482 = vld [vmem:[%s1 + $0x2ce8] sm:$0xff]
  %v1483 = vld [vmem:[%s1 + $0x2cf0] sm:$0xff]
  %v1484 = vld [vmem:[%s1 + $0x2cf8] sm:$0xff]
  %v1485 = vld [vmem:[%s1 + $0x2d00] sm:$0xff]
  %v1486 = vld [vmem:[%s1 + $0x2d08] sm:$0xff]
  %v1487 = vld [vmem:[%s1 + $0x2d10] sm:$0xff]
  %v1488 = vld [vmem:[%s1 + $0x2d18] sm:$0xff]
  %v1489 = vld [vmem:[%s1 + $0x2d20] sm:$0xff]
  %v1490 = vld [vmem:[%s1 + $0x2d28] sm:$0xff]
  %v1491 = vld [vmem:[%s1 + $0x2d30] sm:$0xff]
  %v1492 = vld [vmem:[%s1 + $0x2d38] sm:$0xff]
  %v1493 = vld [vmem:[%s1 + $0x2d40] sm:$0xff]
  %v1494 = vld [vmem:[%s1 + $0x2d48] sm:$0xff]
  %v1495 = vld [vmem:[%s1 + $0x2d50] sm:$0xff]
  %v1496 = vld [vmem:[%s1 + $0x2d58] sm:$0xff]
  %v1497 = vld [vmem:[%s1 + $0x2d60] sm:$0xff]
  %v1498 = vld [vmem:[%s1 + $0x2d68] sm:$0xff]
  %v1499 = vld [vmem:[%s1 + $0x2d70] sm:$0xff]
  %v1500 = vld [vmem:[%s1 + $0x2d78] sm:$0xff]
  %v1501 = vld [vmem:[%s1 + $0x2d80] sm:$0xff]
  %v1502 = vld [vmem:[%s1 + $0x2d88] sm:$0xff]
  %v1503 = vld [vmem:[%s1 + $0x2d90] sm:$0xff]
  %v1504 = vld [vmem:[%s1 + $0x2d98] sm:$0xff]
  %v1505 = vld [vmem:[%s1 + $0x2da0] sm:$0xff]
  %v1506 = vld [vmem:[%s1 + $0x2da8] sm:$0xff]
  %v1507 = vld [vmem:[%s1 + $0x2db0] sm:$0xff]
  %v1508 = vld [vmem:[%s1 + $0x2db8] sm:$0xff]
  %v1509 = vld [vmem:[%s1 + $0x2dc0] sm:$0xff]
  %v1510 = vld [vmem:[%s1 + $0x2dc8] sm:$0xff]
  %v1511 = vld [vmem:[%s1 + $0x2dd0] sm:$0xff]
  %v1512 = vld [vmem:[%s1 + $0x2dd8] sm:$0xff]
  %v1513 = vld [vmem:[%s1 + $0x2de0] sm:$0xff]
  %v1514 = vld [vmem:[%s1 + $0x2de8] sm:$0xff]
  %v1515 = vld [vmem:[%s1 + $0x2df0] sm:$0xff]
  %v1516 = vld [vmem:[%s1 + $0x2df8] sm:$0xff]
  %v1517 = vld [vmem:[%s1 + $0x2e00] sm:$0xff]
  %v1518 = vld [vmem:[%s1 + $0x2e08] sm:$0xff]
  %v1519 = vld [vmem:[%s1 + $0x2e10] sm:$0xff]
  %v1520 = vld [vmem:[%s1 + $0x2e18] sm:$0xff]
  %v1521 = vld [vmem:[%s1 + $0x2e20] sm:$0xff]
  %v1522 = vld [vmem:[%s1 + $0x2e28] sm:$0xff]
  %v1523 = vld [vmem:[%s1 + $0x2e30] sm:$0xff]
  %v1524 = vld [vmem:[%s1 + $0x2e38] sm:$0xff]
  %v1525 = vld [vmem:[%s1 + $0x2e40] sm:$0xff]
  %v1526 = vld [vmem:[%s1 + $0x2e48] sm:$0xff]
  %v1527 = vld [vmem:[%s1 + $0x2e50] sm:$0xff]
  %v1528 = vld [vmem:[%s1 + $0x2e58] sm:$0xff]
  %v1529 = vld [vmem:[%s1 + $0x2e60] sm:$0xff]
  %v1530 = vld [vmem:[%s1 + $0x2e68] sm:$0xff]
  %v1531 = vld [vmem:[%s1 + $0x2e70] sm:$0xff]
  %v1532 = vld [vmem:[%s1 + $0x2e78] sm:$0xff]
  %v1533 = vld [vmem:[%s1 + $0x2e80] sm:$0xff]
  %v1534 = vld [vmem:[%s1 + $0x2e88] sm:$0xff]
  %v1535 = vld [vmem:[%s1 + $0x2e90] sm:$0xff]
  %v1536 = vld [vmem:[%s1 + $0x2e98] sm:$0xff]
  %v1537 = vld [vmem:[%s1 + $0x2ea0] sm:$0xff]
  %v1538 = vld [vmem:[%s1 + $0x2ea8] sm:$0xff]
  %v1539 = vld [vmem:[%s1 + $0x2eb0] sm:$0xff]
  %v1540 = vld [vmem:[%s1 + $0x2eb8] sm:$0xff]
  %v1541 = vld [vmem:[%s1 + $0x2ec0] sm:$0xff]
  %v1542 = vld [vmem:[%s1 + $0x2ec8] sm:$0xff]
  %v1543 = vld [vmem:[%s1 + $0x2ed0] sm:$0xff]
  %v1544 = vld [vmem:[%s1 + $0x2ed8] sm:$0xff]
  %v1545 = vld [vmem:[%s1 + $0x2ee0] sm:$0xff]
  %v1546 = vld [vmem:[%s1 + $0x2ee8] sm:$0xff]
  %v1547 = vld [vmem:[%s1 + $0x2ef0] sm:$0xff]
  %v1548 = vld [vmem:[%s1 + $0x2ef8] sm:$0xff]
  %v1549 = vld [vmem:[%s1 + $0x2f00] sm:$0xff]
  %v1550 = vld [vmem:[%s1 + $0x2f08] sm:$0xff]
  %v1551 = vld [vmem:[%s1 + $0x2f10] sm:$0xff]
  %v1552 = vld [vmem:[%s1 + $0x2f18] sm:$0xff]
  %v1553 = vld [vmem:[%s1 + $0x2f20] sm:$0xff]
  %v1554 = vld [vmem:[%s1 + $0x2f28] sm:$0xff]
  %v1555 = vld [vmem:[%s1 + $0x2f30] sm:$0xff]
  %v1556 = vld [vmem:[%s1 + $0x2f38] sm:$0xff]
  %v1557 = vld [vmem:[%s1 + $0x2f40] sm:$0xff]
  %v1558 = vld [vmem:[%s1 + $0x2f48] sm:$0xff]
  %v1559 = vld [vmem:[%s1 + $0x2f50] sm:$0xff]
  %v1560 = vld [vmem:[%s1 + $0x2f58] sm:$0xff]
  %v1561 = vld [vmem:[%s1 + $0x2f60] sm:$0xff]
  %v1562 = vld [vmem:[%s1 + $0x2f68] sm:$0xff]
  %v1563 = vld [vmem:[%s1 + $0x2f70] sm:$0xff]
  %v1564 = vld [vmem:[%s1 + $0x2f78] sm:$0xff]
  %v1565 = vld [vmem:[%s1 + $0x2f80] sm:$0xff]
  %v1566 = vld [vmem:[%s1 + $0x2f88] sm:$0xff]
  %v1567 = vld [vmem:[%s1 + $0x2f90] sm:$0xff]
  %v1568 = vld [vmem:[%s1 + $0x2f98] sm:$0xff]
  %v1569 = vld [vmem:[%s1 + $0x2fa0] sm:$0xff]
  %v1570 = vld [vmem:[%s1 + $0x2fa8] sm:$0xff]
  %v1571 = vld [vmem:[%s1 + $0x2fb0] sm:$0xff]
  %v1572 = vld [vmem:[%s1 + $0x2fb8] sm:$0xff]
  %v1573 = vld [vmem:[%s1 + $0x2fc0] sm:$0xff]
  %v1574 = vld [vmem:[%s1 + $0x2fc8] sm:$0xff]
  %v1575 = vld [vmem:[%s1 + $0x2fd0] sm:$0xff]
  %v1576 = vld [vmem:[%s1 + $0x2fd8] sm:$0xff]
  %v1577 = vld [vmem:[%s1 + $0x2fe0] sm:$0xff]
  %v1578 = vld [vmem:[%s1 + $0x2fe8] sm:$0xff]
  %v1579 = vld [vmem:[%s1 + $0x2ff0] sm:$0xff]
  %v1580 = vld [vmem:[%s1 + $0x2ff8] sm:$0xff]
  %v1581 = vld [vmem:[%s1 + $0x3000] sm:$0xff]
  %v1582 = vld [vmem:[%s1 + $0x3008] sm:$0xff]
  %v1583 = vld [vmem:[%s1 + $0x3010] sm:$0xff]
  %v1584 = vld [vmem:[%s1 + $0x3018] sm:$0xff]
  %v1585 = vld [vmem:[%s1 + $0x3020] sm:$0xff]
  %v1586 = vld [vmem:[%s1 + $0x3028] sm:$0xff]
  %v1587 = vld [vmem:[%s1 + $0x3030] sm:$0xff]
  %v1588 = vld [vmem:[%s1 + $0x3038] sm:$0xff]
  %v1589 = vld [vmem:[%s1 + $0x3040] sm:$0xff]
  %v1590 = vld [vmem:[%s1 + $0x3048] sm:$0xff]
  %v1591 = vld [vmem:[%s1 + $0x3050] sm:$0xff]
  %v1592 = vld [vmem:[%s1 + $0x3058] sm:$0xff]
  %v1593 = vld [vmem:[%s1 + $0x3060] sm:$0xff]
  %v1594 = vld [vmem:[%s1 + $0x3068] sm:$0xff]
  %v1595 = vld [vmem:[%s1 + $0x3070] sm:$0xff]
  %v1596 = vld [vmem:[%s1 + $0x3078] sm:$0xff]
  %v1597 = vld [vmem:[%s1 + $0x3080] sm:$0xff]
  %v1598 = vld [vmem:[%s1 + $0x3088] sm:$0xff]
  %v1599 = vld [vmem:[%s1 + $0x3090] sm:$0xff]
  %v1600 = vld [vmem:[%s1 + $0x3098] sm:$0xff]
  %v1601 = vld [vmem:[%s1 + $0x30a0] sm:$0xff]
  %v1602 = vld [vmem:[%s1 + $0x30a8] sm:$0xff]
  %v1603 = vld [vmem:[%s1 + $0x30b0] sm:$0xff]
  %v1604 = vld [vmem:[%s1 + $0x30b8] sm:$0xff]
  %v1605 = vld [vmem:[%s1 + $0x30c0] sm:$0xff]
  %v1606 = vld [vmem:[%s1 + $0x30c8] sm:$0xff]
  %v1607 = vld [vmem:[%s1 + $0x30d0] sm:$0xff]
  %v1608 = vld [vmem:[%s1 + $0x30d8] sm:$0xff]
  %v1609 = vld [vmem:[%s1 + $0x30e0] sm:$0xff]
  %v1610 = vld [vmem:[%s1 + $0x30e8] sm:$0xff]
  %v1611 = vld [vmem:[%s1 + $0x30f0] sm:$0xff]
  %v1612 = vld [vmem:[%s1 + $0x30f8] sm:$0xff]
  %v1613 = vld [vmem:[%s2] sm:$0xf]
  %v1615 = vlaneseq
  %v1616 = vshrl.u32 %v1615, 7
  %v1617 = vsub.s32 0, %v1616
  %v1618 = vrot.slane %v1613, %v1617
  %v1619 = vlaneseq
  %v1620 = vshrl.u32 %v1619, 7
  %v1621 = vsub.s32 1, %v1620
  %v1622 = vrot.slane %v1613, %v1621
  %v1623 = vlaneseq
  %v1624 = vshrl.u32 %v1623, 7
  %v1625 = vsub.s32 2, %v1624
  %v1626 = vrot.slane %v1613, %v1625
  %v1627 = vlaneseq
  %v1628 = vshrl.u32 %v1627, 7
  %v1629 = vsub.s32 3, %v1628
  %v1630 = vrot.slane %v1613, %v1629
  %vm1635 = vcmask 523264
  %v1637 = vsel %vm1635, %v44, 0
  %1639 = vmatprep.subr.mxu0 %v46
  %1640 = vmatpush1.msra.mxu0 %v45
  %1641 = vmatprep.subr.mxu0 %v50
  %1642 = vmatpush1.msra.mxu0 %v49
  %1643 = vmatprep.subr.mxu0 %v54
  %1644 = vmatpush1.msra.mxu0 %v53
  %1645 = vmatprep.subr.mxu0 %v58
  %1646 = vmatpush1.msra.mxu0 %v57
  %1647 = vmatprep.subr.mxu0 %v62
  %1648 = vmatpush1.msra.mxu0 %v61
  %1649 = vmatprep.subr.mxu0 %v66
  %1650 = vmatpush1.msra.mxu0 %v65
  %1651 = vmatprep.subr.mxu0 %v70
  %1652 = vmatpush1.msra.mxu0 %v69
  %1653 = vmatprep.subr.mxu0 %v74
  %1654 = vmatpush1.msra.mxu0 %v73
  %1655 = vmatprep.subr.mxu0 %v78
  %1656 = vmatpush1.msra.mxu0 %v77
  %1657 = vmatprep.subr.mxu0 %v82
  %1658 = vmatpush1.msra.mxu0 %v81
  %1659 = vmatprep.subr.mxu0 %v86
  %1660 = vmatpush1.msra.mxu0 %v85
  %1661 = vmatprep.subr.mxu0 %v90
  %1662 = vmatpush1.msra.mxu0 %v89
  %1663 = vmatprep.subr.mxu0 %v94
  %1664 = vmatpush1.msra.mxu0 %v93
  %1665 = vmatprep.subr.mxu0 %v98
  %1666 = vmatpush1.msra.mxu0 %v97
  %1667 = vmatprep.subr.mxu0 %v102
  %1668 = vmatpush1.msra.mxu0 %v101
  %1669 = vmatprep.subr.mxu0 %v106
  %1670 = vmatpush1.msra.mxu0 %v105
  %1671 = vmatprep.subr.mxu0 %v110
  %1672 = vmatpush1.msra.mxu0 %v109
  %1673 = vmatprep.subr.mxu0 %v114
  %1674 = vmatpush1.msra.mxu0 %v113
  %1675 = vmatprep.subr.mxu0 %v118
  %1676 = vmatpush1.msra.mxu0 %v117
  %1677 = vmatprep.subr.mxu0 %v122
  %1678 = vmatpush1.msra.mxu0 %v121
  %1679 = vmatprep.subr.mxu0 %v126
  %1680 = vmatpush1.msra.mxu0 %v125
  %1681 = vmatprep.subr.mxu0 %v130
  %1682 = vmatpush1.msra.mxu0 %v129
  %1683 = vmatprep.subr.mxu0 %v134
  %1684 = vmatpush1.msra.mxu0 %v133
  %1685 = vmatprep.subr.mxu0 %v138
  %1686 = vmatpush1.msra.mxu0 %v137
  %1687 = vmatprep.subr.mxu0 %v142
  %1688 = vmatpush1.msra.mxu0 %v141
  %1689 = vmatprep.subr.mxu0 %v146
  %1690 = vmatpush1.msra.mxu0 %v145
  %1691 = vmatprep.subr.mxu0 %v150
  %1692 = vmatpush1.msra.mxu0 %v149
  %1693 = vmatprep.subr.mxu0 %v154
  %1694 = vmatpush1.msra.mxu0 %v153
  %1695 = vmatprep.subr.mxu0 %v158
  %1696 = vmatpush1.msra.mxu0 %v157
  %1697 = vmatprep.subr.mxu0 %v162
  %1698 = vmatpush1.msra.mxu0 %v161
  %1699 = vmatprep.subr.mxu0 %v166
  %1700 = vmatpush1.msra.mxu0 %v165
  %1701 = vmatprep.subr.mxu0 %v170
  %1702 = vmatpush1.msra.mxu0 %v169
  %1703 = vmatprep.mubr.f32.mxu0 %v21
  %1704 = vmatmul.mubr.f32.gmra.mrb[0].mxu0 %v20
  %v1705 = vpop.f32.mrb[0].mxu0
  %v1706 = vadd.f32 %v1618, %v1705
  %v1707 = vpop.f32.mrb[0].mxu0
  %v1708 = vadd.f32 %v1622, %v1707
  %1709 = vdwg.mxu0
  %1710 = vmatprep.subr.mxu0 %v174
  %1711 = vmatpush1.msra.mxu0 %v173
  %1712 = vmatprep.subr.mxu0 %v178
  %1713 = vmatpush1.msra.mxu0 %v177
  %1714 = vmatprep.subr.mxu0 %v182
  %1715 = vmatpush1.msra.mxu0 %v181
  %1716 = vmatprep.subr.mxu0 %v186
  %1717 = vmatpush1.msra.mxu0 %v185
  %1718 = vmatprep.subr.mxu0 %v190
  %1719 = vmatpush1.msra.mxu0 %v189
  %1720 = vmatprep.subr.mxu0 %v194
  %1721 = vmatpush1.msra.mxu0 %v193
  %1722 = vmatprep.subr.mxu0 %v198
  %1723 = vmatpush1.msra.mxu0 %v197
  %1724 = vmatprep.subr.mxu0 %v202
  %1725 = vmatpush1.msra.mxu0 %v201
  %1726 = vmatprep.subr.mxu0 %v206
  %1727 = vmatpush1.msra.mxu0 %v205
  %1728 = vmatprep.subr.mxu0 %v210
  %1729 = vmatpush1.msra.mxu0 %v209
  %1730 = vmatprep.subr.mxu0 %v214
  %1731 = vmatpush1.msra.mxu0 %v213
  %1732 = vmatprep.subr.mxu0 %v218
  %1733 = vmatpush1.msra.mxu0 %v217
  %1734 = vmatprep.subr.mxu0 %v222
  %1735 = vmatpush1.msra.mxu0 %v221
  %1736 = vmatprep.subr.mxu0 %v226
  %1737 = vmatpush1.msra.mxu0 %v225
  %1738 = vmatprep.subr.mxu0 %v230
  %1739 = vmatpush1.msra.mxu0 %v229
  %1740 = vmatprep.subr.mxu0 %v234
  %1741 = vmatpush1.msra.mxu0 %v233
  %1742 = vmatprep.subr.mxu0 %v238
  %1743 = vmatpush1.msra.mxu0 %v237
  %1744 = vmatprep.subr.mxu0 %v242
  %1745 = vmatpush1.msra.mxu0 %v241
  %1746 = vmatprep.subr.mxu0 %v246
  %1747 = vmatpush1.msra.mxu0 %v245
  %1748 = vmatprep.subr.mxu0 %v250
  %1749 = vmatpush1.msra.mxu0 %v249
  %1750 = vmatprep.subr.mxu0 %v254
  %1751 = vmatpush1.msra.mxu0 %v253
  %1752 = vmatprep.subr.mxu0 %v258
  %1753 = vmatpush1.msra.mxu0 %v257
  %1754 = vmatprep.subr.mxu0 %v262
  %1755 = vmatpush1.msra.mxu0 %v261
  %1756 = vmatprep.subr.mxu0 %v266
  %1757 = vmatpush1.msra.mxu0 %v265
  %1758 = vmatprep.subr.mxu0 %v270
  %1759 = vmatpush1.msra.mxu0 %v269
  %1760 = vmatprep.subr.mxu0 %v274
  %1761 = vmatpush1.msra.mxu0 %v273
  %1762 = vmatprep.subr.mxu0 %v278
  %1763 = vmatpush1.msra.mxu0 %v277
  %1764 = vmatprep.subr.mxu0 %v282
  %1765 = vmatpush1.msra.mxu0 %v281
  %1766 = vmatprep.subr.mxu0 %v286
  %1767 = vmatpush1.msra.mxu0 %v285
  %1768 = vmatprep.subr.mxu0 %v290
  %1769 = vmatpush1.msra.mxu0 %v289
  %1770 = vmatprep.subr.mxu0 %v294
  %1771 = vmatpush1.msra.mxu0 %v293
  %1772 = vmatprep.subr.mxu0 %v298
  %1773 = vmatpush1.msra.mxu0 %v297
  %1774 = vmatprep.mubr.f32.mxu0 %v23
  %1775 = vmatmul.mubr.f32.gmra.mrb[0].mxu0 %v22
  %v1776 = vpop.f32.mrb[0].mxu0
  %v1777 = vadd.f32 %v1706, %v1776
  %v1778 = vpop.f32.mrb[0].mxu0
  %v1779 = vadd.f32 %v1708, %v1778
  %1780 = vdwg.mxu0
  %1781 = vmatprep.subr.mxu0 %v302
  %1782 = vmatpush1.msra.mxu0 %v301
  %1783 = vmatprep.subr.mxu0 %v306
  %1784 = vmatpush1.msra.mxu0 %v305
  %1785 = vmatprep.subr.mxu0 %v310
  %1786 = vmatpush1.msra.mxu0 %v309
  %1787 = vmatprep.subr.mxu0 %v314
  %1788 = vmatpush1.msra.mxu0 %v313
  %1789 = vmatprep.subr.mxu0 %v318
  %1790 = vmatpush1.msra.mxu0 %v317
  %1791 = vmatprep.subr.mxu0 %v322
  %1792 = vmatpush1.msra.mxu0 %v321
  %1793 = vmatprep.subr.mxu0 %v326
  %1794 = vmatpush1.msra.mxu0 %v325
  %1795 = vmatprep.subr.mxu0 %v330
  %1796 = vmatpush1.msra.mxu0 %v329
  %1797 = vmatprep.subr.mxu0 %v334
  %1798 = vmatpush1.msra.mxu0 %v333
  %1799 = vmatprep.subr.mxu0 %v338
  %1800 = vmatpush1.msra.mxu0 %v337
  %1801 = vmatprep.subr.mxu0 %v342
  %1802 = vmatpush1.msra.mxu0 %v341
  %1803 = vmatprep.subr.mxu0 %v346
  %1804 = vmatpush1.msra.mxu0 %v345
  %1805 = vmatprep.subr.mxu0 %v350
  %1806 = vmatpush1.msra.mxu0 %v349
  %1807 = vmatprep.subr.mxu0 %v354
  %1808 = vmatpush1.msra.mxu0 %v353
  %1809 = vmatprep.subr.mxu0 %v358
  %1810 = vmatpush1.msra.mxu0 %v357
  %1811 = vmatprep.subr.mxu0 %v362
  %1812 = vmatpush1.msra.mxu0 %v361
  %1813 = vmatprep.subr.mxu0 %v366
  %1814 = vmatpush1.msra.mxu0 %v365
  %1815 = vmatprep.subr.mxu0 %v370
  %1816 = vmatpush1.msra.mxu0 %v369
  %1817 = vmatprep.subr.mxu0 %v374
  %1818 = vmatpush1.msra.mxu0 %v373
  %1819 = vmatprep.subr.mxu0 %v378
  %1820 = vmatpush1.msra.mxu0 %v377
  %1821 = vmatprep.subr.mxu0 %v382
  %1822 = vmatpush1.msra.mxu0 %v381
  %1823 = vmatprep.subr.mxu0 %v386
  %1824 = vmatpush1.msra.mxu0 %v385
  %1825 = vmatprep.subr.mxu0 %v390
  %1826 = vmatpush1.msra.mxu0 %v389
  %1827 = vmatprep.subr.mxu0 %v394
  %1828 = vmatpush1.msra.mxu0 %v393
  %1829 = vmatprep.subr.mxu0 %v398
  %1830 = vmatpush1.msra.mxu0 %v397
  %1831 = vmatprep.subr.mxu0 %v402
  %1832 = vmatpush1.msra.mxu0 %v401
  %1833 = vmatprep.subr.mxu0 %v406
  %1834 = vmatpush1.msra.mxu0 %v405
  %1835 = vmatprep.subr.mxu0 %v410
  %1836 = vmatpush1.msra.mxu0 %v409
  %1837 = vmatprep.subr.mxu0 %v414
  %1838 = vmatpush1.msra.mxu0 %v413
  %1839 = vmatprep.subr.mxu0 %v418
  %1840 = vmatpush1.msra.mxu0 %v417
  %1841 = vmatprep.subr.mxu0 %v422
  %1842 = vmatpush1.msra.mxu0 %v421
  %1843 = vmatprep.subr.mxu0 %v426
  %1844 = vmatpush1.msra.mxu0 %v425
  %1845 = vmatprep.mubr.f32.mxu0 %v25
  %1846 = vmatmul.mubr.f32.gmra.mrb[0].mxu0 %v24
  %v1847 = vpop.f32.mrb[0].mxu0
  %v1848 = vadd.f32 %v1777, %v1847
  %v1849 = vpop.f32.mrb[0].mxu0
  %v1850 = vadd.f32 %v1779, %v1849
  %1851 = vdwg.mxu0
  %1852 = vmatprep.subr.mxu0 %v430
  %1853 = vmatpush1.msra.mxu0 %v429
  %1854 = vmatprep.subr.mxu0 %v434
  %1855 = vmatpush1.msra.mxu0 %v433
  %1856 = vmatprep.subr.mxu0 %v438
  %1857 = vmatpush1.msra.mxu0 %v437
  %1858 = vmatprep.subr.mxu0 %v442
  %1859 = vmatpush1.msra.mxu0 %v441
  %1860 = vmatprep.subr.mxu0 %v446
  %1861 = vmatpush1.msra.mxu0 %v445
  %1862 = vmatprep.subr.mxu0 %v450
  %1863 = vmatpush1.msra.mxu0 %v449
  %1864 = vmatprep.subr.mxu0 %v454
  %1865 = vmatpush1.msra.mxu0 %v453
  %1866 = vmatprep.subr.mxu0 %v458
  %1867 = vmatpush1.msra.mxu0 %v457
  %1868 = vmatprep.subr.mxu0 %v462
  %1869 = vmatpush1.msra.mxu0 %v461
  %1870 = vmatprep.subr.mxu0 %v466
  %1871 = vmatpush1.msra.mxu0 %v465
  %1872 = vmatprep.subr.mxu0 %v470
  %1873 = vmatpush1.msra.mxu0 %v469
  %1874 = vmatprep.subr.mxu0 %v474
  %1875 = vmatpush1.msra.mxu0 %v473
  %1876 = vmatprep.subr.mxu0 %v478
  %1877 = vmatpush1.msra.mxu0 %v477
  %1878 = vmatprep.subr.mxu0 %v482
  %1879 = vmatpush1.msra.mxu0 %v481
  %1880 = vmatprep.subr.mxu0 %v486
  %1881 = vmatpush1.msra.mxu0 %v485
  %1882 = vmatprep.subr.mxu0 %v490
  %1883 = vmatpush1.msra.mxu0 %v489
  %1884 = vmatprep.subr.mxu0 %v494
  %1885 = vmatpush1.msra.mxu0 %v493
  %1886 = vmatprep.subr.mxu0 %v498
  %1887 = vmatpush1.msra.mxu0 %v497
  %1888 = vmatprep.subr.mxu0 %v502
  %1889 = vmatpush1.msra.mxu0 %v501
  %1890 = vmatprep.subr.mxu0 %v506
  %1891 = vmatpush1.msra.mxu0 %v505
  %1892 = vmatprep.subr.mxu0 %v510
  %1893 = vmatpush1.msra.mxu0 %v509
  %1894 = vmatprep.subr.mxu0 %v514
  %1895 = vmatpush1.msra.mxu0 %v513
  %1896 = vmatprep.subr.mxu0 %v518
  %1897 = vmatpush1.msra.mxu0 %v517
  %1898 = vmatprep.subr.mxu0 %v522
  %1899 = vmatpush1.msra.mxu0 %v521
  %1900 = vmatprep.subr.mxu0 %v526
  %1901 = vmatpush1.msra.mxu0 %v525
  %1902 = vmatprep.subr.mxu0 %v530
  %1903 = vmatpush1.msra.mxu0 %v529
  %1904 = vmatprep.subr.mxu0 %v534
  %1905 = vmatpush1.msra.mxu0 %v533
  %1906 = vmatprep.subr.mxu0 %v538
  %1907 = vmatpush1.msra.mxu0 %v537
  %1908 = vmatprep.subr.mxu0 %v542
  %1909 = vmatpush1.msra.mxu0 %v541
  %1910 = vmatprep.subr.mxu0 %v546
  %1911 = vmatpush1.msra.mxu0 %v545
  %1912 = vmatprep.subr.mxu0 %v550
  %1913 = vmatpush1.msra.mxu0 %v549
  %1914 = vmatprep.subr.mxu0 %v554
  %1915 = vmatpush1.msra.mxu0 %v553
  %1916 = vmatprep.mubr.f32.mxu0 %v27
  %1917 = vmatmul.mubr.f32.gmra.mrb[0].mxu0 %v26
  %v1918 = vpop.f32.mrb[0].mxu0
  %v1919 = vadd.f32 %v1848, %v1918
  %v1920 = vpop.f32.mrb[0].mxu0
  %v1921 = vadd.f32 %v1850, %v1920
  %1922 = vdwg.mxu0
  %1923 = vmatprep.subr.mxu0 %v558
  %1924 = vmatpush1.msra.mxu0 %v557
  %1925 = vmatprep.subr.mxu0 %v562
  %1926 = vmatpush1.msra.mxu0 %v561
  %1927 = vmatprep.subr.mxu0 %v566
  %1928 = vmatpush1.msra.mxu0 %v565
  %1929 = vmatprep.subr.mxu0 %v570
  %1930 = vmatpush1.msra.mxu0 %v569
  %1931 = vmatprep.subr.mxu0 %v574
  %1932 = vmatpush1.msra.mxu0 %v573
  %1933 = vmatprep.subr.mxu0 %v578
  %1934 = vmatpush1.msra.mxu0 %v577
  %1935 = vmatprep.subr.mxu0 %v582
  %1936 = vmatpush1.msra.mxu0 %v581
  %1937 = vmatprep.subr.mxu0 %v586
  %1938 = vmatpush1.msra.mxu0 %v585
  %1939 = vmatprep.subr.mxu0 %v590
  %1940 = vmatpush1.msra.mxu0 %v589
  %1941 = vmatprep.subr.mxu0 %v594
  %1942 = vmatpush1.msra.mxu0 %v593
  %1943 = vmatprep.subr.mxu0 %v598
  %1944 = vmatpush1.msra.mxu0 %v597
  %1945 = vmatprep.subr.mxu0 %v602
  %1946 = vmatpush1.msra.mxu0 %v601
  %1947 = vmatprep.subr.mxu0 %v606
  %1948 = vmatpush1.msra.mxu0 %v605
  %1949 = vmatprep.subr.mxu0 %v610
  %1950 = vmatpush1.msra.mxu0 %v609
  %1951 = vmatprep.subr.mxu0 %v614
  %1952 = vmatpush1.msra.mxu0 %v613
  %1953 = vmatprep.subr.mxu0 %v618
  %1954 = vmatpush1.msra.mxu0 %v617
  %1955 = vmatprep.subr.mxu0 %v622
  %1956 = vmatpush1.msra.mxu0 %v621
  %1957 = vmatprep.subr.mxu0 %v626
  %1958 = vmatpush1.msra.mxu0 %v625
  %1959 = vmatprep.subr.mxu0 %v630
  %1960 = vmatpush1.msra.mxu0 %v629
  %1961 = vmatprep.subr.mxu0 %v634
  %1962 = vmatpush1.msra.mxu0 %v633
  %1963 = vmatprep.subr.mxu0 %v638
  %1964 = vmatpush1.msra.mxu0 %v637
  %1965 = vmatprep.subr.mxu0 %v642
  %1966 = vmatpush1.msra.mxu0 %v641
  %1967 = vmatprep.subr.mxu0 %v646
  %1968 = vmatpush1.msra.mxu0 %v645
  %1969 = vmatprep.subr.mxu0 %v650
  %1970 = vmatpush1.msra.mxu0 %v649
  %1971 = vmatprep.subr.mxu0 %v654
  %1972 = vmatpush1.msra.mxu0 %v653
  %1973 = vmatprep.subr.mxu0 %v658
  %1974 = vmatpush1.msra.mxu0 %v657
  %1975 = vmatprep.subr.mxu0 %v662
  %1976 = vmatpush1.msra.mxu0 %v661
  %1977 = vmatprep.subr.mxu0 %v666
  %1978 = vmatpush1.msra.mxu0 %v665
  %1979 = vmatprep.subr.mxu0 %v670
  %1980 = vmatpush1.msra.mxu0 %v669
  %1981 = vmatprep.subr.mxu0 %v674
  %1982 = vmatpush1.msra.mxu0 %v673
  %1983 = vmatprep.subr.mxu0 %v678
  %1984 = vmatpush1.msra.mxu0 %v677
  %1985 = vmatprep.subr.mxu0 %v682
  %1986 = vmatpush1.msra.mxu0 %v681
  %1987 = vmatprep.mubr.f32.mxu0 %v29
  %1988 = vmatmul.mubr.f32.gmra.mrb[0].mxu0 %v28
  %v1989 = vpop.f32.mrb[0].mxu0
  %v1990 = vadd.f32 %v1919, %v1989
  %v1991 = vpop.f32.mrb[0].mxu0
  %v1992 = vadd.f32 %v1921, %v1991
  %1993 = vdwg.mxu0
  %1994 = vmatprep.subr.mxu0 %v686
  %1995 = vmatpush1.msra.mxu0 %v685
  %1996 = vmatprep.subr.mxu0 %v690
  %1997 = vmatpush1.msra.mxu0 %v689
  %1998 = vmatprep.subr.mxu0 %v694
  %1999 = vmatpush1.msra.mxu0 %v693
  %2000 = vmatprep.subr.mxu0 %v698
  %2001 = vmatpush1.msra.mxu0 %v697
  %2002 = vmatprep.subr.mxu0 %v702
  %2003 = vmatpush1.msra.mxu0 %v701
  %2004 = vmatprep.subr.mxu0 %v706
  %2005 = vmatpush1.msra.mxu0 %v705
  %2006 = vmatprep.subr.mxu0 %v710
  %2007 = vmatpush1.msra.mxu0 %v709
  %2008 = vmatprep.subr.mxu0 %v714
  %2009 = vmatpush1.msra.mxu0 %v713
  %2010 = vmatprep.subr.mxu0 %v718
  %2011 = vmatpush1.msra.mxu0 %v717
  %2012 = vmatprep.subr.mxu0 %v722
  %2013 = vmatpush1.msra.mxu0 %v721
  %2014 = vmatprep.subr.mxu0 %v726
  %2015 = vmatpush1.msra.mxu0 %v725
  %2016 = vmatprep.subr.mxu0 %v730
  %2017 = vmatpush1.msra.mxu0 %v729
  %2018 = vmatprep.subr.mxu0 %v734
  %2019 = vmatpush1.msra.mxu0 %v733
  %2020 = vmatprep.subr.mxu0 %v738
  %2021 = vmatpush1.msra.mxu0 %v737
  %2022 = vmatprep.subr.mxu0 %v742
  %2023 = vmatpush1.msra.mxu0 %v741
  %2024 = vmatprep.subr.mxu0 %v746
  %2025 = vmatpush1.msra.mxu0 %v745
  %2026 = vmatprep.subr.mxu0 %v750
  %2027 = vmatpush1.msra.mxu0 %v749
  %2028 = vmatprep.subr.mxu0 %v754
  %2029 = vmatpush1.msra.mxu0 %v753
  %2030 = vmatprep.subr.mxu0 %v758
  %2031 = vmatpush1.msra.mxu0 %v757
  %2032 = vmatprep.subr.mxu0 %v762
  %2033 = vmatpush1.msra.mxu0 %v761
  %2034 = vmatprep.subr.mxu0 %v766
  %2035 = vmatpush1.msra.mxu0 %v765
  %2036 = vmatprep.subr.mxu0 %v770
  %2037 = vmatpush1.msra.mxu0 %v769
  %2038 = vmatprep.subr.mxu0 %v774
  %2039 = vmatpush1.msra.mxu0 %v773
  %2040 = vmatprep.subr.mxu0 %v778
  %2041 = vmatpush1.msra.mxu0 %v777
  %2042 = vmatprep.subr.mxu0 %v782
  %2043 = vmatpush1.msra.mxu0 %v781
  %2044 = vmatprep.subr.mxu0 %v786
  %2045 = vmatpush1.msra.mxu0 %v785
  %2046 = vmatprep.subr.mxu0 %v790
  %2047 = vmatpush1.msra.mxu0 %v789
  %2048 = vmatprep.subr.mxu0 %v794
  %2049 = vmatpush1.msra.mxu0 %v793
  %2050 = vmatprep.subr.mxu0 %v798
  %2051 = vmatpush1.msra.mxu0 %v797
  %2052 = vmatprep.subr.mxu0 %v802
  %2053 = vmatpush1.msra.mxu0 %v801
  %2054 = vmatprep.subr.mxu0 %v806
  %2055 = vmatpush1.msra.mxu0 %v805
  %2056 = vmatprep.subr.mxu0 %v810
  %2057 = vmatpush1.msra.mxu0 %v809
  %2058 = vmatprep.mubr.f32.mxu0 %v31
  %2059 = vmatmul.mubr.f32.gmra.mrb[0].mxu0 %v30
  %v2060 = vpop.f32.mrb[0].mxu0
  %v2061 = vadd.f32 %v1990, %v2060
  %v2062 = vpop.f32.mrb[0].mxu0
  %v2063 = vadd.f32 %v1992, %v2062
  %2064 = vdwg.mxu0
  %2065 = vmatprep.subr.mxu0 %v814
  %2066 = vmatpush1.msra.mxu0 %v813
  %2067 = vmatprep.subr.mxu0 %v818
  %2068 = vmatpush1.msra.mxu0 %v817
  %2069 = vmatprep.subr.mxu0 %v822
  %2070 = vmatpush1.msra.mxu0 %v821
  %2071 = vmatprep.subr.mxu0 %v826
  %2072 = vmatpush1.msra.mxu0 %v825
  %2073 = vmatprep.subr.mxu0 %v830
  %2074 = vmatpush1.msra.mxu0 %v829
  %2075 = vmatprep.subr.mxu0 %v834
  %2076 = vmatpush1.msra.mxu0 %v833
  %2077 = vmatprep.subr.mxu0 %v838
  %2078 = vmatpush1.msra.mxu0 %v837
  %2079 = vmatprep.subr.mxu0 %v842
  %2080 = vmatpush1.msra.mxu0 %v841
  %2081 = vmatprep.subr.mxu0 %v846
  %2082 = vmatpush1.msra.mxu0 %v845
  %2083 = vmatprep.subr.mxu0 %v850
  %2084 = vmatpush1.msra.mxu0 %v849
  %2085 = vmatprep.subr.mxu0 %v854
  %2086 = vmatpush1.msra.mxu0 %v853
  %2087 = vmatprep.subr.mxu0 %v858
  %2088 = vmatpush1.msra.mxu0 %v857
  %2089 = vmatprep.subr.mxu0 %v862
  %2090 = vmatpush1.msra.mxu0 %v861
  %2091 = vmatprep.subr.mxu0 %v866
  %2092 = vmatpush1.msra.mxu0 %v865
  %2093 = vmatprep.subr.mxu0 %v870
  %2094 = vmatpush1.msra.mxu0 %v869
  %2095 = vmatprep.subr.mxu0 %v874
  %2096 = vmatpush1.msra.mxu0 %v873
  %2097 = vmatprep.subr.mxu0 %v878
  %2098 = vmatpush1.msra.mxu0 %v877
  %2099 = vmatprep.subr.mxu0 %v882
  %2100 = vmatpush1.msra.mxu0 %v881
  %2101 = vmatprep.subr.mxu0 %v886
  %2102 = vmatpush1.msra.mxu0 %v885
  %2103 = vmatprep.subr.mxu0 %v890
  %2104 = vmatpush1.msra.mxu0 %v889
  %2105 = vmatprep.subr.mxu0 %v894
  %2106 = vmatpush1.msra.mxu0 %v893
  %2107 = vmatprep.subr.mxu0 %v898
  %2108 = vmatpush1.msra.mxu0 %v897
  %2109 = vmatprep.subr.mxu0 %v902
  %2110 = vmatpush1.msra.mxu0 %v901
  %2111 = vmatprep.subr.mxu0 %v906
  %2112 = vmatpush1.msra.mxu0 %v905
  %2113 = vmatprep.subr.mxu0 %v910
  %2114 = vmatpush1.msra.mxu0 %v909
  %2115 = vmatprep.subr.mxu0 %v914
  %2116 = vmatpush1.msra.mxu0 %v913
  %2117 = vmatprep.subr.mxu0 %v918
  %2118 = vmatpush1.msra.mxu0 %v917
  %2119 = vmatprep.subr.mxu0 %v922
  %2120 = vmatpush1.msra.mxu0 %v921
  %2121 = vmatprep.subr.mxu0 %v926
  %2122 = vmatpush1.msra.mxu0 %v925
  %2123 = vmatprep.subr.mxu0 %v930
  %2124 = vmatpush1.msra.mxu0 %v929
  %2125 = vmatprep.subr.mxu0 %v934
  %2126 = vmatpush1.msra.mxu0 %v933
  %2127 = vmatprep.subr.mxu0 %v938
  %2128 = vmatpush1.msra.mxu0 %v937
  %2129 = vmatprep.mubr.f32.mxu0 %v33
  %2130 = vmatmul.mubr.f32.gmra.mrb[0].mxu0 %v32
  %v2131 = vpop.f32.mrb[0].mxu0
  %v2132 = vadd.f32 %v2061, %v2131
  %v2133 = vpop.f32.mrb[0].mxu0
  %v2134 = vadd.f32 %v2063, %v2133
  %2135 = vdwg.mxu0
  %2136 = vmatprep.subr.mxu0 %v942
  %2137 = vmatpush1.msra.mxu0 %v941
  %2138 = vmatprep.subr.mxu0 %v946
  %2139 = vmatpush1.msra.mxu0 %v945
  %2140 = vmatprep.subr.mxu0 %v950
  %2141 = vmatpush1.msra.mxu0 %v949
  %2142 = vmatprep.subr.mxu0 %v954
  %2143 = vmatpush1.msra.mxu0 %v953
  %2144 = vmatprep.subr.mxu0 %v958
  %2145 = vmatpush1.msra.mxu0 %v957
  %2146 = vmatprep.subr.mxu0 %v962
  %2147 = vmatpush1.msra.mxu0 %v961
  %2148 = vmatprep.subr.mxu0 %v966
  %2149 = vmatpush1.msra.mxu0 %v965
  %2150 = vmatprep.subr.mxu0 %v970
  %2151 = vmatpush1.msra.mxu0 %v969
  %2152 = vmatprep.subr.mxu0 %v974
  %2153 = vmatpush1.msra.mxu0 %v973
  %2154 = vmatprep.subr.mxu0 %v978
  %2155 = vmatpush1.msra.mxu0 %v977
  %2156 = vmatprep.subr.mxu0 %v982
  %2157 = vmatpush1.msra.mxu0 %v981
  %2158 = vmatprep.subr.mxu0 %v986
  %2159 = vmatpush1.msra.mxu0 %v985
  %2160 = vmatprep.subr.mxu0 %v990
  %2161 = vmatpush1.msra.mxu0 %v989
  %2162 = vmatprep.subr.mxu0 %v994
  %2163 = vmatpush1.msra.mxu0 %v993
  %2164 = vmatprep.subr.mxu0 %v998
  %2165 = vmatpush1.msra.mxu0 %v997
  %2166 = vmatprep.subr.mxu0 %v1002
  %2167 = vmatpush1.msra.mxu0 %v1001
  %2168 = vmatprep.subr.mxu0 %v1006
  %2169 = vmatpush1.msra.mxu0 %v1005
  %2170 = vmatprep.subr.mxu0 %v1010
  %2171 = vmatpush1.msra.mxu0 %v1009
  %2172 = vmatprep.subr.mxu0 %v1014
  %2173 = vmatpush1.msra.mxu0 %v1013
  %2174 = vmatprep.subr.mxu0 %v1018
  %2175 = vmatpush1.msra.mxu0 %v1017
  %2176 = vmatprep.subr.mxu0 %v1022
  %2177 = vmatpush1.msra.mxu0 %v1021
  %2178 = vmatprep.subr.mxu0 %v1026
  %2179 = vmatpush1.msra.mxu0 %v1025
  %2180 = vmatprep.subr.mxu0 %v1030
  %2181 = vmatpush1.msra.mxu0 %v1029
  %2182 = vmatprep.subr.mxu0 %v1034
  %2183 = vmatpush1.msra.mxu0 %v1033
  %2184 = vmatprep.subr.mxu0 %v1038
  %2185 = vmatpush1.msra.mxu0 %v1037
  %2186 = vmatprep.subr.mxu0 %v1042
  %2187 = vmatpush1.msra.mxu0 %v1041
  %2188 = vmatprep.subr.mxu0 %v1046
  %2189 = vmatpush1.msra.mxu0 %v1045
  %2190 = vmatprep.subr.mxu0 %v1050
  %2191 = vmatpush1.msra.mxu0 %v1049
  %2192 = vmatprep.subr.mxu0 %v1054
  %2193 = vmatpush1.msra.mxu0 %v1053
  %2194 = vmatprep.subr.mxu0 %v1058
  %2195 = vmatpush1.msra.mxu0 %v1057
  %2196 = vmatprep.subr.mxu0 %v1062
  %2197 = vmatpush1.msra.mxu0 %v1061
  %2198 = vmatprep.subr.mxu0 %v1066
  %2199 = vmatpush1.msra.mxu0 %v1065
  %2200 = vmatprep.mubr.f32.mxu0 %v35
  %2201 = vmatmul.mubr.f32.gmra.mrb[0].mxu0 %v34
  %v2202 = vpop.f32.mrb[0].mxu0
  %v2203 = vadd.f32 %v2132, %v2202
  %v2204 = vpop.f32.mrb[0].mxu0
  %v2205 = vadd.f32 %v2134, %v2204
  %2206 = vdwg.mxu0
  %2207 = vmatprep.subr.mxu0 %v1070
  %2208 = vmatpush1.msra.mxu0 %v1069
  %2209 = vmatprep.subr.mxu0 %v1074
  %2210 = vmatpush1.msra.mxu0 %v1073
  %2211 = vmatprep.subr.mxu0 %v1078
  %2212 = vmatpush1.msra.mxu0 %v1077
  %2213 = vmatprep.subr.mxu0 %v1082
  %2214 = vmatpush1.msra.mxu0 %v1081
  %2215 = vmatprep.subr.mxu0 %v1086
  %2216 = vmatpush1.msra.mxu0 %v1085
  %2217 = vmatprep.subr.mxu0 %v1090
  %2218 = vmatpush1.msra.mxu0 %v1089
  %2219 = vmatprep.subr.mxu0 %v1094
  %2220 = vmatpush1.msra.mxu0 %v1093
  %2221 = vmatprep.subr.mxu0 %v1098
  %2222 = vmatpush1.msra.mxu0 %v1097
  %2223 = vmatprep.subr.mxu0 %v1102
  %2224 = vmatpush1.msra.mxu0 %v1101
  %2225 = vmatprep.subr.mxu0 %v1106
  %2226 = vmatpush1.msra.mxu0 %v1105
  %2227 = vmatprep.subr.mxu0 %v1110
  %2228 = vmatpush1.msra.mxu0 %v1109
  %2229 = vmatprep.subr.mxu0 %v1114
  %2230 = vmatpush1.msra.mxu0 %v1113
  %2231 = vmatprep.subr.mxu0 %v1118
  %2232 = vmatpush1.msra.mxu0 %v1117
  %2233 = vmatprep.subr.mxu0 %v1122
  %2234 = vmatpush1.msra.mxu0 %v1121
  %2235 = vmatprep.subr.mxu0 %v1126
  %2236 = vmatpush1.msra.mxu0 %v1125
  %2237 = vmatprep.subr.mxu0 %v1130
  %2238 = vmatpush1.msra.mxu0 %v1129
  %2239 = vmatprep.subr.mxu0 %v1134
  %2240 = vmatpush1.msra.mxu0 %v1133
  %2241 = vmatprep.subr.mxu0 %v1138
  %2242 = vmatpush1.msra.mxu0 %v1137
  %2243 = vmatprep.subr.mxu0 %v1142
  %2244 = vmatpush1.msra.mxu0 %v1141
  %2245 = vmatprep.subr.mxu0 %v1146
  %2246 = vmatpush1.msra.mxu0 %v1145
  %2247 = vmatprep.subr.mxu0 %v1150
  %2248 = vmatpush1.msra.mxu0 %v1149
  %2249 = vmatprep.subr.mxu0 %v1154
  %2250 = vmatpush1.msra.mxu0 %v1153
  %2251 = vmatprep.subr.mxu0 %v1158
  %2252 = vmatpush1.msra.mxu0 %v1157
  %2253 = vmatprep.subr.mxu0 %v1162
  %2254 = vmatpush1.msra.mxu0 %v1161
  %2255 = vmatprep.subr.mxu0 %v1166
  %2256 = vmatpush1.msra.mxu0 %v1165
  %2257 = vmatprep.subr.mxu0 %v1170
  %2258 = vmatpush1.msra.mxu0 %v1169
  %2259 = vmatprep.subr.mxu0 %v1174
  %2260 = vmatpush1.msra.mxu0 %v1173
  %2261 = vmatprep.subr.mxu0 %v1178
  %2262 = vmatpush1.msra.mxu0 %v1177
  %2263 = vmatprep.subr.mxu0 %v1182
  %2264 = vmatpush1.msra.mxu0 %v1181
  %2265 = vmatprep.subr.mxu0 %v1186
  %2266 = vmatpush1.msra.mxu0 %v1185
  %2267 = vmatprep.subr.mxu0 %v1190
  %2268 = vmatpush1.msra.mxu0 %v1189
  %2269 = vmatprep.subr.mxu0 %v1194
  %2270 = vmatpush1.msra.mxu0 %v1193
  %2271 = vmatprep.mubr.f32.mxu0 %v37
  %2272 = vmatmul.mubr.f32.gmra.mrb[0].mxu0 %v36
  %v2273 = vpop.f32.mrb[0].mxu0
  %v2274 = vadd.f32 %v2203, %v2273
  %v2275 = vpop.f32.mrb[0].mxu0
  %v2276 = vadd.f32 %v2205, %v2275
  %2277 = vdwg.mxu0
  %2278 = vmatprep.subr.mxu0 %v1198
  %2279 = vmatpush1.msra.mxu0 %v1197
  %2280 = vmatprep.subr.mxu0 %v1202
  %2281 = vmatpush1.msra.mxu0 %v1201
  %2282 = vmatprep.subr.mxu0 %v1206
  %2283 = vmatpush1.msra.mxu0 %v1205
  %2284 = vmatprep.subr.mxu0 %v1210
  %2285 = vmatpush1.msra.mxu0 %v1209
  %2286 = vmatprep.subr.mxu0 %v1214
  %2287 = vmatpush1.msra.mxu0 %v1213
  %2288 = vmatprep.subr.mxu0 %v1218
  %2289 = vmatpush1.msra.mxu0 %v1217
  %2290 = vmatprep.subr.mxu0 %v1222
  %2291 = vmatpush1.msra.mxu0 %v1221
  %2292 = vmatprep.subr.mxu0 %v1226
  %2293 = vmatpush1.msra.mxu0 %v1225
  %2294 = vmatprep.subr.mxu0 %v1230
  %2295 = vmatpush1.msra.mxu0 %v1229
  %2296 = vmatprep.subr.mxu0 %v1234
  %2297 = vmatpush1.msra.mxu0 %v1233
  %2298 = vmatprep.subr.mxu0 %v1238
  %2299 = vmatpush1.msra.mxu0 %v1237
  %2300 = vmatprep.subr.mxu0 %v1242
  %2301 = vmatpush1.msra.mxu0 %v1241
  %2302 = vmatprep.subr.mxu0 %v1246
  %2303 = vmatpush1.msra.mxu0 %v1245
  %2304 = vmatprep.subr.mxu0 %v1250
  %2305 = vmatpush1.msra.mxu0 %v1249
  %2306 = vmatprep.subr.mxu0 %v1254
  %2307 = vmatpush1.msra.mxu0 %v1253
  %2308 = vmatprep.subr.mxu0 %v1258
  %2309 = vmatpush1.msra.mxu0 %v1257
  %2310 = vmatprep.subr.mxu0 %v1262
  %2311 = vmatpush1.msra.mxu0 %v1261
  %2312 = vmatprep.subr.mxu0 %v1266
  %2313 = vmatpush1.msra.mxu0 %v1265
  %2314 = vmatprep.subr.mxu0 %v1270
  %2315 = vmatpush1.msra.mxu0 %v1269
  %2316 = vmatprep.subr.mxu0 %v1274
  %2317 = vmatpush1.msra.mxu0 %v1273
  %2318 = vmatprep.subr.mxu0 %v1278
  %2319 = vmatpush1.msra.mxu0 %v1277
  %2320 = vmatprep.subr.mxu0 %v1282
  %2321 = vmatpush1.msra.mxu0 %v1281
  %2322 = vmatprep.subr.mxu0 %v1286
  %2323 = vmatpush1.msra.mxu0 %v1285
  %2324 = vmatprep.subr.mxu0 %v1290
  %2325 = vmatpush1.msra.mxu0 %v1289
  %2326 = vmatprep.subr.mxu0 %v1294
  %2327 = vmatpush1.msra.mxu0 %v1293
  %2328 = vmatprep.subr.mxu0 %v1298
  %2329 = vmatpush1.msra.mxu0 %v1297
  %2330 = vmatprep.subr.mxu0 %v1302
  %2331 = vmatpush1.msra.mxu0 %v1301
  %2332 = vmatprep.subr.mxu0 %v1306
  %2333 = vmatpush1.msra.mxu0 %v1305
  %2334 = vmatprep.subr.mxu0 %v1310
  %2335 = vmatpush1.msra.mxu0 %v1309
  %2336 = vmatprep.subr.mxu0 %v1314
  %2337 = vmatpush1.msra.mxu0 %v1313
  %2338 = vmatprep.subr.mxu0 %v1318
  %2339 = vmatpush1.msra.mxu0 %v1317
  %2340 = vmatprep.subr.mxu0 %v1322
  %2341 = vmatpush1.msra.mxu0 %v1321
  %2342 = vmatprep.mubr.f32.mxu0 %v39
  %2343 = vmatmul.mubr.f32.gmra.mrb[0].mxu0 %v38
  %v2344 = vpop.f32.mrb[0].mxu0
  %v2345 = vadd.f32 %v2274, %v2344
  %v2346 = vpop.f32.mrb[0].mxu0
  %v2347 = vadd.f32 %v2276, %v2346
  %2348 = vdwg.mxu0
  %2349 = vmatprep.subr.mxu0 %v1326
  %2350 = vmatpush1.msra.mxu0 %v1325
  %2351 = vmatprep.subr.mxu0 %v1330
  %2352 = vmatpush1.msra.mxu0 %v1329
  %2353 = vmatprep.subr.mxu0 %v1334
  %2354 = vmatpush1.msra.mxu0 %v1333
  %2355 = vmatprep.subr.mxu0 %v1338
  %2356 = vmatpush1.msra.mxu0 %v1337
  %2357 = vmatprep.subr.mxu0 %v1342
  %2358 = vmatpush1.msra.mxu0 %v1341
  %2359 = vmatprep.subr.mxu0 %v1346
  %2360 = vmatpush1.msra.mxu0 %v1345
  %2361 = vmatprep.subr.mxu0 %v1350
  %2362 = vmatpush1.msra.mxu0 %v1349
  %2363 = vmatprep.subr.mxu0 %v1354
  %2364 = vmatpush1.msra.mxu0 %v1353
  %2365 = vmatprep.subr.mxu0 %v1358
  %2366 = vmatpush1.msra.mxu0 %v1357
  %2367 = vmatprep.subr.mxu0 %v1362
  %2368 = vmatpush1.msra.mxu0 %v1361
  %2369 = vmatprep.subr.mxu0 %v1366
  %2370 = vmatpush1.msra.mxu0 %v1365
  %2371 = vmatprep.subr.mxu0 %v1370
  %2372 = vmatpush1.msra.mxu0 %v1369
  %2373 = vmatprep.subr.mxu0 %v1374
  %2374 = vmatpush1.msra.mxu0 %v1373
  %2375 = vmatprep.subr.mxu0 %v1378
  %2376 = vmatpush1.msra.mxu0 %v1377
  %2377 = vmatprep.subr.mxu0 %v1382
  %2378 = vmatpush1.msra.mxu0 %v1381
  %2379 = vmatprep.subr.mxu0 %v1386
  %2380 = vmatpush1.msra.mxu0 %v1385
  %2381 = vmatprep.subr.mxu0 %v1390
  %2382 = vmatpush1.msra.mxu0 %v1389
  %2383 = vmatprep.subr.mxu0 %v1394
  %2384 = vmatpush1.msra.mxu0 %v1393
  %2385 = vmatprep.subr.mxu0 %v1398
  %2386 = vmatpush1.msra.mxu0 %v1397
  %2387 = vmatprep.subr.mxu0 %v1402
  %2388 = vmatpush1.msra.mxu0 %v1401
  %2389 = vmatprep.subr.mxu0 %v1406
  %2390 = vmatpush1.msra.mxu0 %v1405
  %2391 = vmatprep.subr.mxu0 %v1410
  %2392 = vmatpush1.msra.mxu0 %v1409
  %2393 = vmatprep.subr.mxu0 %v1414
  %2394 = vmatpush1.msra.mxu0 %v1413
  %2395 = vmatprep.subr.mxu0 %v1418
  %2396 = vmatpush1.msra.mxu0 %v1417
  %2397 = vmatprep.subr.mxu0 %v1422
  %2398 = vmatpush1.msra.mxu0 %v1421
  %2399 = vmatprep.subr.mxu0 %v1426
  %2400 = vmatpush1.msra.mxu0 %v1425
  %2401 = vmatprep.subr.mxu0 %v1430
  %2402 = vmatpush1.msra.mxu0 %v1429
  %2403 = vmatprep.subr.mxu0 %v1434
  %2404 = vmatpush1.msra.mxu0 %v1433
  %2405 = vmatprep.subr.mxu0 %v1438
  %2406 = vmatpush1.msra.mxu0 %v1437
  %2407 = vmatprep.subr.mxu0 %v1442
  %2408 = vmatpush1.msra.mxu0 %v1441
  %2409 = vmatprep.subr.mxu0 %v1446
  %2410 = vmatpush1.msra.mxu0 %v1445
  %2411 = vmatprep.subr.mxu0 %v1450
  %2412 = vmatpush1.msra.mxu0 %v1449
  %2413 = vmatprep.mubr.f32.mxu0 %v41
  %2414 = vmatmul.mubr.f32.gmra.mrb[0].mxu0 %v40
  %v2415 = vpop.f32.mrb[0].mxu0
  %v2416 = vadd.f32 %v2345, %v2415
  %v2417 = vpop.f32.mrb[0].mxu0
  %v2418 = vadd.f32 %v2347, %v2417
  %2419 = vdwg.mxu0
  %2420 = vmatprep.subr.mxu0 %v1454
  %2421 = vmatpush1.msra.mxu0 %v1453
  %2422 = vmatprep.subr.mxu0 %v1458
  %2423 = vmatpush1.msra.mxu0 %v1457
  %2424 = vmatprep.subr.mxu0 %v1462
  %2425 = vmatpush1.msra.mxu0 %v1461
  %2426 = vmatprep.subr.mxu0 %v1466
  %2427 = vmatpush1.msra.mxu0 %v1465
  %2428 = vmatprep.subr.mxu0 %v1470
  %2429 = vmatpush1.msra.mxu0 %v1469
  %2430 = vmatprep.subr.mxu0 %v1474
  %2431 = vmatpush1.msra.mxu0 %v1473
  %2432 = vmatprep.subr.mxu0 %v1478
  %2433 = vmatpush1.msra.mxu0 %v1477
  %2434 = vmatprep.subr.mxu0 %v1482
  %2435 = vmatpush1.msra.mxu0 %v1481
  %2436 = vmatprep.subr.mxu0 %v1486
  %2437 = vmatpush1.msra.mxu0 %v1485
  %2438 = vmatprep.subr.mxu0 %v1490
  %2439 = vmatpush1.msra.mxu0 %v1489
  %2440 = vmatprep.subr.mxu0 %v1494
  %2441 = vmatpush1.msra.mxu0 %v1493
  %2442 = vmatprep.subr.mxu0 %v1498
  %2443 = vmatpush1.msra.mxu0 %v1497
  %2444 = vmatprep.subr.mxu0 %v1502
  %2445 = vmatpush1.msra.mxu0 %v1501
  %2446 = vmatprep.subr.mxu0 %v1506
  %2447 = vmatpush1.msra.mxu0 %v1505
  %2448 = vmatprep.subr.mxu0 %v1510
  %2449 = vmatpush1.msra.mxu0 %v1509
  %2450 = vmatprep.subr.mxu0 %v1514
  %2451 = vmatpush1.msra.mxu0 %v1513
  %2452 = vmatprep.subr.mxu0 %v1518
  %2453 = vmatpush1.msra.mxu0 %v1517
  %2454 = vmatprep.subr.mxu0 %v1522
  %2455 = vmatpush1.msra.mxu0 %v1521
  %2456 = vmatprep.subr.mxu0 %v1526
  %2457 = vmatpush1.msra.mxu0 %v1525
  %2458 = vmatprep.subr.mxu0 %v1530
  %2459 = vmatpush1.msra.mxu0 %v1529
  %2460 = vmatprep.subr.mxu0 %v1534
  %2461 = vmatpush1.msra.mxu0 %v1533
  %2462 = vmatprep.subr.mxu0 %v1538
  %2463 = vmatpush1.msra.mxu0 %v1537
  %2464 = vmatprep.subr.mxu0 %v1542
  %2465 = vmatpush1.msra.mxu0 %v1541
  %2466 = vmatprep.subr.mxu0 %v1546
  %2467 = vmatpush1.msra.mxu0 %v1545
  %2468 = vmatprep.subr.mxu0 %v1550
  %2469 = vmatpush1.msra.mxu0 %v1549
  %2470 = vmatprep.subr.mxu0 %v1554
  %2471 = vmatpush1.msra.mxu0 %v1553
  %2472 = vmatprep.subr.mxu0 %v1558
  %2473 = vmatpush1.msra.mxu0 %v1557
  %2474 = vmatprep.subr.mxu0 %v1562
  %2475 = vmatpush1.msra.mxu0 %v1561
  %2476 = vmatprep.subr.mxu0 %v1566
  %2477 = vmatpush1.msra.mxu0 %v1565
  %2478 = vmatprep.subr.mxu0 %v1570
  %2479 = vmatpush1.msra.mxu0 %v1569
  %2480 = vmatprep.subr.mxu0 %v1574
  %2481 = vmatpush1.msra.mxu0 %v1573
  %2482 = vmatprep.subr.mxu0 %v1578
  %2483 = vmatpush1.msra.mxu0 %v1577
  %2484 = vmatprep.mubr.f32.mxu0 %v43
  %2485 = vmatmul.mubr.f32.gmra.mrb[0].mxu0 %v42
  %v2486 = vpop.f32.mrb[0].mxu0
  %v2487 = vadd.f32 %v2416, %v2486
  %v2488 = vpop.f32.mrb[0].mxu0
  %v2489 = vadd.f32 %v2418, %v2488
  %2490 = vdwg.mxu0
  %2491 = vmatprep.subr.mxu0 %v1582
  %2492 = vmatpush1.msra.mxu0 %v1581
  %2493 = vmatprep.subr.mxu0 %v1586
  %2494 = vmatpush1.msra.mxu0 %v1585
  %2495 = vmatprep.subr.mxu0 %v1590
  %2496 = vmatpush1.msra.mxu0 %v1589
  %2497 = vmatprep.subr.mxu0 %v1594
  %2498 = vmatpush1.msra.mxu0 %v1593
  %2499 = vmatprep.subr.mxu0 %v1598
  %2500 = vmatpush1.msra.mxu0 %v1597
  %2501 = vmatprep.subr.mxu0 %v1602
  %2502 = vmatpush1.msra.mxu0 %v1601
  %2503 = vmatprep.subr.mxu0 %v1606
  %2504 = vmatpush1.msra.mxu0 %v1605
  %2505 = vmatprep.subr.mxu0 %v1610
  %2506 = vmatpush1.msra.mxu0 %v1609
  %2507 = vmatprep.subr.mxu0 0.0
  %2508 = vmatpush1.msra.mxu0 0.0
  %2509 = vmatprep.subr.mxu0 0.0
  %2510 = vmatpush1.msra.mxu0 0.0
  %2511 = vmatprep.subr.mxu0 0.0
  %2512 = vmatpush1.msra.mxu0 0.0
  %2513 = vmatprep.subr.mxu0 0.0
  %2514 = vmatpush1.msra.mxu0 0.0
  %2515 = vmatprep.subr.mxu0 0.0
  %2516 = vmatpush1.msra.mxu0 0.0
  %2517 = vmatprep.subr.mxu0 0.0
  %2518 = vmatpush1.msra.mxu0 0.0
  %2519 = vmatprep.subr.mxu0 0.0
  %2520 = vmatpush1.msra.mxu0 0.0
  %2521 = vmatprep.subr.mxu0 0.0
  %2522 = vmatpush1.msra.mxu0 0.0
  %2523 = vmatprep.subr.mxu0 0.0
  %2524 = vmatpush1.msra.mxu0 0.0
  %2525 = vmatprep.subr.mxu0 0.0
  %2526 = vmatpush1.msra.mxu0 0.0
  %2527 = vmatprep.subr.mxu0 0.0
  %2528 = vmatpush1.msra.mxu0 0.0
  %2529 = vmatprep.subr.mxu0 0.0
  %2530 = vmatpush1.msra.mxu0 0.0
  %2531 = vmatprep.subr.mxu0 0.0
  %2532 = vmatpush1.msra.mxu0 0.0
  %2533 = vmatprep.subr.mxu0 0.0
  %2534 = vmatpush1.msra.mxu0 0.0
  %2535 = vmatprep.subr.mxu0 0.0
  %2536 = vmatpush1.msra.mxu0 0.0
  %2537 = vmatprep.subr.mxu0 0.0
  %2538 = vmatpush1.msra.mxu0 0.0
  %2539 = vmatprep.subr.mxu0 0.0
  %2540 = vmatpush1.msra.mxu0 0.0
  %2541 = vmatprep.subr.mxu0 0.0
  %2542 = vmatpush1.msra.mxu0 0.0
  %2543 = vmatprep.subr.mxu0 0.0
  %2544 = vmatpush1.msra.mxu0 0.0
  %2545 = vmatprep.subr.mxu0 0.0
  %2546 = vmatpush1.msra.mxu0 0.0
  %2547 = vmatprep.subr.mxu0 0.0
  %2548 = vmatpush1.msra.mxu0 0.0
  %2549 = vmatprep.subr.mxu0 0.0
  %2550 = vmatpush1.msra.mxu0 0.0
  %2551 = vmatprep.subr.mxu0 0.0
  %2552 = vmatpush1.msra.mxu0 0.0
  %2553 = vmatprep.subr.mxu0 0.0
  %2554 = vmatpush1.msra.mxu0 0.0
  %2555 = vmatprep.mubr.f32.mxu0 0.0
  %2556 = vmatmul.mubr.f32.gmra.mrb[0].mxu0 %v1637
  %v2557 = vpop.f32.mrb[0].mxu0
  %v2558 = vadd.f32 %v2487, %v2557
  %v2559 = vpop.f32.mrb[0].mxu0
  %v2560 = vadd.f32 %v2489, %v2559
  %2561 = vdwg.mxu0
  %2562 = vmatprep.subr.mxu0 %v48
  %2563 = vmatpush1.msra.mxu0 %v47
  %2564 = vmatprep.subr.mxu0 %v52
  %2565 = vmatpush1.msra.mxu0 %v51
  %2566 = vmatprep.subr.mxu0 %v56
  %2567 = vmatpush1.msra.mxu0 %v55
  %2568 = vmatprep.subr.mxu0 %v60
  %2569 = vmatpush1.msra.mxu0 %v59
  %2570 = vmatprep.subr.mxu0 %v64
  %2571 = vmatpush1.msra.mxu0 %v63
  %2572 = vmatprep.subr.mxu0 %v68
  %2573 = vmatpush1.msra.mxu0 %v67
  %2574 = vmatprep.subr.mxu0 %v72
  %2575 = vmatpush1.msra.mxu0 %v71
  %2576 = vmatprep.subr.mxu0 %v76
  %2577 = vmatpush1.msra.mxu0 %v75
  %2578 = vmatprep.subr.mxu0 %v80
  %2579 = vmatpush1.msra.mxu0 %v79
  %2580 = vmatprep.subr.mxu0 %v84
  %2581 = vmatpush1.msra.mxu0 %v83
  %2582 = vmatprep.subr.mxu0 %v88
  %2583 = vmatpush1.msra.mxu0 %v87
  %2584 = vmatprep.subr.mxu0 %v92
  %2585 = vmatpush1.msra.mxu0 %v91
  %2586 = vmatprep.subr.mxu0 %v96
  %2587 = vmatpush1.msra.mxu0 %v95
  %2588 = vmatprep.subr.mxu0 %v100
  %2589 = vmatpush1.msra.mxu0 %v99
  %2590 = vmatprep.subr.mxu0 %v104
  %2591 = vmatpush1.msra.mxu0 %v103
  %2592 = vmatprep.subr.mxu0 %v108
  %2593 = vmatpush1.msra.mxu0 %v107
  %2594 = vmatprep.subr.mxu0 %v112
  %2595 = vmatpush1.msra.mxu0 %v111
  %2596 = vmatprep.subr.mxu0 %v116
  %2597 = vmatpush1.msra.mxu0 %v115
  %2598 = vmatprep.subr.mxu0 %v120
  %2599 = vmatpush1.msra.mxu0 %v119
  %2600 = vmatprep.subr.mxu0 %v124
  %2601 = vmatpush1.msra.mxu0 %v123
  %2602 = vmatprep.subr.mxu0 %v128
  %2603 = vmatpush1.msra.mxu0 %v127
  %2604 = vmatprep.subr.mxu0 %v132
  %2605 = vmatpush1.msra.mxu0 %v131
  %2606 = vmatprep.subr.mxu0 %v136
  %2607 = vmatpush1.msra.mxu0 %v135
  %2608 = vmatprep.subr.mxu0 %v140
  %2609 = vmatpush1.msra.mxu0 %v139
  %2610 = vmatprep.subr.mxu0 %v144
  %2611 = vmatpush1.msra.mxu0 %v143
  %2612 = vmatprep.subr.mxu0 %v148
  %2613 = vmatpush1.msra.mxu0 %v147
  %2614 = vmatprep.subr.mxu0 %v152
  %2615 = vmatpush1.msra.mxu0 %v151
  %2616 = vmatprep.subr.mxu0 %v156
  %2617 = vmatpush1.msra.mxu0 %v155
  %2618 = vmatprep.subr.mxu0 %v160
  %2619 = vmatpush1.msra.mxu0 %v159
  %2620 = vmatprep.subr.mxu0 %v164
  %2621 = vmatpush1.msra.mxu0 %v163
  %2622 = vmatprep.subr.mxu0 %v168
  %2623 = vmatpush1.msra.mxu0 %v167
  %2624 = vmatprep.subr.mxu0 %v172
  %2625 = vmatpush1.msra.mxu0 %v171
  %2626 = vmatprep.mubr.f32.mxu0 %v21
  %2627 = vmatmul.mubr.f32.gmra.mrb[0].mxu0 %v20
  %v2628 = vpop.f32.mrb[0].mxu0
  %v2629 = vadd.f32 %v1626, %v2628
  %v2630 = vpop.f32.mrb[0].mxu0
  %v2631 = vadd.f32 %v1630, %v2630
  %2632 = vdwg.mxu0
  %2633 = vmatprep.subr.mxu0 %v176
  %2634 = vmatpush1.msra.mxu0 %v175
  %2635 = vmatprep.subr.mxu0 %v180
  %2636 = vmatpush1.msra.mxu0 %v179
  %2637 = vmatprep.subr.mxu0 %v184
  %2638 = vmatpush1.msra.mxu0 %v183
  %2639 = vmatprep.subr.mxu0 %v188
  %2640 = vmatpush1.msra.mxu0 %v187
  %2641 = vmatprep.subr.mxu0 %v192
  %2642 = vmatpush1.msra.mxu0 %v191
  %2643 = vmatprep.subr.mxu0 %v196
  %2644 = vmatpush1.msra.mxu0 %v195
  %2645 = vmatprep.subr.mxu0 %v200
  %2646 = vmatpush1.msra.mxu0 %v199
  %2647 = vmatprep.subr.mxu0 %v204
  %2648 = vmatpush1.msra.mxu0 %v203
  %2649 = vmatprep.subr.mxu0 %v208
  %2650 = vmatpush1.msra.mxu0 %v207
  %2651 = vmatprep.subr.mxu0 %v212
  %2652 = vmatpush1.msra.mxu0 %v211
  %2653 = vmatprep.subr.mxu0 %v216
  %2654 = vmatpush1.msra.mxu0 %v215
  %2655 = vmatprep.subr.mxu0 %v220
  %2656 = vmatpush1.msra.mxu0 %v219
  %2657 = vmatprep.subr.mxu0 %v224
  %2658 = vmatpush1.msra.mxu0 %v223
  %2659 = vmatprep.subr.mxu0 %v228
  %2660 = vmatpush1.msra.mxu0 %v227
  %2661 = vmatprep.subr.mxu0 %v232
  %2662 = vmatpush1.msra.mxu0 %v231
  %2663 = vmatprep.subr.mxu0 %v236
  %2664 = vmatpush1.msra.mxu0 %v235
  %2665 = vmatprep.subr.mxu0 %v240
  %2666 = vmatpush1.msra.mxu0 %v239
  %2667 = vmatprep.subr.mxu0 %v244
  %2668 = vmatpush1.msra.mxu0 %v243
  %2669 = vmatprep.subr.mxu0 %v248
  %2670 = vmatpush1.msra.mxu0 %v247
  %2671 = vmatprep.subr.mxu0 %v252
  %2672 = vmatpush1.msra.mxu0 %v251
  %2673 = vmatprep.subr.mxu0 %v256
  %2674 = vmatpush1.msra.mxu0 %v255
  %2675 = vmatprep.subr.mxu0 %v260
  %2676 = vmatpush1.msra.mxu0 %v259
  %2677 = vmatprep.subr.mxu0 %v264
  %2678 = vmatpush1.msra.mxu0 %v263
  %2679 = vmatprep.subr.mxu0 %v268
  %2680 = vmatpush1.msra.mxu0 %v267
  %2681 = vmatprep.subr.mxu0 %v272
  %2682 = vmatpush1.msra.mxu0 %v271
  %2683 = vmatprep.subr.mxu0 %v276
  %2684 = vmatpush1.msra.mxu0 %v275
  %2685 = vmatprep.subr.mxu0 %v280
  %2686 = vmatpush1.msra.mxu0 %v279
  %2687 = vmatprep.subr.mxu0 %v284
  %2688 = vmatpush1.msra.mxu0 %v283
  %2689 = vmatprep.subr.mxu0 %v288
  %2690 = vmatpush1.msra.mxu0 %v287
  %2691 = vmatprep.subr.mxu0 %v292
  %2692 = vmatpush1.msra.mxu0 %v291
  %2693 = vmatprep.subr.mxu0 %v296
  %2694 = vmatpush1.msra.mxu0 %v295
  %2695 = vmatprep.subr.mxu0 %v300
  %2696 = vmatpush1.msra.mxu0 %v299
  %2697 = vmatprep.mubr.f32.mxu0 %v23
  %2698 = vmatmul.mubr.f32.gmra.mrb[0].mxu0 %v22
  %v2699 = vpop.f32.mrb[0].mxu0
  %v2700 = vadd.f32 %v2629, %v2699
  %v2701 = vpop.f32.mrb[0].mxu0
  %v2702 = vadd.f32 %v2631, %v2701
  %2703 = vdwg.mxu0
  %2704 = vmatprep.subr.mxu0 %v304
  %2705 = vmatpush1.msra.mxu0 %v303
  %2706 = vmatprep.subr.mxu0 %v308
  %2707 = vmatpush1.msra.mxu0 %v307
  %2708 = vmatprep.subr.mxu0 %v312
  %2709 = vmatpush1.msra.mxu0 %v311
  %2710 = vmatprep.subr.mxu0 %v316
  %2711 = vmatpush1.msra.mxu0 %v315
  %2712 = vmatprep.subr.mxu0 %v320
  %2713 = vmatpush1.msra.mxu0 %v319
  %2714 = vmatprep.subr.mxu0 %v324
  %2715 = vmatpush1.msra.mxu0 %v323
  %2716 = vmatprep.subr.mxu0 %v328
  %2717 = vmatpush1.msra.mxu0 %v327
  %2718 = vmatprep.subr.mxu0 %v332
  %2719 = vmatpush1.msra.mxu0 %v331
  %2720 = vmatprep.subr.mxu0 %v336
  %2721 = vmatpush1.msra.mxu0 %v335
  %2722 = vmatprep.subr.mxu0 %v340
  %2723 = vmatpush1.msra.mxu0 %v339
  %2724 = vmatprep.subr.mxu0 %v344
  %2725 = vmatpush1.msra.mxu0 %v343
  %2726 = vmatprep.subr.mxu0 %v348
  %2727 = vmatpush1.msra.mxu0 %v347
  %2728 = vmatprep.subr.mxu0 %v352
  %2729 = vmatpush1.msra.mxu0 %v351
  %2730 = vmatprep.subr.mxu0 %v356
  %2731 = vmatpush1.msra.mxu0 %v355
  %2732 = vmatprep.subr.mxu0 %v360
  %2733 = vmatpush1.msra.mxu0 %v359
  %2734 = vmatprep.subr.mxu0 %v364
  %2735 = vmatpush1.msra.mxu0 %v363
  %2736 = vmatprep.subr.mxu0 %v368
  %2737 = vmatpush1.msra.mxu0 %v367
  %2738 = vmatprep.subr.mxu0 %v372
  %2739 = vmatpush1.msra.mxu0 %v371
  %2740 = vmatprep.subr.mxu0 %v376
  %2741 = vmatpush1.msra.mxu0 %v375
  %2742 = vmatprep.subr.mxu0 %v380
  %2743 = vmatpush1.msra.mxu0 %v379
  %2744 = vmatprep.subr.mxu0 %v384
  %2745 = vmatpush1.msra.mxu0 %v383
  %2746 = vmatprep.subr.mxu0 %v388
  %2747 = vmatpush1.msra.mxu0 %v387
  %2748 = vmatprep.subr.mxu0 %v392
  %2749 = vmatpush1.msra.mxu0 %v391
  %2750 = vmatprep.subr.mxu0 %v396
  %2751 = vmatpush1.msra.mxu0 %v395
  %2752 = vmatprep.subr.mxu0 %v400
  %2753 = vmatpush1.msra.mxu0 %v399
  %2754 = vmatprep.subr.mxu0 %v404
  %2755 = vmatpush1.msra.mxu0 %v403
  %2756 = vmatprep.subr.mxu0 %v408
  %2757 = vmatpush1.msra.mxu0 %v407
  %2758 = vmatprep.subr.mxu0 %v412
  %2759 = vmatpush1.msra.mxu0 %v411
  %2760 = vmatprep.subr.mxu0 %v416
  %2761 = vmatpush1.msra.mxu0 %v415
  %2762 = vmatprep.subr.mxu0 %v420
  %2763 = vmatpush1.msra.mxu0 %v419
  %2764 = vmatprep.subr.mxu0 %v424
  %2765 = vmatpush1.msra.mxu0 %v423
  %2766 = vmatprep.subr.mxu0 %v428
  %2767 = vmatpush1.msra.mxu0 %v427
  %2768 = vmatprep.mubr.f32.mxu0 %v25
  %2769 = vmatmul.mubr.f32.gmra.mrb[0].mxu0 %v24
  %v2770 = vpop.f32.mrb[0].mxu0
  %v2771 = vadd.f32 %v2700, %v2770
  %v2772 = vpop.f32.mrb[0].mxu0
  %v2773 = vadd.f32 %v2702, %v2772
  %2774 = vdwg.mxu0
  %2775 = vmatprep.subr.mxu0 %v432
  %2776 = vmatpush1.msra.mxu0 %v431
  %2777 = vmatprep.subr.mxu0 %v436
  %2778 = vmatpush1.msra.mxu0 %v435
  %2779 = vmatprep.subr.mxu0 %v440
  %2780 = vmatpush1.msra.mxu0 %v439
  %2781 = vmatprep.subr.mxu0 %v444
  %2782 = vmatpush1.msra.mxu0 %v443
  %2783 = vmatprep.subr.mxu0 %v448
  %2784 = vmatpush1.msra.mxu0 %v447
  %2785 = vmatprep.subr.mxu0 %v452
  %2786 = vmatpush1.msra.mxu0 %v451
  %2787 = vmatprep.subr.mxu0 %v456
  %2788 = vmatpush1.msra.mxu0 %v455
  %2789 = vmatprep.subr.mxu0 %v460
  %2790 = vmatpush1.msra.mxu0 %v459
  %2791 = vmatprep.subr.mxu0 %v464
  %2792 = vmatpush1.msra.mxu0 %v463
  %2793 = vmatprep.subr.mxu0 %v468
  %2794 = vmatpush1.msra.mxu0 %v467
  %2795 = vmatprep.subr.mxu0 %v472
  %2796 = vmatpush1.msra.mxu0 %v471
  %2797 = vmatprep.subr.mxu0 %v476
  %2798 = vmatpush1.msra.mxu0 %v475
  %2799 = vmatprep.subr.mxu0 %v480
  %2800 = vmatpush1.msra.mxu0 %v479
  %2801 = vmatprep.subr.mxu0 %v484
  %2802 = vmatpush1.msra.mxu0 %v483
  %2803 = vmatprep.subr.mxu0 %v488
  %2804 = vmatpush1.msra.mxu0 %v487
  %2805 = vmatprep.subr.mxu0 %v492
  %2806 = vmatpush1.msra.mxu0 %v491
  %2807 = vmatprep.subr.mxu0 %v496
  %2808 = vmatpush1.msra.mxu0 %v495
  %2809 = vmatprep.subr.mxu0 %v500
  %2810 = vmatpush1.msra.mxu0 %v499
  %2811 = vmatprep.subr.mxu0 %v504
  %2812 = vmatpush1.msra.mxu0 %v503
  %2813 = vmatprep.subr.mxu0 %v508
  %2814 = vmatpush1.msra.mxu0 %v507
  %2815 = vmatprep.subr.mxu0 %v512
  %2816 = vmatpush1.msra.mxu0 %v511
  %2817 = vmatprep.subr.mxu0 %v516
  %2818 = vmatpush1.msra.mxu0 %v515
  %2819 = vmatprep.subr.mxu0 %v520
  %2820 = vmatpush1.msra.mxu0 %v519
  %2821 = vmatprep.subr.mxu0 %v524
  %2822 = vmatpush1.msra.mxu0 %v523
  %2823 = vmatprep.subr.mxu0 %v528
  %2824 = vmatpush1.msra.mxu0 %v527
  %2825 = vmatprep.subr.mxu0 %v532
  %2826 = vmatpush1.msra.mxu0 %v531
  %2827 = vmatprep.subr.mxu0 %v536
  %2828 = vmatpush1.msra.mxu0 %v535
  %2829 = vmatprep.subr.mxu0 %v540
  %2830 = vmatpush1.msra.mxu0 %v539
  %2831 = vmatprep.subr.mxu0 %v544
  %2832 = vmatpush1.msra.mxu0 %v543
  %2833 = vmatprep.subr.mxu0 %v548
  %2834 = vmatpush1.msra.mxu0 %v547
  %2835 = vmatprep.subr.mxu0 %v552
  %2836 = vmatpush1.msra.mxu0 %v551
  %2837 = vmatprep.subr.mxu0 %v556
  %2838 = vmatpush1.msra.mxu0 %v555
  %2839 = vmatprep.mubr.f32.mxu0 %v27
  %2840 = vmatmul.mubr.f32.gmra.mrb[0].mxu0 %v26
  %v2841 = vpop.f32.mrb[0].mxu0
  %v2842 = vadd.f32 %v2771, %v2841
  %v2843 = vpop.f32.mrb[0].mxu0
  %v2844 = vadd.f32 %v2773, %v2843
  %2845 = vdwg.mxu0
  %2846 = vmatprep.subr.mxu0 %v560
  %2847 = vmatpush1.msra.mxu0 %v559
  %2848 = vmatprep.subr.mxu0 %v564
  %2849 = vmatpush1.msra.mxu0 %v563
  %2850 = vmatprep.subr.mxu0 %v568
  %2851 = vmatpush1.msra.mxu0 %v567
  %2852 = vmatprep.subr.mxu0 %v572
  %2853 = vmatpush1.msra.mxu0 %v571
  %2854 = vmatprep.subr.mxu0 %v576
  %2855 = vmatpush1.msra.mxu0 %v575
  %2856 = vmatprep.subr.mxu0 %v580
  %2857 = vmatpush1.msra.mxu0 %v579
  %2858 = vmatprep.subr.mxu0 %v584
  %2859 = vmatpush1.msra.mxu0 %v583
  %2860 = vmatprep.subr.mxu0 %v588
  %2861 = vmatpush1.msra.mxu0 %v587
  %2862 = vmatprep.subr.mxu0 %v592
  %2863 = vmatpush1.msra.mxu0 %v591
  %2864 = vmatprep.subr.mxu0 %v596
  %2865 = vmatpush1.msra.mxu0 %v595
  %2866 = vmatprep.subr.mxu0 %v600
  %2867 = vmatpush1.msra.mxu0 %v599
  %2868 = vmatprep.subr.mxu0 %v604
  %2869 = vmatpush1.msra.mxu0 %v603
  %2870 = vmatprep.subr.mxu0 %v608
  %2871 = vmatpush1.msra.mxu0 %v607
  %2872 = vmatprep.subr.mxu0 %v612
  %2873 = vmatpush1.msra.mxu0 %v611
  %2874 = vmatprep.subr.mxu0 %v616
  %2875 = vmatpush1.msra.mxu0 %v615
  %2876 = vmatprep.subr.mxu0 %v620
  %2877 = vmatpush1.msra.mxu0 %v619
  %2878 = vmatprep.subr.mxu0 %v624
  %2879 = vmatpush1.msra.mxu0 %v623
  %2880 = vmatprep.subr.mxu0 %v628
  %2881 = vmatpush1.msra.mxu0 %v627
  %2882 = vmatprep.subr.mxu0 %v632
  %2883 = vmatpush1.msra.mxu0 %v631
  %2884 = vmatprep.subr.mxu0 %v636
  %2885 = vmatpush1.msra.mxu0 %v635
  %2886 = vmatprep.subr.mxu0 %v640
  %2887 = vmatpush1.msra.mxu0 %v639
  %2888 = vmatprep.subr.mxu0 %v644
  %2889 = vmatpush1.msra.mxu0 %v643
  %2890 = vmatprep.subr.mxu0 %v648
  %2891 = vmatpush1.msra.mxu0 %v647
  %2892 = vmatprep.subr.mxu0 %v652
  %2893 = vmatpush1.msra.mxu0 %v651
  %2894 = vmatprep.subr.mxu0 %v656
  %2895 = vmatpush1.msra.mxu0 %v655
  %2896 = vmatprep.subr.mxu0 %v660
  %2897 = vmatpush1.msra.mxu0 %v659
  %2898 = vmatprep.subr.mxu0 %v664
  %2899 = vmatpush1.msra.mxu0 %v663
  %2900 = vmatprep.subr.mxu0 %v668
  %2901 = vmatpush1.msra.mxu0 %v667
  %2902 = vmatprep.subr.mxu0 %v672
  %2903 = vmatpush1.msra.mxu0 %v671
  %2904 = vmatprep.subr.mxu0 %v676
  %2905 = vmatpush1.msra.mxu0 %v675
  %2906 = vmatprep.subr.mxu0 %v680
  %2907 = vmatpush1.msra.mxu0 %v679
  %2908 = vmatprep.subr.mxu0 %v684
  %2909 = vmatpush1.msra.mxu0 %v683
  %2910 = vmatprep.mubr.f32.mxu0 %v29
  %2911 = vmatmul.mubr.f32.gmra.mrb[0].mxu0 %v28
  %v2912 = vpop.f32.mrb[0].mxu0
  %v2913 = vadd.f32 %v2842, %v2912
  %v2914 = vpop.f32.mrb[0].mxu0
  %v2915 = vadd.f32 %v2844, %v2914
  %2916 = vdwg.mxu0
  %2917 = vmatprep.subr.mxu0 %v688
  %2918 = vmatpush1.msra.mxu0 %v687
  %2919 = vmatprep.subr.mxu0 %v692
  %2920 = vmatpush1.msra.mxu0 %v691
  %2921 = vmatprep.subr.mxu0 %v696
  %2922 = vmatpush1.msra.mxu0 %v695
  %2923 = vmatprep.subr.mxu0 %v700
  %2924 = vmatpush1.msra.mxu0 %v699
  %2925 = vmatprep.subr.mxu0 %v704
  %2926 = vmatpush1.msra.mxu0 %v703
  %2927 = vmatprep.subr.mxu0 %v708
  %2928 = vmatpush1.msra.mxu0 %v707
  %2929 = vmatprep.subr.mxu0 %v712
  %2930 = vmatpush1.msra.mxu0 %v711
  %2931 = vmatprep.subr.mxu0 %v716
  %2932 = vmatpush1.msra.mxu0 %v715
  %2933 = vmatprep.subr.mxu0 %v720
  %2934 = vmatpush1.msra.mxu0 %v719
  %2935 = vmatprep.subr.mxu0 %v724
  %2936 = vmatpush1.msra.mxu0 %v723
  %2937 = vmatprep.subr.mxu0 %v728
  %2938 = vmatpush1.msra.mxu0 %v727
  %2939 = vmatprep.subr.mxu0 %v732
  %2940 = vmatpush1.msra.mxu0 %v731
  %2941 = vmatprep.subr.mxu0 %v736
  %2942 = vmatpush1.msra.mxu0 %v735
  %2943 = vmatprep.subr.mxu0 %v740
  %2944 = vmatpush1.msra.mxu0 %v739
  %2945 = vmatprep.subr.mxu0 %v744
  %2946 = vmatpush1.msra.mxu0 %v743
  %2947 = vmatprep.subr.mxu0 %v748
  %2948 = vmatpush1.msra.mxu0 %v747
  %2949 = vmatprep.subr.mxu0 %v752
  %2950 = vmatpush1.msra.mxu0 %v751
  %2951 = vmatprep.subr.mxu0 %v756
  %2952 = vmatpush1.msra.mxu0 %v755
  %2953 = vmatprep.subr.mxu0 %v760
  %2954 = vmatpush1.msra.mxu0 %v759
  %2955 = vmatprep.subr.mxu0 %v764
  %2956 = vmatpush1.msra.mxu0 %v763
  %2957 = vmatprep.subr.mxu0 %v768
  %2958 = vmatpush1.msra.mxu0 %v767
  %2959 = vmatprep.subr.mxu0 %v772
  %2960 = vmatpush1.msra.mxu0 %v771
  %2961 = vmatprep.subr.mxu0 %v776
  %2962 = vmatpush1.msra.mxu0 %v775
  %2963 = vmatprep.subr.mxu0 %v780
  %2964 = vmatpush1.msra.mxu0 %v779
  %2965 = vmatprep.subr.mxu0 %v784
  %2966 = vmatpush1.msra.mxu0 %v783
  %2967 = vmatprep.subr.mxu0 %v788
  %2968 = vmatpush1.msra.mxu0 %v787
  %2969 = vmatprep.subr.mxu0 %v792
  %2970 = vmatpush1.msra.mxu0 %v791
  %2971 = vmatprep.subr.mxu0 %v796
  %2972 = vmatpush1.msra.mxu0 %v795
  %2973 = vmatprep.subr.mxu0 %v800
  %2974 = vmatpush1.msra.mxu0 %v799
  %2975 = vmatprep.subr.mxu0 %v804
  %2976 = vmatpush1.msra.mxu0 %v803
  %2977 = vmatprep.subr.mxu0 %v808
  %2978 = vmatpush1.msra.mxu0 %v807
  %2979 = vmatprep.subr.mxu0 %v812
  %2980 = vmatpush1.msra.mxu0 %v811
  %2981 = vmatprep.mubr.f32.mxu0 %v31
  %2982 = vmatmul.mubr.f32.gmra.mrb[0].mxu0 %v30
  %v2983 = vpop.f32.mrb[0].mxu0
  %v2984 = vadd.f32 %v2913, %v2983
  %v2985 = vpop.f32.mrb[0].mxu0
  %v2986 = vadd.f32 %v2915, %v2985
  %2987 = vdwg.mxu0
  %2988 = vmatprep.subr.mxu0 %v816
  %2989 = vmatpush1.msra.mxu0 %v815
  %2990 = vmatprep.subr.mxu0 %v820
  %2991 = vmatpush1.msra.mxu0 %v819
  %2992 = vmatprep.subr.mxu0 %v824
  %2993 = vmatpush1.msra.mxu0 %v823
  %2994 = vmatprep.subr.mxu0 %v828
  %2995 = vmatpush1.msra.mxu0 %v827
  %2996 = vmatprep.subr.mxu0 %v832
  %2997 = vmatpush1.msra.mxu0 %v831
  %2998 = vmatprep.subr.mxu0 %v836
  %2999 = vmatpush1.msra.mxu0 %v835
  %3000 = vmatprep.subr.mxu0 %v840
  %3001 = vmatpush1.msra.mxu0 %v839
  %3002 = vmatprep.subr.mxu0 %v844
  %3003 = vmatpush1.msra.mxu0 %v843
  %3004 = vmatprep.subr.mxu0 %v848
  %3005 = vmatpush1.msra.mxu0 %v847
  %3006 = vmatprep.subr.mxu0 %v852
  %3007 = vmatpush1.msra.mxu0 %v851
  %3008 = vmatprep.subr.mxu0 %v856
  %3009 = vmatpush1.msra.mxu0 %v855
  %3010 = vmatprep.subr.mxu0 %v860
  %3011 = vmatpush1.msra.mxu0 %v859
  %3012 = vmatprep.subr.mxu0 %v864
  %3013 = vmatpush1.msra.mxu0 %v863
  %3014 = vmatprep.subr.mxu0 %v868
  %3015 = vmatpush1.msra.mxu0 %v867
  %3016 = vmatprep.subr.mxu0 %v872
  %3017 = vmatpush1.msra.mxu0 %v871
  %3018 = vmatprep.subr.mxu0 %v876
  %3019 = vmatpush1.msra.mxu0 %v875
  %3020 = vmatprep.subr.mxu0 %v880
  %3021 = vmatpush1.msra.mxu0 %v879
  %3022 = vmatprep.subr.mxu0 %v884
  %3023 = vmatpush1.msra.mxu0 %v883
  %3024 = vmatprep.subr.mxu0 %v888
  %3025 = vmatpush1.msra.mxu0 %v887
  %3026 = vmatprep.subr.mxu0 %v892
  %3027 = vmatpush1.msra.mxu0 %v891
  %3028 = vmatprep.subr.mxu0 %v896
  %3029 = vmatpush1.msra.mxu0 %v895
  %3030 = vmatprep.subr.mxu0 %v900
  %3031 = vmatpush1.msra.mxu0 %v899
  %3032 = vmatprep.subr.mxu0 %v904
  %3033 = vmatpush1.msra.mxu0 %v903
  %3034 = vmatprep.subr.mxu0 %v908
  %3035 = vmatpush1.msra.mxu0 %v907
  %3036 = vmatprep.subr.mxu0 %v912
  %3037 = vmatpush1.msra.mxu0 %v911
  %3038 = vmatprep.subr.mxu0 %v916
  %3039 = vmatpush1.msra.mxu0 %v915
  %3040 = vmatprep.subr.mxu0 %v920
  %3041 = vmatpush1.msra.mxu0 %v919
  %3042 = vmatprep.subr.mxu0 %v924
  %3043 = vmatpush1.msra.mxu0 %v923
  %3044 = vmatprep.subr.mxu0 %v928
  %3045 = vmatpush1.msra.mxu0 %v927
  %3046 = vmatprep.subr.mxu0 %v932
  %3047 = vmatpush1.msra.mxu0 %v931
  %3048 = vmatprep.subr.mxu0 %v936
  %3049 = vmatpush1.msra.mxu0 %v935
  %3050 = vmatprep.subr.mxu0 %v940
  %3051 = vmatpush1.msra.mxu0 %v939
  %3052 = vmatprep.mubr.f32.mxu0 %v33
  %3053 = vmatmul.mubr.f32.gmra.mrb[0].mxu0 %v32
  %v3054 = vpop.f32.mrb[0].mxu0
  %v3055 = vadd.f32 %v2984, %v3054
  %v3056 = vpop.f32.mrb[0].mxu0
  %v3057 = vadd.f32 %v2986, %v3056
  %3058 = vdwg.mxu0
  %3059 = vmatprep.subr.mxu0 %v944
  %3060 = vmatpush1.msra.mxu0 %v943
  %3061 = vmatprep.subr.mxu0 %v948
  %3062 = vmatpush1.msra.mxu0 %v947
  %3063 = vmatprep.subr.mxu0 %v952
  %3064 = vmatpush1.msra.mxu0 %v951
  %3065 = vmatprep.subr.mxu0 %v956
  %3066 = vmatpush1.msra.mxu0 %v955
  %3067 = vmatprep.subr.mxu0 %v960
  %3068 = vmatpush1.msra.mxu0 %v959
  %3069 = vmatprep.subr.mxu0 %v964
  %3070 = vmatpush1.msra.mxu0 %v963
  %3071 = vmatprep.subr.mxu0 %v968
  %3072 = vmatpush1.msra.mxu0 %v967
  %3073 = vmatprep.subr.mxu0 %v972
  %3074 = vmatpush1.msra.mxu0 %v971
  %3075 = vmatprep.subr.mxu0 %v976
  %3076 = vmatpush1.msra.mxu0 %v975
  %3077 = vmatprep.subr.mxu0 %v980
  %3078 = vmatpush1.msra.mxu0 %v979
  %3079 = vmatprep.subr.mxu0 %v984
  %3080 = vmatpush1.msra.mxu0 %v983
  %3081 = vmatprep.subr.mxu0 %v988
  %3082 = vmatpush1.msra.mxu0 %v987
  %3083 = vmatprep.subr.mxu0 %v992
  %3084 = vmatpush1.msra.mxu0 %v991
  %3085 = vmatprep.subr.mxu0 %v996
  %3086 = vmatpush1.msra.mxu0 %v995
  %3087 = vmatprep.subr.mxu0 %v1000
  %3088 = vmatpush1.msra.mxu0 %v999
  %3089 = vmatprep.subr.mxu0 %v1004
  %3090 = vmatpush1.msra.mxu0 %v1003
  %3091 = vmatprep.subr.mxu0 %v1008
  %3092 = vmatpush1.msra.mxu0 %v1007
  %3093 = vmatprep.subr.mxu0 %v1012
  %3094 = vmatpush1.msra.mxu0 %v1011
  %3095 = vmatprep.subr.mxu0 %v1016
  %3096 = vmatpush1.msra.mxu0 %v1015
  %3097 = vmatprep.subr.mxu0 %v1020
  %3098 = vmatpush1.msra.mxu0 %v1019
  %3099 = vmatprep.subr.mxu0 %v1024
  %3100 = vmatpush1.msra.mxu0 %v1023
  %3101 = vmatprep.subr.mxu0 %v1028
  %3102 = vmatpush1.msra.mxu0 %v1027
  %3103 = vmatprep.subr.mxu0 %v1032
  %3104 = vmatpush1.msra.mxu0 %v1031
  %3105 = vmatprep.subr.mxu0 %v1036
  %3106 = vmatpush1.msra.mxu0 %v1035
  %3107 = vmatprep.subr.mxu0 %v1040
  %3108 = vmatpush1.msra.mxu0 %v1039
  %3109 = vmatprep.subr.mxu0 %v1044
  %3110 = vmatpush1.msra.mxu0 %v1043
  %3111 = vmatprep.subr.mxu0 %v1048
  %3112 = vmatpush1.msra.mxu0 %v1047
  %3113 = vmatprep.subr.mxu0 %v1052
  %3114 = vmatpush1.msra.mxu0 %v1051
  %3115 = vmatprep.subr.mxu0 %v1056
  %3116 = vmatpush1.msra.mxu0 %v1055
  %3117 = vmatprep.subr.mxu0 %v1060
  %3118 = vmatpush1.msra.mxu0 %v1059
  %3119 = vmatprep.subr.mxu0 %v1064
  %3120 = vmatpush1.msra.mxu0 %v1063
  %3121 = vmatprep.subr.mxu0 %v1068
  %3122 = vmatpush1.msra.mxu0 %v1067
  %3123 = vmatprep.mubr.f32.mxu0 %v35
  %3124 = vmatmul.mubr.f32.gmra.mrb[0].mxu0 %v34
  %v3125 = vpop.f32.mrb[0].mxu0
  %v3126 = vadd.f32 %v3055, %v3125
  %v3127 = vpop.f32.mrb[0].mxu0
  %v3128 = vadd.f32 %v3057, %v3127
  %3129 = vdwg.mxu0
  %3130 = vmatprep.subr.mxu0 %v1072
  %3131 = vmatpush1.msra.mxu0 %v1071
  %3132 = vmatprep.subr.mxu0 %v1076
  %3133 = vmatpush1.msra.mxu0 %v1075
  %3134 = vmatprep.subr.mxu0 %v1080
  %3135 = vmatpush1.msra.mxu0 %v1079
  %3136 = vmatprep.subr.mxu0 %v1084
  %3137 = vmatpush1.msra.mxu0 %v1083
  %3138 = vmatprep.subr.mxu0 %v1088
  %3139 = vmatpush1.msra.mxu0 %v1087
  %3140 = vmatprep.subr.mxu0 %v1092
  %3141 = vmatpush1.msra.mxu0 %v1091
  %3142 = vmatprep.subr.mxu0 %v1096
  %3143 = vmatpush1.msra.mxu0 %v1095
  %3144 = vmatprep.subr.mxu0 %v1100
  %3145 = vmatpush1.msra.mxu0 %v1099
  %3146 = vmatprep.subr.mxu0 %v1104
  %3147 = vmatpush1.msra.mxu0 %v1103
  %3148 = vmatprep.subr.mxu0 %v1108
  %3149 = vmatpush1.msra.mxu0 %v1107
  %3150 = vmatprep.subr.mxu0 %v1112
  %3151 = vmatpush1.msra.mxu0 %v1111
  %3152 = vmatprep.subr.mxu0 %v1116
  %3153 = vmatpush1.msra.mxu0 %v1115
  %3154 = vmatprep.subr.mxu0 %v1120
  %3155 = vmatpush1.msra.mxu0 %v1119
  %3156 = vmatprep.subr.mxu0 %v1124
  %3157 = vmatpush1.msra.mxu0 %v1123
  %3158 = vmatprep.subr.mxu0 %v1128
  %3159 = vmatpush1.msra.mxu0 %v1127
  %3160 = vmatprep.subr.mxu0 %v1132
  %3161 = vmatpush1.msra.mxu0 %v1131
  %3162 = vmatprep.subr.mxu0 %v1136
  %3163 = vmatpush1.msra.mxu0 %v1135
  %3164 = vmatprep.subr.mxu0 %v1140
  %3165 = vmatpush1.msra.mxu0 %v1139
  %3166 = vmatprep.subr.mxu0 %v1144
  %3167 = vmatpush1.msra.mxu0 %v1143
  %3168 = vmatprep.subr.mxu0 %v1148
  %3169 = vmatpush1.msra.mxu0 %v1147
  %3170 = vmatprep.subr.mxu0 %v1152
  %3171 = vmatpush1.msra.mxu0 %v1151
  %3172 = vmatprep.subr.mxu0 %v1156
  %3173 = vmatpush1.msra.mxu0 %v1155
  %3174 = vmatprep.subr.mxu0 %v1160
  %3175 = vmatpush1.msra.mxu0 %v1159
  %3176 = vmatprep.subr.mxu0 %v1164
  %3177 = vmatpush1.msra.mxu0 %v1163
  %3178 = vmatprep.subr.mxu0 %v1168
  %3179 = vmatpush1.msra.mxu0 %v1167
  %3180 = vmatprep.subr.mxu0 %v1172
  %3181 = vmatpush1.msra.mxu0 %v1171
  %3182 = vmatprep.subr.mxu0 %v1176
  %3183 = vmatpush1.msra.mxu0 %v1175
  %3184 = vmatprep.subr.mxu0 %v1180
  %3185 = vmatpush1.msra.mxu0 %v1179
  %3186 = vmatprep.subr.mxu0 %v1184
  %3187 = vmatpush1.msra.mxu0 %v1183
  %3188 = vmatprep.subr.mxu0 %v1188
  %3189 = vmatpush1.msra.mxu0 %v1187
  %3190 = vmatprep.subr.mxu0 %v1192
  %3191 = vmatpush1.msra.mxu0 %v1191
  %3192 = vmatprep.subr.mxu0 %v1196
  %3193 = vmatpush1.msra.mxu0 %v1195
  %3194 = vmatprep.mubr.f32.mxu0 %v37
  %3195 = vmatmul.mubr.f32.gmra.mrb[0].mxu0 %v36
  %v3196 = vpop.f32.mrb[0].mxu0
  %v3197 = vadd.f32 %v3126, %v3196
  %v3198 = vpop.f32.mrb[0].mxu0
  %v3199 = vadd.f32 %v3128, %v3198
  %3200 = vdwg.mxu0
  %3201 = vmatprep.subr.mxu0 %v1200
  %3202 = vmatpush1.msra.mxu0 %v1199
  %3203 = vmatprep.subr.mxu0 %v1204
  %3204 = vmatpush1.msra.mxu0 %v1203
  %3205 = vmatprep.subr.mxu0 %v1208
  %3206 = vmatpush1.msra.mxu0 %v1207
  %3207 = vmatprep.subr.mxu0 %v1212
  %3208 = vmatpush1.msra.mxu0 %v1211
  %3209 = vmatprep.subr.mxu0 %v1216
  %3210 = vmatpush1.msra.mxu0 %v1215
  %3211 = vmatprep.subr.mxu0 %v1220
  %3212 = vmatpush1.msra.mxu0 %v1219
  %3213 = vmatprep.subr.mxu0 %v1224
  %3214 = vmatpush1.msra.mxu0 %v1223
  %3215 = vmatprep.subr.mxu0 %v1228
  %3216 = vmatpush1.msra.mxu0 %v1227
  %3217 = vmatprep.subr.mxu0 %v1232
  %3218 = vmatpush1.msra.mxu0 %v1231
  %3219 = vmatprep.subr.mxu0 %v1236
  %3220 = vmatpush1.msra.mxu0 %v1235
  %3221 = vmatprep.subr.mxu0 %v1240
  %3222 = vmatpush1.msra.mxu0 %v1239
  %3223 = vmatprep.subr.mxu0 %v1244
  %3224 = vmatpush1.msra.mxu0 %v1243
  %3225 = vmatprep.subr.mxu0 %v1248
  %3226 = vmatpush1.msra.mxu0 %v1247
  %3227 = vmatprep.subr.mxu0 %v1252
  %3228 = vmatpush1.msra.mxu0 %v1251
  %3229 = vmatprep.subr.mxu0 %v1256
  %3230 = vmatpush1.msra.mxu0 %v1255
  %3231 = vmatprep.subr.mxu0 %v1260
  %3232 = vmatpush1.msra.mxu0 %v1259
  %3233 = vmatprep.subr.mxu0 %v1264
  %3234 = vmatpush1.msra.mxu0 %v1263
  %3235 = vmatprep.subr.mxu0 %v1268
  %3236 = vmatpush1.msra.mxu0 %v1267
  %3237 = vmatprep.subr.mxu0 %v1272
  %3238 = vmatpush1.msra.mxu0 %v1271
  %3239 = vmatprep.subr.mxu0 %v1276
  %3240 = vmatpush1.msra.mxu0 %v1275
  %3241 = vmatprep.subr.mxu0 %v1280
  %3242 = vmatpush1.msra.mxu0 %v1279
  %3243 = vmatprep.subr.mxu0 %v1284
  %3244 = vmatpush1.msra.mxu0 %v1283
  %3245 = vmatprep.subr.mxu0 %v1288
  %3246 = vmatpush1.msra.mxu0 %v1287
  %3247 = vmatprep.subr.mxu0 %v1292
  %3248 = vmatpush1.msra.mxu0 %v1291
  %3249 = vmatprep.subr.mxu0 %v1296
  %3250 = vmatpush1.msra.mxu0 %v1295
  %3251 = vmatprep.subr.mxu0 %v1300
  %3252 = vmatpush1.msra.mxu0 %v1299
  %3253 = vmatprep.subr.mxu0 %v1304
  %3254 = vmatpush1.msra.mxu0 %v1303
  %3255 = vmatprep.subr.mxu0 %v1308
  %3256 = vmatpush1.msra.mxu0 %v1307
  %3257 = vmatprep.subr.mxu0 %v1312
  %3258 = vmatpush1.msra.mxu0 %v1311
  %3259 = vmatprep.subr.mxu0 %v1316
  %3260 = vmatpush1.msra.mxu0 %v1315
  %3261 = vmatprep.subr.mxu0 %v1320
  %3262 = vmatpush1.msra.mxu0 %v1319
  %3263 = vmatprep.subr.mxu0 %v1324
  %3264 = vmatpush1.msra.mxu0 %v1323
  %3265 = vmatprep.mubr.f32.mxu0 %v39
  %3266 = vmatmul.mubr.f32.gmra.mrb[0].mxu0 %v38
  %v3267 = vpop.f32.mrb[0].mxu0
  %v3268 = vadd.f32 %v3197, %v3267
  %v3269 = vpop.f32.mrb[0].mxu0
  %v3270 = vadd.f32 %v3199, %v3269
  %3271 = vdwg.mxu0
  %3272 = vmatprep.subr.mxu0 %v1328
  %3273 = vmatpush1.msra.mxu0 %v1327
  %3274 = vmatprep.subr.mxu0 %v1332
  %3275 = vmatpush1.msra.mxu0 %v1331
  %3276 = vmatprep.subr.mxu0 %v1336
  %3277 = vmatpush1.msra.mxu0 %v1335
  %3278 = vmatprep.subr.mxu0 %v1340
  %3279 = vmatpush1.msra.mxu0 %v1339
  %3280 = vmatprep.subr.mxu0 %v1344
  %3281 = vmatpush1.msra.mxu0 %v1343
  %3282 = vmatprep.subr.mxu0 %v1348
  %3283 = vmatpush1.msra.mxu0 %v1347
  %3284 = vmatprep.subr.mxu0 %v1352
  %3285 = vmatpush1.msra.mxu0 %v1351
  %3286 = vmatprep.subr.mxu0 %v1356
  %3287 = vmatpush1.msra.mxu0 %v1355
  %3288 = vmatprep.subr.mxu0 %v1360
  %3289 = vmatpush1.msra.mxu0 %v1359
  %3290 = vmatprep.subr.mxu0 %v1364
  %3291 = vmatpush1.msra.mxu0 %v1363
  %3292 = vmatprep.subr.mxu0 %v1368
  %3293 = vmatpush1.msra.mxu0 %v1367
  %3294 = vmatprep.subr.mxu0 %v1372
  %3295 = vmatpush1.msra.mxu0 %v1371
  %3296 = vmatprep.subr.mxu0 %v1376
  %3297 = vmatpush1.msra.mxu0 %v1375
  %3298 = vmatprep.subr.mxu0 %v1380
  %3299 = vmatpush1.msra.mxu0 %v1379
  %3300 = vmatprep.subr.mxu0 %v1384
  %3301 = vmatpush1.msra.mxu0 %v1383
  %3302 = vmatprep.subr.mxu0 %v1388
  %3303 = vmatpush1.msra.mxu0 %v1387
  %3304 = vmatprep.subr.mxu0 %v1392
  %3305 = vmatpush1.msra.mxu0 %v1391
  %3306 = vmatprep.subr.mxu0 %v1396
  %3307 = vmatpush1.msra.mxu0 %v1395
  %3308 = vmatprep.subr.mxu0 %v1400
  %3309 = vmatpush1.msra.mxu0 %v1399
  %3310 = vmatprep.subr.mxu0 %v1404
  %3311 = vmatpush1.msra.mxu0 %v1403
  %3312 = vmatprep.subr.mxu0 %v1408
  %3313 = vmatpush1.msra.mxu0 %v1407
  %3314 = vmatprep.subr.mxu0 %v1412
  %3315 = vmatpush1.msra.mxu0 %v1411
  %3316 = vmatprep.subr.mxu0 %v1416
  %3317 = vmatpush1.msra.mxu0 %v1415
  %3318 = vmatprep.subr.mxu0 %v1420
  %3319 = vmatpush1.msra.mxu0 %v1419
  %3320 = vmatprep.subr.mxu0 %v1424
  %3321 = vmatpush1.msra.mxu0 %v1423
  %3322 = vmatprep.subr.mxu0 %v1428
  %3323 = vmatpush1.msra.mxu0 %v1427
  %3324 = vmatprep.subr.mxu0 %v1432
  %3325 = vmatpush1.msra.mxu0 %v1431
  %3326 = vmatprep.subr.mxu0 %v1436
  %3327 = vmatpush1.msra.mxu0 %v1435
  %3328 = vmatprep.subr.mxu0 %v1440
  %3329 = vmatpush1.msra.mxu0 %v1439
  %3330 = vmatprep.subr.mxu0 %v1444
  %3331 = vmatpush1.msra.mxu0 %v1443
  %3332 = vmatprep.subr.mxu0 %v1448
  %3333 = vmatpush1.msra.mxu0 %v1447
  %3334 = vmatprep.subr.mxu0 %v1452
  %3335 = vmatpush1.msra.mxu0 %v1451
  %3336 = vmatprep.mubr.f32.mxu0 %v41
  %3337 = vmatmul.mubr.f32.gmra.mrb[0].mxu0 %v40
  %v3338 = vpop.f32.mrb[0].mxu0
  %v3339 = vadd.f32 %v3268, %v3338
  %v3340 = vpop.f32.mrb[0].mxu0
  %v3341 = vadd.f32 %v3270, %v3340
  %3342 = vdwg.mxu0
  %3343 = vmatprep.subr.mxu0 %v1456
  %3344 = vmatpush1.msra.mxu0 %v1455
  %3345 = vmatprep.subr.mxu0 %v1460
  %3346 = vmatpush1.msra.mxu0 %v1459
  %3347 = vmatprep.subr.mxu0 %v1464
  %3348 = vmatpush1.msra.mxu0 %v1463
  %3349 = vmatprep.subr.mxu0 %v1468
  %3350 = vmatpush1.msra.mxu0 %v1467
  %3351 = vmatprep.subr.mxu0 %v1472
  %3352 = vmatpush1.msra.mxu0 %v1471
  %3353 = vmatprep.subr.mxu0 %v1476
  %3354 = vmatpush1.msra.mxu0 %v1475
  %3355 = vmatprep.subr.mxu0 %v1480
  %3356 = vmatpush1.msra.mxu0 %v1479
  %3357 = vmatprep.subr.mxu0 %v1484
  %3358 = vmatpush1.msra.mxu0 %v1483
  %3359 = vmatprep.subr.mxu0 %v1488
  %3360 = vmatpush1.msra.mxu0 %v1487
  %3361 = vmatprep.subr.mxu0 %v1492
  %3362 = vmatpush1.msra.mxu0 %v1491
  %3363 = vmatprep.subr.mxu0 %v1496
  %3364 = vmatpush1.msra.mxu0 %v1495
  %3365 = vmatprep.subr.mxu0 %v1500
  %3366 = vmatpush1.msra.mxu0 %v1499
  %3367 = vmatprep.subr.mxu0 %v1504
  %3368 = vmatpush1.msra.mxu0 %v1503
  %3369 = vmatprep.subr.mxu0 %v1508
  %3370 = vmatpush1.msra.mxu0 %v1507
  %3371 = vmatprep.subr.mxu0 %v1512
  %3372 = vmatpush1.msra.mxu0 %v1511
  %3373 = vmatprep.subr.mxu0 %v1516
  %3374 = vmatpush1.msra.mxu0 %v1515
  %3375 = vmatprep.subr.mxu0 %v1520
  %3376 = vmatpush1.msra.mxu0 %v1519
  %3377 = vmatprep.subr.mxu0 %v1524
  %3378 = vmatpush1.msra.mxu0 %v1523
  %3379 = vmatprep.subr.mxu0 %v1528
  %3380 = vmatpush1.msra.mxu0 %v1527
  %3381 = vmatprep.subr.mxu0 %v1532
  %3382 = vmatpush1.msra.mxu0 %v1531
  %3383 = vmatprep.subr.mxu0 %v1536
  %3384 = vmatpush1.msra.mxu0 %v1535
  %3385 = vmatprep.subr.mxu0 %v1540
  %3386 = vmatpush1.msra.mxu0 %v1539
  %3387 = vmatprep.subr.mxu0 %v1544
  %3388 = vmatpush1.msra.mxu0 %v1543
  %3389 = vmatprep.subr.mxu0 %v1548
  %3390 = vmatpush1.msra.mxu0 %v1547
  %3391 = vmatprep.subr.mxu0 %v1552
  %3392 = vmatpush1.msra.mxu0 %v1551
  %3393 = vmatprep.subr.mxu0 %v1556
  %3394 = vmatpush1.msra.mxu0 %v1555
  %3395 = vmatprep.subr.mxu0 %v1560
  %3396 = vmatpush1.msra.mxu0 %v1559
  %3397 = vmatprep.subr.mxu0 %v1564
  %3398 = vmatpush1.msra.mxu0 %v1563
  %3399 = vmatprep.subr.mxu0 %v1568
  %3400 = vmatpush1.msra.mxu0 %v1567
  %3401 = vmatprep.subr.mxu0 %v1572
  %3402 = vmatpush1.msra.mxu0 %v1571
  %3403 = vmatprep.subr.mxu0 %v1576
  %3404 = vmatpush1.msra.mxu0 %v1575
  %3405 = vmatprep.subr.mxu0 %v1580
  %3406 = vmatpush1.msra.mxu0 %v1579
  %3407 = vmatprep.mubr.f32.mxu0 %v43
  %3408 = vmatmul.mubr.f32.gmra.mrb[0].mxu0 %v42
  %v3409 = vpop.f32.mrb[0].mxu0
  %v3410 = vadd.f32 %v3339, %v3409
  %v3411 = vpop.f32.mrb[0].mxu0
  %v3412 = vadd.f32 %v3341, %v3411
  %3413 = vdwg.mxu0
  %3414 = vmatprep.subr.mxu0 %v1584
  %3415 = vmatpush1.msra.mxu0 %v1583
  %3416 = vmatprep.subr.mxu0 %v1588
  %3417 = vmatpush1.msra.mxu0 %v1587
  %3418 = vmatprep.subr.mxu0 %v1592
  %3419 = vmatpush1.msra.mxu0 %v1591
  %3420 = vmatprep.subr.mxu0 %v1596
  %3421 = vmatpush1.msra.mxu0 %v1595
  %3422 = vmatprep.subr.mxu0 %v1600
  %3423 = vmatpush1.msra.mxu0 %v1599
  %3424 = vmatprep.subr.mxu0 %v1604
  %3425 = vmatpush1.msra.mxu0 %v1603
  %3426 = vmatprep.subr.mxu0 %v1608
  %3427 = vmatpush1.msra.mxu0 %v1607
  %3428 = vmatprep.subr.mxu0 %v1612
  %3429 = vmatpush1.msra.mxu0 %v1611
  %3430 = vmatprep.subr.mxu0 0.0
  %3431 = vmatpush1.msra.mxu0 0.0
  %3432 = vmatprep.subr.mxu0 0.0
  %3433 = vmatpush1.msra.mxu0 0.0
  %3434 = vmatprep.subr.mxu0 0.0
  %3435 = vmatpush1.msra.mxu0 0.0
  %3436 = vmatprep.subr.mxu0 0.0
  %3437 = vmatpush1.msra.mxu0 0.0
  %3438 = vmatprep.subr.mxu0 0.0
  %3439 = vmatpush1.msra.mxu0 0.0
  %3440 = vmatprep.subr.mxu0 0.0
  %3441 = vmatpush1.msra.mxu0 0.0
  %3442 = vmatprep.subr.mxu0 0.0
  %3443 = vmatpush1.msra.mxu0 0.0
  %3444 = vmatprep.subr.mxu0 0.0
  %3445 = vmatpush1.msra.mxu0 0.0
  %3446 = vmatprep.subr.mxu0 0.0
  %3447 = vmatpush1.msra.mxu0 0.0
  %3448 = vmatprep.subr.mxu0 0.0
  %3449 = vmatpush1.msra.mxu0 0.0
  %3450 = vmatprep.subr.mxu0 0.0
  %3451 = vmatpush1.msra.mxu0 0.0
  %3452 = vmatprep.subr.mxu0 0.0
  %3453 = vmatpush1.msra.mxu0 0.0
  %3454 = vmatprep.subr.mxu0 0.0
  %3455 = vmatpush1.msra.mxu0 0.0
  %3456 = vmatprep.subr.mxu0 0.0
  %3457 = vmatpush1.msra.mxu0 0.0
  %3458 = vmatprep.subr.mxu0 0.0
  %3459 = vmatpush1.msra.mxu0 0.0
  %3460 = vmatprep.subr.mxu0 0.0
  %3461 = vmatpush1.msra.mxu0 0.0
  %3462 = vmatprep.subr.mxu0 0.0
  %3463 = vmatpush1.msra.mxu0 0.0
  %3464 = vmatprep.subr.mxu0 0.0
  %3465 = vmatpush1.msra.mxu0 0.0
  %3466 = vmatprep.subr.mxu0 0.0
  %3467 = vmatpush1.msra.mxu0 0.0
  %3468 = vmatprep.subr.mxu0 0.0
  %3469 = vmatpush1.msra.mxu0 0.0
  %3470 = vmatprep.subr.mxu0 0.0
  %3471 = vmatpush1.msra.mxu0 0.0
  %3472 = vmatprep.subr.mxu0 0.0
  %3473 = vmatpush1.msra.mxu0 0.0
  %3474 = vmatprep.subr.mxu0 0.0
  %3475 = vmatpush1.msra.mxu0 0.0
  %3476 = vmatprep.subr.mxu0 0.0
  %3477 = vmatpush1.msra.mxu0 0.0
  %3478 = vmatprep.mubr.f32.mxu0 0.0
  %3479 = vmatmul.mubr.f32.gmra.mrb[0].mxu0 %v1637
  %v3480 = vpop.f32.mrb[0].mxu0
  %v3481 = vadd.f32 %v3410, %v3480
  %v3482 = vpop.f32.mrb[0].mxu0
  %v3483 = vadd.f32 %v3412, %v3482
  %3484 = vdwg.mxu0
  %v3485 = vmax.f32 %v2558, 0.0
  %v3486 = vmax.f32 %v2560, 0.0
  %v3487 = vmax.f32 %v3481, 0.0
  %v3488 = vmax.f32 %v3483, 0.0
  %v3489 = vld [vmem:[%s3] sm:$0xff]
  %v3490 = vld [vmem:[%s3 + $0x8] sm:$0xff]
  %v3491 = vld [vmem:[%s3 + $0x10] sm:$0xff]
  %v3492 = vld [vmem:[%s3 + $0x18] sm:$0xff]
  %v3493 = vld [vmem:[%s3 + $0x20] sm:$0xff]
  %v3494 = vld [vmem:[%s3 + $0x28] sm:$0xff]
  %v3495 = vld [vmem:[%s3 + $0x30] sm:$0xff]
  %v3496 = vld [vmem:[%s3 + $0x38] sm:$0xff]
  %v3497 = vld [vmem:[%s3 + $0x40] sm:$0xff]
  %v3498 = vld [vmem:[%s3 + $0x48] sm:$0xff]
  %v3499 = vld [vmem:[%s3 + $0x50] sm:$0xff]
  %v3500 = vld [vmem:[%s3 + $0x58] sm:$0xff]
  %v3501 = vld [vmem:[%s3 + $0x60] sm:$0xff]
  %v3502 = vld [vmem:[%s3 + $0x68] sm:$0xff]
  %v3503 = vld [vmem:[%s3 + $0x70] sm:$0xff]
  %v3504 = vld [vmem:[%s3 + $0x78] sm:$0xff]
  %v3505 = vld [vmem:[%s3 + $0x80] sm:$0xff]
  %v3506 = vld [vmem:[%s3 + $0x88] sm:$0xff]
  %v3507 = vld [vmem:[%s3 + $0x90] sm:$0xff]
  %v3508 = vld [vmem:[%s3 + $0x98] sm:$0xff]
  %v3509 = vld [vmem:[%s3 + $0xa0] sm:$0xff]
  %v3510 = vld [vmem:[%s3 + $0xa8] sm:$0xff]
  %v3511 = vld [vmem:[%s3 + $0xb0] sm:$0xff]
  %v3512 = vld [vmem:[%s3 + $0xb8] sm:$0xff]
  %v3513 = vld [vmem:[%s3 + $0xc0] sm:$0xff]
  %v3514 = vld [vmem:[%s3 + $0xc8] sm:$0xff]
  %v3515 = vld [vmem:[%s3 + $0xd0] sm:$0xff]
  %v3516 = vld [vmem:[%s3 + $0xd8] sm:$0xff]
  %v3517 = vld [vmem:[%s3 + $0xe0] sm:$0xff]
  %v3518 = vld [vmem:[%s3 + $0xe8] sm:$0xff]
  %v3519 = vld [vmem:[%s3 + $0xf0] sm:$0xff]
  %v3520 = vld [vmem:[%s3 + $0xf8] sm:$0xff]
  %v3521 = vld [vmem:[%s3 + $0x100] sm:$0xff]
  %v3522 = vld [vmem:[%s3 + $0x108] sm:$0xff]
  %v3523 = vld [vmem:[%s3 + $0x110] sm:$0xff]
  %v3524 = vld [vmem:[%s3 + $0x118] sm:$0xff]
  %v3525 = vld [vmem:[%s3 + $0x120] sm:$0xff]
  %v3526 = vld [vmem:[%s3 + $0x128] sm:$0xff]
  %v3527 = vld [vmem:[%s3 + $0x130] sm:$0xff]
  %v3528 = vld [vmem:[%s3 + $0x138] sm:$0xff]
  %v3529 = vld [vmem:[%s3 + $0x140] sm:$0xff]
  %v3530 = vld [vmem:[%s3 + $0x148] sm:$0xff]
  %v3531 = vld [vmem:[%s3 + $0x150] sm:$0xff]
  %v3532 = vld [vmem:[%s3 + $0x158] sm:$0xff]
  %v3533 = vld [vmem:[%s3 + $0x160] sm:$0xff]
  %v3534 = vld [vmem:[%s3 + $0x168] sm:$0xff]
  %v3535 = vld [vmem:[%s3 + $0x170] sm:$0xff]
  %v3536 = vld [vmem:[%s3 + $0x178] sm:$0xff]
  %v3537 = vld [vmem:[%s3 + $0x180] sm:$0xff]
  %v3538 = vld [vmem:[%s3 + $0x188] sm:$0xff]
  %v3539 = vld [vmem:[%s3 + $0x190] sm:$0xff]
  %v3540 = vld [vmem:[%s3 + $0x198] sm:$0xff]
  %v3541 = vld [vmem:[%s3 + $0x1a0] sm:$0xff]
  %v3542 = vld [vmem:[%s3 + $0x1a8] sm:$0xff]
  %v3543 = vld [vmem:[%s3 + $0x1b0] sm:$0xff]
  %v3544 = vld [vmem:[%s3 + $0x1b8] sm:$0xff]
  %v3545 = vld [vmem:[%s3 + $0x1c0] sm:$0xff]
  %v3546 = vld [vmem:[%s3 + $0x1c8] sm:$0xff]
  %v3547 = vld [vmem:[%s3 + $0x1d0] sm:$0xff]
  %v3548 = vld [vmem:[%s3 + $0x1d8] sm:$0xff]
  %v3549 = vld [vmem:[%s3 + $0x1e0] sm:$0xff]
  %v3550 = vld [vmem:[%s3 + $0x1e8] sm:$0xff]
  %v3551 = vld [vmem:[%s3 + $0x1f0] sm:$0xff]
  %v3552 = vld [vmem:[%s3 + $0x1f8] sm:$0xff]
  %v3553 = vld [vmem:[%s4] sm:$0x1]
  %v3555 = vlaneseq
  %v3556 = vshrl.u32 %v3555, 7
  %v3557 = vsub.s32 0, %v3556
  %v3558 = vrot.slane %v3553, %v3557
  %3560 = vmatprep.subr.mxu0 0.0
  %3561 = vmatpush1.msra.mxu0 %v3489
  %3562 = vmatprep.subr.mxu0 0.0
  %3563 = vmatpush1.msra.mxu0 %v3490
  %3564 = vmatprep.subr.mxu0 0.0
  %3565 = vmatpush1.msra.mxu0 %v3491
  %3566 = vmatprep.subr.mxu0 0.0
  %3567 = vmatpush1.msra.mxu0 %v3492
  %3568 = vmatprep.subr.mxu0 0.0
  %3569 = vmatpush1.msra.mxu0 %v3493
  %3570 = vmatprep.subr.mxu0 0.0
  %3571 = vmatpush1.msra.mxu0 %v3494
  %3572 = vmatprep.subr.mxu0 0.0
  %3573 = vmatpush1.msra.mxu0 %v3495
  %3574 = vmatprep.subr.mxu0 0.0
  %3575 = vmatpush1.msra.mxu0 %v3496
  %3576 = vmatprep.subr.mxu0 0.0
  %3577 = vmatpush1.msra.mxu0 %v3497
  %3578 = vmatprep.subr.mxu0 0.0
  %3579 = vmatpush1.msra.mxu0 %v3498
  %3580 = vmatprep.subr.mxu0 0.0
  %3581 = vmatpush1.msra.mxu0 %v3499
  %3582 = vmatprep.subr.mxu0 0.0
  %3583 = vmatpush1.msra.mxu0 %v3500
  %3584 = vmatprep.subr.mxu0 0.0
  %3585 = vmatpush1.msra.mxu0 %v3501
  %3586 = vmatprep.subr.mxu0 0.0
  %3587 = vmatpush1.msra.mxu0 %v3502
  %3588 = vmatprep.subr.mxu0 0.0
  %3589 = vmatpush1.msra.mxu0 %v3503
  %3590 = vmatprep.subr.mxu0 0.0
  %3591 = vmatpush1.msra.mxu0 %v3504
  %3592 = vmatprep.subr.mxu0 0.0
  %3593 = vmatpush1.msra.mxu0 %v3505
  %3594 = vmatprep.subr.mxu0 0.0
  %3595 = vmatpush1.msra.mxu0 %v3506
  %3596 = vmatprep.subr.mxu0 0.0
  %3597 = vmatpush1.msra.mxu0 %v3507
  %3598 = vmatprep.subr.mxu0 0.0
  %3599 = vmatpush1.msra.mxu0 %v3508
  %3600 = vmatprep.subr.mxu0 0.0
  %3601 = vmatpush1.msra.mxu0 %v3509
  %3602 = vmatprep.subr.mxu0 0.0
  %3603 = vmatpush1.msra.mxu0 %v3510
  %3604 = vmatprep.subr.mxu0 0.0
  %3605 = vmatpush1.msra.mxu0 %v3511
  %3606 = vmatprep.subr.mxu0 0.0
  %3607 = vmatpush1.msra.mxu0 %v3512
  %3608 = vmatprep.subr.mxu0 0.0
  %3609 = vmatpush1.msra.mxu0 %v3513
  %3610 = vmatprep.subr.mxu0 0.0
  %3611 = vmatpush1.msra.mxu0 %v3514
  %3612 = vmatprep.subr.mxu0 0.0
  %3613 = vmatpush1.msra.mxu0 %v3515
  %3614 = vmatprep.subr.mxu0 0.0
  %3615 = vmatpush1.msra.mxu0 %v3516
  %3616 = vmatprep.subr.mxu0 0.0
  %3617 = vmatpush1.msra.mxu0 %v3517
  %3618 = vmatprep.subr.mxu0 0.0
  %3619 = vmatpush1.msra.mxu0 %v3518
  %3620 = vmatprep.subr.mxu0 0.0
  %3621 = vmatpush1.msra.mxu0 %v3519
  %3622 = vmatprep.subr.mxu0 0.0
  %3623 = vmatpush1.msra.mxu0 %v3520
  %3624 = vmatprep.mubr.f32.mxu0 %v3486
  %3625 = vmatmul.mubr.f32.gmra.mrb[0].mxu0 %v3485
  %v3626 = vpop.f32.mrb[0].mxu0
  %v3627 = vadd.f32 %v3558, %v3626
  %v3628 = vpop.f32.mrb[0].mxu0
  %3629 = vdwg.mxu0
  %3630 = vmatprep.subr.mxu0 0.0
  %3631 = vmatpush1.msra.mxu0 %v3521
  %3632 = vmatprep.subr.mxu0 0.0
  %3633 = vmatpush1.msra.mxu0 %v3522
  %3634 = vmatprep.subr.mxu0 0.0
  %3635 = vmatpush1.msra.mxu0 %v3523
  %3636 = vmatprep.subr.mxu0 0.0
  %3637 = vmatpush1.msra.mxu0 %v3524
  %3638 = vmatprep.subr.mxu0 0.0
  %3639 = vmatpush1.msra.mxu0 %v3525
  %3640 = vmatprep.subr.mxu0 0.0
  %3641 = vmatpush1.msra.mxu0 %v3526
  %3642 = vmatprep.subr.mxu0 0.0
  %3643 = vmatpush1.msra.mxu0 %v3527
  %3644 = vmatprep.subr.mxu0 0.0
  %3645 = vmatpush1.msra.mxu0 %v3528
  %3646 = vmatprep.subr.mxu0 0.0
  %3647 = vmatpush1.msra.mxu0 %v3529
  %3648 = vmatprep.subr.mxu0 0.0
  %3649 = vmatpush1.msra.mxu0 %v3530
  %3650 = vmatprep.subr.mxu0 0.0
  %3651 = vmatpush1.msra.mxu0 %v3531
  %3652 = vmatprep.subr.mxu0 0.0
  %3653 = vmatpush1.msra.mxu0 %v3532
  %3654 = vmatprep.subr.mxu0 0.0
  %3655 = vmatpush1.msra.mxu0 %v3533
  %3656 = vmatprep.subr.mxu0 0.0
  %3657 = vmatpush1.msra.mxu0 %v3534
  %3658 = vmatprep.subr.mxu0 0.0
  %3659 = vmatpush1.msra.mxu0 %v3535
  %3660 = vmatprep.subr.mxu0 0.0
  %3661 = vmatpush1.msra.mxu0 %v3536
  %3662 = vmatprep.subr.mxu0 0.0
  %3663 = vmatpush1.msra.mxu0 %v3537
  %3664 = vmatprep.subr.mxu0 0.0
  %3665 = vmatpush1.msra.mxu0 %v3538
  %3666 = vmatprep.subr.mxu0 0.0
  %3667 = vmatpush1.msra.mxu0 %v3539
  %3668 = vmatprep.subr.mxu0 0.0
  %3669 = vmatpush1.msra.mxu0 %v3540
  %3670 = vmatprep.subr.mxu0 0.0
  %3671 = vmatpush1.msra.mxu0 %v3541
  %3672 = vmatprep.subr.mxu0 0.0
  %3673 = vmatpush1.msra.mxu0 %v3542
  %3674 = vmatprep.subr.mxu0 0.0
  %3675 = vmatpush1.msra.mxu0 %v3543
  %3676 = vmatprep.subr.mxu0 0.0
  %3677 = vmatpush1.msra.mxu0 %v3544
  %3678 = vmatprep.subr.mxu0 0.0
  %3679 = vmatpush1.msra.mxu0 %v3545
  %3680 = vmatprep.subr.mxu0 0.0
  %3681 = vmatpush1.msra.mxu0 %v3546
  %3682 = vmatprep.subr.mxu0 0.0
  %3683 = vmatpush1.msra.mxu0 %v3547
  %3684 = vmatprep.subr.mxu0 0.0
  %3685 = vmatpush1.msra.mxu0 %v3548
  %3686 = vmatprep.subr.mxu0 0.0
  %3687 = vmatpush1.msra.mxu0 %v3549
  %3688 = vmatprep.subr.mxu0 0.0
  %3689 = vmatpush1.msra.mxu0 %v3550
  %3690 = vmatprep.subr.mxu0 0.0
  %3691 = vmatpush1.msra.mxu0 %v3551
  %3692 = vmatprep.subr.mxu0 0.0
  %3693 = vmatpush1.msra.mxu0 %v3552
  %3694 = vmatprep.mubr.f32.mxu0 %v3488
  %3695 = vmatmul.mubr.f32.gmra.mrb[0].mxu0 %v3487
  %v3696 = vpop.f32.mrb[0].mxu0
  %v3697 = vadd.f32 %v3627, %v3696
  %v3698 = vpop.f32.mrb[0].mxu0
  %3699 = vdwg.mxu0
  %vm3700 = vcmask 130048
  %3701 = vst.msk [vmem:[%s5] sm:$0xff] %vm3700, %v3697
  // Predicated region
  $region22: #{actor_forward.7} parent=0 // pred_check
    _
  $region23: #{actor_forward.7} parent=0 // pred_check_branch
    %3703 = sbr.rel (0) target = $region25
  $region24: #{actor_forward.7} parent=0 // pred_region
    _
  $region25: #{actor_forward.7} parent=0 // pred_fallthru
    _
  // Predicated region
  $region26: #{actor_forward.7} parent=0 // pred_check
    _
  $region27: #{actor_forward.7} parent=0 // pred_check_branch
    %3705 = sbr.rel (0) target = $region29
  $region28: #{actor_forward.7} parent=0 // pred_region
    _
  $region29: #{actor_forward.7} parent=0 // pred_fallthru
    _

</llo_original>
